<compile_context>
chip_gen: v6e
topology: v6e:2x2x1
jax: 0.10.0
libtpu: 0.0.40
codegen_flags: <defaults>
</compile_context>

<pallas_src>
import numpy as np
import jax
import jax.numpy as jnp
from jax.experimental import pallas as pl
from jax.experimental.pallas import tpu as pltpu

SIGMA = 25.0       # marginal_prob_std(t) = sqrt((sigma^(2t) - 1) / (2 ln sigma))
EMBED_DIM = 64
T_DIM = 128


def _round_up(n, m):
    return ((n + m - 1) // m) * m


# ======================================================================
# Packed (kernel) math — shared between the Pallas kernel and a pure-JAX
# structural reference.  `slabs` / `bias` may be Pallas Refs or jnp arrays;
# only static slicing is used.
# ======================================================================
def _packed_scorenet_math(x, cond, four, inv_std, slabs, bias, layout):
    wlay, blay = layout["w"], layout["b"]
    f32, bf16 = jnp.float32, jnp.bfloat16

    def silu(v):
        return v * jax.nn.sigmoid(v)

    def bias_of(name):
        row, width = blay[name]
        return bias[row:row + 1, :width]

    def matmul(a, w):
        return jnp.dot(a.astype(bf16), w, preferred_element_type=f32)

    def lin(a, name):
        slab, off, rows = wlay[name]
        return matmul(a, slabs[slab][off:off + rows, :]) + bias_of(name)

    def lin_segs(segs, name):
        # y = concat(segs, -1) @ W + b, computed as split matmuls (no concat).
        slab, off, _ = wlay[name]
        ref = slabs[slab]
        acc, o = None, off
        for s in segs:
            r = s.shape[-1]
            p = matmul(s, ref[o:o + r, :])
            acc = p if acc is None else acc + p
            o += r
        return acc + bias_of(name)

    # --- embedding of t and condition ------------------------------------
    embed_t = lin(four, "embed")                 # (B, 128); cols >=64 are zero
    embed_c = silu(lin(cond, "pre"))             # (B, 128); cols >=64 are zero

    def sort_t(z):                               # Linear -> SiLU -> Linear
        return lin(silu(lin(z, "sort1")), "sort2")

    et = sort_t(embed_t)                         # (B, 128)
    ec = sort_t(embed_c)                         # (B, 128)
    # Hoisted SiLU + fused time/cond MLP input (one lane concat, done once).
    tc = jnp.concatenate([silu(et), silu(ec)], axis=-1)          # (B, 256)

    # --- residual blocks --------------------------------------------------
    def res_block(segs, pfx, identity_skip):
        h1 = silu(lin_segs(segs, pfx + ".d1")) + lin(tc, pfx + ".tc")
        h2 = silu(lin(h1, pfx + ".d2"))
        if not identity_skip:
            return [h2 + lin_segs(segs, pfx + ".m")]
        outs, o = [], 0
        for s in segs:                           # h2 + concat(segs), columnwise
            w = s.shape[-1]
            outs.append(h2[:, o:o + w] + s)
            o += w
        return outs

    (d1,) = res_block([x], "rb1", False)                 # (B, 512)
    (d2,) = res_block([d1], "rb2", False)                # (B, 256)
    (d3,) = res_block([d2], "rb3", False)                # (B, 128)
    (u3,) = res_block([d3], "mid", True)                 # (B, 128)
    u2 = res_block([d3, u3], "up3", True)                # [(B,128),(B,128)]
    u1 = res_block([d2] + u2, "up2", True)               # [(B,256),(B,128),(B,128)]
    h = lin_segs([d1] + u1, "last")                      # (B, 128); cols>=odim zero
    return h * inv_std                                   # (B,1) lane-broadcast


def _make_scorenet_kernel(layout):
    def kernel(x_ref, cond_ref, four_ref, istd_ref,
               w128_ref, w256_ref, w512_ref, bias_ref, out_ref):
        slabs = {"w128": w128_ref, "w256": w256_ref, "w512": w512_ref}
        out_ref[...] = _packed_scorenet_math(
            x_ref[...], cond_ref[...], four_ref[...], istd_ref[...],
            slabs, bias_ref, layout)
    return kernel


# ======================================================================
# Parameter packing (done once at init, host-side numpy)
# ======================================================================
def pack_scorenet_params(params):
    g = lambda a: np.asarray(a, np.float32)
    entries = []  # (name, slab_key, weight[rows, cols<=width], bias[cols])

    def add(name, slab, w, b, row_pad=None):
        w, b = g(w), g(b).reshape(-1)
        if row_pad is not None and w.shape[0] < row_pad:
            w = np.pad(w, ((0, row_pad - w.shape[0]), (0, 0)))
        entries.append((name, slab, w, b))

    def add_rb(pfx, slab, rb):
        add(pfx + ".d1", slab, rb["d1_w"], rb["d1_b"])
        # fuse time_mlp + cond_mlp: rows = [t_w ; c_w], bias = t_b + c_b
        add(pfx + ".tc", slab,
            np.concatenate([g(rb["t_w"]), g(rb["c_w"])], axis=0),
            g(rb["t_b"]) + g(rb["c_b"]))
        add(pfx + ".d2", slab, rb["d2_w"], rb["d2_b"])
        if "m_w" in rb:
            add(pfx + ".m", slab, rb["m_w"], rb["m_b"])

    add("embed", "w128", params["embed_w"], params["embed_b"])      # cols 64->128 pad
    add("pre",   "w128", params["pre_w"],   params["pre_b"])        # rows 11->16, cols->128
    add("sort1", "w128", params["sort1_w"], params["sort1_b"], row_pad=128)
    add("sort2", "w128", params["sort2_w"], params["sort2_b"])
    add_rb("rb1", "w512", params["rb1"])
    add_rb("rb2", "w256", params["rb2"])
    add_rb("rb3", "w128", params["rb3"])
    add_rb("mid", "w128", params["mid"])
    add_rb("up3", "w256", params["up3"])
    add_rb("up2", "w512", params["up2"])
    add("last", "w128", params["last_w"], params["last_b"])         # cols odim->128

    slab_width = {"w128": 128, "w256": 256, "w512": 512}
    bufs = {k: [] for k in slab_width}
    cursors = {k: 0 for k in slab_width}
    wlayout, blayout, brows = {}, {}, []
    for name, slab, w, b in entries:
        width = slab_width[slab]
        rows = _round_up(w.shape[0], 16)             # bf16 sublane-tile alignment
        buf = np.zeros((rows, width), np.float32)
        buf[:w.shape[0], :w.shape[1]] = w
        bufs[slab].append(buf)
        wlayout[name] = (slab, cursors[slab], rows)
        cursors[slab] += rows
        brow = np.zeros((512,), np.float32)
        brow[:b.shape[0]] = b
        blayout[name] = (len(brows), width)          # bias used at the slab width
        brows.append(brow)

    packed = {k: jnp.asarray(np.concatenate(v, axis=0), dtype=jnp.bfloat16)
              for k, v in bufs.items()}
    nb = _round_up(len(brows), 8)
    bias = np.zeros((nb, 512), np.float32)
    bias[:len(brows)] = np.stack(brows)
    packed["bias"] = jnp.asarray(bias)
    packed["gfp_w"] = jnp.asarray(g(params["gfp_w"]))
    layout = {"w": wlayout, "b": blayout}
    return packed, layout


# ======================================================================
# Forward wrapper
# ======================================================================
def _glue_inputs(packed, x, t, condition):
    """Pad features, build Fourier features of t and 1/std (all cheap XLA glue)."""
    B, odim = x.shape
    sdim = condition.shape[1]
    t2 = t.reshape(B, 1).astype(jnp.float32)
    x_pad = jnp.pad(x.astype(jnp.float32), ((0, 0), (0, _round_up(odim, 16) - odim)))
    c_pad = jnp.pad(condition.astype(jnp.float32),
                    ((0, 0), (0, _round_up(sdim, 16) - sdim)))
    x_proj = t2 * packed["gfp_w"] * (2.0 * np.pi)
    fourier = jnp.concatenate([jnp.sin(x_proj), jnp.cos(x_proj)], axis=-1)   # (B,64)
    log_s = float(np.log(SIGMA))
    # NB: caller must keep t bounded away from 0 (std -> 0), as the sampler does.
    inv_std = jax.lax.rsqrt((jnp.exp(2.0 * t2 * log_s) - 1.0) / (2.0 * log_s))
    return x_pad, c_pad, fourier, inv_std


def make_scorenet_forward(layout):
    kernel = _make_scorenet_kernel(layout)

    @jax.jit
    def forward(packed, x, t, condition):
        B0, odim = x.shape
        # Batch tile: whole (sublane-padded) batch when small, 128-row tiles
        # otherwise.  Grid streams batch tiles while weights stay VMEM-resident.
        TB = 128 if B0 > 128 else _round_up(max(B0, 8), 8)
        B = _round_up(B0, TB)
        if B != B0:                       # pad batch to a whole number of tiles
            pad = B - B0
            x = jnp.pad(x, ((0, pad), (0, 0)))
            condition = jnp.pad(condition, ((0, pad), (0, 0)))
            t = jnp.pad(t.reshape(B0), ((0, pad),), constant_values=1.0)
        x16, cond16, fourier, inv_std = _glue_inputs(packed, x, t, condition)

        w128, w256, w512, bias = (packed[k] for k in ("w128", "w256", "w512", "bias"))
        param_bytes = sum(int(a.size) * a.dtype.itemsize
                          for a in (w128, w256, w512, bias))

        def tile_spec(width):             # streamed per-batch-tile operands
            return pl.BlockSpec((TB, width), lambda i: (i, 0))

        def resident_spec(arr):           # constant index -> fetched once, stays in VMEM
            return pl.BlockSpec(arr.shape, lambda i: (0, 0))

        grid_spec = pltpu.PrefetchScalarGridSpec(
            num_scalar_prefetch=0,
            grid=(B // TB,),
            in_specs=[tile_spec(x16.shape[1]),
                      tile_spec(cond16.shape[1]),
                      tile_spec(fourier.shape[1]),
                      tile_spec(1),
                      resident_spec(w128), resident_spec(w256),
                      resident_spec(w512), resident_spec(bias)],
            out_specs=pl.BlockSpec((TB, 128), lambda i: (i, 0)),   # lane-dense out
        )
        out = pl.pallas_call(
            kernel,
            out_shape=jax.ShapeDtypeStruct((B, 128), jnp.float32),
            grid_spec=grid_spec,
            compiler_params=pltpu.CompilerParams(
                dimension_semantics=("parallel",),
                vmem_limit_bytes=2 * param_bytes + (16 << 20)),
        )(x16, cond16, fourier, inv_std, w128, w256, w512, bias)
        return out[:B0, :odim]

    return forward


# ======================================================================
# References
# ======================================================================
def scorenet_packed_reference(packed, layout, x, t, condition):
    """Pure-JAX run of the exact packed/bf16 kernel math (structural check)."""
    B, odim = x.shape
    x16, cond16, fourier, inv_std = _glue_inputs(packed, x, t, condition)
    slabs = {k: packed[k] for k in ("w128", "w256", "w512")}
    h = _packed_scorenet_math(x16, cond16, fourier, inv_std,
                              slabs, packed["bias"], layout)
    return h[:, :odim]


def _silu(x):
    return x * jax.nn.sigmoid(x)


def _linear(x, w, b):
    return jnp.dot(x, w, preferred_element_type=jnp.float32) + b


def _residual_block(x, et, ec, p):
    h1 = _silu(_linear(x, p["d1_w"], p["d1_b"]))
    h1 = h1 + _linear(_silu(et), p["t_w"], p["t_b"])
    h1 = h1 + _linear(_silu(ec), p["c_w"], p["c_b"])
    h2 = _silu(_linear(h1, p["d2_w"], p["d2_b"]))
    skip = _linear(x, p["m_w"], p["m_b"]) if "m_w" in p else x
    return h2 + skip


def scorenet_reference(params, x, t, condition):
    """f32 mirror of the original PyTorch ScoreNet.forward (semantic check)."""
    B = x.shape[0]
    t2 = t.reshape(B, 1).astype(jnp.float32)
    x_proj = t2 * params["gfp_w"] * (2.0 * np.pi)
    fourier = jnp.concatenate([jnp.sin(x_proj), jnp.cos(x_proj)], axis=-1)
    P = params
    embed_t = _linear(fourier, P["embed_w"], P["embed_b"])
    embed_c = _silu(_linear(condition, P["pre_w"], P["pre_b"]))

    def sort_t(z):
        return _linear(_silu(_linear(z, P["sort1_w"], P["sort1_b"])),
                       P["sort2_w"], P["sort2_b"])

    et, ec = sort_t(embed_t), sort_t(embed_c)
    d1 = _residual_block(x, et, ec, P["rb1"])
    d2 = _residual_block(d1, et, ec, P["rb2"])
    d3 = _residual_block(d2, et, ec, P["rb3"])
    u3 = _residual_block(d3, et, ec, P["mid"])
    u2 = _residual_block(jnp.concatenate([d3, u3], -1), et, ec, P["up3"])
    u1 = _residual_block(jnp.concatenate([d2, u2], -1), et, ec, P["up2"])
    h = _linear(jnp.concatenate([d1, u1], -1), P["last_w"], P["last_b"])
    log_s = np.log(SIGMA)
    std = jnp.sqrt((jnp.exp(2.0 * t2 * log_s) - 1.0) / (2.0 * log_s))
    return h / std


# ======================================================================
# Parameter init (matches torch nn.Linear defaults; weights stored (in, out))
# ======================================================================
def _init_linear(key, fan_in, fan_out):
    kw, kb = jax.random.split(key)
    bound = 1.0 / np.sqrt(fan_in)
    w = jax.random.uniform(kw, (fan_in, fan_out), jnp.float32, -bound, bound)
    b = jax.random.uniform(kb, (1, fan_out), jnp.float32, -bound, bound)
    return w, b


def init_scorenet_params(key, input_dim, output_dim, embed_dim=EMBED_DIM):
    sdim = input_dim - output_dim
    keys = iter(jax.random.split(key, 64))

    def lin(i, o):
        return _init_linear(next(keys), i, o)

    def rb(i, o, t_dim=T_DIM):
        d = {}
        d["t_w"], d["t_b"] = lin(t_dim, o)
        d["c_w"], d["c_b"] = lin(t_dim, o)
        d["d1_w"], d["d1_b"] = lin(i, o)
        d["d2_w"], d["d2_b"] = lin(o, o)
        if i != o:
            d["m_w"], d["m_b"] = lin(i, o)
        return d

    p = {}
    p["gfp_w"] = jax.random.normal(next(keys), (1, embed_dim // 2), jnp.float32) * 30.0
    p["embed_w"], p["embed_b"] = lin(embed_dim, embed_dim)
    p["pre_w"], p["pre_b"] = lin(sdim, embed_dim)
    p["sort1_w"], p["sort1_b"] = lin(embed_dim, 128)
    p["sort2_w"], p["sort2_b"] = lin(128, 128)
    p["rb1"] = rb(output_dim, 512)
    p["rb2"] = rb(512, 256)
    p["rb3"] = rb(256, 128)
    p["mid"] = rb(128, 128)
    p["up3"] = rb(256, 256)
    p["up2"] = rb(512, 512)
    p["last_w"], p["last_b"] = lin(1024, output_dim)
    return p


# ======================================================================
if __name__ == "__main__":
    input_dim, output_dim = 17, 6          # state dim = 11, action dim = 6
    B = 8

    key = jax.random.PRNGKey(0)
    kp, kx, kt, kc, kx2, kt2, kc2 = jax.random.split(key, 7)
    params = init_scorenet_params(kp, input_dim, output_dim)
    packed, layout = pack_scorenet_params(params)
    forward = make_scorenet_forward(layout)

    # --- small-batch run (single tile) ---------------------------------
    x = jax.random.normal(kx, (B, output_dim), jnp.float32)
    t = jax.random.uniform(kt, (B,), jnp.float32, minval=0.1, maxval=1.0)
    cond = jax.random.normal(kc, (B, input_dim - output_dim), jnp.float32)

    out = jax.block_until_ready(forward(packed, x, t, cond))
    ref_packed = jax.block_until_ready(scorenet_packed_reference(packed, layout, x, t, cond))
    ref_f32 = jax.block_until_ready(scorenet_reference(params, x, t, cond))

    assert out.shape == (B, output_dim)
    # structural check: kernel == identical packed bf16 math run by XLA
    np.testing.assert_allclose(np.asarray(out), np.asarray(ref_packed),
                               rtol=1e-2, atol=1e-2)
    # semantic check: matches the f32 PyTorch-mirror forward (bf16 tolerance)
    np.testing.assert_allclose(np.asarray(out), np.asarray(ref_f32),
                               rtol=6e-2, atol=6e-2)

    # --- multi-tile run (exercises the batch grid / resident weights) ---
    B2 = 130                                # 2 grid tiles of 128, last partial
    x2 = jax.random.normal(kx2, (B2, output_dim), jnp.float32)
    t2 = jax.random.uniform(kt2, (B2,), jnp.float32, minval=0.1, maxval=1.0)
    cond2 = jax.random.normal(kc2, (B2, input_dim - output_dim), jnp.float32)
    out2 = jax.block_until_ready(forward(packed, x2, t2, cond2))
    ref2 = jax.block_until_ready(scorenet_packed_reference(packed, layout, x2, t2, cond2))
    assert out2.shape == (B2, output_dim)
    np.testing.assert_allclose(np.asarray(out2), np.asarray(ref2),
                               rtol=2e-2, atol=2e-2)

    print("KERNEL_OK")
</pallas_src>

<mosaic_0001>
module attributes {stable_mosaic.version = 11 : i64} {
  func.func @kernel(%arg0: i32, %arg1: memref<8x16xf32, #tpu.memory_space<vmem>>, %arg2: memref<8x16xf32, #tpu.memory_space<vmem>>, %arg3: memref<8x64xf32, #tpu.memory_space<vmem>>, %arg4: memref<8x1xf32, #tpu.memory_space<vmem>>, %arg5: memref<2768x128xbf16, #tpu.memory_space<vmem>>, %arg6: memref<2304x256xbf16, #tpu.memory_space<vmem>>, %arg7: memref<2080x512xbf16, #tpu.memory_space<vmem>>, %arg8: memref<32x512xf32, #tpu.memory_space<vmem>>, %arg9: memref<8x128xf32, #tpu.memory_space<vmem>>) attributes {dimension_semantics = [#tpu.dimension_semantics<parallel>], iteration_bounds = array<i64: 1>, scalar_prefetch = 0 : i64, scratch_operands = 0 : i64, tpu.core_type = #tpu.core_type<tc>, window_params = [{transform_indices = @transform_0, window_bounds = array<i64: 8, 16>}, {transform_indices = @transform_1, window_bounds = array<i64: 8, 16>}, {transform_indices = @transform_2, window_bounds = array<i64: 8, 64>}, {transform_indices = @transform_3, window_bounds = array<i64: 8, 1>}, {pipeline_mode = #tpu.pipeline_mode<synchronous>, transform_indices = @transform_4, window_bounds = array<i64: 2768, 128>}, {pipeline_mode = #tpu.pipeline_mode<synchronous>, transform_indices = @transform_5, window_bounds = array<i64: 2304, 256>}, {pipeline_mode = #tpu.pipeline_mode<synchronous>, transform_indices = @transform_6, window_bounds = array<i64: 2080, 512>}, {pipeline_mode = #tpu.pipeline_mode<synchronous>, transform_indices = @transform_7, window_bounds = array<i64: 32, 512>}, {transform_indices = @transform_8, window_bounds = array<i64: 8, 128>}]} {
    %c0 = arith.constant 0 : index
    %c0_0 = arith.constant 0 : index
    %0 = vector.load %arg1[%c0, %c0_0] : memref<8x16xf32, #tpu.memory_space<vmem>>, vector<8x16xf32>
    %c0_1 = arith.constant 0 : index
    %c0_2 = arith.constant 0 : index
    %1 = vector.load %arg2[%c0_1, %c0_2] : memref<8x16xf32, #tpu.memory_space<vmem>>, vector<8x16xf32>
    %c0_3 = arith.constant 0 : index
    %c0_4 = arith.constant 0 : index
    %2 = vector.load %arg3[%c0_3, %c0_4] : memref<8x64xf32, #tpu.memory_space<vmem>>, vector<8x64xf32>
    %c0_5 = arith.constant 0 : index
    %c0_6 = arith.constant 0 : index
    %3 = vector.load %arg4[%c0_5, %c0_6] : memref<8x1xf32, #tpu.memory_space<vmem>>, vector<8x1xf32>
    %c0_7 = arith.constant 0 : index
    %c0_8 = arith.constant 0 : index
    %4 = vector.load %arg5[%c0_7, %c0_8] : memref<2768x128xbf16, #tpu.memory_space<vmem>>, vector<64x128xbf16>
    %5 = arith.truncf %2 : vector<8x64xf32> to vector<8x64xbf16>
    %cst = arith.constant dense<0.000000e+00> : vector<8x128xf32>
    %6 = tpu.matmul %5, %4, %cst {dimension_numbers = #tpu.dot_dimension_numbers<[1], [0], [0], [1], [0, 0, 1, 1], [], []>} : vector<8x64xbf16>, vector<64x128xbf16>, vector<8x128xf32> -> vector<8x128xf32>
    %c0_9 = arith.constant 0 : index
    %c0_10 = arith.constant 0 : index
    %7 = vector.load %arg8[%c0_9, %c0_10] : memref<32x512xf32, #tpu.memory_space<vmem>>, vector<1x128xf32>
    %8 = vector.broadcast %7 : vector<1x128xf32> to vector<8x128xf32>
    %9 = arith.addf %6, %8 : vector<8x128xf32>
    %c64 = arith.constant 64 : index
    %c0_11 = arith.constant 0 : index
    %10 = vector.load %arg5[%c64, %c0_11] : memref<2768x128xbf16, #tpu.memory_space<vmem>>, vector<16x128xbf16>
    %11 = arith.truncf %1 : vector<8x16xf32> to vector<8x16xbf16>
    %cst_12 = arith.constant dense<0.000000e+00> : vector<8x128xf32>
    %12 = tpu.matmul %11, %10, %cst_12 {dimension_numbers = #tpu.dot_dimension_numbers<[1], [0], [0], [1], [0, 0, 1, 1], [], []>} : vector<8x16xbf16>, vector<16x128xbf16>, vector<8x128xf32> -> vector<8x128xf32>
    %c1 = arith.constant 1 : index
    %c0_13 = arith.constant 0 : index
    %13 = vector.load %arg8[%c1, %c0_13] : memref<32x512xf32, #tpu.memory_space<vmem>>, vector<1x128xf32>
    %14 = vector.broadcast %13 : vector<1x128xf32> to vector<8x128xf32>
    %15 = arith.addf %12, %14 : vector<8x128xf32>
    %16 = arith.negf %15 : vector<8x128xf32>
    %17 = math.exp %16 : vector<8x128xf32>
    %cst_14 = arith.constant 1.000000e+00 : f32
    %18 = vector.broadcast %cst_14 : f32 to vector<8x128xf32>
    %19 = arith.addf %18, %17 : vector<8x128xf32>
    %20 = arith.divf %18, %19 : vector<8x128xf32>
    %21 = arith.mulf %15, %20 : vector<8x128xf32>
    %c80 = arith.constant 80 : index
    %c0_15 = arith.constant 0 : index
    %22 = vector.load %arg5[%c80, %c0_15] : memref<2768x128xbf16, #tpu.memory_space<vmem>>, vector<128x128xbf16>
    %23 = arith.truncf %9 : vector<8x128xf32> to vector<8x128xbf16>
    %cst_16 = arith.constant dense<0.000000e+00> : vector<8x128xf32>
    %24 = tpu.matmul %23, %22, %cst_16 {dimension_numbers = #tpu.dot_dimension_numbers<[1], [0], [0], [1], [0, 0, 1, 1], [], []>} : vector<8x128xbf16>, vector<128x128xbf16>, vector<8x128xf32> -> vector<8x128xf32>
    %c2 = arith.constant 2 : index
    %c0_17 = arith.constant 0 : index
    %25 = vector.load %arg8[%c2, %c0_17] : memref<32x512xf32, #tpu.memory_space<vmem>>, vector<1x128xf32>
    %26 = vector.broadcast %25 : vector<1x128xf32> to vector<8x128xf32>
    %27 = arith.addf %24, %26 : vector<8x128xf32>
    %28 = arith.negf %27 : vector<8x128xf32>
    %29 = math.exp %28 : vector<8x128xf32>
    %cst_18 = arith.constant 1.000000e+00 : f32
    %30 = vector.broadcast %cst_18 : f32 to vector<8x128xf32>
    %31 = arith.addf %30, %29 : vector<8x128xf32>
    %32 = arith.divf %30, %31 : vector<8x128xf32>
    %33 = arith.mulf %27, %32 : vector<8x128xf32>
    %c208 = arith.constant 208 : index
    %c0_19 = arith.constant 0 : index
    %34 = vector.load %arg5[%c208, %c0_19] : memref<2768x128xbf16, #tpu.memory_space<vmem>>, vector<128x128xbf16>
    %35 = arith.truncf %33 : vector<8x128xf32> to vector<8x128xbf16>
    %cst_20 = arith.constant dense<0.000000e+00> : vector<8x128xf32>
    %36 = tpu.matmul %35, %34, %cst_20 {dimension_numbers = #tpu.dot_dimension_numbers<[1], [0], [0], [1], [0, 0, 1, 1], [], []>} : vector<8x128xbf16>, vector<128x128xbf16>, vector<8x128xf32> -> vector<8x128xf32>
    %c3 = arith.constant 3 : index
    %c0_21 = arith.constant 0 : index
    %37 = vector.load %arg8[%c3, %c0_21] : memref<32x512xf32, #tpu.memory_space<vmem>>, vector<1x128xf32>
    %38 = vector.broadcast %37 : vector<1x128xf32> to vector<8x128xf32>
    %39 = arith.addf %36, %38 : vector<8x128xf32>
    %c80_22 = arith.constant 80 : index
    %c0_23 = arith.constant 0 : index
    %40 = vector.load %arg5[%c80_22, %c0_23] : memref<2768x128xbf16, #tpu.memory_space<vmem>>, vector<128x128xbf16>
    %41 = arith.truncf %21 : vector<8x128xf32> to vector<8x128xbf16>
    %cst_24 = arith.constant dense<0.000000e+00> : vector<8x128xf32>
    %42 = tpu.matmul %41, %40, %cst_24 {dimension_numbers = #tpu.dot_dimension_numbers<[1], [0], [0], [1], [0, 0, 1, 1], [], []>} : vector<8x128xbf16>, vector<128x128xbf16>, vector<8x128xf32> -> vector<8x128xf32>
    %c2_25 = arith.constant 2 : index
    %c0_26 = arith.constant 0 : index
    %43 = vector.load %arg8[%c2_25, %c0_26] : memref<32x512xf32, #tpu.memory_space<vmem>>, vector<1x128xf32>
    %44 = vector.broadcast %43 : vector<1x128xf32> to vector<8x128xf32>
    %45 = arith.addf %42, %44 : vector<8x128xf32>
    %46 = arith.negf %45 : vector<8x128xf32>
    %47 = math.exp %46 : vector<8x128xf32>
    %cst_27 = arith.constant 1.000000e+00 : f32
    %48 = vector.broadcast %cst_27 : f32 to vector<8x128xf32>
    %49 = arith.addf %48, %47 : vector<8x128xf32>
    %50 = arith.divf %48, %49 : vector<8x128xf32>
    %51 = arith.mulf %45, %50 : vector<8x128xf32>
    %c208_28 = arith.constant 208 : index
    %c0_29 = arith.constant 0 : index
    %52 = vector.load %arg5[%c208_28, %c0_29] : memref<2768x128xbf16, #tpu.memory_space<vmem>>, vector<128x128xbf16>
    %53 = arith.truncf %51 : vector<8x128xf32> to vector<8x128xbf16>
    %cst_30 = arith.constant dense<0.000000e+00> : vector<8x128xf32>
    %54 = tpu.matmul %53, %52, %cst_30 {dimension_numbers = #tpu.dot_dimension_numbers<[1], [0], [0], [1], [0, 0, 1, 1], [], []>} : vector<8x128xbf16>, vector<128x128xbf16>, vector<8x128xf32> -> vector<8x128xf32>
    %c3_31 = arith.constant 3 : index
    %c0_32 = arith.constant 0 : index
    %55 = vector.load %arg8[%c3_31, %c0_32] : memref<32x512xf32, #tpu.memory_space<vmem>>, vector<1x128xf32>
    %56 = vector.broadcast %55 : vector<1x128xf32> to vector<8x128xf32>
    %57 = arith.addf %54, %56 : vector<8x128xf32>
    %58 = arith.negf %39 : vector<8x128xf32>
    %59 = math.exp %58 : vector<8x128xf32>
    %cst_33 = arith.constant 1.000000e+00 : f32
    %60 = vector.broadcast %cst_33 : f32 to vector<8x128xf32>
    %61 = arith.addf %60, %59 : vector<8x128xf32>
    %62 = arith.divf %60, %61 : vector<8x128xf32>
    %63 = arith.mulf %39, %62 : vector<8x128xf32>
    %64 = arith.negf %57 : vector<8x128xf32>
    %65 = math.exp %64 : vector<8x128xf32>
    %cst_34 = arith.constant 1.000000e+00 : f32
    %66 = vector.broadcast %cst_34 : f32 to vector<8x128xf32>
    %67 = arith.addf %66, %65 : vector<8x128xf32>
    %68 = arith.divf %66, %67 : vector<8x128xf32>
    %69 = arith.mulf %57, %68 : vector<8x128xf32>
    %70 = tpu.concatenate %63, %69 in 1 : vector<8x128xf32>, vector<8x128xf32> -> vector<8x256xf32>
    %c0_35 = arith.constant 0 : index
    %c0_36 = arith.constant 0 : index
    %71 = vector.load %arg7[%c0_35, %c0_36] : memref<2080x512xbf16, #tpu.memory_space<vmem>>, vector<16x512xbf16>
    %72 = arith.truncf %0 : vector<8x16xf32> to vector<8x16xbf16>
    %cst_37 = arith.constant dense<0.000000e+00> : vector<8x512xf32>
    %73 = tpu.matmul %72, %71, %cst_37 {dimension_numbers = #tpu.dot_dimension_numbers<[1], [0], [0], [1], [0, 0, 1, 1], [], []>} : vector<8x16xbf16>, vector<16x512xbf16>, vector<8x512xf32> -> vector<8x512xf32>
    %c4 = arith.constant 4 : index
    %c0_38 = arith.constant 0 : index
    %74 = vector.load %arg8[%c4, %c0_38] : memref<32x512xf32, #tpu.memory_space<vmem>>, vector<1x512xf32>
    %75 = vector.broadcast %74 : vector<1x512xf32> to vector<8x512xf32>
    %76 = arith.addf %73, %75 : vector<8x512xf32>
    %77 = arith.negf %76 : vector<8x512xf32>
    %78 = math.exp %77 : vector<8x512xf32>
    %cst_39 = arith.constant 1.000000e+00 : f32
    %79 = vector.broadcast %cst_39 : f32 to vector<8x512xf32>
    %80 = arith.addf %79, %78 : vector<8x512xf32>
    %81 = arith.divf %79, %80 : vector<8x512xf32>
    %82 = arith.mulf %76, %81 : vector<8x512xf32>
    %c16 = arith.constant 16 : index
    %c0_40 = arith.constant 0 : index
    %83 = vector.load %arg7[%c16, %c0_40] : memref<2080x512xbf16, #tpu.memory_space<vmem>>, vector<256x512xbf16>
    %84 = arith.truncf %70 : vector<8x256xf32> to vector<8x256xbf16>
    %cst_41 = arith.constant dense<0.000000e+00> : vector<8x512xf32>
    %85 = tpu.matmul %84, %83, %cst_41 {dimension_numbers = #tpu.dot_dimension_numbers<[1], [0], [0], [1], [0, 0, 1, 1], [], []>} : vector<8x256xbf16>, vector<256x512xbf16>, vector<8x512xf32> -> vector<8x512xf32>
    %c5 = arith.constant 5 : index
    %c0_42 = arith.constant 0 : index
    %86 = vector.load %arg8[%c5, %c0_42] : memref<32x512xf32, #tpu.memory_space<vmem>>, vector<1x512xf32>
    %87 = vector.broadcast %86 : vector<1x512xf32> to vector<8x512xf32>
    %88 = arith.addf %85, %87 : vector<8x512xf32>
    %89 = arith.addf %82, %88 : vector<8x512xf32>
    %c272 = arith.constant 272 : index
    %c0_43 = arith.constant 0 : index
    %90 = vector.load %arg7[%c272, %c0_43] : memref<2080x512xbf16, #tpu.memory_space<vmem>>, vector<512x512xbf16>
    %91 = arith.truncf %89 : vector<8x512xf32> to vector<8x512xbf16>
    %cst_44 = arith.constant dense<0.000000e+00> : vector<8x512xf32>
    %92 = tpu.matmul %91, %90, %cst_44 {dimension_numbers = #tpu.dot_dimension_numbers<[1], [0], [0], [1], [0, 0, 1, 1], [], []>} : vector<8x512xbf16>, vector<512x512xbf16>, vector<8x512xf32> -> vector<8x512xf32>
    %c6 = arith.constant 6 : index
    %c0_45 = arith.constant 0 : index
    %93 = vector.load %arg8[%c6, %c0_45] : memref<32x512xf32, #tpu.memory_space<vmem>>, vector<1x512xf32>
    %94 = vector.broadcast %93 : vector<1x512xf32> to vector<8x512xf32>
    %95 = arith.addf %92, %94 : vector<8x512xf32>
    %96 = arith.negf %95 : vector<8x512xf32>
    %97 = math.exp %96 : vector<8x512xf32>
    %cst_46 = arith.constant 1.000000e+00 : f32
    %98 = vector.broadcast %cst_46 : f32 to vector<8x512xf32>
    %99 = arith.addf %98, %97 : vector<8x512xf32>
    %100 = arith.divf %98, %99 : vector<8x512xf32>
    %101 = arith.mulf %95, %100 : vector<8x512xf32>
    %c784 = arith.constant 784 : index
    %c0_47 = arith.constant 0 : index
    %102 = vector.load %arg7[%c784, %c0_47] : memref<2080x512xbf16, #tpu.memory_space<vmem>>, vector<16x512xbf16>
    %103 = arith.truncf %0 : vector<8x16xf32> to vector<8x16xbf16>
    %cst_48 = arith.constant dense<0.000000e+00> : vector<8x512xf32>
    %104 = tpu.matmul %103, %102, %cst_48 {dimension_numbers = #tpu.dot_dimension_numbers<[1], [0], [0], [1], [0, 0, 1, 1], [], []>} : vector<8x16xbf16>, vector<16x512xbf16>, vector<8x512xf32> -> vector<8x512xf32>
    %c7 = arith.constant 7 : index
    %c0_49 = arith.constant 0 : index
    %105 = vector.load %arg8[%c7, %c0_49] : memref<32x512xf32, #tpu.memory_space<vmem>>, vector<1x512xf32>
    %106 = vector.broadcast %105 : vector<1x512xf32> to vector<8x512xf32>
    %107 = arith.addf %104, %106 : vector<8x512xf32>
    %108 = arith.addf %101, %107 : vector<8x512xf32>
    %c0_50 = arith.constant 0 : index
    %c0_51 = arith.constant 0 : index
    %109 = vector.load %arg6[%c0_50, %c0_51] : memref<2304x256xbf16, #tpu.memory_space<vmem>>, vector<512x256xbf16>
    %110 = arith.truncf %108 : vector<8x512xf32> to vector<8x512xbf16>
    %cst_52 = arith.constant dense<0.000000e+00> : vector<8x256xf32>
    %111 = tpu.matmul %110, %109, %cst_52 {dimension_numbers = #tpu.dot_dimension_numbers<[1], [0], [0], [1], [0, 0, 1, 1], [], []>} : vector<8x512xbf16>, vector<512x256xbf16>, vector<8x256xf32> -> vector<8x256xf32>
    %c8 = arith.constant 8 : index
    %c0_53 = arith.constant 0 : index
    %112 = vector.load %arg8[%c8, %c0_53] : memref<32x512xf32, #tpu.memory_space<vmem>>, vector<1x256xf32>
    %113 = vector.broadcast %112 : vector<1x256xf32> to vector<8x256xf32>
    %114 = arith.addf %111, %113 : vector<8x256xf32>
    %115 = arith.negf %114 : vector<8x256xf32>
    %116 = math.exp %115 : vector<8x256xf32>
    %cst_54 = arith.constant 1.000000e+00 : f32
    %117 = vector.broadcast %cst_54 : f32 to vector<8x256xf32>
    %118 = arith.addf %117, %116 : vector<8x256xf32>
    %119 = arith.divf %117, %118 : vector<8x256xf32>
    %120 = arith.mulf %114, %119 : vector<8x256xf32>
    %c512 = arith.constant 512 : index
    %c0_55 = arith.constant 0 : index
    %121 = vector.load %arg6[%c512, %c0_55] : memref<2304x256xbf16, #tpu.memory_space<vmem>>, vector<256x256xbf16>
    %122 = arith.truncf %70 : vector<8x256xf32> to vector<8x256xbf16>
    %cst_56 = arith.constant dense<0.000000e+00> : vector<8x256xf32>
    %123 = tpu.matmul %122, %121, %cst_56 {dimension_numbers = #tpu.dot_dimension_numbers<[1], [0], [0], [1], [0, 0, 1, 1], [], []>} : vector<8x256xbf16>, vector<256x256xbf16>, vector<8x256xf32> -> vector<8x256xf32>
    %c9 = arith.constant 9 : index
    %c0_57 = arith.constant 0 : index
    %124 = vector.load %arg8[%c9, %c0_57] : memref<32x512xf32, #tpu.memory_space<vmem>>, vector<1x256xf32>
    %125 = vector.broadcast %124 : vector<1x256xf32> to vector<8x256xf32>
    %126 = arith.addf %123, %125 : vector<8x256xf32>
    %127 = arith.addf %120, %126 : vector<8x256xf32>
    %c768 = arith.constant 768 : index
    %c0_58 = arith.constant 0 : index
    %128 = vector.load %arg6[%c768, %c0_58] : memref<2304x256xbf16, #tpu.memory_space<vmem>>, vector<256x256xbf16>
    %129 = arith.truncf %127 : vector<8x256xf32> to vector<8x256xbf16>
    %cst_59 = arith.constant dense<0.000000e+00> : vector<8x256xf32>
    %130 = tpu.matmul %129, %128, %cst_59 {dimension_numbers = #tpu.dot_dimension_numbers<[1], [0], [0], [1], [0, 0, 1, 1], [], []>} : vector<8x256xbf16>, vector<256x256xbf16>, vector<8x256xf32> -> vector<8x256xf32>
    %c10 = arith.constant 10 : index
    %c0_60 = arith.constant 0 : index
    %131 = vector.load %arg8[%c10, %c0_60] : memref<32x512xf32, #tpu.memory_space<vmem>>, vector<1x256xf32>
    %132 = vector.broadcast %131 : vector<1x256xf32> to vector<8x256xf32>
    %133 = arith.addf %130, %132 : vector<8x256xf32>
    %134 = arith.negf %133 : vector<8x256xf32>
    %135 = math.exp %134 : vector<8x256xf32>
    %cst_61 = arith.constant 1.000000e+00 : f32
    %136 = vector.broadcast %cst_61 : f32 to vector<8x256xf32>
    %137 = arith.addf %136, %135 : vector<8x256xf32>
    %138 = arith.divf %136, %137 : vector<8x256xf32>
    %139 = arith.mulf %133, %138 : vector<8x256xf32>
    %c1024 = arith.constant 1024 : index
    %c0_62 = arith.constant 0 : index
    %140 = vector.load %arg6[%c1024, %c0_62] : memref<2304x256xbf16, #tpu.memory_space<vmem>>, vector<512x256xbf16>
    %141 = arith.truncf %108 : vector<8x512xf32> to vector<8x512xbf16>
    %cst_63 = arith.constant dense<0.000000e+00> : vector<8x256xf32>
    %142 = tpu.matmul %141, %140, %cst_63 {dimension_numbers = #tpu.dot_dimension_numbers<[1], [0], [0], [1], [0, 0, 1, 1], [], []>} : vector<8x512xbf16>, vector<512x256xbf16>, vector<8x256xf32> -> vector<8x256xf32>
    %c11 = arith.constant 11 : index
    %c0_64 = arith.constant 0 : index
    %143 = vector.load %arg8[%c11, %c0_64] : memref<32x512xf32, #tpu.memory_space<vmem>>, vector<1x256xf32>
    %144 = vector.broadcast %143 : vector<1x256xf32> to vector<8x256xf32>
    %145 = arith.addf %142, %144 : vector<8x256xf32>
    %146 = arith.addf %139, %145 : vector<8x256xf32>
    %c336 = arith.constant 336 : index
    %c0_65 = arith.constant 0 : index
    %147 = vector.load %arg5[%c336, %c0_65] : memref<2768x128xbf16, #tpu.memory_space<vmem>>, vector<256x128xbf16>
    %148 = arith.truncf %146 : vector<8x256xf32> to vector<8x256xbf16>
    %cst_66 = arith.constant dense<0.000000e+00> : vector<8x128xf32>
    %149 = tpu.matmul %148, %147, %cst_66 {dimension_numbers = #tpu.dot_dimension_numbers<[1], [0], [0], [1], [0, 0, 1, 1], [], []>} : vector<8x256xbf16>, vector<256x128xbf16>, vector<8x128xf32> -> vector<8x128xf32>
    %c12 = arith.constant 12 : index
    %c0_67 = arith.constant 0 : index
    %150 = vector.load %arg8[%c12, %c0_67] : memref<32x512xf32, #tpu.memory_space<vmem>>, vector<1x128xf32>
    %151 = vector.broadcast %150 : vector<1x128xf32> to vector<8x128xf32>
    %152 = arith.addf %149, %151 : vector<8x128xf32>
    %153 = arith.negf %152 : vector<8x128xf32>
    %154 = math.exp %153 : vector<8x128xf32>
    %cst_68 = arith.constant 1.000000e+00 : f32
    %155 = vector.broadcast %cst_68 : f32 to vector<8x128xf32>
    %156 = arith.addf %155, %154 : vector<8x128xf32>
    %157 = arith.divf %155, %156 : vector<8x128xf32>
    %158 = arith.mulf %152, %157 : vector<8x128xf32>
    %c592 = arith.constant 592 : index
    %c0_69 = arith.constant 0 : index
    %159 = vector.load %arg5[%c592, %c0_69] : memref<2768x128xbf16, #tpu.memory_space<vmem>>, vector<256x128xbf16>
    %160 = arith.truncf %70 : vector<8x256xf32> to vector<8x256xbf16>
    %cst_70 = arith.constant dense<0.000000e+00> : vector<8x128xf32>
    %161 = tpu.matmul %160, %159, %cst_70 {dimension_numbers = #tpu.dot_dimension_numbers<[1], [0], [0], [1], [0, 0, 1, 1], [], []>} : vector<8x256xbf16>, vector<256x128xbf16>, vector<8x128xf32> -> vector<8x128xf32>
    %c13 = arith.constant 13 : index
    %c0_71 = arith.constant 0 : index
    %162 = vector.load %arg8[%c13, %c0_71] : memref<32x512xf32, #tpu.memory_space<vmem>>, vector<1x128xf32>
    %163 = vector.broadcast %162 : vector<1x128xf32> to vector<8x128xf32>
    %164 = arith.addf %161, %163 : vector<8x128xf32>
    %165 = arith.addf %158, %164 : vector<8x128xf32>
    %c848 = arith.constant 848 : index
    %c0_72 = arith.constant 0 : index
    %166 = vector.load %arg5[%c848, %c0_72] : memref<2768x128xbf16, #tpu.memory_space<vmem>>, vector<128x128xbf16>
    %167 = arith.truncf %165 : vector<8x128xf32> to vector<8x128xbf16>
    %cst_73 = arith.constant dense<0.000000e+00> : vector<8x128xf32>
    %168 = tpu.matmul %167, %166, %cst_73 {dimension_numbers = #tpu.dot_dimension_numbers<[1], [0], [0], [1], [0, 0, 1, 1], [], []>} : vector<8x128xbf16>, vector<128x128xbf16>, vector<8x128xf32> -> vector<8x128xf32>
    %c14 = arith.constant 14 : index
    %c0_74 = arith.constant 0 : index
    %169 = vector.load %arg8[%c14, %c0_74] : memref<32x512xf32, #tpu.memory_space<vmem>>, vector<1x128xf32>
    %170 = vector.broadcast %169 : vector<1x128xf32> to vector<8x128xf32>
    %171 = arith.addf %168, %170 : vector<8x128xf32>
    %172 = arith.negf %171 : vector<8x128xf32>
    %173 = math.exp %172 : vector<8x128xf32>
    %cst_75 = arith.constant 1.000000e+00 : f32
    %174 = vector.broadcast %cst_75 : f32 to vector<8x128xf32>
    %175 = arith.addf %174, %173 : vector<8x128xf32>
    %176 = arith.divf %174, %175 : vector<8x128xf32>
    %177 = arith.mulf %171, %176 : vector<8x128xf32>
    %c976 = arith.constant 976 : index
    %c0_76 = arith.constant 0 : index
    %178 = vector.load %arg5[%c976, %c0_76] : memref<2768x128xbf16, #tpu.memory_space<vmem>>, vector<256x128xbf16>
    %179 = arith.truncf %146 : vector<8x256xf32> to vector<8x256xbf16>
    %cst_77 = arith.constant dense<0.000000e+00> : vector<8x128xf32>
    %180 = tpu.matmul %179, %178, %cst_77 {dimension_numbers = #tpu.dot_dimension_numbers<[1], [0], [0], [1], [0, 0, 1, 1], [], []>} : vector<8x256xbf16>, vector<256x128xbf16>, vector<8x128xf32> -> vector<8x128xf32>
    %c15 = arith.constant 15 : index
    %c0_78 = arith.constant 0 : index
    %181 = vector.load %arg8[%c15, %c0_78] : memref<32x512xf32, #tpu.memory_space<vmem>>, vector<1x128xf32>
    %182 = vector.broadcast %181 : vector<1x128xf32> to vector<8x128xf32>
    %183 = arith.addf %180, %182 : vector<8x128xf32>
    %184 = arith.addf %177, %183 : vector<8x128xf32>
    %c1232 = arith.constant 1232 : index
    %c0_79 = arith.constant 0 : index
    %185 = vector.load %arg5[%c1232, %c0_79] : memref<2768x128xbf16, #tpu.memory_space<vmem>>, vector<128x128xbf16>
    %186 = arith.truncf %184 : vector<8x128xf32> to vector<8x128xbf16>
    %cst_80 = arith.constant dense<0.000000e+00> : vector<8x128xf32>
    %187 = tpu.matmul %186, %185, %cst_80 {dimension_numbers = #tpu.dot_dimension_numbers<[1], [0], [0], [1], [0, 0, 1, 1], [], []>} : vector<8x128xbf16>, vector<128x128xbf16>, vector<8x128xf32> -> vector<8x128xf32>
    %c16_81 = arith.constant 16 : index
    %c0_82 = arith.constant 0 : index
    %188 = vector.load %arg8[%c16_81, %c0_82] : memref<32x512xf32, #tpu.memory_space<vmem>>, vector<1x128xf32>
    %189 = vector.broadcast %188 : vector<1x128xf32> to vector<8x128xf32>
    %190 = arith.addf %187, %189 : vector<8x128xf32>
    %191 = arith.negf %190 : vector<8x128xf32>
    %192 = math.exp %191 : vector<8x128xf32>
    %cst_83 = arith.constant 1.000000e+00 : f32
    %193 = vector.broadcast %cst_83 : f32 to vector<8x128xf32>
    %194 = arith.addf %193, %192 : vector<8x128xf32>
    %195 = arith.divf %193, %194 : vector<8x128xf32>
    %196 = arith.mulf %190, %195 : vector<8x128xf32>
    %c1360 = arith.constant 1360 : index
    %c0_84 = arith.constant 0 : index
    %197 = vector.load %arg5[%c1360, %c0_84] : memref<2768x128xbf16, #tpu.memory_space<vmem>>, vector<256x128xbf16>
    %198 = arith.truncf %70 : vector<8x256xf32> to vector<8x256xbf16>
    %cst_85 = arith.constant dense<0.000000e+00> : vector<8x128xf32>
    %199 = tpu.matmul %198, %197, %cst_85 {dimension_numbers = #tpu.dot_dimension_numbers<[1], [0], [0], [1], [0, 0, 1, 1], [], []>} : vector<8x256xbf16>, vector<256x128xbf16>, vector<8x128xf32> -> vector<8x128xf32>
    %c17 = arith.constant 17 : index
    %c0_86 = arith.constant 0 : index
    %200 = vector.load %arg8[%c17, %c0_86] : memref<32x512xf32, #tpu.memory_space<vmem>>, vector<1x128xf32>
    %201 = vector.broadcast %200 : vector<1x128xf32> to vector<8x128xf32>
    %202 = arith.addf %199, %201 : vector<8x128xf32>
    %203 = arith.addf %196, %202 : vector<8x128xf32>
    %c1616 = arith.constant 1616 : index
    %c0_87 = arith.constant 0 : index
    %204 = vector.load %arg5[%c1616, %c0_87] : memref<2768x128xbf16, #tpu.memory_space<vmem>>, vector<128x128xbf16>
    %205 = arith.truncf %203 : vector<8x128xf32> to vector<8x128xbf16>
    %cst_88 = arith.constant dense<0.000000e+00> : vector<8x128xf32>
    %206 = tpu.matmul %205, %204, %cst_88 {dimension_numbers = #tpu.dot_dimension_numbers<[1], [0], [0], [1], [0, 0, 1, 1], [], []>} : vector<8x128xbf16>, vector<128x128xbf16>, vector<8x128xf32> -> vector<8x128xf32>
    %c18 = arith.constant 18 : index
    %c0_89 = arith.constant 0 : index
    %207 = vector.load %arg8[%c18, %c0_89] : memref<32x512xf32, #tpu.memory_space<vmem>>, vector<1x128xf32>
    %208 = vector.broadcast %207 : vector<1x128xf32> to vector<8x128xf32>
    %209 = arith.addf %206, %208 : vector<8x128xf32>
    %210 = arith.negf %209 : vector<8x128xf32>
    %211 = math.exp %210 : vector<8x128xf32>
    %cst_90 = arith.constant 1.000000e+00 : f32
    %212 = vector.broadcast %cst_90 : f32 to vector<8x128xf32>
    %213 = arith.addf %212, %211 : vector<8x128xf32>
    %214 = arith.divf %212, %213 : vector<8x128xf32>
    %215 = arith.mulf %209, %214 : vector<8x128xf32>
    %216 = arith.addf %215, %184 : vector<8x128xf32>
    %c1536 = arith.constant 1536 : index
    %c0_91 = arith.constant 0 : index
    %217 = vector.load %arg6[%c1536, %c0_91] : memref<2304x256xbf16, #tpu.memory_space<vmem>>, vector<128x256xbf16>
    %218 = arith.truncf %184 : vector<8x128xf32> to vector<8x128xbf16>
    %cst_92 = arith.constant dense<0.000000e+00> : vector<8x256xf32>
    %219 = tpu.matmul %218, %217, %cst_92 {dimension_numbers = #tpu.dot_dimension_numbers<[1], [0], [0], [1], [0, 0, 1, 1], [], []>} : vector<8x128xbf16>, vector<128x256xbf16>, vector<8x256xf32> -> vector<8x256xf32>
    %c1664 = arith.constant 1664 : index
    %c0_93 = arith.constant 0 : index
    %220 = vector.load %arg6[%c1664, %c0_93] : memref<2304x256xbf16, #tpu.memory_space<vmem>>, vector<128x256xbf16>
    %221 = arith.truncf %216 : vector<8x128xf32> to vector<8x128xbf16>
    %cst_94 = arith.constant dense<0.000000e+00> : vector<8x256xf32>
    %222 = tpu.matmul %221, %220, %cst_94 {dimension_numbers = #tpu.dot_dimension_numbers<[1], [0], [0], [1], [0, 0, 1, 1], [], []>} : vector<8x128xbf16>, vector<128x256xbf16>, vector<8x256xf32> -> vector<8x256xf32>
    %223 = arith.addf %219, %222 : vector<8x256xf32>
    %c19 = arith.constant 19 : index
    %c0_95 = arith.constant 0 : index
    %224 = vector.load %arg8[%c19, %c0_95] : memref<32x512xf32, #tpu.memory_space<vmem>>, vector<1x256xf32>
    %225 = vector.broadcast %224 : vector<1x256xf32> to vector<8x256xf32>
    %226 = arith.addf %223, %225 : vector<8x256xf32>
    %227 = arith.negf %226 : vector<8x256xf32>
    %228 = math.exp %227 : vector<8x256xf32>
    %cst_96 = arith.constant 1.000000e+00 : f32
    %229 = vector.broadcast %cst_96 : f32 to vector<8x256xf32>
    %230 = arith.addf %229, %228 : vector<8x256xf32>
    %231 = arith.divf %229, %230 : vector<8x256xf32>
    %232 = arith.mulf %226, %231 : vector<8x256xf32>
    %c1792 = arith.constant 1792 : index
    %c0_97 = arith.constant 0 : index
    %233 = vector.load %arg6[%c1792, %c0_97] : memref<2304x256xbf16, #tpu.memory_space<vmem>>, vector<256x256xbf16>
    %234 = arith.truncf %70 : vector<8x256xf32> to vector<8x256xbf16>
    %cst_98 = arith.constant dense<0.000000e+00> : vector<8x256xf32>
    %235 = tpu.matmul %234, %233, %cst_98 {dimension_numbers = #tpu.dot_dimension_numbers<[1], [0], [0], [1], [0, 0, 1, 1], [], []>} : vector<8x256xbf16>, vector<256x256xbf16>, vector<8x256xf32> -> vector<8x256xf32>
    %c20 = arith.constant 20 : index
    %c0_99 = arith.constant 0 : index
    %236 = vector.load %arg8[%c20, %c0_99] : memref<32x512xf32, #tpu.memory_space<vmem>>, vector<1x256xf32>
    %237 = vector.broadcast %236 : vector<1x256xf32> to vector<8x256xf32>
    %238 = arith.addf %235, %237 : vector<8x256xf32>
    %239 = arith.addf %232, %238 : vector<8x256xf32>
    %c2048 = arith.constant 2048 : index
    %c0_100 = arith.constant 0 : index
    %240 = vector.load %arg6[%c2048, %c0_100] : memref<2304x256xbf16, #tpu.memory_space<vmem>>, vector<256x256xbf16>
    %241 = arith.truncf %239 : vector<8x256xf32> to vector<8x256xbf16>
    %cst_101 = arith.constant dense<0.000000e+00> : vector<8x256xf32>
    %242 = tpu.matmul %241, %240, %cst_101 {dimension_numbers = #tpu.dot_dimension_numbers<[1], [0], [0], [1], [0, 0, 1, 1], [], []>} : vector<8x256xbf16>, vector<256x256xbf16>, vector<8x256xf32> -> vector<8x256xf32>
    %c21 = arith.constant 21 : index
    %c0_102 = arith.constant 0 : index
    %243 = vector.load %arg8[%c21, %c0_102] : memref<32x512xf32, #tpu.memory_space<vmem>>, vector<1x256xf32>
    %244 = vector.broadcast %243 : vector<1x256xf32> to vector<8x256xf32>
    %245 = arith.addf %242, %244 : vector<8x256xf32>
    %246 = arith.negf %245 : vector<8x256xf32>
    %247 = math.exp %246 : vector<8x256xf32>
    %cst_103 = arith.constant 1.000000e+00 : f32
    %248 = vector.broadcast %cst_103 : f32 to vector<8x256xf32>
    %249 = arith.addf %248, %247 : vector<8x256xf32>
    %250 = arith.divf %248, %249 : vector<8x256xf32>
    %251 = arith.mulf %245, %250 : vector<8x256xf32>
    %252 = vector.extract_strided_slice %251 {offsets = [0, 0], sizes = [8, 128], strides = [1, 1]} : vector<8x256xf32> to vector<8x128xf32>
    %253 = arith.addf %252, %184 : vector<8x128xf32>
    %254 = vector.extract_strided_slice %251 {offsets = [0, 128], sizes = [8, 128], strides = [1, 1]} : vector<8x256xf32> to vector<8x128xf32>
    %255 = arith.addf %254, %216 : vector<8x128xf32>
    %c800 = arith.constant 800 : index
    %c0_104 = arith.constant 0 : index
    %256 = vector.load %arg7[%c800, %c0_104] : memref<2080x512xbf16, #tpu.memory_space<vmem>>, vector<256x512xbf16>
    %257 = arith.truncf %146 : vector<8x256xf32> to vector<8x256xbf16>
    %cst_105 = arith.constant dense<0.000000e+00> : vector<8x512xf32>
    %258 = tpu.matmul %257, %256, %cst_105 {dimension_numbers = #tpu.dot_dimension_numbers<[1], [0], [0], [1], [0, 0, 1, 1], [], []>} : vector<8x256xbf16>, vector<256x512xbf16>, vector<8x512xf32> -> vector<8x512xf32>
    %c1056 = arith.constant 1056 : index
    %c0_106 = arith.constant 0 : index
    %259 = vector.load %arg7[%c1056, %c0_106] : memref<2080x512xbf16, #tpu.memory_space<vmem>>, vector<128x512xbf16>
    %260 = arith.truncf %253 : vector<8x128xf32> to vector<8x128xbf16>
    %cst_107 = arith.constant dense<0.000000e+00> : vector<8x512xf32>
    %261 = tpu.matmul %260, %259, %cst_107 {dimension_numbers = #tpu.dot_dimension_numbers<[1], [0], [0], [1], [0, 0, 1, 1], [], []>} : vector<8x128xbf16>, vector<128x512xbf16>, vector<8x512xf32> -> vector<8x512xf32>
    %262 = arith.addf %258, %261 : vector<8x512xf32>
    %c1184 = arith.constant 1184 : index
    %c0_108 = arith.constant 0 : index
    %263 = vector.load %arg7[%c1184, %c0_108] : memref<2080x512xbf16, #tpu.memory_space<vmem>>, vector<128x512xbf16>
    %264 = arith.truncf %255 : vector<8x128xf32> to vector<8x128xbf16>
    %cst_109 = arith.constant dense<0.000000e+00> : vector<8x512xf32>
    %265 = tpu.matmul %264, %263, %cst_109 {dimension_numbers = #tpu.dot_dimension_numbers<[1], [0], [0], [1], [0, 0, 1, 1], [], []>} : vector<8x128xbf16>, vector<128x512xbf16>, vector<8x512xf32> -> vector<8x512xf32>
    %266 = arith.addf %262, %265 : vector<8x512xf32>
    %c22 = arith.constant 22 : index
    %c0_110 = arith.constant 0 : index
    %267 = vector.load %arg8[%c22, %c0_110] : memref<32x512xf32, #tpu.memory_space<vmem>>, vector<1x512xf32>
    %268 = vector.broadcast %267 : vector<1x512xf32> to vector<8x512xf32>
    %269 = arith.addf %266, %268 : vector<8x512xf32>
    %270 = arith.negf %269 : vector<8x512xf32>
    %271 = math.exp %270 : vector<8x512xf32>
    %cst_111 = arith.constant 1.000000e+00 : f32
    %272 = vector.broadcast %cst_111 : f32 to vector<8x512xf32>
    %273 = arith.addf %272, %271 : vector<8x512xf32>
    %274 = arith.divf %272, %273 : vector<8x512xf32>
    %275 = arith.mulf %269, %274 : vector<8x512xf32>
    %c1312 = arith.constant 1312 : index
    %c0_112 = arith.constant 0 : index
    %276 = vector.load %arg7[%c1312, %c0_112] : memref<2080x512xbf16, #tpu.memory_space<vmem>>, vector<256x512xbf16>
    %277 = arith.truncf %70 : vector<8x256xf32> to vector<8x256xbf16>
    %cst_113 = arith.constant dense<0.000000e+00> : vector<8x512xf32>
    %278 = tpu.matmul %277, %276, %cst_113 {dimension_numbers = #tpu.dot_dimension_numbers<[1], [0], [0], [1], [0, 0, 1, 1], [], []>} : vector<8x256xbf16>, vector<256x512xbf16>, vector<8x512xf32> -> vector<8x512xf32>
    %c23 = arith.constant 23 : index
    %c0_114 = arith.constant 0 : index
    %279 = vector.load %arg8[%c23, %c0_114] : memref<32x512xf32, #tpu.memory_space<vmem>>, vector<1x512xf32>
    %280 = vector.broadcast %279 : vector<1x512xf32> to vector<8x512xf32>
    %281 = arith.addf %278, %280 : vector<8x512xf32>
    %282 = arith.addf %275, %281 : vector<8x512xf32>
    %c1568 = arith.constant 1568 : index
    %c0_115 = arith.constant 0 : index
    %283 = vector.load %arg7[%c1568, %c0_115] : memref<2080x512xbf16, #tpu.memory_space<vmem>>, vector<512x512xbf16>
    %284 = arith.truncf %282 : vector<8x512xf32> to vector<8x512xbf16>
    %cst_116 = arith.constant dense<0.000000e+00> : vector<8x512xf32>
    %285 = tpu.matmul %284, %283, %cst_116 {dimension_numbers = #tpu.dot_dimension_numbers<[1], [0], [0], [1], [0, 0, 1, 1], [], []>} : vector<8x512xbf16>, vector<512x512xbf16>, vector<8x512xf32> -> vector<8x512xf32>
    %c24 = arith.constant 24 : index
    %c0_117 = arith.constant 0 : index
    %286 = vector.load %arg8[%c24, %c0_117] : memref<32x512xf32, #tpu.memory_space<vmem>>, vector<1x512xf32>
    %287 = vector.broadcast %286 : vector<1x512xf32> to vector<8x512xf32>
    %288 = arith.addf %285, %287 : vector<8x512xf32>
    %289 = arith.negf %288 : vector<8x512xf32>
    %290 = math.exp %289 : vector<8x512xf32>
    %cst_118 = arith.constant 1.000000e+00 : f32
    %291 = vector.broadcast %cst_118 : f32 to vector<8x512xf32>
    %292 = arith.addf %291, %290 : vector<8x512xf32>
    %293 = arith.divf %291, %292 : vector<8x512xf32>
    %294 = arith.mulf %288, %293 : vector<8x512xf32>
    %295 = vector.extract_strided_slice %294 {offsets = [0, 0], sizes = [8, 256], strides = [1, 1]} : vector<8x512xf32> to vector<8x256xf32>
    %296 = arith.addf %295, %146 : vector<8x256xf32>
    %297 = vector.extract_strided_slice %294 {offsets = [0, 256], sizes = [8, 128], strides = [1, 1]} : vector<8x512xf32> to vector<8x128xf32>
    %298 = arith.addf %297, %253 : vector<8x128xf32>
    %299 = vector.extract_strided_slice %294 {offsets = [0, 384], sizes = [8, 128], strides = [1, 1]} : vector<8x512xf32> to vector<8x128xf32>
    %300 = arith.addf %299, %255 : vector<8x128xf32>
    %c1744 = arith.constant 1744 : index
    %c0_119 = arith.constant 0 : index
    %301 = vector.load %arg5[%c1744, %c0_119] : memref<2768x128xbf16, #tpu.memory_space<vmem>>, vector<512x128xbf16>
    %302 = arith.truncf %108 : vector<8x512xf32> to vector<8x512xbf16>
    %cst_120 = arith.constant dense<0.000000e+00> : vector<8x128xf32>
    %303 = tpu.matmul %302, %301, %cst_120 {dimension_numbers = #tpu.dot_dimension_numbers<[1], [0], [0], [1], [0, 0, 1, 1], [], []>} : vector<8x512xbf16>, vector<512x128xbf16>, vector<8x128xf32> -> vector<8x128xf32>
    %c2256 = arith.constant 2256 : index
    %c0_121 = arith.constant 0 : index
    %304 = vector.load %arg5[%c2256, %c0_121] : memref<2768x128xbf16, #tpu.memory_space<vmem>>, vector<256x128xbf16>
    %305 = arith.truncf %296 : vector<8x256xf32> to vector<8x256xbf16>
    %cst_122 = arith.constant dense<0.000000e+00> : vector<8x128xf32>
    %306 = tpu.matmul %305, %304, %cst_122 {dimension_numbers = #tpu.dot_dimension_numbers<[1], [0], [0], [1], [0, 0, 1, 1], [], []>} : vector<8x256xbf16>, vector<256x128xbf16>, vector<8x128xf32> -> vector<8x128xf32>
    %307 = arith.addf %303, %306 : vector<8x128xf32>
    %c2512 = arith.constant 2512 : index
    %c0_123 = arith.constant 0 : index
    %308 = vector.load %arg5[%c2512, %c0_123] : memref<2768x128xbf16, #tpu.memory_space<vmem>>, vector<128x128xbf16>
    %309 = arith.truncf %298 : vector<8x128xf32> to vector<8x128xbf16>
    %cst_124 = arith.constant dense<0.000000e+00> : vector<8x128xf32>
    %310 = tpu.matmul %309, %308, %cst_124 {dimension_numbers = #tpu.dot_dimension_numbers<[1], [0], [0], [1], [0, 0, 1, 1], [], []>} : vector<8x128xbf16>, vector<128x128xbf16>, vector<8x128xf32> -> vector<8x128xf32>
    %311 = arith.addf %307, %310 : vector<8x128xf32>
    %c2640 = arith.constant 2640 : index
    %c0_125 = arith.constant 0 : index
    %312 = vector.load %arg5[%c2640, %c0_125] : memref<2768x128xbf16, #tpu.memory_space<vmem>>, vector<128x128xbf16>
    %313 = arith.truncf %300 : vector<8x128xf32> to vector<8x128xbf16>
    %cst_126 = arith.constant dense<0.000000e+00> : vector<8x128xf32>
    %314 = tpu.matmul %313, %312, %cst_126 {dimension_numbers = #tpu.dot_dimension_numbers<[1], [0], [0], [1], [0, 0, 1, 1], [], []>} : vector<8x128xbf16>, vector<128x128xbf16>, vector<8x128xf32> -> vector<8x128xf32>
    %315 = arith.addf %311, %314 : vector<8x128xf32>
    %c25 = arith.constant 25 : index
    %c0_127 = arith.constant 0 : index
    %316 = vector.load %arg8[%c25, %c0_127] : memref<32x512xf32, #tpu.memory_space<vmem>>, vector<1x128xf32>
    %317 = vector.broadcast %316 : vector<1x128xf32> to vector<8x128xf32>
    %318 = arith.addf %315, %317 : vector<8x128xf32>
    %319 = vector.broadcast %3 : vector<8x1xf32> to vector<8x128xf32>
    %320 = arith.mulf %318, %319 : vector<8x128xf32>
    %c0_128 = arith.constant 0 : index
    %c0_129 = arith.constant 0 : index
    %321 = vector.load %arg9[%c0_128, %c0_129] : memref<8x128xf32, #tpu.memory_space<vmem>>, vector<8x128xf32>
    tpu.vector_store %arg9[%c0_128, %c0_129], %320 {strides = array<i32>} : memref<8x128xf32, #tpu.memory_space<vmem>>, vector<8x128xf32>,
    return
  }
  func.func @transform_0(%arg0: i32) -> (i32, i32) {
    %c0_i32 = arith.constant 0 : i32
    %c0_i32_0 = arith.constant 0 : i32
    return %arg0, %c0_i32 : i32, i32
  }
  func.func @transform_1(%arg0: i32) -> (i32, i32) {
    %c0_i32 = arith.constant 0 : i32
    %c0_i32_0 = arith.constant 0 : i32
    return %arg0, %c0_i32 : i32, i32
  }
  func.func @transform_2(%arg0: i32) -> (i32, i32) {
    %c0_i32 = arith.constant 0 : i32
    %c0_i32_0 = arith.constant 0 : i32
    return %arg0, %c0_i32 : i32, i32
  }
  func.func @transform_3(%arg0: i32) -> (i32, i32) {
    %c0_i32 = arith.constant 0 : i32
    %c0_i32_0 = arith.constant 0 : i32
    return %arg0, %c0_i32 : i32, i32
  }
  func.func @transform_4(%arg0: i32) -> (i32, i32) {
    %c0_i32 = arith.constant 0 : i32
    %c0_i32_0 = arith.constant 0 : i32
    %c0_i32_1 = arith.constant 0 : i32
    return %c0_i32, %c0_i32_0 : i32, i32
  }
  func.func @transform_5(%arg0: i32) -> (i32, i32) {
    %c0_i32 = arith.constant 0 : i32
    %c0_i32_0 = arith.constant 0 : i32
    %c0_i32_1 = arith.constant 0 : i32
    return %c0_i32, %c0_i32_0 : i32, i32
  }
  func.func @transform_6(%arg0: i32) -> (i32, i32) {
    %c0_i32 = arith.constant 0 : i32
    %c0_i32_0 = arith.constant 0 : i32
    %c0_i32_1 = arith.constant 0 : i32
    return %c0_i32, %c0_i32_0 : i32, i32
  }
  func.func @transform_7(%arg0: i32) -> (i32, i32) {
    %c0_i32 = arith.constant 0 : i32
    %c0_i32_0 = arith.constant 0 : i32
    %c0_i32_1 = arith.constant 0 : i32
    return %c0_i32, %c0_i32_0 : i32, i32
  }
  func.func @transform_8(%arg0: i32) -> (i32, i32) {
    %c0_i32 = arith.constant 0 : i32
    %c0_i32_0 = arith.constant 0 : i32
    return %arg0, %c0_i32 : i32, i32
  }
}

</mosaic_0001>

<llo_original>
// kernel: forward.1
$region0: #{forward.1}
  #allocation0 [shape = 'u32[]', space=smem, size = 0x4, offset = 0x4, fixed_abs, tag = 'smem constant byte address 0x4 - core index']
  #allocation1 [shape = 'u32[144,128]{1,0:T(1,128)}', space=vmem, size = 0x12000, scoped, tag = 'internal scratch']
  %s0 = inlined_call_operand.vmem [shape: f32[8,16], index: 0, kind: input, shape index: {}]
  %s1 = inlined_call_operand.vmem [shape: f32[8,16], index: 1, kind: input, shape index: {}]
  %s2 = inlined_call_operand.vmem [shape: f32[8,64], index: 2, kind: input, shape index: {}]
  %s3 = inlined_call_operand.vmem [shape: f32[8,1], index: 3, kind: input, shape index: {}]
  %s4 = inlined_call_operand.hbm [shape: bf16[2768,128], index: 4, kind: input, shape index: {}]
  %s5 = inlined_call_operand.hbm [shape: bf16[2304,256], index: 5, kind: input, shape index: {}]
  %s6 = inlined_call_operand.hbm [shape: bf16[2080,512], index: 6, kind: input, shape index: {}]
  %s7 = inlined_call_operand.hbm [shape: f32[32,512], index: 7, kind: input, shape index: {}]
  %s8 = inlined_call_operand.hbm [shape: f32[8,128], index: 8, kind: output, shape index: {}]
  %s9 = sld [smem:[#allocation0]]
  $region58: #{forward.1} parent=0
    _
  %s11 = ssub.s32 1, %s9
  %s12 = scalar_select 0, %s11, %s9
  $region1: #{forward.1} parent=0
    #allocation2 [shape = 'u8[708608]{0}', space=vmem, size = 0xad000, scoped, tag = 'input window, operand 4, single buffered']
    #allocation3 [shape = 's32[1]{0}', space=sflag, size = 0x4, scoped, tag = 'scoped memory for forward.1']
    #allocation4 [shape = 's32[1]{0}', space=sflag, size = 0x4, scoped, tag = 'scoped memory for forward.1']
    #allocation5 [shape = 'u8[1179648]{0}', space=vmem, size = 0x120000, scoped, tag = 'input window, operand 5, single buffered']
    #allocation6 [shape = 's32[1]{0}', space=sflag, size = 0x4, scoped, tag = 'scoped memory for forward.1']
    #allocation7 [shape = 'u8[2129920]{0}', space=vmem, size = 0x208000, scoped, tag = 'input window, operand 6, single buffered']
    #allocation8 [shape = 'u8[65536]{0}', space=vmem, size = 0x10000, scoped, tag = 'input window, operand 7, single buffered']
    #allocation9 [shape = 's32[1]{0}', space=sflag, size = 0x4, scoped, tag = 'scoped memory for forward.1']
    #allocation10 [shape = 'u8[4096]{0}', space=vmem, size = 0x1000, scoped, tag = 'output window, operand 0, single buffered']
    %13 = vsyncpa [#allocation3], 0
    %14 = vsyncpa [#allocation6], 0
    %15 = vsyncpa [#allocation9], 0
    %16 = vsyncpa [#allocation4], 0
    // Predicated region
    $region2: #{forward.1} parent=1 // pred_check
      _
    $region3: #{forward.1} parent=1 // pred_check_branch
      %18 = sbr.rel (0) target = $region5
    $region4: #{forward.1} parent=1 // pred_region
      _
    $region5: #{forward.1} parent=1 // pred_fallthru
      _
    // Predicated region
    $region6: #{forward.1} parent=1 // pred_check
      _
    $region7: #{forward.1} parent=1 // pred_check_branch
      %20 = sbr.rel (0) target = $region9
    $region8: #{forward.1} parent=1 // pred_region
      _
    $region9: #{forward.1} parent=1 // pred_fallthru
      _
    // Predicated region
    $region10: #{forward.1} parent=1 // pred_check
      _
    $region11: #{forward.1} parent=1 // pred_check_branch
      %22 = sbr.rel (0) target = $region13
    $region12: #{forward.1} parent=1 // pred_region
      _
    $region13: #{forward.1} parent=1 // pred_fallthru
      _
    // Predicated region
    $region14: #{forward.1} parent=1 // pred_check
      _
    $region15: #{forward.1} parent=1 // pred_check_branch
      %24 = sbr.rel (0) target = $region17
    $region16: #{forward.1} parent=1 // pred_region
      _
    $region17: #{forward.1} parent=1 // pred_fallthru
      _
    // Predicated region
    $region18: #{forward.1} parent=1 // pred_check
      _
    $region19: #{forward.1} parent=1 // pred_check_branch
      %26 = sbr.rel (0) target = $region21
    $region20: #{forward.1} parent=1 // pred_region
      %s28 = ssub.s32 22144, 22144
      %29 = vsyncadd [#allocation3], %s28
      %s30 = sshll.u32 [#allocation2], 4
      %s31 = int_to_ptr.vmem [resolvable:$true] %s30
      %36 = dma.hbm_to_vmem [thread:$0]  %s4, 22144, %s31, [#allocation3], 64, 64, 4
    $region21: #{forward.1} parent=1 // pred_fallthru
      _
    // Predicated region
    $region22: #{forward.1} parent=1 // pred_check
      _
    $region23: #{forward.1} parent=1 // pred_check_branch
      %38 = sbr.rel (0) target = $region25
    $region24: #{forward.1} parent=1 // pred_region
      %s40 = ssub.s32 36864, 36864
      %41 = vsyncadd [#allocation6], %s40
      %s42 = sshll.u32 [#allocation5], 4
      %s43 = int_to_ptr.vmem [resolvable:$true] %s42
      %48 = dma.hbm_to_vmem [thread:$0]  %s5, 36864, %s43, [#allocation6], 128, 128, 8
    $region25: #{forward.1} parent=1 // pred_fallthru
      _
    // Predicated region
    $region26: #{forward.1} parent=1 // pred_check
      _
    $region27: #{forward.1} parent=1 // pred_check_branch
      %50 = sbr.rel (0) target = $region29
    $region28: #{forward.1} parent=1 // pred_region
      %s52 = ssub.s32 66560, 66560
      %53 = vsyncadd [#allocation6], %s52
      %s54 = sshll.u32 [#allocation7], 4
      %s55 = int_to_ptr.vmem [resolvable:$true] %s54
      %60 = dma.hbm_to_vmem [thread:$0]  %s6, 66560, %s55, [#allocation6], 256, 256, 16
    $region29: #{forward.1} parent=1 // pred_fallthru
      _
    // Predicated region
    $region30: #{forward.1} parent=1 // pred_check
      _
    $region31: #{forward.1} parent=1 // pred_check_branch
      %62 = sbr.rel (0) target = $region33
    $region32: #{forward.1} parent=1 // pred_region
      %s64 = ssub.s32 2048, 2048
      %65 = vsyncadd [#allocation9], %s64
      %s66 = sshll.u32 [#allocation8], 4
      %s67 = int_to_ptr.vmem [resolvable:$true] %s66
      %72 = dma.hbm_to_vmem [thread:$0]  %s7, 2048, %s67, [#allocation9], 512, 512, 32
    $region33: #{forward.1} parent=1 // pred_fallthru
      _
    // Predicated region
    $region34: #{forward.1} parent=1 // pred_check
      _
    $region35: #{forward.1} parent=1 // pred_check_branch
      %74 = sbr.rel (0) target = $region37
    $region36: #{forward.1} parent=1 // pred_region
      %75 = dma.done [#allocation3], 22144
    $region37: #{forward.1} parent=1 // pred_fallthru
      _
    // Predicated region
    $region38: #{forward.1} parent=1 // pred_check
      _
    $region39: #{forward.1} parent=1 // pred_check_branch
      %77 = sbr.rel (0) target = $region41
    $region40: #{forward.1} parent=1 // pred_region
      %78 = dma.done [#allocation6], 36864
    $region41: #{forward.1} parent=1 // pred_fallthru
      _
    // Predicated region
    $region42: #{forward.1} parent=1 // pred_check
      _
    $region43: #{forward.1} parent=1 // pred_check_branch
      %80 = sbr.rel (0) target = $region45
    $region44: #{forward.1} parent=1 // pred_region
      %81 = dma.done [#allocation6], 66560
    $region45: #{forward.1} parent=1 // pred_fallthru
      _
    // Predicated region
    $region46: #{forward.1} parent=1 // pred_check
      _
    $region47: #{forward.1} parent=1 // pred_check_branch
      %83 = sbr.rel (0) target = $region49
    $region48: #{forward.1} parent=1 // pred_region
      %84 = dma.done [#allocation9], 2048
    $region49: #{forward.1} parent=1 // pred_fallthru
      _
    %v86 = vld [vmem:[%s0] sm:$0xff]
    %v87 = vld [vmem:[%s1] sm:$0xff]
    %v88 = vld [vmem:[%s2] sm:$0xff]
    %v89 = vld [vmem:[%s3] sm:$0xff]
    %v90 = vld [vmem:[#allocation2] sm:$0xf]
    %v91 = vld [vmem:[#allocation2 + $0x4] sm:$0xf]
    %v92 = vld [vmem:[#allocation2 + $0x8] sm:$0xf]
    %v93 = vld [vmem:[#allocation2 + $0xc] sm:$0xf]
    %v94 = vld [vmem:[#allocation2 + $0x10] sm:$0xf]
    %v95 = vld [vmem:[#allocation2 + $0x14] sm:$0xf]
    %v96 = vld [vmem:[#allocation2 + $0x18] sm:$0xf]
    %v97 = vld [vmem:[#allocation2 + $0x1c] sm:$0xf]
    %v98 = vpack.c.bf16 %v88, %v88
    %v99 = vld [vmem:[#allocation8] ss:$0 sm:$0xff]
    %v108 = vunpack.c.l.b16 %v90
    %v109 = vunpack.c.l.b16 %v91
    %v110 = vunpack.c.l.b16 %v92
    %v111 = vunpack.c.l.b16 %v93
    %v112 = vunpack.c.l.b16 %v94
    %v113 = vunpack.c.l.b16 %v95
    %v114 = vunpack.c.l.b16 %v96
    %v115 = vunpack.c.l.b16 %v97
    %v116 = vpack.c.b16 %v109, %v108
    %v117 = vpack.c.b16 %v111, %v110
    %v118 = vpack.c.b16 %v113, %v112
    %v119 = vpack.c.b16 %v115, %v114
    %vm124 = vcmask 523264
    %v126 = vsel %vm124, %v98, 0
    %128 = vmatprep.subr.bf16.mxu0 0
    %129 = vmatpush1.bf16.msra.mxu0 0
    %130 = vmatprep.subr.bf16.mxu0 0
    %131 = vmatpush1.bf16.msra.mxu0 0
    %132 = vmatprep.subr.bf16.mxu0 0
    %133 = vmatpush1.bf16.msra.mxu0 0
    %134 = vmatprep.subr.bf16.mxu0 0
    %135 = vmatpush1.bf16.msra.mxu0 0
    %136 = vmatprep.subr.bf16.mxu0 0
    %137 = vmatpush1.bf16.msra.mxu0 %v119
    %138 = vmatprep.subr.bf16.mxu0 0
    %139 = vmatpush1.bf16.msra.mxu0 %v118
    %140 = vmatprep.subr.bf16.mxu0 0
    %141 = vmatpush1.bf16.msra.mxu0 %v117
    %142 = vmatprep.subr.bf16.mxu0 0
    %143 = vmatpush1.bf16.msra.mxu0 %v116
    %144 = vmatprep.subr.bf16.mxu0 0
    %145 = vmatpush2.bf16.msra.mxu0 0
    %146 = vmatprep.subr.bf16.mxu0 0
    %147 = vmatpush2.bf16.msra.mxu0 0
    %148 = vmatprep.subr.bf16.mxu0 0
    %149 = vmatpush2.bf16.msra.mxu0 0
    %150 = vmatprep.subr.bf16.mxu0 0
    %151 = vmatpush2.bf16.msra.mxu0 0
    %152 = vmatprep.subr.bf16.mxu0 0
    %153 = vmatpush2.bf16.msra.mxu0 0
    %154 = vmatprep.subr.bf16.mxu0 0
    %155 = vmatpush2.bf16.msra.mxu0 0
    %156 = vmatprep.subr.bf16.mxu0 0
    %157 = vmatpush2.bf16.msra.mxu0 0
    %158 = vmatprep.subr.bf16.mxu0 0
    %159 = vmatpush2.bf16.msra.mxu0 0
    %160 = vmatprep.mubr.bf16.mxu0 0
    %161 = vmatmul.mubr.bf16.gmra.mxu0 %v126
    %v162 = vpop.f32.mrf.mxu0
    %v163 = vadd.f32 %v99, %v162
    %v164 = vpop.f32.mrf.mxu0
    %v165 = vpop.f32.mrf.mxu0
    %v166 = vpop.f32.mrf.mxu0
    %167 = vdwg.mxu0
    %v168 = vld [vmem:[#allocation2 + $0x20] sm:$0xf]
    %v169 = vld [vmem:[#allocation2 + $0x24] sm:$0xf]
    %v170 = vpack.c.bf16 %v87, %v87
    %v171 = vld [vmem:[#allocation8 + $0x1] ss:$0 sm:$0xff]
    %v174 = vunpack.c.l.b16 %v168
    %v175 = vunpack.c.l.b16 %v169
    %v176 = vpack.c.b16 %v175, %v174
    %vm178 = vcmask 130048
    %v180 = vsel %vm178, %v170, 0
    %182 = vmatprep.subr.bf16.mxu0 0
    %183 = vmatpush1.bf16.msra.mxu0 0
    %184 = vmatprep.subr.bf16.mxu0 0
    %185 = vmatpush1.bf16.msra.mxu0 0
    %186 = vmatprep.subr.bf16.mxu0 0
    %187 = vmatpush1.bf16.msra.mxu0 0
    %188 = vmatprep.subr.bf16.mxu0 0
    %189 = vmatpush1.bf16.msra.mxu0 0
    %190 = vmatprep.subr.bf16.mxu0 0
    %191 = vmatpush1.bf16.msra.mxu0 0
    %192 = vmatprep.subr.bf16.mxu0 0
    %193 = vmatpush1.bf16.msra.mxu0 0
    %194 = vmatprep.subr.bf16.mxu0 0
    %195 = vmatpush1.bf16.msra.mxu0 0
    %196 = vmatprep.subr.bf16.mxu0 0
    %197 = vmatpush1.bf16.msra.mxu0 %v176
    %198 = vmatprep.subr.bf16.mxu0 0
    %199 = vmatpush2.bf16.msra.mxu0 0
    %200 = vmatprep.subr.bf16.mxu0 0
    %201 = vmatpush2.bf16.msra.mxu0 0
    %202 = vmatprep.subr.bf16.mxu0 0
    %203 = vmatpush2.bf16.msra.mxu0 0
    %204 = vmatprep.subr.bf16.mxu0 0
    %205 = vmatpush2.bf16.msra.mxu0 0
    %206 = vmatprep.subr.bf16.mxu0 0
    %207 = vmatpush2.bf16.msra.mxu0 0
    %208 = vmatprep.subr.bf16.mxu0 0
    %209 = vmatpush2.bf16.msra.mxu0 0
    %210 = vmatprep.subr.bf16.mxu0 0
    %211 = vmatpush2.bf16.msra.mxu0 0
    %212 = vmatprep.subr.bf16.mxu0 0
    %213 = vmatpush2.bf16.msra.mxu0 0
    %214 = vmatprep.mubr.bf16.mxu0 0
    %215 = vmatmul.mubr.bf16.gmra.mxu0 %v180
    %v216 = vpop.f32.mrf.mxu0
    %v217 = vadd.f32 %v171, %v216
    %v218 = vpop.f32.mrf.mxu0
    %v219 = vpop.f32.mrf.mxu0
    %v220 = vpop.f32.mrf.mxu0
    %221 = vdwg.mxu0
    %v222 = vxor.u32 %v217, 2147483648
    %v223 = vmul.f32 %v222, 1.442695
    %v224 = vpow.pop %v223
    %v225 = vadd.f32 %v224, 1.0
    %v226 = vrcp.pop %v225
    %v227 = vmul.f32 1.0, %v226
    %v228 = vmul.f32 %v217, %v227
    %v229 = vld [vmem:[#allocation2 + $0x28] sm:$0xf]
    %v230 = vld [vmem:[#allocation2 + $0x2c] sm:$0xf]
    %v231 = vld [vmem:[#allocation2 + $0x30] sm:$0xf]
    %v232 = vld [vmem:[#allocation2 + $0x34] sm:$0xf]
    %v233 = vld [vmem:[#allocation2 + $0x38] sm:$0xf]
    %v234 = vld [vmem:[#allocation2 + $0x3c] sm:$0xf]
    %v235 = vld [vmem:[#allocation2 + $0x40] sm:$0xf]
    %v236 = vld [vmem:[#allocation2 + $0x44] sm:$0xf]
    %v237 = vld [vmem:[#allocation2 + $0x48] sm:$0xf]
    %v238 = vld [vmem:[#allocation2 + $0x4c] sm:$0xf]
    %v239 = vld [vmem:[#allocation2 + $0x50] sm:$0xf]
    %v240 = vld [vmem:[#allocation2 + $0x54] sm:$0xf]
    %v241 = vld [vmem:[#allocation2 + $0x58] sm:$0xf]
    %v242 = vld [vmem:[#allocation2 + $0x5c] sm:$0xf]
    %v243 = vld [vmem:[#allocation2 + $0x60] sm:$0xf]
    %v244 = vld [vmem:[#allocation2 + $0x64] sm:$0xf]
    %v245 = vpack.c.bf16 %v163, %v163
    %v246 = vld [vmem:[#allocation8 + $0x2] ss:$0 sm:$0xff]
    %v263 = vunpack.c.l.b16 %v229
    %v264 = vunpack.c.l.b16 %v230
    %v265 = vunpack.c.l.b16 %v231
    %v266 = vunpack.c.l.b16 %v232
    %v267 = vunpack.c.l.b16 %v233
    %v268 = vunpack.c.l.b16 %v234
    %v269 = vunpack.c.l.b16 %v235
    %v270 = vunpack.c.l.b16 %v236
    %v271 = vunpack.c.l.b16 %v237
    %v272 = vunpack.c.l.b16 %v238
    %v273 = vunpack.c.l.b16 %v239
    %v274 = vunpack.c.l.b16 %v240
    %v275 = vunpack.c.l.b16 %v241
    %v276 = vunpack.c.l.b16 %v242
    %v277 = vunpack.c.l.b16 %v243
    %v278 = vunpack.c.l.b16 %v244
    %v279 = vpack.c.b16 %v264, %v263
    %v280 = vpack.c.b16 %v266, %v265
    %v281 = vpack.c.b16 %v268, %v267
    %v282 = vpack.c.b16 %v270, %v269
    %v283 = vpack.c.b16 %v272, %v271
    %v284 = vpack.c.b16 %v274, %v273
    %v285 = vpack.c.b16 %v276, %v275
    %v286 = vpack.c.b16 %v278, %v277
    %295 = vmatprep.subr.bf16.mxu0 0
    %296 = vmatpush1.bf16.msra.mxu0 %v286
    %297 = vmatprep.subr.bf16.mxu0 0
    %298 = vmatpush1.bf16.msra.mxu0 %v285
    %299 = vmatprep.subr.bf16.mxu0 0
    %300 = vmatpush1.bf16.msra.mxu0 %v284
    %301 = vmatprep.subr.bf16.mxu0 0
    %302 = vmatpush1.bf16.msra.mxu0 %v283
    %303 = vmatprep.subr.bf16.mxu0 0
    %304 = vmatpush1.bf16.msra.mxu0 %v282
    %305 = vmatprep.subr.bf16.mxu0 0
    %306 = vmatpush1.bf16.msra.mxu0 %v281
    %307 = vmatprep.subr.bf16.mxu0 0
    %308 = vmatpush1.bf16.msra.mxu0 %v280
    %309 = vmatprep.subr.bf16.mxu0 0
    %310 = vmatpush1.bf16.msra.mxu0 %v279
    %311 = vmatprep.subr.bf16.mxu0 0
    %312 = vmatpush2.bf16.msra.mxu0 0
    %313 = vmatprep.subr.bf16.mxu0 0
    %314 = vmatpush2.bf16.msra.mxu0 0
    %315 = vmatprep.subr.bf16.mxu0 0
    %316 = vmatpush2.bf16.msra.mxu0 0
    %317 = vmatprep.subr.bf16.mxu0 0
    %318 = vmatpush2.bf16.msra.mxu0 0
    %319 = vmatprep.subr.bf16.mxu0 0
    %320 = vmatpush2.bf16.msra.mxu0 0
    %321 = vmatprep.subr.bf16.mxu0 0
    %322 = vmatpush2.bf16.msra.mxu0 0
    %323 = vmatprep.subr.bf16.mxu0 0
    %324 = vmatpush2.bf16.msra.mxu0 0
    %325 = vmatprep.subr.bf16.mxu0 0
    %326 = vmatpush2.bf16.msra.mxu0 0
    %327 = vmatprep.mubr.bf16.mxu0 0
    %328 = vmatmul.mubr.bf16.gmra.mxu0 %v245
    %v329 = vpop.f32.mrf.mxu0
    %v330 = vadd.f32 %v246, %v329
    %v331 = vpop.f32.mrf.mxu0
    %v332 = vpop.f32.mrf.mxu0
    %v333 = vpop.f32.mrf.mxu0
    %334 = vdwg.mxu0
    %v335 = vxor.u32 %v330, 2147483648
    %v336 = vmul.f32 %v335, 1.442695
    %v337 = vpow.pop %v336
    %v338 = vadd.f32 %v337, 1.0
    %v339 = vrcp.pop %v338
    %v340 = vmul.f32 1.0, %v339
    %v341 = vmul.f32 %v330, %v340
    %v342 = vld [vmem:[#allocation2 + $0x68] sm:$0xf]
    %v343 = vld [vmem:[#allocation2 + $0x6c] sm:$0xf]
    %v344 = vld [vmem:[#allocation2 + $0x70] sm:$0xf]
    %v345 = vld [vmem:[#allocation2 + $0x74] sm:$0xf]
    %v346 = vld [vmem:[#allocation2 + $0x78] sm:$0xf]
    %v347 = vld [vmem:[#allocation2 + $0x7c] sm:$0xf]
    %v348 = vld [vmem:[#allocation2 + $0x80] sm:$0xf]
    %v349 = vld [vmem:[#allocation2 + $0x84] sm:$0xf]
    %v350 = vld [vmem:[#allocation2 + $0x88] sm:$0xf]
    %v351 = vld [vmem:[#allocation2 + $0x8c] sm:$0xf]
    %v352 = vld [vmem:[#allocation2 + $0x90] sm:$0xf]
    %v353 = vld [vmem:[#allocation2 + $0x94] sm:$0xf]
    %v354 = vld [vmem:[#allocation2 + $0x98] sm:$0xf]
    %v355 = vld [vmem:[#allocation2 + $0x9c] sm:$0xf]
    %v356 = vld [vmem:[#allocation2 + $0xa0] sm:$0xf]
    %v357 = vld [vmem:[#allocation2 + $0xa4] sm:$0xf]
    %v358 = vpack.c.bf16 %v341, %v341
    %v359 = vld [vmem:[#allocation8 + $0x3] ss:$0 sm:$0xff]
    %v376 = vunpack.c.l.b16 %v342
    %v377 = vunpack.c.l.b16 %v343
    %v378 = vunpack.c.l.b16 %v344
    %v379 = vunpack.c.l.b16 %v345
    %v380 = vunpack.c.l.b16 %v346
    %v381 = vunpack.c.l.b16 %v347
    %v382 = vunpack.c.l.b16 %v348
    %v383 = vunpack.c.l.b16 %v349
    %v384 = vunpack.c.l.b16 %v350
    %v385 = vunpack.c.l.b16 %v351
    %v386 = vunpack.c.l.b16 %v352
    %v387 = vunpack.c.l.b16 %v353
    %v388 = vunpack.c.l.b16 %v354
    %v389 = vunpack.c.l.b16 %v355
    %v390 = vunpack.c.l.b16 %v356
    %v391 = vunpack.c.l.b16 %v357
    %v392 = vpack.c.b16 %v377, %v376
    %v393 = vpack.c.b16 %v379, %v378
    %v394 = vpack.c.b16 %v381, %v380
    %v395 = vpack.c.b16 %v383, %v382
    %v396 = vpack.c.b16 %v385, %v384
    %v397 = vpack.c.b16 %v387, %v386
    %v398 = vpack.c.b16 %v389, %v388
    %v399 = vpack.c.b16 %v391, %v390
    %408 = vmatprep.subr.bf16.mxu0 0
    %409 = vmatpush1.bf16.msra.mxu0 %v399
    %410 = vmatprep.subr.bf16.mxu0 0
    %411 = vmatpush1.bf16.msra.mxu0 %v398
    %412 = vmatprep.subr.bf16.mxu0 0
    %413 = vmatpush1.bf16.msra.mxu0 %v397
    %414 = vmatprep.subr.bf16.mxu0 0
    %415 = vmatpush1.bf16.msra.mxu0 %v396
    %416 = vmatprep.subr.bf16.mxu0 0
    %417 = vmatpush1.bf16.msra.mxu0 %v395
    %418 = vmatprep.subr.bf16.mxu0 0
    %419 = vmatpush1.bf16.msra.mxu0 %v394
    %420 = vmatprep.subr.bf16.mxu0 0
    %421 = vmatpush1.bf16.msra.mxu0 %v393
    %422 = vmatprep.subr.bf16.mxu0 0
    %423 = vmatpush1.bf16.msra.mxu0 %v392
    %424 = vmatprep.subr.bf16.mxu0 0
    %425 = vmatpush2.bf16.msra.mxu0 0
    %426 = vmatprep.subr.bf16.mxu0 0
    %427 = vmatpush2.bf16.msra.mxu0 0
    %428 = vmatprep.subr.bf16.mxu0 0
    %429 = vmatpush2.bf16.msra.mxu0 0
    %430 = vmatprep.subr.bf16.mxu0 0
    %431 = vmatpush2.bf16.msra.mxu0 0
    %432 = vmatprep.subr.bf16.mxu0 0
    %433 = vmatpush2.bf16.msra.mxu0 0
    %434 = vmatprep.subr.bf16.mxu0 0
    %435 = vmatpush2.bf16.msra.mxu0 0
    %436 = vmatprep.subr.bf16.mxu0 0
    %437 = vmatpush2.bf16.msra.mxu0 0
    %438 = vmatprep.subr.bf16.mxu0 0
    %439 = vmatpush2.bf16.msra.mxu0 0
    %440 = vmatprep.mubr.bf16.mxu0 0
    %441 = vmatmul.mubr.bf16.gmra.mxu0 %v358
    %v442 = vpop.f32.mrf.mxu0
    %v443 = vadd.f32 %v359, %v442
    %v444 = vpop.f32.mrf.mxu0
    %v445 = vpop.f32.mrf.mxu0
    %v446 = vpop.f32.mrf.mxu0
    %447 = vdwg.mxu0
    %v448 = vpack.c.bf16 %v228, %v228
    %449 = vmatprep.subr.bf16.mxu0 0
    %450 = vmatpush1.bf16.msra.mxu0 %v286
    %451 = vmatprep.subr.bf16.mxu0 0
    %452 = vmatpush1.bf16.msra.mxu0 %v285
    %453 = vmatprep.subr.bf16.mxu0 0
    %454 = vmatpush1.bf16.msra.mxu0 %v284
    %455 = vmatprep.subr.bf16.mxu0 0
    %456 = vmatpush1.bf16.msra.mxu0 %v283
    %457 = vmatprep.subr.bf16.mxu0 0
    %458 = vmatpush1.bf16.msra.mxu0 %v282
    %459 = vmatprep.subr.bf16.mxu0 0
    %460 = vmatpush1.bf16.msra.mxu0 %v281
    %461 = vmatprep.subr.bf16.mxu0 0
    %462 = vmatpush1.bf16.msra.mxu0 %v280
    %463 = vmatprep.subr.bf16.mxu0 0
    %464 = vmatpush1.bf16.msra.mxu0 %v279
    %465 = vmatprep.subr.bf16.mxu0 0
    %466 = vmatpush2.bf16.msra.mxu0 0
    %467 = vmatprep.subr.bf16.mxu0 0
    %468 = vmatpush2.bf16.msra.mxu0 0
    %469 = vmatprep.subr.bf16.mxu0 0
    %470 = vmatpush2.bf16.msra.mxu0 0
    %471 = vmatprep.subr.bf16.mxu0 0
    %472 = vmatpush2.bf16.msra.mxu0 0
    %473 = vmatprep.subr.bf16.mxu0 0
    %474 = vmatpush2.bf16.msra.mxu0 0
    %475 = vmatprep.subr.bf16.mxu0 0
    %476 = vmatpush2.bf16.msra.mxu0 0
    %477 = vmatprep.subr.bf16.mxu0 0
    %478 = vmatpush2.bf16.msra.mxu0 0
    %479 = vmatprep.subr.bf16.mxu0 0
    %480 = vmatpush2.bf16.msra.mxu0 0
    %481 = vmatprep.mubr.bf16.mxu0 0
    %482 = vmatmul.mubr.bf16.gmra.mxu0 %v448
    %v483 = vpop.f32.mrf.mxu0
    %v484 = vadd.f32 %v246, %v483
    %v485 = vpop.f32.mrf.mxu0
    %v486 = vpop.f32.mrf.mxu0
    %v487 = vpop.f32.mrf.mxu0
    %488 = vdwg.mxu0
    %v489 = vxor.u32 %v484, 2147483648
    %v490 = vmul.f32 %v489, 1.442695
    %v491 = vpow.pop %v490
    %v492 = vadd.f32 %v491, 1.0
    %v493 = vrcp.pop %v492
    %v494 = vmul.f32 1.0, %v493
    %v495 = vmul.f32 %v484, %v494
    %v496 = vpack.c.bf16 %v495, %v495
    %497 = vmatprep.subr.bf16.mxu0 0
    %498 = vmatpush1.bf16.msra.mxu0 %v399
    %499 = vmatprep.subr.bf16.mxu0 0
    %500 = vmatpush1.bf16.msra.mxu0 %v398
    %501 = vmatprep.subr.bf16.mxu0 0
    %502 = vmatpush1.bf16.msra.mxu0 %v397
    %503 = vmatprep.subr.bf16.mxu0 0
    %504 = vmatpush1.bf16.msra.mxu0 %v396
    %505 = vmatprep.subr.bf16.mxu0 0
    %506 = vmatpush1.bf16.msra.mxu0 %v395
    %507 = vmatprep.subr.bf16.mxu0 0
    %508 = vmatpush1.bf16.msra.mxu0 %v394
    %509 = vmatprep.subr.bf16.mxu0 0
    %510 = vmatpush1.bf16.msra.mxu0 %v393
    %511 = vmatprep.subr.bf16.mxu0 0
    %512 = vmatpush1.bf16.msra.mxu0 %v392
    %513 = vmatprep.subr.bf16.mxu0 0
    %514 = vmatpush2.bf16.msra.mxu0 0
    %515 = vmatprep.subr.bf16.mxu0 0
    %516 = vmatpush2.bf16.msra.mxu0 0
    %517 = vmatprep.subr.bf16.mxu0 0
    %518 = vmatpush2.bf16.msra.mxu0 0
    %519 = vmatprep.subr.bf16.mxu0 0
    %520 = vmatpush2.bf16.msra.mxu0 0
    %521 = vmatprep.subr.bf16.mxu0 0
    %522 = vmatpush2.bf16.msra.mxu0 0
    %523 = vmatprep.subr.bf16.mxu0 0
    %524 = vmatpush2.bf16.msra.mxu0 0
    %525 = vmatprep.subr.bf16.mxu0 0
    %526 = vmatpush2.bf16.msra.mxu0 0
    %527 = vmatprep.subr.bf16.mxu0 0
    %528 = vmatpush2.bf16.msra.mxu0 0
    %529 = vmatprep.mubr.bf16.mxu0 0
    %530 = vmatmul.mubr.bf16.gmra.mxu0 %v496
    %v531 = vpop.f32.mrf.mxu0
    %v532 = vadd.f32 %v359, %v531
    %v533 = vpop.f32.mrf.mxu0
    %v534 = vpop.f32.mrf.mxu0
    %v535 = vpop.f32.mrf.mxu0
    %536 = vdwg.mxu0
    %v537 = vxor.u32 %v443, 2147483648
    %v538 = vmul.f32 %v537, 1.442695
    %v539 = vpow.pop %v538
    %v540 = vadd.f32 %v539, 1.0
    %v541 = vrcp.pop %v540
    %v542 = vmul.f32 1.0, %v541
    %v543 = vmul.f32 %v443, %v542
    %v544 = vxor.u32 %v532, 2147483648
    %v545 = vmul.f32 %v544, 1.442695
    %v546 = vpow.pop %v545
    %v547 = vadd.f32 %v546, 1.0
    %v548 = vrcp.pop %v547
    %v549 = vmul.f32 1.0, %v548
    %v550 = vmul.f32 %v532, %v549
    %v551 = vld [vmem:[#allocation7] sm:$0xff]
    %v552 = vld [vmem:[#allocation7 + $0x8] sm:$0xff]
    %v553 = vld [vmem:[#allocation7 + $0x10] sm:$0xff]
    %v554 = vld [vmem:[#allocation7 + $0x18] sm:$0xff]
    %v555 = vpack.c.bf16 %v86, %v86
    %s556 = scalar_lea.vmem [#allocation8], 4
    %v557 = vld [vmem:[%s556] ss:$8 sm:$0xf]
    %v559 = vlaneseq
    %v560 = vshrl.u32 %v559, 7
    %v561 = vsub.s32 0, %v560
    %v562 = vrot.slane %v557, %v561
    %v563 = vlaneseq
    %v564 = vshrl.u32 %v563, 7
    %v565 = vsub.s32 1, %v564
    %v566 = vrot.slane %v557, %v565
    %v567 = vlaneseq
    %v568 = vshrl.u32 %v567, 7
    %v569 = vsub.s32 2, %v568
    %v570 = vrot.slane %v557, %v569
    %v571 = vlaneseq
    %v572 = vshrl.u32 %v571, 7
    %v573 = vsub.s32 3, %v572
    %v574 = vrot.slane %v557, %v573
    %v583 = vunpack.c.l.b16 %v551
    %v584 = vunpack.c.h.b16 %v551
    %v585 = vunpack.c.l.b16 %v552
    %v586 = vunpack.c.h.b16 %v552
    %v587 = vunpack.c.l.b16 %v553
    %v588 = vunpack.c.h.b16 %v553
    %v589 = vunpack.c.l.b16 %v554
    %v590 = vunpack.c.h.b16 %v554
    %v591 = vpack.c.b16 %v587, %v583
    %v592 = vpack.c.b16 %v588, %v584
    %v593 = vpack.c.b16 %v589, %v585
    %v594 = vpack.c.b16 %v590, %v586
    %v600 = vsel %vm178, %v555, 0
    %602 = vmatprep.subr.bf16.mxu0 0
    %603 = vmatpush1.bf16.msra.mxu0 0
    %604 = vmatprep.subr.bf16.mxu0 0
    %605 = vmatpush1.bf16.msra.mxu0 0
    %606 = vmatprep.subr.bf16.mxu0 0
    %607 = vmatpush1.bf16.msra.mxu0 0
    %608 = vmatprep.subr.bf16.mxu0 0
    %609 = vmatpush1.bf16.msra.mxu0 0
    %610 = vmatprep.subr.bf16.mxu0 0
    %611 = vmatpush1.bf16.msra.mxu0 0
    %612 = vmatprep.subr.bf16.mxu0 0
    %613 = vmatpush1.bf16.msra.mxu0 0
    %614 = vmatprep.subr.bf16.mxu0 0
    %615 = vmatpush1.bf16.msra.mxu0 0
    %616 = vmatprep.subr.bf16.mxu0 %v592
    %617 = vmatpush1.bf16.msra.mxu0 %v591
    %618 = vmatprep.subr.bf16.mxu0 0
    %619 = vmatpush2.bf16.msra.mxu0 0
    %620 = vmatprep.subr.bf16.mxu0 0
    %621 = vmatpush2.bf16.msra.mxu0 0
    %622 = vmatprep.subr.bf16.mxu0 0
    %623 = vmatpush2.bf16.msra.mxu0 0
    %624 = vmatprep.subr.bf16.mxu0 0
    %625 = vmatpush2.bf16.msra.mxu0 0
    %626 = vmatprep.subr.bf16.mxu0 0
    %627 = vmatpush2.bf16.msra.mxu0 0
    %628 = vmatprep.subr.bf16.mxu0 0
    %629 = vmatpush2.bf16.msra.mxu0 0
    %630 = vmatprep.subr.bf16.mxu0 0
    %631 = vmatpush2.bf16.msra.mxu0 0
    %632 = vmatprep.subr.bf16.mxu0 0
    %633 = vmatpush2.bf16.msra.mxu0 0
    %634 = vmatprep.mubr.bf16.mxu0 0
    %635 = vmatmul.mubr.bf16.gmra.mxu0 %v600
    %v636 = vpop.f32.mrf.mxu0
    %v637 = vadd.f32 %v562, %v636
    %v638 = vpop.f32.mrf.mxu0
    %v639 = vadd.f32 %v566, %v638
    %v640 = vpop.f32.mrf.mxu0
    %v641 = vpop.f32.mrf.mxu0
    %642 = vdwg.mxu0
    %643 = vmatprep.subr.bf16.mxu0 0
    %644 = vmatpush1.bf16.msra.mxu0 0
    %645 = vmatprep.subr.bf16.mxu0 0
    %646 = vmatpush1.bf16.msra.mxu0 0
    %647 = vmatprep.subr.bf16.mxu0 0
    %648 = vmatpush1.bf16.msra.mxu0 0
    %649 = vmatprep.subr.bf16.mxu0 0
    %650 = vmatpush1.bf16.msra.mxu0 0
    %651 = vmatprep.subr.bf16.mxu0 0
    %652 = vmatpush1.bf16.msra.mxu0 0
    %653 = vmatprep.subr.bf16.mxu0 0
    %654 = vmatpush1.bf16.msra.mxu0 0
    %655 = vmatprep.subr.bf16.mxu0 0
    %656 = vmatpush1.bf16.msra.mxu0 0
    %657 = vmatprep.subr.bf16.mxu0 %v594
    %658 = vmatpush1.bf16.msra.mxu0 %v593
    %659 = vmatprep.subr.bf16.mxu0 0
    %660 = vmatpush2.bf16.msra.mxu0 0
    %661 = vmatprep.subr.bf16.mxu0 0
    %662 = vmatpush2.bf16.msra.mxu0 0
    %663 = vmatprep.subr.bf16.mxu0 0
    %664 = vmatpush2.bf16.msra.mxu0 0
    %665 = vmatprep.subr.bf16.mxu0 0
    %666 = vmatpush2.bf16.msra.mxu0 0
    %667 = vmatprep.subr.bf16.mxu0 0
    %668 = vmatpush2.bf16.msra.mxu0 0
    %669 = vmatprep.subr.bf16.mxu0 0
    %670 = vmatpush2.bf16.msra.mxu0 0
    %671 = vmatprep.subr.bf16.mxu0 0
    %672 = vmatpush2.bf16.msra.mxu0 0
    %673 = vmatprep.subr.bf16.mxu0 0
    %674 = vmatpush2.bf16.msra.mxu0 0
    %675 = vmatprep.mubr.bf16.mxu0 0
    %676 = vmatmul.mubr.bf16.gmra.mxu0 %v600
    %v677 = vpop.f32.mrf.mxu0
    %v678 = vadd.f32 %v570, %v677
    %v679 = vpop.f32.mrf.mxu0
    %v680 = vadd.f32 %v574, %v679
    %v681 = vpop.f32.mrf.mxu0
    %v682 = vpop.f32.mrf.mxu0
    %683 = vdwg.mxu0
    %v684 = vxor.u32 %v637, 2147483648
    %v685 = vxor.u32 %v639, 2147483648
    %v686 = vxor.u32 %v678, 2147483648
    %v687 = vxor.u32 %v680, 2147483648
    %v688 = vmul.f32 %v684, 1.442695
    %v689 = vpow.pop %v688
    %v690 = vmul.f32 %v685, 1.442695
    %v691 = vpow.pop %v690
    %v692 = vmul.f32 %v686, 1.442695
    %v693 = vpow.pop %v692
    %v694 = vmul.f32 %v687, 1.442695
    %v695 = vpow.pop %v694
    %v696 = vadd.f32 %v689, 1.0
    %v697 = vadd.f32 %v691, 1.0
    %v698 = vadd.f32 %v693, 1.0
    %v699 = vadd.f32 %v695, 1.0
    %v700 = vrcp.pop %v696
    %v701 = vmul.f32 1.0, %v700
    %v702 = vrcp.pop %v697
    %v703 = vmul.f32 1.0, %v702
    %v704 = vrcp.pop %v698
    %v705 = vmul.f32 1.0, %v704
    %v706 = vrcp.pop %v699
    %v707 = vmul.f32 1.0, %v706
    %v708 = vmul.f32 %v637, %v701
    %v709 = vmul.f32 %v639, %v703
    %v710 = vmul.f32 %v678, %v705
    %v711 = vmul.f32 %v680, %v707
    %v712 = vld [vmem:[#allocation7 + $0x20] sm:$0xff]
    %v713 = vld [vmem:[#allocation7 + $0x28] sm:$0xff]
    %v714 = vld [vmem:[#allocation7 + $0x30] sm:$0xff]
    %v715 = vld [vmem:[#allocation7 + $0x38] sm:$0xff]
    %v716 = vld [vmem:[#allocation7 + $0x40] sm:$0xff]
    %v717 = vld [vmem:[#allocation7 + $0x48] sm:$0xff]
    %v718 = vld [vmem:[#allocation7 + $0x50] sm:$0xff]
    %v719 = vld [vmem:[#allocation7 + $0x58] sm:$0xff]
    %v720 = vld [vmem:[#allocation7 + $0x60] sm:$0xff]
    %v721 = vld [vmem:[#allocation7 + $0x68] sm:$0xff]
    %v722 = vld [vmem:[#allocation7 + $0x70] sm:$0xff]
    %v723 = vld [vmem:[#allocation7 + $0x78] sm:$0xff]
    %v724 = vld [vmem:[#allocation7 + $0x80] sm:$0xff]
    %v725 = vld [vmem:[#allocation7 + $0x88] sm:$0xff]
    %v726 = vld [vmem:[#allocation7 + $0x90] sm:$0xff]
    %v727 = vld [vmem:[#allocation7 + $0x98] sm:$0xff]
    %v728 = vld [vmem:[#allocation7 + $0xa0] sm:$0xff]
    %v729 = vld [vmem:[#allocation7 + $0xa8] sm:$0xff]
    %v730 = vld [vmem:[#allocation7 + $0xb0] sm:$0xff]
    %v731 = vld [vmem:[#allocation7 + $0xb8] sm:$0xff]
    %v732 = vld [vmem:[#allocation7 + $0xc0] sm:$0xff]
    %v733 = vld [vmem:[#allocation7 + $0xc8] sm:$0xff]
    %v734 = vld [vmem:[#allocation7 + $0xd0] sm:$0xff]
    %v735 = vld [vmem:[#allocation7 + $0xd8] sm:$0xff]
    %v736 = vld [vmem:[#allocation7 + $0xe0] sm:$0xff]
    %v737 = vld [vmem:[#allocation7 + $0xe8] sm:$0xff]
    %v738 = vld [vmem:[#allocation7 + $0xf0] sm:$0xff]
    %v739 = vld [vmem:[#allocation7 + $0xf8] sm:$0xff]
    %v740 = vld [vmem:[#allocation7 + $0x100] sm:$0xff]
    %v741 = vld [vmem:[#allocation7 + $0x108] sm:$0xff]
    %v742 = vld [vmem:[#allocation7 + $0x110] sm:$0xff]
    %v743 = vld [vmem:[#allocation7 + $0x118] sm:$0xff]
    %v744 = vld [vmem:[#allocation7 + $0x120] sm:$0xff]
    %v745 = vld [vmem:[#allocation7 + $0x128] sm:$0xff]
    %v746 = vld [vmem:[#allocation7 + $0x130] sm:$0xff]
    %v747 = vld [vmem:[#allocation7 + $0x138] sm:$0xff]
    %v748 = vld [vmem:[#allocation7 + $0x140] sm:$0xff]
    %v749 = vld [vmem:[#allocation7 + $0x148] sm:$0xff]
    %v750 = vld [vmem:[#allocation7 + $0x150] sm:$0xff]
    %v751 = vld [vmem:[#allocation7 + $0x158] sm:$0xff]
    %v752 = vld [vmem:[#allocation7 + $0x160] sm:$0xff]
    %v753 = vld [vmem:[#allocation7 + $0x168] sm:$0xff]
    %v754 = vld [vmem:[#allocation7 + $0x170] sm:$0xff]
    %v755 = vld [vmem:[#allocation7 + $0x178] sm:$0xff]
    %v756 = vld [vmem:[#allocation7 + $0x180] sm:$0xff]
    %v757 = vld [vmem:[#allocation7 + $0x188] sm:$0xff]
    %v758 = vld [vmem:[#allocation7 + $0x190] sm:$0xff]
    %v759 = vld [vmem:[#allocation7 + $0x198] sm:$0xff]
    %v760 = vld [vmem:[#allocation7 + $0x1a0] sm:$0xff]
    %v761 = vld [vmem:[#allocation7 + $0x1a8] sm:$0xff]
    %v762 = vld [vmem:[#allocation7 + $0x1b0] sm:$0xff]
    %v763 = vld [vmem:[#allocation7 + $0x1b8] sm:$0xff]
    %v764 = vld [vmem:[#allocation7 + $0x1c0] sm:$0xff]
    %v765 = vld [vmem:[#allocation7 + $0x1c8] sm:$0xff]
    %v766 = vld [vmem:[#allocation7 + $0x1d0] sm:$0xff]
    %v767 = vld [vmem:[#allocation7 + $0x1d8] sm:$0xff]
    %v768 = vld [vmem:[#allocation7 + $0x1e0] sm:$0xff]
    %v769 = vld [vmem:[#allocation7 + $0x1e8] sm:$0xff]
    %v770 = vld [vmem:[#allocation7 + $0x1f0] sm:$0xff]
    %v771 = vld [vmem:[#allocation7 + $0x1f8] sm:$0xff]
    %v772 = vld [vmem:[#allocation7 + $0x200] sm:$0xff]
    %v773 = vld [vmem:[#allocation7 + $0x208] sm:$0xff]
    %v774 = vld [vmem:[#allocation7 + $0x210] sm:$0xff]
    %v775 = vld [vmem:[#allocation7 + $0x218] sm:$0xff]
    %v776 = vpack.c.bf16 %v543, %v543
    %v777 = vpack.c.bf16 %v550, %v550
    %s778 = scalar_lea.vmem [#allocation8], 5
    %v779 = vld [vmem:[%s778] ss:$8 sm:$0xf]
    %v781 = vlaneseq
    %v782 = vshrl.u32 %v781, 7
    %v783 = vsub.s32 0, %v782
    %v784 = vrot.slane %v779, %v783
    %v785 = vlaneseq
    %v786 = vshrl.u32 %v785, 7
    %v787 = vsub.s32 1, %v786
    %v788 = vrot.slane %v779, %v787
    %v789 = vlaneseq
    %v790 = vshrl.u32 %v789, 7
    %v791 = vsub.s32 2, %v790
    %v792 = vrot.slane %v779, %v791
    %v793 = vlaneseq
    %v794 = vshrl.u32 %v793, 7
    %v795 = vsub.s32 3, %v794
    %v796 = vrot.slane %v779, %v795
    %v865 = vunpack.c.l.b16 %v712
    %v866 = vunpack.c.h.b16 %v712
    %v867 = vunpack.c.l.b16 %v713
    %v868 = vunpack.c.h.b16 %v713
    %v869 = vunpack.c.l.b16 %v714
    %v870 = vunpack.c.h.b16 %v714
    %v871 = vunpack.c.l.b16 %v715
    %v872 = vunpack.c.h.b16 %v715
    %v873 = vunpack.c.l.b16 %v716
    %v874 = vunpack.c.h.b16 %v716
    %v875 = vunpack.c.l.b16 %v717
    %v876 = vunpack.c.h.b16 %v717
    %v877 = vunpack.c.l.b16 %v718
    %v878 = vunpack.c.h.b16 %v718
    %v879 = vunpack.c.l.b16 %v719
    %v880 = vunpack.c.h.b16 %v719
    %v881 = vunpack.c.l.b16 %v720
    %v882 = vunpack.c.h.b16 %v720
    %v883 = vunpack.c.l.b16 %v721
    %v884 = vunpack.c.h.b16 %v721
    %v885 = vunpack.c.l.b16 %v722
    %v886 = vunpack.c.h.b16 %v722
    %v887 = vunpack.c.l.b16 %v723
    %v888 = vunpack.c.h.b16 %v723
    %v889 = vunpack.c.l.b16 %v724
    %v890 = vunpack.c.h.b16 %v724
    %v891 = vunpack.c.l.b16 %v725
    %v892 = vunpack.c.h.b16 %v725
    %v893 = vunpack.c.l.b16 %v726
    %v894 = vunpack.c.h.b16 %v726
    %v895 = vunpack.c.l.b16 %v727
    %v896 = vunpack.c.h.b16 %v727
    %v897 = vunpack.c.l.b16 %v728
    %v898 = vunpack.c.h.b16 %v728
    %v899 = vunpack.c.l.b16 %v729
    %v900 = vunpack.c.h.b16 %v729
    %v901 = vunpack.c.l.b16 %v730
    %v902 = vunpack.c.h.b16 %v730
    %v903 = vunpack.c.l.b16 %v731
    %v904 = vunpack.c.h.b16 %v731
    %v905 = vunpack.c.l.b16 %v732
    %v906 = vunpack.c.h.b16 %v732
    %v907 = vunpack.c.l.b16 %v733
    %v908 = vunpack.c.h.b16 %v733
    %v909 = vunpack.c.l.b16 %v734
    %v910 = vunpack.c.h.b16 %v734
    %v911 = vunpack.c.l.b16 %v735
    %v912 = vunpack.c.h.b16 %v735
    %v913 = vunpack.c.l.b16 %v736
    %v914 = vunpack.c.h.b16 %v736
    %v915 = vunpack.c.l.b16 %v737
    %v916 = vunpack.c.h.b16 %v737
    %v917 = vunpack.c.l.b16 %v738
    %v918 = vunpack.c.h.b16 %v738
    %v919 = vunpack.c.l.b16 %v739
    %v920 = vunpack.c.h.b16 %v739
    %v921 = vunpack.c.l.b16 %v740
    %v922 = vunpack.c.h.b16 %v740
    %v923 = vunpack.c.l.b16 %v741
    %v924 = vunpack.c.h.b16 %v741
    %v925 = vunpack.c.l.b16 %v742
    %v926 = vunpack.c.h.b16 %v742
    %v927 = vunpack.c.l.b16 %v743
    %v928 = vunpack.c.h.b16 %v743
    %v929 = vunpack.c.l.b16 %v744
    %v930 = vunpack.c.h.b16 %v744
    %v931 = vunpack.c.l.b16 %v745
    %v932 = vunpack.c.h.b16 %v745
    %v933 = vunpack.c.l.b16 %v746
    %v934 = vunpack.c.h.b16 %v746
    %v935 = vunpack.c.l.b16 %v747
    %v936 = vunpack.c.h.b16 %v747
    %v937 = vunpack.c.l.b16 %v748
    %v938 = vunpack.c.h.b16 %v748
    %v939 = vunpack.c.l.b16 %v749
    %v940 = vunpack.c.h.b16 %v749
    %v941 = vunpack.c.l.b16 %v750
    %v942 = vunpack.c.h.b16 %v750
    %v943 = vunpack.c.l.b16 %v751
    %v944 = vunpack.c.h.b16 %v751
    %v945 = vunpack.c.l.b16 %v752
    %v946 = vunpack.c.h.b16 %v752
    %v947 = vunpack.c.l.b16 %v753
    %v948 = vunpack.c.h.b16 %v753
    %v949 = vunpack.c.l.b16 %v754
    %v950 = vunpack.c.h.b16 %v754
    %v951 = vunpack.c.l.b16 %v755
    %v952 = vunpack.c.h.b16 %v755
    %v953 = vunpack.c.l.b16 %v756
    %v954 = vunpack.c.h.b16 %v756
    %v955 = vunpack.c.l.b16 %v757
    %v956 = vunpack.c.h.b16 %v757
    %v957 = vunpack.c.l.b16 %v758
    %v958 = vunpack.c.h.b16 %v758
    %v959 = vunpack.c.l.b16 %v759
    %v960 = vunpack.c.h.b16 %v759
    %v961 = vunpack.c.l.b16 %v760
    %v962 = vunpack.c.h.b16 %v760
    %v963 = vunpack.c.l.b16 %v761
    %v964 = vunpack.c.h.b16 %v761
    %v965 = vunpack.c.l.b16 %v762
    %v966 = vunpack.c.h.b16 %v762
    %v967 = vunpack.c.l.b16 %v763
    %v968 = vunpack.c.h.b16 %v763
    %v969 = vunpack.c.l.b16 %v764
    %v970 = vunpack.c.h.b16 %v764
    %v971 = vunpack.c.l.b16 %v765
    %v972 = vunpack.c.h.b16 %v765
    %v973 = vunpack.c.l.b16 %v766
    %v974 = vunpack.c.h.b16 %v766
    %v975 = vunpack.c.l.b16 %v767
    %v976 = vunpack.c.h.b16 %v767
    %v977 = vunpack.c.l.b16 %v768
    %v978 = vunpack.c.h.b16 %v768
    %v979 = vunpack.c.l.b16 %v769
    %v980 = vunpack.c.h.b16 %v769
    %v981 = vunpack.c.l.b16 %v770
    %v982 = vunpack.c.h.b16 %v770
    %v983 = vunpack.c.l.b16 %v771
    %v984 = vunpack.c.h.b16 %v771
    %v985 = vunpack.c.l.b16 %v772
    %v986 = vunpack.c.h.b16 %v772
    %v987 = vunpack.c.l.b16 %v773
    %v988 = vunpack.c.h.b16 %v773
    %v989 = vunpack.c.l.b16 %v774
    %v990 = vunpack.c.h.b16 %v774
    %v991 = vunpack.c.l.b16 %v775
    %v992 = vunpack.c.h.b16 %v775
    %v993 = vpack.c.b16 %v869, %v865
    %v994 = vpack.c.b16 %v870, %v866
    %v995 = vpack.c.b16 %v871, %v867
    %v996 = vpack.c.b16 %v872, %v868
    %v997 = vpack.c.b16 %v877, %v873
    %v998 = vpack.c.b16 %v878, %v874
    %v999 = vpack.c.b16 %v879, %v875
    %v1000 = vpack.c.b16 %v880, %v876
    %v1001 = vpack.c.b16 %v885, %v881
    %v1002 = vpack.c.b16 %v886, %v882
    %v1003 = vpack.c.b16 %v887, %v883
    %v1004 = vpack.c.b16 %v888, %v884
    %v1005 = vpack.c.b16 %v893, %v889
    %v1006 = vpack.c.b16 %v894, %v890
    %v1007 = vpack.c.b16 %v895, %v891
    %v1008 = vpack.c.b16 %v896, %v892
    %v1009 = vpack.c.b16 %v901, %v897
    %v1010 = vpack.c.b16 %v902, %v898
    %v1011 = vpack.c.b16 %v903, %v899
    %v1012 = vpack.c.b16 %v904, %v900
    %v1013 = vpack.c.b16 %v909, %v905
    %v1014 = vpack.c.b16 %v910, %v906
    %v1015 = vpack.c.b16 %v911, %v907
    %v1016 = vpack.c.b16 %v912, %v908
    %v1017 = vpack.c.b16 %v917, %v913
    %v1018 = vpack.c.b16 %v918, %v914
    %v1019 = vpack.c.b16 %v919, %v915
    %v1020 = vpack.c.b16 %v920, %v916
    %v1021 = vpack.c.b16 %v925, %v921
    %v1022 = vpack.c.b16 %v926, %v922
    %v1023 = vpack.c.b16 %v927, %v923
    %v1024 = vpack.c.b16 %v928, %v924
    %v1025 = vpack.c.b16 %v933, %v929
    %v1026 = vpack.c.b16 %v934, %v930
    %v1027 = vpack.c.b16 %v935, %v931
    %v1028 = vpack.c.b16 %v936, %v932
    %v1029 = vpack.c.b16 %v941, %v937
    %v1030 = vpack.c.b16 %v942, %v938
    %v1031 = vpack.c.b16 %v943, %v939
    %v1032 = vpack.c.b16 %v944, %v940
    %v1033 = vpack.c.b16 %v949, %v945
    %v1034 = vpack.c.b16 %v950, %v946
    %v1035 = vpack.c.b16 %v951, %v947
    %v1036 = vpack.c.b16 %v952, %v948
    %v1037 = vpack.c.b16 %v957, %v953
    %v1038 = vpack.c.b16 %v958, %v954
    %v1039 = vpack.c.b16 %v959, %v955
    %v1040 = vpack.c.b16 %v960, %v956
    %v1041 = vpack.c.b16 %v965, %v961
    %v1042 = vpack.c.b16 %v966, %v962
    %v1043 = vpack.c.b16 %v967, %v963
    %v1044 = vpack.c.b16 %v968, %v964
    %v1045 = vpack.c.b16 %v973, %v969
    %v1046 = vpack.c.b16 %v974, %v970
    %v1047 = vpack.c.b16 %v975, %v971
    %v1048 = vpack.c.b16 %v976, %v972
    %v1049 = vpack.c.b16 %v981, %v977
    %v1050 = vpack.c.b16 %v982, %v978
    %v1051 = vpack.c.b16 %v983, %v979
    %v1052 = vpack.c.b16 %v984, %v980
    %v1053 = vpack.c.b16 %v989, %v985
    %v1054 = vpack.c.b16 %v990, %v986
    %v1055 = vpack.c.b16 %v991, %v987
    %v1056 = vpack.c.b16 %v992, %v988
    %1121 = vmatprep.subr.bf16.mxu0 %v1022
    %1122 = vmatpush1.bf16.msra.mxu0 %v1021
    %1123 = vmatprep.subr.bf16.mxu0 %v1018
    %1124 = vmatpush1.bf16.msra.mxu0 %v1017
    %1125 = vmatprep.subr.bf16.mxu0 %v1014
    %1126 = vmatpush1.bf16.msra.mxu0 %v1013
    %1127 = vmatprep.subr.bf16.mxu0 %v1010
    %1128 = vmatpush1.bf16.msra.mxu0 %v1009
    %1129 = vmatprep.subr.bf16.mxu0 %v1006
    %1130 = vmatpush1.bf16.msra.mxu0 %v1005
    %1131 = vmatprep.subr.bf16.mxu0 %v1002
    %1132 = vmatpush1.bf16.msra.mxu0 %v1001
    %1133 = vmatprep.subr.bf16.mxu0 %v998
    %1134 = vmatpush1.bf16.msra.mxu0 %v997
    %1135 = vmatprep.subr.bf16.mxu0 %v994
    %1136 = vmatpush1.bf16.msra.mxu0 %v993
    %1137 = vmatprep.subr.bf16.mxu0 %v1054
    %1138 = vmatpush2.bf16.msra.mxu0 %v1053
    %1139 = vmatprep.subr.bf16.mxu0 %v1050
    %1140 = vmatpush2.bf16.msra.mxu0 %v1049
    %1141 = vmatprep.subr.bf16.mxu0 %v1046
    %1142 = vmatpush2.bf16.msra.mxu0 %v1045
    %1143 = vmatprep.subr.bf16.mxu0 %v1042
    %1144 = vmatpush2.bf16.msra.mxu0 %v1041
    %1145 = vmatprep.subr.bf16.mxu0 %v1038
    %1146 = vmatpush2.bf16.msra.mxu0 %v1037
    %1147 = vmatprep.subr.bf16.mxu0 %v1034
    %1148 = vmatpush2.bf16.msra.mxu0 %v1033
    %1149 = vmatprep.subr.bf16.mxu0 %v1030
    %1150 = vmatpush2.bf16.msra.mxu0 %v1029
    %1151 = vmatprep.subr.bf16.mxu0 %v1026
    %1152 = vmatpush2.bf16.msra.mxu0 %v1025
    %1153 = vmatprep.mubr.bf16.mxu0 %v777
    %1154 = vmatmul.mubr.bf16.gmra.mxu0 %v776
    %v1155 = vpop.f32.mrf.mxu0
    %v1156 = vadd.f32 %v784, %v1155
    %v1157 = vpop.f32.mrf.mxu0
    %v1158 = vadd.f32 %v788, %v1157
    %v1159 = vpop.f32.mrf.mxu0
    %v1160 = vpop.f32.mrf.mxu0
    %1161 = vdwg.mxu0
    %1162 = vmatprep.subr.bf16.mxu0 %v1024
    %1163 = vmatpush1.bf16.msra.mxu0 %v1023
    %1164 = vmatprep.subr.bf16.mxu0 %v1020
    %1165 = vmatpush1.bf16.msra.mxu0 %v1019
    %1166 = vmatprep.subr.bf16.mxu0 %v1016
    %1167 = vmatpush1.bf16.msra.mxu0 %v1015
    %1168 = vmatprep.subr.bf16.mxu0 %v1012
    %1169 = vmatpush1.bf16.msra.mxu0 %v1011
    %1170 = vmatprep.subr.bf16.mxu0 %v1008
    %1171 = vmatpush1.bf16.msra.mxu0 %v1007
    %1172 = vmatprep.subr.bf16.mxu0 %v1004
    %1173 = vmatpush1.bf16.msra.mxu0 %v1003
    %1174 = vmatprep.subr.bf16.mxu0 %v1000
    %1175 = vmatpush1.bf16.msra.mxu0 %v999
    %1176 = vmatprep.subr.bf16.mxu0 %v996
    %1177 = vmatpush1.bf16.msra.mxu0 %v995
    %1178 = vmatprep.subr.bf16.mxu0 %v1056
    %1179 = vmatpush2.bf16.msra.mxu0 %v1055
    %1180 = vmatprep.subr.bf16.mxu0 %v1052
    %1181 = vmatpush2.bf16.msra.mxu0 %v1051
    %1182 = vmatprep.subr.bf16.mxu0 %v1048
    %1183 = vmatpush2.bf16.msra.mxu0 %v1047
    %1184 = vmatprep.subr.bf16.mxu0 %v1044
    %1185 = vmatpush2.bf16.msra.mxu0 %v1043
    %1186 = vmatprep.subr.bf16.mxu0 %v1040
    %1187 = vmatpush2.bf16.msra.mxu0 %v1039
    %1188 = vmatprep.subr.bf16.mxu0 %v1036
    %1189 = vmatpush2.bf16.msra.mxu0 %v1035
    %1190 = vmatprep.subr.bf16.mxu0 %v1032
    %1191 = vmatpush2.bf16.msra.mxu0 %v1031
    %1192 = vmatprep.subr.bf16.mxu0 %v1028
    %1193 = vmatpush2.bf16.msra.mxu0 %v1027
    %1194 = vmatprep.mubr.bf16.mxu0 %v777
    %1195 = vmatmul.mubr.bf16.gmra.mxu0 %v776
    %v1196 = vpop.f32.mrf.mxu0
    %v1197 = vadd.f32 %v792, %v1196
    %v1198 = vpop.f32.mrf.mxu0
    %v1199 = vadd.f32 %v796, %v1198
    %v1200 = vpop.f32.mrf.mxu0
    %v1201 = vpop.f32.mrf.mxu0
    %1202 = vdwg.mxu0
    %v1203 = vadd.f32 %v708, %v1156
    %v1204 = vadd.f32 %v709, %v1158
    %v1205 = vadd.f32 %v710, %v1197
    %v1206 = vadd.f32 %v711, %v1199
    %v1207 = vld [vmem:[#allocation7 + $0x220] sm:$0xff]
    %v1208 = vld [vmem:[#allocation7 + $0x228] sm:$0xff]
    %v1209 = vld [vmem:[#allocation7 + $0x230] sm:$0xff]
    %v1210 = vld [vmem:[#allocation7 + $0x238] sm:$0xff]
    %v1211 = vld [vmem:[#allocation7 + $0x240] sm:$0xff]
    %v1212 = vld [vmem:[#allocation7 + $0x248] sm:$0xff]
    %v1213 = vld [vmem:[#allocation7 + $0x250] sm:$0xff]
    %v1214 = vld [vmem:[#allocation7 + $0x258] sm:$0xff]
    %v1215 = vld [vmem:[#allocation7 + $0x260] sm:$0xff]
    %v1216 = vld [vmem:[#allocation7 + $0x268] sm:$0xff]
    %v1217 = vld [vmem:[#allocation7 + $0x270] sm:$0xff]
    %v1218 = vld [vmem:[#allocation7 + $0x278] sm:$0xff]
    %v1219 = vld [vmem:[#allocation7 + $0x280] sm:$0xff]
    %v1220 = vld [vmem:[#allocation7 + $0x288] sm:$0xff]
    %v1221 = vld [vmem:[#allocation7 + $0x290] sm:$0xff]
    %v1222 = vld [vmem:[#allocation7 + $0x298] sm:$0xff]
    %v1223 = vld [vmem:[#allocation7 + $0x2a0] sm:$0xff]
    %v1224 = vld [vmem:[#allocation7 + $0x2a8] sm:$0xff]
    %v1225 = vld [vmem:[#allocation7 + $0x2b0] sm:$0xff]
    %v1226 = vld [vmem:[#allocation7 + $0x2b8] sm:$0xff]
    %v1227 = vld [vmem:[#allocation7 + $0x2c0] sm:$0xff]
    %v1228 = vld [vmem:[#allocation7 + $0x2c8] sm:$0xff]
    %v1229 = vld [vmem:[#allocation7 + $0x2d0] sm:$0xff]
    %v1230 = vld [vmem:[#allocation7 + $0x2d8] sm:$0xff]
    %v1231 = vld [vmem:[#allocation7 + $0x2e0] sm:$0xff]
    %v1232 = vld [vmem:[#allocation7 + $0x2e8] sm:$0xff]
    %v1233 = vld [vmem:[#allocation7 + $0x2f0] sm:$0xff]
    %v1234 = vld [vmem:[#allocation7 + $0x2f8] sm:$0xff]
    %v1235 = vld [vmem:[#allocation7 + $0x300] sm:$0xff]
    %v1236 = vld [vmem:[#allocation7 + $0x308] sm:$0xff]
    %v1237 = vld [vmem:[#allocation7 + $0x310] sm:$0xff]
    %v1238 = vld [vmem:[#allocation7 + $0x318] sm:$0xff]
    %v1239 = vld [vmem:[#allocation7 + $0x320] sm:$0xff]
    %v1240 = vld [vmem:[#allocation7 + $0x328] sm:$0xff]
    %v1241 = vld [vmem:[#allocation7 + $0x330] sm:$0xff]
    %v1242 = vld [vmem:[#allocation7 + $0x338] sm:$0xff]
    %v1243 = vld [vmem:[#allocation7 + $0x340] sm:$0xff]
    %v1244 = vld [vmem:[#allocation7 + $0x348] sm:$0xff]
    %v1245 = vld [vmem:[#allocation7 + $0x350] sm:$0xff]
    %v1246 = vld [vmem:[#allocation7 + $0x358] sm:$0xff]
    %v1247 = vld [vmem:[#allocation7 + $0x360] sm:$0xff]
    %v1248 = vld [vmem:[#allocation7 + $0x368] sm:$0xff]
    %v1249 = vld [vmem:[#allocation7 + $0x370] sm:$0xff]
    %v1250 = vld [vmem:[#allocation7 + $0x378] sm:$0xff]
    %v1251 = vld [vmem:[#allocation7 + $0x380] sm:$0xff]
    %v1252 = vld [vmem:[#allocation7 + $0x388] sm:$0xff]
    %v1253 = vld [vmem:[#allocation7 + $0x390] sm:$0xff]
    %v1254 = vld [vmem:[#allocation7 + $0x398] sm:$0xff]
    %v1255 = vld [vmem:[#allocation7 + $0x3a0] sm:$0xff]
    %v1256 = vld [vmem:[#allocation7 + $0x3a8] sm:$0xff]
    %v1257 = vld [vmem:[#allocation7 + $0x3b0] sm:$0xff]
    %v1258 = vld [vmem:[#allocation7 + $0x3b8] sm:$0xff]
    %v1259 = vld [vmem:[#allocation7 + $0x3c0] sm:$0xff]
    %v1260 = vld [vmem:[#allocation7 + $0x3c8] sm:$0xff]
    %v1261 = vld [vmem:[#allocation7 + $0x3d0] sm:$0xff]
    %v1262 = vld [vmem:[#allocation7 + $0x3d8] sm:$0xff]
    %v1263 = vld [vmem:[#allocation7 + $0x3e0] sm:$0xff]
    %v1264 = vld [vmem:[#allocation7 + $0x3e8] sm:$0xff]
    %v1265 = vld [vmem:[#allocation7 + $0x3f0] sm:$0xff]
    %v1266 = vld [vmem:[#allocation7 + $0x3f8] sm:$0xff]
    %v1267 = vld [vmem:[#allocation7 + $0x400] sm:$0xff]
    %v1268 = vld [vmem:[#allocation7 + $0x408] sm:$0xff]
    %v1269 = vld [vmem:[#allocation7 + $0x410] sm:$0xff]
    %v1270 = vld [vmem:[#allocation7 + $0x418] sm:$0xff]
    %v1271 = vld [vmem:[#allocation7 + $0x420] sm:$0xff]
    %v1272 = vld [vmem:[#allocation7 + $0x428] sm:$0xff]
    %v1273 = vld [vmem:[#allocation7 + $0x430] sm:$0xff]
    %v1274 = vld [vmem:[#allocation7 + $0x438] sm:$0xff]
    %v1275 = vld [vmem:[#allocation7 + $0x440] sm:$0xff]
    %v1276 = vld [vmem:[#allocation7 + $0x448] sm:$0xff]
    %v1277 = vld [vmem:[#allocation7 + $0x450] sm:$0xff]
    %v1278 = vld [vmem:[#allocation7 + $0x458] sm:$0xff]
    %v1279 = vld [vmem:[#allocation7 + $0x460] sm:$0xff]
    %v1280 = vld [vmem:[#allocation7 + $0x468] sm:$0xff]
    %v1281 = vld [vmem:[#allocation7 + $0x470] sm:$0xff]
    %v1282 = vld [vmem:[#allocation7 + $0x478] sm:$0xff]
    %v1283 = vld [vmem:[#allocation7 + $0x480] sm:$0xff]
    %v1284 = vld [vmem:[#allocation7 + $0x488] sm:$0xff]
    %v1285 = vld [vmem:[#allocation7 + $0x490] sm:$0xff]
    %v1286 = vld [vmem:[#allocation7 + $0x498] sm:$0xff]
    %v1287 = vld [vmem:[#allocation7 + $0x4a0] sm:$0xff]
    %v1288 = vld [vmem:[#allocation7 + $0x4a8] sm:$0xff]
    %v1289 = vld [vmem:[#allocation7 + $0x4b0] sm:$0xff]
    %v1290 = vld [vmem:[#allocation7 + $0x4b8] sm:$0xff]
    %v1291 = vld [vmem:[#allocation7 + $0x4c0] sm:$0xff]
    %v1292 = vld [vmem:[#allocation7 + $0x4c8] sm:$0xff]
    %v1293 = vld [vmem:[#allocation7 + $0x4d0] sm:$0xff]
    %v1294 = vld [vmem:[#allocation7 + $0x4d8] sm:$0xff]
    %v1295 = vld [vmem:[#allocation7 + $0x4e0] sm:$0xff]
    %v1296 = vld [vmem:[#allocation7 + $0x4e8] sm:$0xff]
    %v1297 = vld [vmem:[#allocation7 + $0x4f0] sm:$0xff]
    %v1298 = vld [vmem:[#allocation7 + $0x4f8] sm:$0xff]
    %v1299 = vld [vmem:[#allocation7 + $0x500] sm:$0xff]
    %v1300 = vld [vmem:[#allocation7 + $0x508] sm:$0xff]
    %v1301 = vld [vmem:[#allocation7 + $0x510] sm:$0xff]
    %v1302 = vld [vmem:[#allocation7 + $0x518] sm:$0xff]
    %v1303 = vld [vmem:[#allocation7 + $0x520] sm:$0xff]
    %v1304 = vld [vmem:[#allocation7 + $0x528] sm:$0xff]
    %v1305 = vld [vmem:[#allocation7 + $0x530] sm:$0xff]
    %v1306 = vld [vmem:[#allocation7 + $0x538] sm:$0xff]
    %v1307 = vld [vmem:[#allocation7 + $0x540] sm:$0xff]
    %v1308 = vld [vmem:[#allocation7 + $0x548] sm:$0xff]
    %v1309 = vld [vmem:[#allocation7 + $0x550] sm:$0xff]
    %v1310 = vld [vmem:[#allocation7 + $0x558] sm:$0xff]
    %v1311 = vld [vmem:[#allocation7 + $0x560] sm:$0xff]
    %v1312 = vld [vmem:[#allocation7 + $0x568] sm:$0xff]
    %v1313 = vld [vmem:[#allocation7 + $0x570] sm:$0xff]
    %v1314 = vld [vmem:[#allocation7 + $0x578] sm:$0xff]
    %v1315 = vld [vmem:[#allocation7 + $0x580] sm:$0xff]
    %v1316 = vld [vmem:[#allocation7 + $0x588] sm:$0xff]
    %v1317 = vld [vmem:[#allocation7 + $0x590] sm:$0xff]
    %v1318 = vld [vmem:[#allocation7 + $0x598] sm:$0xff]
    %v1319 = vld [vmem:[#allocation7 + $0x5a0] sm:$0xff]
    %v1320 = vld [vmem:[#allocation7 + $0x5a8] sm:$0xff]
    %v1321 = vld [vmem:[#allocation7 + $0x5b0] sm:$0xff]
    %v1322 = vld [vmem:[#allocation7 + $0x5b8] sm:$0xff]
    %v1323 = vld [vmem:[#allocation7 + $0x5c0] sm:$0xff]
    %v1324 = vld [vmem:[#allocation7 + $0x5c8] sm:$0xff]
    %v1325 = vld [vmem:[#allocation7 + $0x5d0] sm:$0xff]
    %v1326 = vld [vmem:[#allocation7 + $0x5d8] sm:$0xff]
    %v1327 = vld [vmem:[#allocation7 + $0x5e0] sm:$0xff]
    %v1328 = vld [vmem:[#allocation7 + $0x5e8] sm:$0xff]
    %v1329 = vld [vmem:[#allocation7 + $0x5f0] sm:$0xff]
    %v1330 = vld [vmem:[#allocation7 + $0x5f8] sm:$0xff]
    %v1331 = vld [vmem:[#allocation7 + $0x600] sm:$0xff]
    %v1332 = vld [vmem:[#allocation7 + $0x608] sm:$0xff]
    %v1333 = vld [vmem:[#allocation7 + $0x610] sm:$0xff]
    %v1334 = vld [vmem:[#allocation7 + $0x618] sm:$0xff]
    %v1335 = vpack.c.bf16 %v1203, %v1203
    %v1336 = vpack.c.bf16 %v1204, %v1204
    %v1337 = vpack.c.bf16 %v1205, %v1205
    %v1338 = vpack.c.bf16 %v1206, %v1206
    %s1339 = scalar_lea.vmem [#allocation8], 6
    %v1340 = vld [vmem:[%s1339] ss:$8 sm:$0xf]
    %v1342 = vlaneseq
    %v1343 = vshrl.u32 %v1342, 7
    %v1344 = vsub.s32 0, %v1343
    %v1345 = vrot.slane %v1340, %v1344
    %v1346 = vlaneseq
    %v1347 = vshrl.u32 %v1346, 7
    %v1348 = vsub.s32 1, %v1347
    %v1349 = vrot.slane %v1340, %v1348
    %v1350 = vlaneseq
    %v1351 = vshrl.u32 %v1350, 7
    %v1352 = vsub.s32 2, %v1351
    %v1353 = vrot.slane %v1340, %v1352
    %v1354 = vlaneseq
    %v1355 = vshrl.u32 %v1354, 7
    %v1356 = vsub.s32 3, %v1355
    %v1357 = vrot.slane %v1340, %v1356
    %v1490 = vunpack.c.l.b16 %v1207
    %v1491 = vunpack.c.h.b16 %v1207
    %v1492 = vunpack.c.l.b16 %v1208
    %v1493 = vunpack.c.h.b16 %v1208
    %v1494 = vunpack.c.l.b16 %v1209
    %v1495 = vunpack.c.h.b16 %v1209
    %v1496 = vunpack.c.l.b16 %v1210
    %v1497 = vunpack.c.h.b16 %v1210
    %v1498 = vunpack.c.l.b16 %v1211
    %v1499 = vunpack.c.h.b16 %v1211
    %v1500 = vunpack.c.l.b16 %v1212
    %v1501 = vunpack.c.h.b16 %v1212
    %v1502 = vunpack.c.l.b16 %v1213
    %v1503 = vunpack.c.h.b16 %v1213
    %v1504 = vunpack.c.l.b16 %v1214
    %v1505 = vunpack.c.h.b16 %v1214
    %v1506 = vunpack.c.l.b16 %v1215
    %v1507 = vunpack.c.h.b16 %v1215
    %v1508 = vunpack.c.l.b16 %v1216
    %v1509 = vunpack.c.h.b16 %v1216
    %v1510 = vunpack.c.l.b16 %v1217
    %v1511 = vunpack.c.h.b16 %v1217
    %v1512 = vunpack.c.l.b16 %v1218
    %v1513 = vunpack.c.h.b16 %v1218
    %v1514 = vunpack.c.l.b16 %v1219
    %v1515 = vunpack.c.h.b16 %v1219
    %v1516 = vunpack.c.l.b16 %v1220
    %v1517 = vunpack.c.h.b16 %v1220
    %v1518 = vunpack.c.l.b16 %v1221
    %v1519 = vunpack.c.h.b16 %v1221
    %v1520 = vunpack.c.l.b16 %v1222
    %v1521 = vunpack.c.h.b16 %v1222
    %v1522 = vunpack.c.l.b16 %v1223
    %v1523 = vunpack.c.h.b16 %v1223
    %v1524 = vunpack.c.l.b16 %v1224
    %v1525 = vunpack.c.h.b16 %v1224
    %v1526 = vunpack.c.l.b16 %v1225
    %v1527 = vunpack.c.h.b16 %v1225
    %v1528 = vunpack.c.l.b16 %v1226
    %v1529 = vunpack.c.h.b16 %v1226
    %v1530 = vunpack.c.l.b16 %v1227
    %v1531 = vunpack.c.h.b16 %v1227
    %v1532 = vunpack.c.l.b16 %v1228
    %v1533 = vunpack.c.h.b16 %v1228
    %v1534 = vunpack.c.l.b16 %v1229
    %v1535 = vunpack.c.h.b16 %v1229
    %v1536 = vunpack.c.l.b16 %v1230
    %v1537 = vunpack.c.h.b16 %v1230
    %v1538 = vunpack.c.l.b16 %v1231
    %v1539 = vunpack.c.h.b16 %v1231
    %v1540 = vunpack.c.l.b16 %v1232
    %v1541 = vunpack.c.h.b16 %v1232
    %v1542 = vunpack.c.l.b16 %v1233
    %v1543 = vunpack.c.h.b16 %v1233
    %v1544 = vunpack.c.l.b16 %v1234
    %v1545 = vunpack.c.h.b16 %v1234
    %v1546 = vunpack.c.l.b16 %v1235
    %v1547 = vunpack.c.h.b16 %v1235
    %v1548 = vunpack.c.l.b16 %v1236
    %v1549 = vunpack.c.h.b16 %v1236
    %v1550 = vunpack.c.l.b16 %v1237
    %v1551 = vunpack.c.h.b16 %v1237
    %v1552 = vunpack.c.l.b16 %v1238
    %v1553 = vunpack.c.h.b16 %v1238
    %v1554 = vunpack.c.l.b16 %v1239
    %v1555 = vunpack.c.h.b16 %v1239
    %v1556 = vunpack.c.l.b16 %v1240
    %v1557 = vunpack.c.h.b16 %v1240
    %v1558 = vunpack.c.l.b16 %v1241
    %v1559 = vunpack.c.h.b16 %v1241
    %v1560 = vunpack.c.l.b16 %v1242
    %v1561 = vunpack.c.h.b16 %v1242
    %v1562 = vunpack.c.l.b16 %v1243
    %v1563 = vunpack.c.h.b16 %v1243
    %v1564 = vunpack.c.l.b16 %v1244
    %v1565 = vunpack.c.h.b16 %v1244
    %v1566 = vunpack.c.l.b16 %v1245
    %v1567 = vunpack.c.h.b16 %v1245
    %v1568 = vunpack.c.l.b16 %v1246
    %v1569 = vunpack.c.h.b16 %v1246
    %v1570 = vunpack.c.l.b16 %v1247
    %v1571 = vunpack.c.h.b16 %v1247
    %v1572 = vunpack.c.l.b16 %v1248
    %v1573 = vunpack.c.h.b16 %v1248
    %v1574 = vunpack.c.l.b16 %v1249
    %v1575 = vunpack.c.h.b16 %v1249
    %v1576 = vunpack.c.l.b16 %v1250
    %v1577 = vunpack.c.h.b16 %v1250
    %v1578 = vunpack.c.l.b16 %v1251
    %v1579 = vunpack.c.h.b16 %v1251
    %v1580 = vunpack.c.l.b16 %v1252
    %v1581 = vunpack.c.h.b16 %v1252
    %v1582 = vunpack.c.l.b16 %v1253
    %v1583 = vunpack.c.h.b16 %v1253
    %v1584 = vunpack.c.l.b16 %v1254
    %v1585 = vunpack.c.h.b16 %v1254
    %v1586 = vunpack.c.l.b16 %v1255
    %v1587 = vunpack.c.h.b16 %v1255
    %v1588 = vunpack.c.l.b16 %v1256
    %v1589 = vunpack.c.h.b16 %v1256
    %v1590 = vunpack.c.l.b16 %v1257
    %v1591 = vunpack.c.h.b16 %v1257
    %v1592 = vunpack.c.l.b16 %v1258
    %v1593 = vunpack.c.h.b16 %v1258
    %v1594 = vunpack.c.l.b16 %v1259
    %v1595 = vunpack.c.h.b16 %v1259
    %v1596 = vunpack.c.l.b16 %v1260
    %v1597 = vunpack.c.h.b16 %v1260
    %v1598 = vunpack.c.l.b16 %v1261
    %v1599 = vunpack.c.h.b16 %v1261
    %v1600 = vunpack.c.l.b16 %v1262
    %v1601 = vunpack.c.h.b16 %v1262
    %v1602 = vunpack.c.l.b16 %v1263
    %v1603 = vunpack.c.h.b16 %v1263
    %v1604 = vunpack.c.l.b16 %v1264
    %v1605 = vunpack.c.h.b16 %v1264
    %v1606 = vunpack.c.l.b16 %v1265
    %v1607 = vunpack.c.h.b16 %v1265
    %v1608 = vunpack.c.l.b16 %v1266
    %v1609 = vunpack.c.h.b16 %v1266
    %v1610 = vunpack.c.l.b16 %v1267
    %v1611 = vunpack.c.h.b16 %v1267
    %v1612 = vunpack.c.l.b16 %v1268
    %v1613 = vunpack.c.h.b16 %v1268
    %v1614 = vunpack.c.l.b16 %v1269
    %v1615 = vunpack.c.h.b16 %v1269
    %v1616 = vunpack.c.l.b16 %v1270
    %v1617 = vunpack.c.h.b16 %v1270
    %v1618 = vunpack.c.l.b16 %v1271
    %v1619 = vunpack.c.h.b16 %v1271
    %v1620 = vunpack.c.l.b16 %v1272
    %v1621 = vunpack.c.h.b16 %v1272
    %v1622 = vunpack.c.l.b16 %v1273
    %v1623 = vunpack.c.h.b16 %v1273
    %v1624 = vunpack.c.l.b16 %v1274
    %v1625 = vunpack.c.h.b16 %v1274
    %v1626 = vunpack.c.l.b16 %v1275
    %v1627 = vunpack.c.h.b16 %v1275
    %v1628 = vunpack.c.l.b16 %v1276
    %v1629 = vunpack.c.h.b16 %v1276
    %v1630 = vunpack.c.l.b16 %v1277
    %v1631 = vunpack.c.h.b16 %v1277
    %v1632 = vunpack.c.l.b16 %v1278
    %v1633 = vunpack.c.h.b16 %v1278
    %v1634 = vunpack.c.l.b16 %v1279
    %v1635 = vunpack.c.h.b16 %v1279
    %v1636 = vunpack.c.l.b16 %v1280
    %v1637 = vunpack.c.h.b16 %v1280
    %v1638 = vunpack.c.l.b16 %v1281
    %v1639 = vunpack.c.h.b16 %v1281
    %v1640 = vunpack.c.l.b16 %v1282
    %v1641 = vunpack.c.h.b16 %v1282
    %v1642 = vunpack.c.l.b16 %v1283
    %v1643 = vunpack.c.h.b16 %v1283
    %v1644 = vunpack.c.l.b16 %v1284
    %v1645 = vunpack.c.h.b16 %v1284
    %v1646 = vunpack.c.l.b16 %v1285
    %v1647 = vunpack.c.h.b16 %v1285
    %v1648 = vunpack.c.l.b16 %v1286
    %v1649 = vunpack.c.h.b16 %v1286
    %v1650 = vunpack.c.l.b16 %v1287
    %v1651 = vunpack.c.h.b16 %v1287
    %v1652 = vunpack.c.l.b16 %v1288
    %v1653 = vunpack.c.h.b16 %v1288
    %v1654 = vunpack.c.l.b16 %v1289
    %v1655 = vunpack.c.h.b16 %v1289
    %v1656 = vunpack.c.l.b16 %v1290
    %v1657 = vunpack.c.h.b16 %v1290
    %v1658 = vunpack.c.l.b16 %v1291
    %v1659 = vunpack.c.h.b16 %v1291
    %v1660 = vunpack.c.l.b16 %v1292
    %v1661 = vunpack.c.h.b16 %v1292
    %v1662 = vunpack.c.l.b16 %v1293
    %v1663 = vunpack.c.h.b16 %v1293
    %v1664 = vunpack.c.l.b16 %v1294
    %v1665 = vunpack.c.h.b16 %v1294
    %v1666 = vunpack.c.l.b16 %v1295
    %v1667 = vunpack.c.h.b16 %v1295
    %v1668 = vunpack.c.l.b16 %v1296
    %v1669 = vunpack.c.h.b16 %v1296
    %v1670 = vunpack.c.l.b16 %v1297
    %v1671 = vunpack.c.h.b16 %v1297
    %v1672 = vunpack.c.l.b16 %v1298
    %v1673 = vunpack.c.h.b16 %v1298
    %v1674 = vunpack.c.l.b16 %v1299
    %v1675 = vunpack.c.h.b16 %v1299
    %v1676 = vunpack.c.l.b16 %v1300
    %v1677 = vunpack.c.h.b16 %v1300
    %v1678 = vunpack.c.l.b16 %v1301
    %v1679 = vunpack.c.h.b16 %v1301
    %v1680 = vunpack.c.l.b16 %v1302
    %v1681 = vunpack.c.h.b16 %v1302
    %v1682 = vunpack.c.l.b16 %v1303
    %v1683 = vunpack.c.h.b16 %v1303
    %v1684 = vunpack.c.l.b16 %v1304
    %v1685 = vunpack.c.h.b16 %v1304
    %v1686 = vunpack.c.l.b16 %v1305
    %v1687 = vunpack.c.h.b16 %v1305
    %v1688 = vunpack.c.l.b16 %v1306
    %v1689 = vunpack.c.h.b16 %v1306
    %v1690 = vunpack.c.l.b16 %v1307
    %v1691 = vunpack.c.h.b16 %v1307
    %v1692 = vunpack.c.l.b16 %v1308
    %v1693 = vunpack.c.h.b16 %v1308
    %v1694 = vunpack.c.l.b16 %v1309
    %v1695 = vunpack.c.h.b16 %v1309
    %v1696 = vunpack.c.l.b16 %v1310
    %v1697 = vunpack.c.h.b16 %v1310
    %v1698 = vunpack.c.l.b16 %v1311
    %v1699 = vunpack.c.h.b16 %v1311
    %v1700 = vunpack.c.l.b16 %v1312
    %v1701 = vunpack.c.h.b16 %v1312
    %v1702 = vunpack.c.l.b16 %v1313
    %v1703 = vunpack.c.h.b16 %v1313
    %v1704 = vunpack.c.l.b16 %v1314
    %v1705 = vunpack.c.h.b16 %v1314
    %v1706 = vunpack.c.l.b16 %v1315
    %v1707 = vunpack.c.h.b16 %v1315
    %v1708 = vunpack.c.l.b16 %v1316
    %v1709 = vunpack.c.h.b16 %v1316
    %v1710 = vunpack.c.l.b16 %v1317
    %v1711 = vunpack.c.h.b16 %v1317
    %v1712 = vunpack.c.l.b16 %v1318
    %v1713 = vunpack.c.h.b16 %v1318
    %v1714 = vunpack.c.l.b16 %v1319
    %v1715 = vunpack.c.h.b16 %v1319
    %v1716 = vunpack.c.l.b16 %v1320
    %v1717 = vunpack.c.h.b16 %v1320
    %v1718 = vunpack.c.l.b16 %v1321
    %v1719 = vunpack.c.h.b16 %v1321
    %v1720 = vunpack.c.l.b16 %v1322
    %v1721 = vunpack.c.h.b16 %v1322
    %v1722 = vunpack.c.l.b16 %v1323
    %v1723 = vunpack.c.h.b16 %v1323
    %v1724 = vunpack.c.l.b16 %v1324
    %v1725 = vunpack.c.h.b16 %v1324
    %v1726 = vunpack.c.l.b16 %v1325
    %v1727 = vunpack.c.h.b16 %v1325
    %v1728 = vunpack.c.l.b16 %v1326
    %v1729 = vunpack.c.h.b16 %v1326
    %v1730 = vunpack.c.l.b16 %v1327
    %v1731 = vunpack.c.h.b16 %v1327
    %v1732 = vunpack.c.l.b16 %v1328
    %v1733 = vunpack.c.h.b16 %v1328
    %v1734 = vunpack.c.l.b16 %v1329
    %v1735 = vunpack.c.h.b16 %v1329
    %v1736 = vunpack.c.l.b16 %v1330
    %v1737 = vunpack.c.h.b16 %v1330
    %v1738 = vunpack.c.l.b16 %v1331
    %v1739 = vunpack.c.h.b16 %v1331
    %v1740 = vunpack.c.l.b16 %v1332
    %v1741 = vunpack.c.h.b16 %v1332
    %v1742 = vunpack.c.l.b16 %v1333
    %v1743 = vunpack.c.h.b16 %v1333
    %v1744 = vunpack.c.l.b16 %v1334
    %v1745 = vunpack.c.h.b16 %v1334
    %v1746 = vpack.c.b16 %v1494, %v1490
    %v1747 = vpack.c.b16 %v1495, %v1491
    %v1748 = vpack.c.b16 %v1496, %v1492
    %v1749 = vpack.c.b16 %v1497, %v1493
    %v1750 = vpack.c.b16 %v1502, %v1498
    %v1751 = vpack.c.b16 %v1503, %v1499
    %v1752 = vpack.c.b16 %v1504, %v1500
    %v1753 = vpack.c.b16 %v1505, %v1501
    %v1754 = vpack.c.b16 %v1510, %v1506
    %v1755 = vpack.c.b16 %v1511, %v1507
    %v1756 = vpack.c.b16 %v1512, %v1508
    %v1757 = vpack.c.b16 %v1513, %v1509
    %v1758 = vpack.c.b16 %v1518, %v1514
    %v1759 = vpack.c.b16 %v1519, %v1515
    %v1760 = vpack.c.b16 %v1520, %v1516
    %v1761 = vpack.c.b16 %v1521, %v1517
    %v1762 = vpack.c.b16 %v1526, %v1522
    %v1763 = vpack.c.b16 %v1527, %v1523
    %v1764 = vpack.c.b16 %v1528, %v1524
    %v1765 = vpack.c.b16 %v1529, %v1525
    %v1766 = vpack.c.b16 %v1534, %v1530
    %v1767 = vpack.c.b16 %v1535, %v1531
    %v1768 = vpack.c.b16 %v1536, %v1532
    %v1769 = vpack.c.b16 %v1537, %v1533
    %v1770 = vpack.c.b16 %v1542, %v1538
    %v1771 = vpack.c.b16 %v1543, %v1539
    %v1772 = vpack.c.b16 %v1544, %v1540
    %v1773 = vpack.c.b16 %v1545, %v1541
    %v1774 = vpack.c.b16 %v1550, %v1546
    %v1775 = vpack.c.b16 %v1551, %v1547
    %v1776 = vpack.c.b16 %v1552, %v1548
    %v1777 = vpack.c.b16 %v1553, %v1549
    %v1778 = vpack.c.b16 %v1558, %v1554
    %v1779 = vpack.c.b16 %v1559, %v1555
    %v1780 = vpack.c.b16 %v1560, %v1556
    %v1781 = vpack.c.b16 %v1561, %v1557
    %v1782 = vpack.c.b16 %v1566, %v1562
    %v1783 = vpack.c.b16 %v1567, %v1563
    %v1784 = vpack.c.b16 %v1568, %v1564
    %v1785 = vpack.c.b16 %v1569, %v1565
    %v1786 = vpack.c.b16 %v1574, %v1570
    %v1787 = vpack.c.b16 %v1575, %v1571
    %v1788 = vpack.c.b16 %v1576, %v1572
    %v1789 = vpack.c.b16 %v1577, %v1573
    %v1790 = vpack.c.b16 %v1582, %v1578
    %v1791 = vpack.c.b16 %v1583, %v1579
    %v1792 = vpack.c.b16 %v1584, %v1580
    %v1793 = vpack.c.b16 %v1585, %v1581
    %v1794 = vpack.c.b16 %v1590, %v1586
    %v1795 = vpack.c.b16 %v1591, %v1587
    %v1796 = vpack.c.b16 %v1592, %v1588
    %v1797 = vpack.c.b16 %v1593, %v1589
    %v1798 = vpack.c.b16 %v1598, %v1594
    %v1799 = vpack.c.b16 %v1599, %v1595
    %v1800 = vpack.c.b16 %v1600, %v1596
    %v1801 = vpack.c.b16 %v1601, %v1597
    %v1802 = vpack.c.b16 %v1606, %v1602
    %v1803 = vpack.c.b16 %v1607, %v1603
    %v1804 = vpack.c.b16 %v1608, %v1604
    %v1805 = vpack.c.b16 %v1609, %v1605
    %v1806 = vpack.c.b16 %v1614, %v1610
    %v1807 = vpack.c.b16 %v1615, %v1611
    %v1808 = vpack.c.b16 %v1616, %v1612
    %v1809 = vpack.c.b16 %v1617, %v1613
    %v1810 = vpack.c.b16 %v1622, %v1618
    %v1811 = vpack.c.b16 %v1623, %v1619
    %v1812 = vpack.c.b16 %v1624, %v1620
    %v1813 = vpack.c.b16 %v1625, %v1621
    %v1814 = vpack.c.b16 %v1630, %v1626
    %v1815 = vpack.c.b16 %v1631, %v1627
    %v1816 = vpack.c.b16 %v1632, %v1628
    %v1817 = vpack.c.b16 %v1633, %v1629
    %v1818 = vpack.c.b16 %v1638, %v1634
    %v1819 = vpack.c.b16 %v1639, %v1635
    %v1820 = vpack.c.b16 %v1640, %v1636
    %v1821 = vpack.c.b16 %v1641, %v1637
    %v1822 = vpack.c.b16 %v1646, %v1642
    %v1823 = vpack.c.b16 %v1647, %v1643
    %v1824 = vpack.c.b16 %v1648, %v1644
    %v1825 = vpack.c.b16 %v1649, %v1645
    %v1826 = vpack.c.b16 %v1654, %v1650
    %v1827 = vpack.c.b16 %v1655, %v1651
    %v1828 = vpack.c.b16 %v1656, %v1652
    %v1829 = vpack.c.b16 %v1657, %v1653
    %v1830 = vpack.c.b16 %v1662, %v1658
    %v1831 = vpack.c.b16 %v1663, %v1659
    %v1832 = vpack.c.b16 %v1664, %v1660
    %v1833 = vpack.c.b16 %v1665, %v1661
    %v1834 = vpack.c.b16 %v1670, %v1666
    %v1835 = vpack.c.b16 %v1671, %v1667
    %v1836 = vpack.c.b16 %v1672, %v1668
    %v1837 = vpack.c.b16 %v1673, %v1669
    %v1838 = vpack.c.b16 %v1678, %v1674
    %v1839 = vpack.c.b16 %v1679, %v1675
    %v1840 = vpack.c.b16 %v1680, %v1676
    %v1841 = vpack.c.b16 %v1681, %v1677
    %v1842 = vpack.c.b16 %v1686, %v1682
    %v1843 = vpack.c.b16 %v1687, %v1683
    %v1844 = vpack.c.b16 %v1688, %v1684
    %v1845 = vpack.c.b16 %v1689, %v1685
    %v1846 = vpack.c.b16 %v1694, %v1690
    %v1847 = vpack.c.b16 %v1695, %v1691
    %v1848 = vpack.c.b16 %v1696, %v1692
    %v1849 = vpack.c.b16 %v1697, %v1693
    %v1850 = vpack.c.b16 %v1702, %v1698
    %v1851 = vpack.c.b16 %v1703, %v1699
    %v1852 = vpack.c.b16 %v1704, %v1700
    %v1853 = vpack.c.b16 %v1705, %v1701
    %v1854 = vpack.c.b16 %v1710, %v1706
    %v1855 = vpack.c.b16 %v1711, %v1707
    %v1856 = vpack.c.b16 %v1712, %v1708
    %v1857 = vpack.c.b16 %v1713, %v1709
    %v1858 = vpack.c.b16 %v1718, %v1714
    %v1859 = vpack.c.b16 %v1719, %v1715
    %v1860 = vpack.c.b16 %v1720, %v1716
    %v1861 = vpack.c.b16 %v1721, %v1717
    %v1862 = vpack.c.b16 %v1726, %v1722
    %v1863 = vpack.c.b16 %v1727, %v1723
    %v1864 = vpack.c.b16 %v1728, %v1724
    %v1865 = vpack.c.b16 %v1729, %v1725
    %v1866 = vpack.c.b16 %v1734, %v1730
    %v1867 = vpack.c.b16 %v1735, %v1731
    %v1868 = vpack.c.b16 %v1736, %v1732
    %v1869 = vpack.c.b16 %v1737, %v1733
    %v1870 = vpack.c.b16 %v1742, %v1738
    %v1871 = vpack.c.b16 %v1743, %v1739
    %v1872 = vpack.c.b16 %v1744, %v1740
    %v1873 = vpack.c.b16 %v1745, %v1741
    %2002 = vmatprep.subr.bf16.mxu0 %v1775
    %2003 = vmatpush1.bf16.msra.mxu0 %v1774
    %2004 = vmatprep.subr.bf16.mxu0 %v1771
    %2005 = vmatpush1.bf16.msra.mxu0 %v1770
    %2006 = vmatprep.subr.bf16.mxu0 %v1767
    %2007 = vmatpush1.bf16.msra.mxu0 %v1766
    %2008 = vmatprep.subr.bf16.mxu0 %v1763
    %2009 = vmatpush1.bf16.msra.mxu0 %v1762
    %2010 = vmatprep.subr.bf16.mxu0 %v1759
    %2011 = vmatpush1.bf16.msra.mxu0 %v1758
    %2012 = vmatprep.subr.bf16.mxu0 %v1755
    %2013 = vmatpush1.bf16.msra.mxu0 %v1754
    %2014 = vmatprep.subr.bf16.mxu0 %v1751
    %2015 = vmatpush1.bf16.msra.mxu0 %v1750
    %2016 = vmatprep.subr.bf16.mxu0 %v1747
    %2017 = vmatpush1.bf16.msra.mxu0 %v1746
    %2018 = vmatprep.subr.bf16.mxu0 %v1807
    %2019 = vmatpush2.bf16.msra.mxu0 %v1806
    %2020 = vmatprep.subr.bf16.mxu0 %v1803
    %2021 = vmatpush2.bf16.msra.mxu0 %v1802
    %2022 = vmatprep.subr.bf16.mxu0 %v1799
    %2023 = vmatpush2.bf16.msra.mxu0 %v1798
    %2024 = vmatprep.subr.bf16.mxu0 %v1795
    %2025 = vmatpush2.bf16.msra.mxu0 %v1794
    %2026 = vmatprep.subr.bf16.mxu0 %v1791
    %2027 = vmatpush2.bf16.msra.mxu0 %v1790
    %2028 = vmatprep.subr.bf16.mxu0 %v1787
    %2029 = vmatpush2.bf16.msra.mxu0 %v1786
    %2030 = vmatprep.subr.bf16.mxu0 %v1783
    %2031 = vmatpush2.bf16.msra.mxu0 %v1782
    %2032 = vmatprep.subr.bf16.mxu0 %v1779
    %2033 = vmatpush2.bf16.msra.mxu0 %v1778
    %2034 = vmatprep.mubr.bf16.mxu0 %v1336
    %2035 = vmatmul.mubr.bf16.gmra.mxu0 %v1335
    %v2036 = vpop.f32.mrf.mxu0
    %v2037 = vadd.f32 %v1345, %v2036
    %v2038 = vpop.f32.mrf.mxu0
    %v2039 = vadd.f32 %v1349, %v2038
    %v2040 = vpop.f32.mrf.mxu0
    %v2041 = vpop.f32.mrf.mxu0
    %2042 = vdwg.mxu0
    %2043 = vmatprep.subr.bf16.mxu0 %v1839
    %2044 = vmatpush1.bf16.msra.mxu0 %v1838
    %2045 = vmatprep.subr.bf16.mxu0 %v1835
    %2046 = vmatpush1.bf16.msra.mxu0 %v1834
    %2047 = vmatprep.subr.bf16.mxu0 %v1831
    %2048 = vmatpush1.bf16.msra.mxu0 %v1830
    %2049 = vmatprep.subr.bf16.mxu0 %v1827
    %2050 = vmatpush1.bf16.msra.mxu0 %v1826
    %2051 = vmatprep.subr.bf16.mxu0 %v1823
    %2052 = vmatpush1.bf16.msra.mxu0 %v1822
    %2053 = vmatprep.subr.bf16.mxu0 %v1819
    %2054 = vmatpush1.bf16.msra.mxu0 %v1818
    %2055 = vmatprep.subr.bf16.mxu0 %v1815
    %2056 = vmatpush1.bf16.msra.mxu0 %v1814
    %2057 = vmatprep.subr.bf16.mxu0 %v1811
    %2058 = vmatpush1.bf16.msra.mxu0 %v1810
    %2059 = vmatprep.subr.bf16.mxu0 %v1871
    %2060 = vmatpush2.bf16.msra.mxu0 %v1870
    %2061 = vmatprep.subr.bf16.mxu0 %v1867
    %2062 = vmatpush2.bf16.msra.mxu0 %v1866
    %2063 = vmatprep.subr.bf16.mxu0 %v1863
    %2064 = vmatpush2.bf16.msra.mxu0 %v1862
    %2065 = vmatprep.subr.bf16.mxu0 %v1859
    %2066 = vmatpush2.bf16.msra.mxu0 %v1858
    %2067 = vmatprep.subr.bf16.mxu0 %v1855
    %2068 = vmatpush2.bf16.msra.mxu0 %v1854
    %2069 = vmatprep.subr.bf16.mxu0 %v1851
    %2070 = vmatpush2.bf16.msra.mxu0 %v1850
    %2071 = vmatprep.subr.bf16.mxu0 %v1847
    %2072 = vmatpush2.bf16.msra.mxu0 %v1846
    %2073 = vmatprep.subr.bf16.mxu0 %v1843
    %2074 = vmatpush2.bf16.msra.mxu0 %v1842
    %2075 = vmatprep.mubr.bf16.mxu0 %v1338
    %2076 = vmatmul.mubr.bf16.gmra.mxu0 %v1337
    %v2077 = vpop.f32.mrf.mxu0
    %v2078 = vadd.f32 %v2037, %v2077
    %v2079 = vpop.f32.mrf.mxu0
    %v2080 = vadd.f32 %v2039, %v2079
    %v2081 = vpop.f32.mrf.mxu0
    %v2082 = vpop.f32.mrf.mxu0
    %2083 = vdwg.mxu0
    %2084 = vmatprep.subr.bf16.mxu0 %v1777
    %2085 = vmatpush1.bf16.msra.mxu0 %v1776
    %2086 = vmatprep.subr.bf16.mxu0 %v1773
    %2087 = vmatpush1.bf16.msra.mxu0 %v1772
    %2088 = vmatprep.subr.bf16.mxu0 %v1769
    %2089 = vmatpush1.bf16.msra.mxu0 %v1768
    %2090 = vmatprep.subr.bf16.mxu0 %v1765
    %2091 = vmatpush1.bf16.msra.mxu0 %v1764
    %2092 = vmatprep.subr.bf16.mxu0 %v1761
    %2093 = vmatpush1.bf16.msra.mxu0 %v1760
    %2094 = vmatprep.subr.bf16.mxu0 %v1757
    %2095 = vmatpush1.bf16.msra.mxu0 %v1756
    %2096 = vmatprep.subr.bf16.mxu0 %v1753
    %2097 = vmatpush1.bf16.msra.mxu0 %v1752
    %2098 = vmatprep.subr.bf16.mxu0 %v1749
    %2099 = vmatpush1.bf16.msra.mxu0 %v1748
    %2100 = vmatprep.subr.bf16.mxu0 %v1809
    %2101 = vmatpush2.bf16.msra.mxu0 %v1808
    %2102 = vmatprep.subr.bf16.mxu0 %v1805
    %2103 = vmatpush2.bf16.msra.mxu0 %v1804
    %2104 = vmatprep.subr.bf16.mxu0 %v1801
    %2105 = vmatpush2.bf16.msra.mxu0 %v1800
    %2106 = vmatprep.subr.bf16.mxu0 %v1797
    %2107 = vmatpush2.bf16.msra.mxu0 %v1796
    %2108 = vmatprep.subr.bf16.mxu0 %v1793
    %2109 = vmatpush2.bf16.msra.mxu0 %v1792
    %2110 = vmatprep.subr.bf16.mxu0 %v1789
    %2111 = vmatpush2.bf16.msra.mxu0 %v1788
    %2112 = vmatprep.subr.bf16.mxu0 %v1785
    %2113 = vmatpush2.bf16.msra.mxu0 %v1784
    %2114 = vmatprep.subr.bf16.mxu0 %v1781
    %2115 = vmatpush2.bf16.msra.mxu0 %v1780
    %2116 = vmatprep.mubr.bf16.mxu0 %v1336
    %2117 = vmatmul.mubr.bf16.gmra.mxu0 %v1335
    %v2118 = vpop.f32.mrf.mxu0
    %v2119 = vadd.f32 %v1353, %v2118
    %v2120 = vpop.f32.mrf.mxu0
    %v2121 = vadd.f32 %v1357, %v2120
    %v2122 = vpop.f32.mrf.mxu0
    %v2123 = vpop.f32.mrf.mxu0
    %2124 = vdwg.mxu0
    %2125 = vmatprep.subr.bf16.mxu0 %v1841
    %2126 = vmatpush1.bf16.msra.mxu0 %v1840
    %2127 = vmatprep.subr.bf16.mxu0 %v1837
    %2128 = vmatpush1.bf16.msra.mxu0 %v1836
    %2129 = vmatprep.subr.bf16.mxu0 %v1833
    %2130 = vmatpush1.bf16.msra.mxu0 %v1832
    %2131 = vmatprep.subr.bf16.mxu0 %v1829
    %2132 = vmatpush1.bf16.msra.mxu0 %v1828
    %2133 = vmatprep.subr.bf16.mxu0 %v1825
    %2134 = vmatpush1.bf16.msra.mxu0 %v1824
    %2135 = vmatprep.subr.bf16.mxu0 %v1821
    %2136 = vmatpush1.bf16.msra.mxu0 %v1820
    %2137 = vmatprep.subr.bf16.mxu0 %v1817
    %2138 = vmatpush1.bf16.msra.mxu0 %v1816
    %2139 = vmatprep.subr.bf16.mxu0 %v1813
    %2140 = vmatpush1.bf16.msra.mxu0 %v1812
    %2141 = vmatprep.subr.bf16.mxu0 %v1873
    %2142 = vmatpush2.bf16.msra.mxu0 %v1872
    %2143 = vmatprep.subr.bf16.mxu0 %v1869
    %2144 = vmatpush2.bf16.msra.mxu0 %v1868
    %2145 = vmatprep.subr.bf16.mxu0 %v1865
    %2146 = vmatpush2.bf16.msra.mxu0 %v1864
    %2147 = vmatprep.subr.bf16.mxu0 %v1861
    %2148 = vmatpush2.bf16.msra.mxu0 %v1860
    %2149 = vmatprep.subr.bf16.mxu0 %v1857
    %2150 = vmatpush2.bf16.msra.mxu0 %v1856
    %2151 = vmatprep.subr.bf16.mxu0 %v1853
    %2152 = vmatpush2.bf16.msra.mxu0 %v1852
    %2153 = vmatprep.subr.bf16.mxu0 %v1849
    %2154 = vmatpush2.bf16.msra.mxu0 %v1848
    %2155 = vmatprep.subr.bf16.mxu0 %v1845
    %2156 = vmatpush2.bf16.msra.mxu0 %v1844
    %2157 = vmatprep.mubr.bf16.mxu0 %v1338
    %2158 = vmatmul.mubr.bf16.gmra.mxu0 %v1337
    %v2159 = vpop.f32.mrf.mxu0
    %v2160 = vadd.f32 %v2119, %v2159
    %v2161 = vpop.f32.mrf.mxu0
    %v2162 = vadd.f32 %v2121, %v2161
    %v2163 = vpop.f32.mrf.mxu0
    %v2164 = vpop.f32.mrf.mxu0
    %2165 = vdwg.mxu0
    %v2166 = vxor.u32 %v2078, 2147483648
    %v2167 = vxor.u32 %v2080, 2147483648
    %v2168 = vxor.u32 %v2160, 2147483648
    %v2169 = vxor.u32 %v2162, 2147483648
    %v2170 = vmul.f32 %v2166, 1.442695
    %v2171 = vpow.pop %v2170
    %v2172 = vmul.f32 %v2167, 1.442695
    %v2173 = vpow.pop %v2172
    %v2174 = vmul.f32 %v2168, 1.442695
    %v2175 = vpow.pop %v2174
    %v2176 = vmul.f32 %v2169, 1.442695
    %v2177 = vpow.pop %v2176
    %v2178 = vadd.f32 %v2171, 1.0
    %v2179 = vadd.f32 %v2173, 1.0
    %v2180 = vadd.f32 %v2175, 1.0
    %v2181 = vadd.f32 %v2177, 1.0
    %v2182 = vrcp.pop %v2178
    %v2183 = vmul.f32 1.0, %v2182
    %v2184 = vrcp.pop %v2179
    %v2185 = vmul.f32 1.0, %v2184
    %v2186 = vrcp.pop %v2180
    %v2187 = vmul.f32 1.0, %v2186
    %v2188 = vrcp.pop %v2181
    %v2189 = vmul.f32 1.0, %v2188
    %v2190 = vmul.f32 %v2078, %v2183
    %v2191 = vmul.f32 %v2080, %v2185
    %v2192 = vmul.f32 %v2160, %v2187
    %v2193 = vmul.f32 %v2162, %v2189
    %v2194 = vld [vmem:[#allocation7 + $0x620] sm:$0xff]
    %v2195 = vld [vmem:[#allocation7 + $0x628] sm:$0xff]
    %v2196 = vld [vmem:[#allocation7 + $0x630] sm:$0xff]
    %v2197 = vld [vmem:[#allocation7 + $0x638] sm:$0xff]
    %s2198 = scalar_lea.vmem [#allocation8], 7
    %v2199 = vld [vmem:[%s2198] ss:$8 sm:$0xf]
    %v2201 = vlaneseq
    %v2202 = vshrl.u32 %v2201, 7
    %v2203 = vsub.s32 0, %v2202
    %v2204 = vrot.slane %v2199, %v2203
    %v2205 = vlaneseq
    %v2206 = vshrl.u32 %v2205, 7
    %v2207 = vsub.s32 1, %v2206
    %v2208 = vrot.slane %v2199, %v2207
    %v2209 = vlaneseq
    %v2210 = vshrl.u32 %v2209, 7
    %v2211 = vsub.s32 2, %v2210
    %v2212 = vrot.slane %v2199, %v2211
    %v2213 = vlaneseq
    %v2214 = vshrl.u32 %v2213, 7
    %v2215 = vsub.s32 3, %v2214
    %v2216 = vrot.slane %v2199, %v2215
    %v2225 = vunpack.c.l.b16 %v2194
    %v2226 = vunpack.c.h.b16 %v2194
    %v2227 = vunpack.c.l.b16 %v2195
    %v2228 = vunpack.c.h.b16 %v2195
    %v2229 = vunpack.c.l.b16 %v2196
    %v2230 = vunpack.c.h.b16 %v2196
    %v2231 = vunpack.c.l.b16 %v2197
    %v2232 = vunpack.c.h.b16 %v2197
    %v2233 = vpack.c.b16 %v2229, %v2225
    %v2234 = vpack.c.b16 %v2230, %v2226
    %v2235 = vpack.c.b16 %v2231, %v2227
    %v2236 = vpack.c.b16 %v2232, %v2228
    %2241 = vmatprep.subr.bf16.mxu0 0
    %2242 = vmatpush1.bf16.msra.mxu0 0
    %2243 = vmatprep.subr.bf16.mxu0 0
    %2244 = vmatpush1.bf16.msra.mxu0 0
    %2245 = vmatprep.subr.bf16.mxu0 0
    %2246 = vmatpush1.bf16.msra.mxu0 0
    %2247 = vmatprep.subr.bf16.mxu0 0
    %2248 = vmatpush1.bf16.msra.mxu0 0
    %2249 = vmatprep.subr.bf16.mxu0 0
    %2250 = vmatpush1.bf16.msra.mxu0 0
    %2251 = vmatprep.subr.bf16.mxu0 0
    %2252 = vmatpush1.bf16.msra.mxu0 0
    %2253 = vmatprep.subr.bf16.mxu0 0
    %2254 = vmatpush1.bf16.msra.mxu0 0
    %2255 = vmatprep.subr.bf16.mxu0 %v2234
    %2256 = vmatpush1.bf16.msra.mxu0 %v2233
    %2257 = vmatprep.subr.bf16.mxu0 0
    %2258 = vmatpush2.bf16.msra.mxu0 0
    %2259 = vmatprep.subr.bf16.mxu0 0
    %2260 = vmatpush2.bf16.msra.mxu0 0
    %2261 = vmatprep.subr.bf16.mxu0 0
    %2262 = vmatpush2.bf16.msra.mxu0 0
    %2263 = vmatprep.subr.bf16.mxu0 0
    %2264 = vmatpush2.bf16.msra.mxu0 0
    %2265 = vmatprep.subr.bf16.mxu0 0
    %2266 = vmatpush2.bf16.msra.mxu0 0
    %2267 = vmatprep.subr.bf16.mxu0 0
    %2268 = vmatpush2.bf16.msra.mxu0 0
    %2269 = vmatprep.subr.bf16.mxu0 0
    %2270 = vmatpush2.bf16.msra.mxu0 0
    %2271 = vmatprep.subr.bf16.mxu0 0
    %2272 = vmatpush2.bf16.msra.mxu0 0
    %2273 = vmatprep.mubr.bf16.mxu0 0
    %2274 = vmatmul.mubr.bf16.gmra.mxu0 %v600
    %v2275 = vpop.f32.mrf.mxu0
    %v2276 = vadd.f32 %v2204, %v2275
    %v2277 = vpop.f32.mrf.mxu0
    %v2278 = vadd.f32 %v2208, %v2277
    %v2279 = vpop.f32.mrf.mxu0
    %v2280 = vpop.f32.mrf.mxu0
    %2281 = vdwg.mxu0
    %2282 = vmatprep.subr.bf16.mxu0 0
    %2283 = vmatpush1.bf16.msra.mxu0 0
    %2284 = vmatprep.subr.bf16.mxu0 0
    %2285 = vmatpush1.bf16.msra.mxu0 0
    %2286 = vmatprep.subr.bf16.mxu0 0
    %2287 = vmatpush1.bf16.msra.mxu0 0
    %2288 = vmatprep.subr.bf16.mxu0 0
    %2289 = vmatpush1.bf16.msra.mxu0 0
    %2290 = vmatprep.subr.bf16.mxu0 0
    %2291 = vmatpush1.bf16.msra.mxu0 0
    %2292 = vmatprep.subr.bf16.mxu0 0
    %2293 = vmatpush1.bf16.msra.mxu0 0
    %2294 = vmatprep.subr.bf16.mxu0 0
    %2295 = vmatpush1.bf16.msra.mxu0 0
    %2296 = vmatprep.subr.bf16.mxu0 %v2236
    %2297 = vmatpush1.bf16.msra.mxu0 %v2235
    %2298 = vmatprep.subr.bf16.mxu0 0
    %2299 = vmatpush2.bf16.msra.mxu0 0
    %2300 = vmatprep.subr.bf16.mxu0 0
    %2301 = vmatpush2.bf16.msra.mxu0 0
    %2302 = vmatprep.subr.bf16.mxu0 0
    %2303 = vmatpush2.bf16.msra.mxu0 0
    %2304 = vmatprep.subr.bf16.mxu0 0
    %2305 = vmatpush2.bf16.msra.mxu0 0
    %2306 = vmatprep.subr.bf16.mxu0 0
    %2307 = vmatpush2.bf16.msra.mxu0 0
    %2308 = vmatprep.subr.bf16.mxu0 0
    %2309 = vmatpush2.bf16.msra.mxu0 0
    %2310 = vmatprep.subr.bf16.mxu0 0
    %2311 = vmatpush2.bf16.msra.mxu0 0
    %2312 = vmatprep.subr.bf16.mxu0 0
    %2313 = vmatpush2.bf16.msra.mxu0 0
    %2314 = vmatprep.mubr.bf16.mxu0 0
    %2315 = vmatmul.mubr.bf16.gmra.mxu0 %v600
    %v2316 = vpop.f32.mrf.mxu0
    %v2317 = vadd.f32 %v2212, %v2316
    %v2318 = vpop.f32.mrf.mxu0
    %v2319 = vadd.f32 %v2216, %v2318
    %v2320 = vpop.f32.mrf.mxu0
    %v2321 = vpop.f32.mrf.mxu0
    %2322 = vdwg.mxu0
    %v2323 = vadd.f32 %v2190, %v2276
    %v2324 = vadd.f32 %v2191, %v2278
    %v2325 = vadd.f32 %v2192, %v2317
    %v2326 = vadd.f32 %v2193, %v2319
    %v2327 = vld [vmem:[#allocation5] sm:$0xff]
    %v2328 = vld [vmem:[#allocation5 + $0x8] sm:$0xff]
    %v2329 = vld [vmem:[#allocation5 + $0x10] sm:$0xff]
    %v2330 = vld [vmem:[#allocation5 + $0x18] sm:$0xff]
    %v2331 = vld [vmem:[#allocation5 + $0x20] sm:$0xff]
    %v2332 = vld [vmem:[#allocation5 + $0x28] sm:$0xff]
    %v2333 = vld [vmem:[#allocation5 + $0x30] sm:$0xff]
    %v2334 = vld [vmem:[#allocation5 + $0x38] sm:$0xff]
    %v2335 = vld [vmem:[#allocation5 + $0x40] sm:$0xff]
    %v2336 = vld [vmem:[#allocation5 + $0x48] sm:$0xff]
    %v2337 = vld [vmem:[#allocation5 + $0x50] sm:$0xff]
    %v2338 = vld [vmem:[#allocation5 + $0x58] sm:$0xff]
    %v2339 = vld [vmem:[#allocation5 + $0x60] sm:$0xff]
    %v2340 = vld [vmem:[#allocation5 + $0x68] sm:$0xff]
    %v2341 = vld [vmem:[#allocation5 + $0x70] sm:$0xff]
    %v2342 = vld [vmem:[#allocation5 + $0x78] sm:$0xff]
    %v2343 = vld [vmem:[#allocation5 + $0x80] sm:$0xff]
    %v2344 = vld [vmem:[#allocation5 + $0x88] sm:$0xff]
    %v2345 = vld [vmem:[#allocation5 + $0x90] sm:$0xff]
    %v2346 = vld [vmem:[#allocation5 + $0x98] sm:$0xff]
    %v2347 = vld [vmem:[#allocation5 + $0xa0] sm:$0xff]
    %v2348 = vld [vmem:[#allocation5 + $0xa8] sm:$0xff]
    %v2349 = vld [vmem:[#allocation5 + $0xb0] sm:$0xff]
    %v2350 = vld [vmem:[#allocation5 + $0xb8] sm:$0xff]
    %v2351 = vld [vmem:[#allocation5 + $0xc0] sm:$0xff]
    %v2352 = vld [vmem:[#allocation5 + $0xc8] sm:$0xff]
    %v2353 = vld [vmem:[#allocation5 + $0xd0] sm:$0xff]
    %v2354 = vld [vmem:[#allocation5 + $0xd8] sm:$0xff]
    %v2355 = vld [vmem:[#allocation5 + $0xe0] sm:$0xff]
    %v2356 = vld [vmem:[#allocation5 + $0xe8] sm:$0xff]
    %v2357 = vld [vmem:[#allocation5 + $0xf0] sm:$0xff]
    %v2358 = vld [vmem:[#allocation5 + $0xf8] sm:$0xff]
    %v2359 = vld [vmem:[#allocation5 + $0x100] sm:$0xff]
    %v2360 = vld [vmem:[#allocation5 + $0x108] sm:$0xff]
    %v2361 = vld [vmem:[#allocation5 + $0x110] sm:$0xff]
    %v2362 = vld [vmem:[#allocation5 + $0x118] sm:$0xff]
    %v2363 = vld [vmem:[#allocation5 + $0x120] sm:$0xff]
    %v2364 = vld [vmem:[#allocation5 + $0x128] sm:$0xff]
    %v2365 = vld [vmem:[#allocation5 + $0x130] sm:$0xff]
    %v2366 = vld [vmem:[#allocation5 + $0x138] sm:$0xff]
    %v2367 = vld [vmem:[#allocation5 + $0x140] sm:$0xff]
    %v2368 = vld [vmem:[#allocation5 + $0x148] sm:$0xff]
    %v2369 = vld [vmem:[#allocation5 + $0x150] sm:$0xff]
    %v2370 = vld [vmem:[#allocation5 + $0x158] sm:$0xff]
    %v2371 = vld [vmem:[#allocation5 + $0x160] sm:$0xff]
    %v2372 = vld [vmem:[#allocation5 + $0x168] sm:$0xff]
    %v2373 = vld [vmem:[#allocation5 + $0x170] sm:$0xff]
    %v2374 = vld [vmem:[#allocation5 + $0x178] sm:$0xff]
    %v2375 = vld [vmem:[#allocation5 + $0x180] sm:$0xff]
    %v2376 = vld [vmem:[#allocation5 + $0x188] sm:$0xff]
    %v2377 = vld [vmem:[#allocation5 + $0x190] sm:$0xff]
    %v2378 = vld [vmem:[#allocation5 + $0x198] sm:$0xff]
    %v2379 = vld [vmem:[#allocation5 + $0x1a0] sm:$0xff]
    %v2380 = vld [vmem:[#allocation5 + $0x1a8] sm:$0xff]
    %v2381 = vld [vmem:[#allocation5 + $0x1b0] sm:$0xff]
    %v2382 = vld [vmem:[#allocation5 + $0x1b8] sm:$0xff]
    %v2383 = vld [vmem:[#allocation5 + $0x1c0] sm:$0xff]
    %v2384 = vld [vmem:[#allocation5 + $0x1c8] sm:$0xff]
    %v2385 = vld [vmem:[#allocation5 + $0x1d0] sm:$0xff]
    %v2386 = vld [vmem:[#allocation5 + $0x1d8] sm:$0xff]
    %v2387 = vld [vmem:[#allocation5 + $0x1e0] sm:$0xff]
    %v2388 = vld [vmem:[#allocation5 + $0x1e8] sm:$0xff]
    %v2389 = vld [vmem:[#allocation5 + $0x1f0] sm:$0xff]
    %v2390 = vld [vmem:[#allocation5 + $0x1f8] sm:$0xff]
    %v2391 = vpack.c.bf16 %v2323, %v2323
    %v2392 = vpack.c.bf16 %v2324, %v2324
    %v2393 = vpack.c.bf16 %v2325, %v2325
    %v2394 = vpack.c.bf16 %v2326, %v2326
    %s2395 = scalar_lea.vmem [#allocation8], 32
    %v2396 = vld [vmem:[%s2395] ss:$8 sm:$0x3]
    %v2398 = vlaneseq
    %v2399 = vshrl.u32 %v2398, 7
    %v2400 = vsub.s32 0, %v2399
    %v2401 = vrot.slane %v2396, %v2400
    %v2402 = vlaneseq
    %v2403 = vshrl.u32 %v2402, 7
    %v2404 = vsub.s32 1, %v2403
    %v2405 = vrot.slane %v2396, %v2404
    %v2472 = vunpack.c.l.b16 %v2327
    %v2473 = vunpack.c.h.b16 %v2327
    %v2474 = vunpack.c.l.b16 %v2328
    %v2475 = vunpack.c.h.b16 %v2328
    %v2476 = vunpack.c.l.b16 %v2329
    %v2477 = vunpack.c.h.b16 %v2329
    %v2478 = vunpack.c.l.b16 %v2330
    %v2479 = vunpack.c.h.b16 %v2330
    %v2480 = vunpack.c.l.b16 %v2331
    %v2481 = vunpack.c.h.b16 %v2331
    %v2482 = vunpack.c.l.b16 %v2332
    %v2483 = vunpack.c.h.b16 %v2332
    %v2484 = vunpack.c.l.b16 %v2333
    %v2485 = vunpack.c.h.b16 %v2333
    %v2486 = vunpack.c.l.b16 %v2334
    %v2487 = vunpack.c.h.b16 %v2334
    %v2488 = vunpack.c.l.b16 %v2335
    %v2489 = vunpack.c.h.b16 %v2335
    %v2490 = vunpack.c.l.b16 %v2336
    %v2491 = vunpack.c.h.b16 %v2336
    %v2492 = vunpack.c.l.b16 %v2337
    %v2493 = vunpack.c.h.b16 %v2337
    %v2494 = vunpack.c.l.b16 %v2338
    %v2495 = vunpack.c.h.b16 %v2338
    %v2496 = vunpack.c.l.b16 %v2339
    %v2497 = vunpack.c.h.b16 %v2339
    %v2498 = vunpack.c.l.b16 %v2340
    %v2499 = vunpack.c.h.b16 %v2340
    %v2500 = vunpack.c.l.b16 %v2341
    %v2501 = vunpack.c.h.b16 %v2341
    %v2502 = vunpack.c.l.b16 %v2342
    %v2503 = vunpack.c.h.b16 %v2342
    %v2504 = vunpack.c.l.b16 %v2343
    %v2505 = vunpack.c.h.b16 %v2343
    %v2506 = vunpack.c.l.b16 %v2344
    %v2507 = vunpack.c.h.b16 %v2344
    %v2508 = vunpack.c.l.b16 %v2345
    %v2509 = vunpack.c.h.b16 %v2345
    %v2510 = vunpack.c.l.b16 %v2346
    %v2511 = vunpack.c.h.b16 %v2346
    %v2512 = vunpack.c.l.b16 %v2347
    %v2513 = vunpack.c.h.b16 %v2347
    %v2514 = vunpack.c.l.b16 %v2348
    %v2515 = vunpack.c.h.b16 %v2348
    %v2516 = vunpack.c.l.b16 %v2349
    %v2517 = vunpack.c.h.b16 %v2349
    %v2518 = vunpack.c.l.b16 %v2350
    %v2519 = vunpack.c.h.b16 %v2350
    %v2520 = vunpack.c.l.b16 %v2351
    %v2521 = vunpack.c.h.b16 %v2351
    %v2522 = vunpack.c.l.b16 %v2352
    %v2523 = vunpack.c.h.b16 %v2352
    %v2524 = vunpack.c.l.b16 %v2353
    %v2525 = vunpack.c.h.b16 %v2353
    %v2526 = vunpack.c.l.b16 %v2354
    %v2527 = vunpack.c.h.b16 %v2354
    %v2528 = vunpack.c.l.b16 %v2355
    %v2529 = vunpack.c.h.b16 %v2355
    %v2530 = vunpack.c.l.b16 %v2356
    %v2531 = vunpack.c.h.b16 %v2356
    %v2532 = vunpack.c.l.b16 %v2357
    %v2533 = vunpack.c.h.b16 %v2357
    %v2534 = vunpack.c.l.b16 %v2358
    %v2535 = vunpack.c.h.b16 %v2358
    %v2536 = vunpack.c.l.b16 %v2359
    %v2537 = vunpack.c.h.b16 %v2359
    %v2538 = vunpack.c.l.b16 %v2360
    %v2539 = vunpack.c.h.b16 %v2360
    %v2540 = vunpack.c.l.b16 %v2361
    %v2541 = vunpack.c.h.b16 %v2361
    %v2542 = vunpack.c.l.b16 %v2362
    %v2543 = vunpack.c.h.b16 %v2362
    %v2544 = vunpack.c.l.b16 %v2363
    %v2545 = vunpack.c.h.b16 %v2363
    %v2546 = vunpack.c.l.b16 %v2364
    %v2547 = vunpack.c.h.b16 %v2364
    %v2548 = vunpack.c.l.b16 %v2365
    %v2549 = vunpack.c.h.b16 %v2365
    %v2550 = vunpack.c.l.b16 %v2366
    %v2551 = vunpack.c.h.b16 %v2366
    %v2552 = vunpack.c.l.b16 %v2367
    %v2553 = vunpack.c.h.b16 %v2367
    %v2554 = vunpack.c.l.b16 %v2368
    %v2555 = vunpack.c.h.b16 %v2368
    %v2556 = vunpack.c.l.b16 %v2369
    %v2557 = vunpack.c.h.b16 %v2369
    %v2558 = vunpack.c.l.b16 %v2370
    %v2559 = vunpack.c.h.b16 %v2370
    %v2560 = vunpack.c.l.b16 %v2371
    %v2561 = vunpack.c.h.b16 %v2371
    %v2562 = vunpack.c.l.b16 %v2372
    %v2563 = vunpack.c.h.b16 %v2372
    %v2564 = vunpack.c.l.b16 %v2373
    %v2565 = vunpack.c.h.b16 %v2373
    %v2566 = vunpack.c.l.b16 %v2374
    %v2567 = vunpack.c.h.b16 %v2374
    %v2568 = vunpack.c.l.b16 %v2375
    %v2569 = vunpack.c.h.b16 %v2375
    %v2570 = vunpack.c.l.b16 %v2376
    %v2571 = vunpack.c.h.b16 %v2376
    %v2572 = vunpack.c.l.b16 %v2377
    %v2573 = vunpack.c.h.b16 %v2377
    %v2574 = vunpack.c.l.b16 %v2378
    %v2575 = vunpack.c.h.b16 %v2378
    %v2576 = vunpack.c.l.b16 %v2379
    %v2577 = vunpack.c.h.b16 %v2379
    %v2578 = vunpack.c.l.b16 %v2380
    %v2579 = vunpack.c.h.b16 %v2380
    %v2580 = vunpack.c.l.b16 %v2381
    %v2581 = vunpack.c.h.b16 %v2381
    %v2582 = vunpack.c.l.b16 %v2382
    %v2583 = vunpack.c.h.b16 %v2382
    %v2584 = vunpack.c.l.b16 %v2383
    %v2585 = vunpack.c.h.b16 %v2383
    %v2586 = vunpack.c.l.b16 %v2384
    %v2587 = vunpack.c.h.b16 %v2384
    %v2588 = vunpack.c.l.b16 %v2385
    %v2589 = vunpack.c.h.b16 %v2385
    %v2590 = vunpack.c.l.b16 %v2386
    %v2591 = vunpack.c.h.b16 %v2386
    %v2592 = vunpack.c.l.b16 %v2387
    %v2593 = vunpack.c.h.b16 %v2387
    %v2594 = vunpack.c.l.b16 %v2388
    %v2595 = vunpack.c.h.b16 %v2388
    %v2596 = vunpack.c.l.b16 %v2389
    %v2597 = vunpack.c.h.b16 %v2389
    %v2598 = vunpack.c.l.b16 %v2390
    %v2599 = vunpack.c.h.b16 %v2390
    %v2600 = vpack.c.b16 %v2474, %v2472
    %v2601 = vpack.c.b16 %v2475, %v2473
    %v2602 = vpack.c.b16 %v2478, %v2476
    %v2603 = vpack.c.b16 %v2479, %v2477
    %v2604 = vpack.c.b16 %v2482, %v2480
    %v2605 = vpack.c.b16 %v2483, %v2481
    %v2606 = vpack.c.b16 %v2486, %v2484
    %v2607 = vpack.c.b16 %v2487, %v2485
    %v2608 = vpack.c.b16 %v2490, %v2488
    %v2609 = vpack.c.b16 %v2491, %v2489
    %v2610 = vpack.c.b16 %v2494, %v2492
    %v2611 = vpack.c.b16 %v2495, %v2493
    %v2612 = vpack.c.b16 %v2498, %v2496
    %v2613 = vpack.c.b16 %v2499, %v2497
    %v2614 = vpack.c.b16 %v2502, %v2500
    %v2615 = vpack.c.b16 %v2503, %v2501
    %v2616 = vpack.c.b16 %v2506, %v2504
    %v2617 = vpack.c.b16 %v2507, %v2505
    %v2618 = vpack.c.b16 %v2510, %v2508
    %v2619 = vpack.c.b16 %v2511, %v2509
    %v2620 = vpack.c.b16 %v2514, %v2512
    %v2621 = vpack.c.b16 %v2515, %v2513
    %v2622 = vpack.c.b16 %v2518, %v2516
    %v2623 = vpack.c.b16 %v2519, %v2517
    %v2624 = vpack.c.b16 %v2522, %v2520
    %v2625 = vpack.c.b16 %v2523, %v2521
    %v2626 = vpack.c.b16 %v2526, %v2524
    %v2627 = vpack.c.b16 %v2527, %v2525
    %v2628 = vpack.c.b16 %v2530, %v2528
    %v2629 = vpack.c.b16 %v2531, %v2529
    %v2630 = vpack.c.b16 %v2534, %v2532
    %v2631 = vpack.c.b16 %v2535, %v2533
    %v2632 = vpack.c.b16 %v2538, %v2536
    %v2633 = vpack.c.b16 %v2539, %v2537
    %v2634 = vpack.c.b16 %v2542, %v2540
    %v2635 = vpack.c.b16 %v2543, %v2541
    %v2636 = vpack.c.b16 %v2546, %v2544
    %v2637 = vpack.c.b16 %v2547, %v2545
    %v2638 = vpack.c.b16 %v2550, %v2548
    %v2639 = vpack.c.b16 %v2551, %v2549
    %v2640 = vpack.c.b16 %v2554, %v2552
    %v2641 = vpack.c.b16 %v2555, %v2553
    %v2642 = vpack.c.b16 %v2558, %v2556
    %v2643 = vpack.c.b16 %v2559, %v2557
    %v2644 = vpack.c.b16 %v2562, %v2560
    %v2645 = vpack.c.b16 %v2563, %v2561
    %v2646 = vpack.c.b16 %v2566, %v2564
    %v2647 = vpack.c.b16 %v2567, %v2565
    %v2648 = vpack.c.b16 %v2570, %v2568
    %v2649 = vpack.c.b16 %v2571, %v2569
    %v2650 = vpack.c.b16 %v2574, %v2572
    %v2651 = vpack.c.b16 %v2575, %v2573
    %v2652 = vpack.c.b16 %v2578, %v2576
    %v2653 = vpack.c.b16 %v2579, %v2577
    %v2654 = vpack.c.b16 %v2582, %v2580
    %v2655 = vpack.c.b16 %v2583, %v2581
    %v2656 = vpack.c.b16 %v2586, %v2584
    %v2657 = vpack.c.b16 %v2587, %v2585
    %v2658 = vpack.c.b16 %v2590, %v2588
    %v2659 = vpack.c.b16 %v2591, %v2589
    %v2660 = vpack.c.b16 %v2594, %v2592
    %v2661 = vpack.c.b16 %v2595, %v2593
    %v2662 = vpack.c.b16 %v2598, %v2596
    %v2663 = vpack.c.b16 %v2599, %v2597
    %2728 = vmatprep.subr.bf16.mxu0 %v2615
    %2729 = vmatpush1.bf16.msra.mxu0 %v2614
    %2730 = vmatprep.subr.bf16.mxu0 %v2613
    %2731 = vmatpush1.bf16.msra.mxu0 %v2612
    %2732 = vmatprep.subr.bf16.mxu0 %v2611
    %2733 = vmatpush1.bf16.msra.mxu0 %v2610
    %2734 = vmatprep.subr.bf16.mxu0 %v2609
    %2735 = vmatpush1.bf16.msra.mxu0 %v2608
    %2736 = vmatprep.subr.bf16.mxu0 %v2607
    %2737 = vmatpush1.bf16.msra.mxu0 %v2606
    %2738 = vmatprep.subr.bf16.mxu0 %v2605
    %2739 = vmatpush1.bf16.msra.mxu0 %v2604
    %2740 = vmatprep.subr.bf16.mxu0 %v2603
    %2741 = vmatpush1.bf16.msra.mxu0 %v2602
    %2742 = vmatprep.subr.bf16.mxu0 %v2601
    %2743 = vmatpush1.bf16.msra.mxu0 %v2600
    %2744 = vmatprep.subr.bf16.mxu0 %v2631
    %2745 = vmatpush2.bf16.msra.mxu0 %v2630
    %2746 = vmatprep.subr.bf16.mxu0 %v2629
    %2747 = vmatpush2.bf16.msra.mxu0 %v2628
    %2748 = vmatprep.subr.bf16.mxu0 %v2627
    %2749 = vmatpush2.bf16.msra.mxu0 %v2626
    %2750 = vmatprep.subr.bf16.mxu0 %v2625
    %2751 = vmatpush2.bf16.msra.mxu0 %v2624
    %2752 = vmatprep.subr.bf16.mxu0 %v2623
    %2753 = vmatpush2.bf16.msra.mxu0 %v2622
    %2754 = vmatprep.subr.bf16.mxu0 %v2621
    %2755 = vmatpush2.bf16.msra.mxu0 %v2620
    %2756 = vmatprep.subr.bf16.mxu0 %v2619
    %2757 = vmatpush2.bf16.msra.mxu0 %v2618
    %2758 = vmatprep.subr.bf16.mxu0 %v2617
    %2759 = vmatpush2.bf16.msra.mxu0 %v2616
    %2760 = vmatprep.mubr.bf16.mxu0 %v2392
    %2761 = vmatmul.mubr.bf16.gmra.mxu0 %v2391
    %v2762 = vpop.f32.mrf.mxu0
    %v2763 = vadd.f32 %v2401, %v2762
    %v2764 = vpop.f32.mrf.mxu0
    %v2765 = vadd.f32 %v2405, %v2764
    %v2766 = vpop.f32.mrf.mxu0
    %v2767 = vpop.f32.mrf.mxu0
    %2768 = vdwg.mxu0
    %2769 = vmatprep.subr.bf16.mxu0 %v2647
    %2770 = vmatpush1.bf16.msra.mxu0 %v2646
    %2771 = vmatprep.subr.bf16.mxu0 %v2645
    %2772 = vmatpush1.bf16.msra.mxu0 %v2644
    %2773 = vmatprep.subr.bf16.mxu0 %v2643
    %2774 = vmatpush1.bf16.msra.mxu0 %v2642
    %2775 = vmatprep.subr.bf16.mxu0 %v2641
    %2776 = vmatpush1.bf16.msra.mxu0 %v2640
    %2777 = vmatprep.subr.bf16.mxu0 %v2639
    %2778 = vmatpush1.bf16.msra.mxu0 %v2638
    %2779 = vmatprep.subr.bf16.mxu0 %v2637
    %2780 = vmatpush1.bf16.msra.mxu0 %v2636
    %2781 = vmatprep.subr.bf16.mxu0 %v2635
    %2782 = vmatpush1.bf16.msra.mxu0 %v2634
    %2783 = vmatprep.subr.bf16.mxu0 %v2633
    %2784 = vmatpush1.bf16.msra.mxu0 %v2632
    %2785 = vmatprep.subr.bf16.mxu0 %v2663
    %2786 = vmatpush2.bf16.msra.mxu0 %v2662
    %2787 = vmatprep.subr.bf16.mxu0 %v2661
    %2788 = vmatpush2.bf16.msra.mxu0 %v2660
    %2789 = vmatprep.subr.bf16.mxu0 %v2659
    %2790 = vmatpush2.bf16.msra.mxu0 %v2658
    %2791 = vmatprep.subr.bf16.mxu0 %v2657
    %2792 = vmatpush2.bf16.msra.mxu0 %v2656
    %2793 = vmatprep.subr.bf16.mxu0 %v2655
    %2794 = vmatpush2.bf16.msra.mxu0 %v2654
    %2795 = vmatprep.subr.bf16.mxu0 %v2653
    %2796 = vmatpush2.bf16.msra.mxu0 %v2652
    %2797 = vmatprep.subr.bf16.mxu0 %v2651
    %2798 = vmatpush2.bf16.msra.mxu0 %v2650
    %2799 = vmatprep.subr.bf16.mxu0 %v2649
    %2800 = vmatpush2.bf16.msra.mxu0 %v2648
    %2801 = vmatprep.mubr.bf16.mxu0 %v2394
    %2802 = vmatmul.mubr.bf16.gmra.mxu0 %v2393
    %v2803 = vpop.f32.mrf.mxu0
    %v2804 = vadd.f32 %v2763, %v2803
    %v2805 = vpop.f32.mrf.mxu0
    %v2806 = vadd.f32 %v2765, %v2805
    %v2807 = vpop.f32.mrf.mxu0
    %v2808 = vpop.f32.mrf.mxu0
    %2809 = vdwg.mxu0
    %v2810 = vxor.u32 %v2804, 2147483648
    %v2811 = vxor.u32 %v2806, 2147483648
    %v2812 = vmul.f32 %v2810, 1.442695
    %v2813 = vpow.pop %v2812
    %v2814 = vmul.f32 %v2811, 1.442695
    %v2815 = vpow.pop %v2814
    %v2816 = vadd.f32 %v2813, 1.0
    %v2817 = vadd.f32 %v2815, 1.0
    %v2818 = vrcp.pop %v2816
    %v2819 = vmul.f32 1.0, %v2818
    %v2820 = vrcp.pop %v2817
    %v2821 = vmul.f32 1.0, %v2820
    %v2822 = vmul.f32 %v2804, %v2819
    %v2823 = vmul.f32 %v2806, %v2821
    %v2824 = vld [vmem:[#allocation5 + $0x200] sm:$0xff]
    %v2825 = vld [vmem:[#allocation5 + $0x208] sm:$0xff]
    %v2826 = vld [vmem:[#allocation5 + $0x210] sm:$0xff]
    %v2827 = vld [vmem:[#allocation5 + $0x218] sm:$0xff]
    %v2828 = vld [vmem:[#allocation5 + $0x220] sm:$0xff]
    %v2829 = vld [vmem:[#allocation5 + $0x228] sm:$0xff]
    %v2830 = vld [vmem:[#allocation5 + $0x230] sm:$0xff]
    %v2831 = vld [vmem:[#allocation5 + $0x238] sm:$0xff]
    %v2832 = vld [vmem:[#allocation5 + $0x240] sm:$0xff]
    %v2833 = vld [vmem:[#allocation5 + $0x248] sm:$0xff]
    %v2834 = vld [vmem:[#allocation5 + $0x250] sm:$0xff]
    %v2835 = vld [vmem:[#allocation5 + $0x258] sm:$0xff]
    %v2836 = vld [vmem:[#allocation5 + $0x260] sm:$0xff]
    %v2837 = vld [vmem:[#allocation5 + $0x268] sm:$0xff]
    %v2838 = vld [vmem:[#allocation5 + $0x270] sm:$0xff]
    %v2839 = vld [vmem:[#allocation5 + $0x278] sm:$0xff]
    %v2840 = vld [vmem:[#allocation5 + $0x280] sm:$0xff]
    %v2841 = vld [vmem:[#allocation5 + $0x288] sm:$0xff]
    %v2842 = vld [vmem:[#allocation5 + $0x290] sm:$0xff]
    %v2843 = vld [vmem:[#allocation5 + $0x298] sm:$0xff]
    %v2844 = vld [vmem:[#allocation5 + $0x2a0] sm:$0xff]
    %v2845 = vld [vmem:[#allocation5 + $0x2a8] sm:$0xff]
    %v2846 = vld [vmem:[#allocation5 + $0x2b0] sm:$0xff]
    %v2847 = vld [vmem:[#allocation5 + $0x2b8] sm:$0xff]
    %v2848 = vld [vmem:[#allocation5 + $0x2c0] sm:$0xff]
    %v2849 = vld [vmem:[#allocation5 + $0x2c8] sm:$0xff]
    %v2850 = vld [vmem:[#allocation5 + $0x2d0] sm:$0xff]
    %v2851 = vld [vmem:[#allocation5 + $0x2d8] sm:$0xff]
    %v2852 = vld [vmem:[#allocation5 + $0x2e0] sm:$0xff]
    %v2853 = vld [vmem:[#allocation5 + $0x2e8] sm:$0xff]
    %v2854 = vld [vmem:[#allocation5 + $0x2f0] sm:$0xff]
    %v2855 = vld [vmem:[#allocation5 + $0x2f8] sm:$0xff]
    %s2856 = scalar_lea.vmem [#allocation8], 33
    %v2857 = vld [vmem:[%s2856] ss:$8 sm:$0x3]
    %v2859 = vlaneseq
    %v2860 = vshrl.u32 %v2859, 7
    %v2861 = vsub.s32 0, %v2860
    %v2862 = vrot.slane %v2857, %v2861
    %v2863 = vlaneseq
    %v2864 = vshrl.u32 %v2863, 7
    %v2865 = vsub.s32 1, %v2864
    %v2866 = vrot.slane %v2857, %v2865
    %v2901 = vunpack.c.l.b16 %v2824
    %v2902 = vunpack.c.h.b16 %v2824
    %v2903 = vunpack.c.l.b16 %v2825
    %v2904 = vunpack.c.h.b16 %v2825
    %v2905 = vunpack.c.l.b16 %v2826
    %v2906 = vunpack.c.h.b16 %v2826
    %v2907 = vunpack.c.l.b16 %v2827
    %v2908 = vunpack.c.h.b16 %v2827
    %v2909 = vunpack.c.l.b16 %v2828
    %v2910 = vunpack.c.h.b16 %v2828
    %v2911 = vunpack.c.l.b16 %v2829
    %v2912 = vunpack.c.h.b16 %v2829
    %v2913 = vunpack.c.l.b16 %v2830
    %v2914 = vunpack.c.h.b16 %v2830
    %v2915 = vunpack.c.l.b16 %v2831
    %v2916 = vunpack.c.h.b16 %v2831
    %v2917 = vunpack.c.l.b16 %v2832
    %v2918 = vunpack.c.h.b16 %v2832
    %v2919 = vunpack.c.l.b16 %v2833
    %v2920 = vunpack.c.h.b16 %v2833
    %v2921 = vunpack.c.l.b16 %v2834
    %v2922 = vunpack.c.h.b16 %v2834
    %v2923 = vunpack.c.l.b16 %v2835
    %v2924 = vunpack.c.h.b16 %v2835
    %v2925 = vunpack.c.l.b16 %v2836
    %v2926 = vunpack.c.h.b16 %v2836
    %v2927 = vunpack.c.l.b16 %v2837
    %v2928 = vunpack.c.h.b16 %v2837
    %v2929 = vunpack.c.l.b16 %v2838
    %v2930 = vunpack.c.h.b16 %v2838
    %v2931 = vunpack.c.l.b16 %v2839
    %v2932 = vunpack.c.h.b16 %v2839
    %v2933 = vunpack.c.l.b16 %v2840
    %v2934 = vunpack.c.h.b16 %v2840
    %v2935 = vunpack.c.l.b16 %v2841
    %v2936 = vunpack.c.h.b16 %v2841
    %v2937 = vunpack.c.l.b16 %v2842
    %v2938 = vunpack.c.h.b16 %v2842
    %v2939 = vunpack.c.l.b16 %v2843
    %v2940 = vunpack.c.h.b16 %v2843
    %v2941 = vunpack.c.l.b16 %v2844
    %v2942 = vunpack.c.h.b16 %v2844
    %v2943 = vunpack.c.l.b16 %v2845
    %v2944 = vunpack.c.h.b16 %v2845
    %v2945 = vunpack.c.l.b16 %v2846
    %v2946 = vunpack.c.h.b16 %v2846
    %v2947 = vunpack.c.l.b16 %v2847
    %v2948 = vunpack.c.h.b16 %v2847
    %v2949 = vunpack.c.l.b16 %v2848
    %v2950 = vunpack.c.h.b16 %v2848
    %v2951 = vunpack.c.l.b16 %v2849
    %v2952 = vunpack.c.h.b16 %v2849
    %v2953 = vunpack.c.l.b16 %v2850
    %v2954 = vunpack.c.h.b16 %v2850
    %v2955 = vunpack.c.l.b16 %v2851
    %v2956 = vunpack.c.h.b16 %v2851
    %v2957 = vunpack.c.l.b16 %v2852
    %v2958 = vunpack.c.h.b16 %v2852
    %v2959 = vunpack.c.l.b16 %v2853
    %v2960 = vunpack.c.h.b16 %v2853
    %v2961 = vunpack.c.l.b16 %v2854
    %v2962 = vunpack.c.h.b16 %v2854
    %v2963 = vunpack.c.l.b16 %v2855
    %v2964 = vunpack.c.h.b16 %v2855
    %v2965 = vpack.c.b16 %v2903, %v2901
    %v2966 = vpack.c.b16 %v2904, %v2902
    %v2967 = vpack.c.b16 %v2907, %v2905
    %v2968 = vpack.c.b16 %v2908, %v2906
    %v2969 = vpack.c.b16 %v2911, %v2909
    %v2970 = vpack.c.b16 %v2912, %v2910
    %v2971 = vpack.c.b16 %v2915, %v2913
    %v2972 = vpack.c.b16 %v2916, %v2914
    %v2973 = vpack.c.b16 %v2919, %v2917
    %v2974 = vpack.c.b16 %v2920, %v2918
    %v2975 = vpack.c.b16 %v2923, %v2921
    %v2976 = vpack.c.b16 %v2924, %v2922
    %v2977 = vpack.c.b16 %v2927, %v2925
    %v2978 = vpack.c.b16 %v2928, %v2926
    %v2979 = vpack.c.b16 %v2931, %v2929
    %v2980 = vpack.c.b16 %v2932, %v2930
    %v2981 = vpack.c.b16 %v2935, %v2933
    %v2982 = vpack.c.b16 %v2936, %v2934
    %v2983 = vpack.c.b16 %v2939, %v2937
    %v2984 = vpack.c.b16 %v2940, %v2938
    %v2985 = vpack.c.b16 %v2943, %v2941
    %v2986 = vpack.c.b16 %v2944, %v2942
    %v2987 = vpack.c.b16 %v2947, %v2945
    %v2988 = vpack.c.b16 %v2948, %v2946
    %v2989 = vpack.c.b16 %v2951, %v2949
    %v2990 = vpack.c.b16 %v2952, %v2950
    %v2991 = vpack.c.b16 %v2955, %v2953
    %v2992 = vpack.c.b16 %v2956, %v2954
    %v2993 = vpack.c.b16 %v2959, %v2957
    %v2994 = vpack.c.b16 %v2960, %v2958
    %v2995 = vpack.c.b16 %v2963, %v2961
    %v2996 = vpack.c.b16 %v2964, %v2962
    %3029 = vmatprep.subr.bf16.mxu0 %v2980
    %3030 = vmatpush1.bf16.msra.mxu0 %v2979
    %3031 = vmatprep.subr.bf16.mxu0 %v2978
    %3032 = vmatpush1.bf16.msra.mxu0 %v2977
    %3033 = vmatprep.subr.bf16.mxu0 %v2976
    %3034 = vmatpush1.bf16.msra.mxu0 %v2975
    %3035 = vmatprep.subr.bf16.mxu0 %v2974
    %3036 = vmatpush1.bf16.msra.mxu0 %v2973
    %3037 = vmatprep.subr.bf16.mxu0 %v2972
    %3038 = vmatpush1.bf16.msra.mxu0 %v2971
    %3039 = vmatprep.subr.bf16.mxu0 %v2970
    %3040 = vmatpush1.bf16.msra.mxu0 %v2969
    %3041 = vmatprep.subr.bf16.mxu0 %v2968
    %3042 = vmatpush1.bf16.msra.mxu0 %v2967
    %3043 = vmatprep.subr.bf16.mxu0 %v2966
    %3044 = vmatpush1.bf16.msra.mxu0 %v2965
    %3045 = vmatprep.subr.bf16.mxu0 %v2996
    %3046 = vmatpush2.bf16.msra.mxu0 %v2995
    %3047 = vmatprep.subr.bf16.mxu0 %v2994
    %3048 = vmatpush2.bf16.msra.mxu0 %v2993
    %3049 = vmatprep.subr.bf16.mxu0 %v2992
    %3050 = vmatpush2.bf16.msra.mxu0 %v2991
    %3051 = vmatprep.subr.bf16.mxu0 %v2990
    %3052 = vmatpush2.bf16.msra.mxu0 %v2989
    %3053 = vmatprep.subr.bf16.mxu0 %v2988
    %3054 = vmatpush2.bf16.msra.mxu0 %v2987
    %3055 = vmatprep.subr.bf16.mxu0 %v2986
    %3056 = vmatpush2.bf16.msra.mxu0 %v2985
    %3057 = vmatprep.subr.bf16.mxu0 %v2984
    %3058 = vmatpush2.bf16.msra.mxu0 %v2983
    %3059 = vmatprep.subr.bf16.mxu0 %v2982
    %3060 = vmatpush2.bf16.msra.mxu0 %v2981
    %3061 = vmatprep.mubr.bf16.mxu0 %v777
    %3062 = vmatmul.mubr.bf16.gmra.mxu0 %v776
    %v3063 = vpop.f32.mrf.mxu0
    %v3064 = vadd.f32 %v2862, %v3063
    %v3065 = vpop.f32.mrf.mxu0
    %v3066 = vadd.f32 %v2866, %v3065
    %v3067 = vpop.f32.mrf.mxu0
    %v3068 = vpop.f32.mrf.mxu0
    %3069 = vdwg.mxu0
    %v3070 = vadd.f32 %v2822, %v3064
    %v3071 = vadd.f32 %v2823, %v3066
    %v3072 = vld [vmem:[#allocation5 + $0x300] sm:$0xff]
    %v3073 = vld [vmem:[#allocation5 + $0x308] sm:$0xff]
    %v3074 = vld [vmem:[#allocation5 + $0x310] sm:$0xff]
    %v3075 = vld [vmem:[#allocation5 + $0x318] sm:$0xff]
    %v3076 = vld [vmem:[#allocation5 + $0x320] sm:$0xff]
    %v3077 = vld [vmem:[#allocation5 + $0x328] sm:$0xff]
    %v3078 = vld [vmem:[#allocation5 + $0x330] sm:$0xff]
    %v3079 = vld [vmem:[#allocation5 + $0x338] sm:$0xff]
    %v3080 = vld [vmem:[#allocation5 + $0x340] sm:$0xff]
    %v3081 = vld [vmem:[#allocation5 + $0x348] sm:$0xff]
    %v3082 = vld [vmem:[#allocation5 + $0x350] sm:$0xff]
    %v3083 = vld [vmem:[#allocation5 + $0x358] sm:$0xff]
    %v3084 = vld [vmem:[#allocation5 + $0x360] sm:$0xff]
    %v3085 = vld [vmem:[#allocation5 + $0x368] sm:$0xff]
    %v3086 = vld [vmem:[#allocation5 + $0x370] sm:$0xff]
    %v3087 = vld [vmem:[#allocation5 + $0x378] sm:$0xff]
    %v3088 = vld [vmem:[#allocation5 + $0x380] sm:$0xff]
    %v3089 = vld [vmem:[#allocation5 + $0x388] sm:$0xff]
    %v3090 = vld [vmem:[#allocation5 + $0x390] sm:$0xff]
    %v3091 = vld [vmem:[#allocation5 + $0x398] sm:$0xff]
    %v3092 = vld [vmem:[#allocation5 + $0x3a0] sm:$0xff]
    %v3093 = vld [vmem:[#allocation5 + $0x3a8] sm:$0xff]
    %v3094 = vld [vmem:[#allocation5 + $0x3b0] sm:$0xff]
    %v3095 = vld [vmem:[#allocation5 + $0x3b8] sm:$0xff]
    %v3096 = vld [vmem:[#allocation5 + $0x3c0] sm:$0xff]
    %v3097 = vld [vmem:[#allocation5 + $0x3c8] sm:$0xff]
    %v3098 = vld [vmem:[#allocation5 + $0x3d0] sm:$0xff]
    %v3099 = vld [vmem:[#allocation5 + $0x3d8] sm:$0xff]
    %v3100 = vld [vmem:[#allocation5 + $0x3e0] sm:$0xff]
    %v3101 = vld [vmem:[#allocation5 + $0x3e8] sm:$0xff]
    %v3102 = vld [vmem:[#allocation5 + $0x3f0] sm:$0xff]
    %v3103 = vld [vmem:[#allocation5 + $0x3f8] sm:$0xff]
    %v3104 = vpack.c.bf16 %v3070, %v3070
    %v3105 = vpack.c.bf16 %v3071, %v3071
    %s3106 = scalar_lea.vmem [#allocation8], 34
    %v3107 = vld [vmem:[%s3106] ss:$8 sm:$0x3]
    %v3109 = vlaneseq
    %v3110 = vshrl.u32 %v3109, 7
    %v3111 = vsub.s32 0, %v3110
    %v3112 = vrot.slane %v3107, %v3111
    %v3113 = vlaneseq
    %v3114 = vshrl.u32 %v3113, 7
    %v3115 = vsub.s32 1, %v3114
    %v3116 = vrot.slane %v3107, %v3115
    %v3151 = vunpack.c.l.b16 %v3072
    %v3152 = vunpack.c.h.b16 %v3072
    %v3153 = vunpack.c.l.b16 %v3073
    %v3154 = vunpack.c.h.b16 %v3073
    %v3155 = vunpack.c.l.b16 %v3074
    %v3156 = vunpack.c.h.b16 %v3074
    %v3157 = vunpack.c.l.b16 %v3075
    %v3158 = vunpack.c.h.b16 %v3075
    %v3159 = vunpack.c.l.b16 %v3076
    %v3160 = vunpack.c.h.b16 %v3076
    %v3161 = vunpack.c.l.b16 %v3077
    %v3162 = vunpack.c.h.b16 %v3077
    %v3163 = vunpack.c.l.b16 %v3078
    %v3164 = vunpack.c.h.b16 %v3078
    %v3165 = vunpack.c.l.b16 %v3079
    %v3166 = vunpack.c.h.b16 %v3079
    %v3167 = vunpack.c.l.b16 %v3080
    %v3168 = vunpack.c.h.b16 %v3080
    %v3169 = vunpack.c.l.b16 %v3081
    %v3170 = vunpack.c.h.b16 %v3081
    %v3171 = vunpack.c.l.b16 %v3082
    %v3172 = vunpack.c.h.b16 %v3082
    %v3173 = vunpack.c.l.b16 %v3083
    %v3174 = vunpack.c.h.b16 %v3083
    %v3175 = vunpack.c.l.b16 %v3084
    %v3176 = vunpack.c.h.b16 %v3084
    %v3177 = vunpack.c.l.b16 %v3085
    %v3178 = vunpack.c.h.b16 %v3085
    %v3179 = vunpack.c.l.b16 %v3086
    %v3180 = vunpack.c.h.b16 %v3086
    %v3181 = vunpack.c.l.b16 %v3087
    %v3182 = vunpack.c.h.b16 %v3087
    %v3183 = vunpack.c.l.b16 %v3088
    %v3184 = vunpack.c.h.b16 %v3088
    %v3185 = vunpack.c.l.b16 %v3089
    %v3186 = vunpack.c.h.b16 %v3089
    %v3187 = vunpack.c.l.b16 %v3090
    %v3188 = vunpack.c.h.b16 %v3090
    %v3189 = vunpack.c.l.b16 %v3091
    %v3190 = vunpack.c.h.b16 %v3091
    %v3191 = vunpack.c.l.b16 %v3092
    %v3192 = vunpack.c.h.b16 %v3092
    %v3193 = vunpack.c.l.b16 %v3093
    %v3194 = vunpack.c.h.b16 %v3093
    %v3195 = vunpack.c.l.b16 %v3094
    %v3196 = vunpack.c.h.b16 %v3094
    %v3197 = vunpack.c.l.b16 %v3095
    %v3198 = vunpack.c.h.b16 %v3095
    %v3199 = vunpack.c.l.b16 %v3096
    %v3200 = vunpack.c.h.b16 %v3096
    %v3201 = vunpack.c.l.b16 %v3097
    %v3202 = vunpack.c.h.b16 %v3097
    %v3203 = vunpack.c.l.b16 %v3098
    %v3204 = vunpack.c.h.b16 %v3098
    %v3205 = vunpack.c.l.b16 %v3099
    %v3206 = vunpack.c.h.b16 %v3099
    %v3207 = vunpack.c.l.b16 %v3100
    %v3208 = vunpack.c.h.b16 %v3100
    %v3209 = vunpack.c.l.b16 %v3101
    %v3210 = vunpack.c.h.b16 %v3101
    %v3211 = vunpack.c.l.b16 %v3102
    %v3212 = vunpack.c.h.b16 %v3102
    %v3213 = vunpack.c.l.b16 %v3103
    %v3214 = vunpack.c.h.b16 %v3103
    %v3215 = vpack.c.b16 %v3153, %v3151
    %v3216 = vpack.c.b16 %v3154, %v3152
    %v3217 = vpack.c.b16 %v3157, %v3155
    %v3218 = vpack.c.b16 %v3158, %v3156
    %v3219 = vpack.c.b16 %v3161, %v3159
    %v3220 = vpack.c.b16 %v3162, %v3160
    %v3221 = vpack.c.b16 %v3165, %v3163
    %v3222 = vpack.c.b16 %v3166, %v3164
    %v3223 = vpack.c.b16 %v3169, %v3167
    %v3224 = vpack.c.b16 %v3170, %v3168
    %v3225 = vpack.c.b16 %v3173, %v3171
    %v3226 = vpack.c.b16 %v3174, %v3172
    %v3227 = vpack.c.b16 %v3177, %v3175
    %v3228 = vpack.c.b16 %v3178, %v3176
    %v3229 = vpack.c.b16 %v3181, %v3179
    %v3230 = vpack.c.b16 %v3182, %v3180
    %v3231 = vpack.c.b16 %v3185, %v3183
    %v3232 = vpack.c.b16 %v3186, %v3184
    %v3233 = vpack.c.b16 %v3189, %v3187
    %v3234 = vpack.c.b16 %v3190, %v3188
    %v3235 = vpack.c.b16 %v3193, %v3191
    %v3236 = vpack.c.b16 %v3194, %v3192
    %v3237 = vpack.c.b16 %v3197, %v3195
    %v3238 = vpack.c.b16 %v3198, %v3196
    %v3239 = vpack.c.b16 %v3201, %v3199
    %v3240 = vpack.c.b16 %v3202, %v3200
    %v3241 = vpack.c.b16 %v3205, %v3203
    %v3242 = vpack.c.b16 %v3206, %v3204
    %v3243 = vpack.c.b16 %v3209, %v3207
    %v3244 = vpack.c.b16 %v3210, %v3208
    %v3245 = vpack.c.b16 %v3213, %v3211
    %v3246 = vpack.c.b16 %v3214, %v3212
    %3279 = vmatprep.subr.bf16.mxu0 %v3230
    %3280 = vmatpush1.bf16.msra.mxu0 %v3229
    %3281 = vmatprep.subr.bf16.mxu0 %v3228
    %3282 = vmatpush1.bf16.msra.mxu0 %v3227
    %3283 = vmatprep.subr.bf16.mxu0 %v3226
    %3284 = vmatpush1.bf16.msra.mxu0 %v3225
    %3285 = vmatprep.subr.bf16.mxu0 %v3224
    %3286 = vmatpush1.bf16.msra.mxu0 %v3223
    %3287 = vmatprep.subr.bf16.mxu0 %v3222
    %3288 = vmatpush1.bf16.msra.mxu0 %v3221
    %3289 = vmatprep.subr.bf16.mxu0 %v3220
    %3290 = vmatpush1.bf16.msra.mxu0 %v3219
    %3291 = vmatprep.subr.bf16.mxu0 %v3218
    %3292 = vmatpush1.bf16.msra.mxu0 %v3217
    %3293 = vmatprep.subr.bf16.mxu0 %v3216
    %3294 = vmatpush1.bf16.msra.mxu0 %v3215
    %3295 = vmatprep.subr.bf16.mxu0 %v3246
    %3296 = vmatpush2.bf16.msra.mxu0 %v3245
    %3297 = vmatprep.subr.bf16.mxu0 %v3244
    %3298 = vmatpush2.bf16.msra.mxu0 %v3243
    %3299 = vmatprep.subr.bf16.mxu0 %v3242
    %3300 = vmatpush2.bf16.msra.mxu0 %v3241
    %3301 = vmatprep.subr.bf16.mxu0 %v3240
    %3302 = vmatpush2.bf16.msra.mxu0 %v3239
    %3303 = vmatprep.subr.bf16.mxu0 %v3238
    %3304 = vmatpush2.bf16.msra.mxu0 %v3237
    %3305 = vmatprep.subr.bf16.mxu0 %v3236
    %3306 = vmatpush2.bf16.msra.mxu0 %v3235
    %3307 = vmatprep.subr.bf16.mxu0 %v3234
    %3308 = vmatpush2.bf16.msra.mxu0 %v3233
    %3309 = vmatprep.subr.bf16.mxu0 %v3232
    %3310 = vmatpush2.bf16.msra.mxu0 %v3231
    %3311 = vmatprep.mubr.bf16.mxu0 %v3105
    %3312 = vmatmul.mubr.bf16.gmra.mxu0 %v3104
    %v3313 = vpop.f32.mrf.mxu0
    %v3314 = vadd.f32 %v3112, %v3313
    %v3315 = vpop.f32.mrf.mxu0
    %v3316 = vadd.f32 %v3116, %v3315
    %v3317 = vpop.f32.mrf.mxu0
    %v3318 = vpop.f32.mrf.mxu0
    %3319 = vdwg.mxu0
    %v3320 = vxor.u32 %v3314, 2147483648
    %v3321 = vxor.u32 %v3316, 2147483648
    %v3322 = vmul.f32 %v3320, 1.442695
    %v3323 = vpow.pop %v3322
    %v3324 = vmul.f32 %v3321, 1.442695
    %v3325 = vpow.pop %v3324
    %v3326 = vadd.f32 %v3323, 1.0
    %v3327 = vadd.f32 %v3325, 1.0
    %v3328 = vrcp.pop %v3326
    %v3329 = vmul.f32 1.0, %v3328
    %v3330 = vrcp.pop %v3327
    %v3331 = vmul.f32 1.0, %v3330
    %v3332 = vmul.f32 %v3314, %v3329
    %v3333 = vmul.f32 %v3316, %v3331
    %v3334 = vld [vmem:[#allocation5 + $0x400] sm:$0xff]
    %v3335 = vld [vmem:[#allocation5 + $0x408] sm:$0xff]
    %v3336 = vld [vmem:[#allocation5 + $0x410] sm:$0xff]
    %v3337 = vld [vmem:[#allocation5 + $0x418] sm:$0xff]
    %v3338 = vld [vmem:[#allocation5 + $0x420] sm:$0xff]
    %v3339 = vld [vmem:[#allocation5 + $0x428] sm:$0xff]
    %v3340 = vld [vmem:[#allocation5 + $0x430] sm:$0xff]
    %v3341 = vld [vmem:[#allocation5 + $0x438] sm:$0xff]
    %v3342 = vld [vmem:[#allocation5 + $0x440] sm:$0xff]
    %v3343 = vld [vmem:[#allocation5 + $0x448] sm:$0xff]
    %v3344 = vld [vmem:[#allocation5 + $0x450] sm:$0xff]
    %v3345 = vld [vmem:[#allocation5 + $0x458] sm:$0xff]
    %v3346 = vld [vmem:[#allocation5 + $0x460] sm:$0xff]
    %v3347 = vld [vmem:[#allocation5 + $0x468] sm:$0xff]
    %v3348 = vld [vmem:[#allocation5 + $0x470] sm:$0xff]
    %v3349 = vld [vmem:[#allocation5 + $0x478] sm:$0xff]
    %v3350 = vld [vmem:[#allocation5 + $0x480] sm:$0xff]
    %v3351 = vld [vmem:[#allocation5 + $0x488] sm:$0xff]
    %v3352 = vld [vmem:[#allocation5 + $0x490] sm:$0xff]
    %v3353 = vld [vmem:[#allocation5 + $0x498] sm:$0xff]
    %v3354 = vld [vmem:[#allocation5 + $0x4a0] sm:$0xff]
    %v3355 = vld [vmem:[#allocation5 + $0x4a8] sm:$0xff]
    %v3356 = vld [vmem:[#allocation5 + $0x4b0] sm:$0xff]
    %v3357 = vld [vmem:[#allocation5 + $0x4b8] sm:$0xff]
    %v3358 = vld [vmem:[#allocation5 + $0x4c0] sm:$0xff]
    %v3359 = vld [vmem:[#allocation5 + $0x4c8] sm:$0xff]
    %v3360 = vld [vmem:[#allocation5 + $0x4d0] sm:$0xff]
    %v3361 = vld [vmem:[#allocation5 + $0x4d8] sm:$0xff]
    %v3362 = vld [vmem:[#allocation5 + $0x4e0] sm:$0xff]
    %v3363 = vld [vmem:[#allocation5 + $0x4e8] sm:$0xff]
    %v3364 = vld [vmem:[#allocation5 + $0x4f0] sm:$0xff]
    %v3365 = vld [vmem:[#allocation5 + $0x4f8] sm:$0xff]
    %v3366 = vld [vmem:[#allocation5 + $0x500] sm:$0xff]
    %v3367 = vld [vmem:[#allocation5 + $0x508] sm:$0xff]
    %v3368 = vld [vmem:[#allocation5 + $0x510] sm:$0xff]
    %v3369 = vld [vmem:[#allocation5 + $0x518] sm:$0xff]
    %v3370 = vld [vmem:[#allocation5 + $0x520] sm:$0xff]
    %v3371 = vld [vmem:[#allocation5 + $0x528] sm:$0xff]
    %v3372 = vld [vmem:[#allocation5 + $0x530] sm:$0xff]
    %v3373 = vld [vmem:[#allocation5 + $0x538] sm:$0xff]
    %v3374 = vld [vmem:[#allocation5 + $0x540] sm:$0xff]
    %v3375 = vld [vmem:[#allocation5 + $0x548] sm:$0xff]
    %v3376 = vld [vmem:[#allocation5 + $0x550] sm:$0xff]
    %v3377 = vld [vmem:[#allocation5 + $0x558] sm:$0xff]
    %v3378 = vld [vmem:[#allocation5 + $0x560] sm:$0xff]
    %v3379 = vld [vmem:[#allocation5 + $0x568] sm:$0xff]
    %v3380 = vld [vmem:[#allocation5 + $0x570] sm:$0xff]
    %v3381 = vld [vmem:[#allocation5 + $0x578] sm:$0xff]
    %v3382 = vld [vmem:[#allocation5 + $0x580] sm:$0xff]
    %v3383 = vld [vmem:[#allocation5 + $0x588] sm:$0xff]
    %v3384 = vld [vmem:[#allocation5 + $0x590] sm:$0xff]
    %v3385 = vld [vmem:[#allocation5 + $0x598] sm:$0xff]
    %v3386 = vld [vmem:[#allocation5 + $0x5a0] sm:$0xff]
    %v3387 = vld [vmem:[#allocation5 + $0x5a8] sm:$0xff]
    %v3388 = vld [vmem:[#allocation5 + $0x5b0] sm:$0xff]
    %v3389 = vld [vmem:[#allocation5 + $0x5b8] sm:$0xff]
    %v3390 = vld [vmem:[#allocation5 + $0x5c0] sm:$0xff]
    %v3391 = vld [vmem:[#allocation5 + $0x5c8] sm:$0xff]
    %v3392 = vld [vmem:[#allocation5 + $0x5d0] sm:$0xff]
    %v3393 = vld [vmem:[#allocation5 + $0x5d8] sm:$0xff]
    %v3394 = vld [vmem:[#allocation5 + $0x5e0] sm:$0xff]
    %v3395 = vld [vmem:[#allocation5 + $0x5e8] sm:$0xff]
    %v3396 = vld [vmem:[#allocation5 + $0x5f0] sm:$0xff]
    %v3397 = vld [vmem:[#allocation5 + $0x5f8] sm:$0xff]
    %s3398 = scalar_lea.vmem [#allocation8], 35
    %v3399 = vld [vmem:[%s3398] ss:$8 sm:$0x3]
    %v3401 = vlaneseq
    %v3402 = vshrl.u32 %v3401, 7
    %v3403 = vsub.s32 0, %v3402
    %v3404 = vrot.slane %v3399, %v3403
    %v3405 = vlaneseq
    %v3406 = vshrl.u32 %v3405, 7
    %v3407 = vsub.s32 1, %v3406
    %v3408 = vrot.slane %v3399, %v3407
    %v3475 = vunpack.c.l.b16 %v3334
    %v3476 = vunpack.c.h.b16 %v3334
    %v3477 = vunpack.c.l.b16 %v3335
    %v3478 = vunpack.c.h.b16 %v3335
    %v3479 = vunpack.c.l.b16 %v3336
    %v3480 = vunpack.c.h.b16 %v3336
    %v3481 = vunpack.c.l.b16 %v3337
    %v3482 = vunpack.c.h.b16 %v3337
    %v3483 = vunpack.c.l.b16 %v3338
    %v3484 = vunpack.c.h.b16 %v3338
    %v3485 = vunpack.c.l.b16 %v3339
    %v3486 = vunpack.c.h.b16 %v3339
    %v3487 = vunpack.c.l.b16 %v3340
    %v3488 = vunpack.c.h.b16 %v3340
    %v3489 = vunpack.c.l.b16 %v3341
    %v3490 = vunpack.c.h.b16 %v3341
    %v3491 = vunpack.c.l.b16 %v3342
    %v3492 = vunpack.c.h.b16 %v3342
    %v3493 = vunpack.c.l.b16 %v3343
    %v3494 = vunpack.c.h.b16 %v3343
    %v3495 = vunpack.c.l.b16 %v3344
    %v3496 = vunpack.c.h.b16 %v3344
    %v3497 = vunpack.c.l.b16 %v3345
    %v3498 = vunpack.c.h.b16 %v3345
    %v3499 = vunpack.c.l.b16 %v3346
    %v3500 = vunpack.c.h.b16 %v3346
    %v3501 = vunpack.c.l.b16 %v3347
    %v3502 = vunpack.c.h.b16 %v3347
    %v3503 = vunpack.c.l.b16 %v3348
    %v3504 = vunpack.c.h.b16 %v3348
    %v3505 = vunpack.c.l.b16 %v3349
    %v3506 = vunpack.c.h.b16 %v3349
    %v3507 = vunpack.c.l.b16 %v3350
    %v3508 = vunpack.c.h.b16 %v3350
    %v3509 = vunpack.c.l.b16 %v3351
    %v3510 = vunpack.c.h.b16 %v3351
    %v3511 = vunpack.c.l.b16 %v3352
    %v3512 = vunpack.c.h.b16 %v3352
    %v3513 = vunpack.c.l.b16 %v3353
    %v3514 = vunpack.c.h.b16 %v3353
    %v3515 = vunpack.c.l.b16 %v3354
    %v3516 = vunpack.c.h.b16 %v3354
    %v3517 = vunpack.c.l.b16 %v3355
    %v3518 = vunpack.c.h.b16 %v3355
    %v3519 = vunpack.c.l.b16 %v3356
    %v3520 = vunpack.c.h.b16 %v3356
    %v3521 = vunpack.c.l.b16 %v3357
    %v3522 = vunpack.c.h.b16 %v3357
    %v3523 = vunpack.c.l.b16 %v3358
    %v3524 = vunpack.c.h.b16 %v3358
    %v3525 = vunpack.c.l.b16 %v3359
    %v3526 = vunpack.c.h.b16 %v3359
    %v3527 = vunpack.c.l.b16 %v3360
    %v3528 = vunpack.c.h.b16 %v3360
    %v3529 = vunpack.c.l.b16 %v3361
    %v3530 = vunpack.c.h.b16 %v3361
    %v3531 = vunpack.c.l.b16 %v3362
    %v3532 = vunpack.c.h.b16 %v3362
    %v3533 = vunpack.c.l.b16 %v3363
    %v3534 = vunpack.c.h.b16 %v3363
    %v3535 = vunpack.c.l.b16 %v3364
    %v3536 = vunpack.c.h.b16 %v3364
    %v3537 = vunpack.c.l.b16 %v3365
    %v3538 = vunpack.c.h.b16 %v3365
    %v3539 = vunpack.c.l.b16 %v3366
    %v3540 = vunpack.c.h.b16 %v3366
    %v3541 = vunpack.c.l.b16 %v3367
    %v3542 = vunpack.c.h.b16 %v3367
    %v3543 = vunpack.c.l.b16 %v3368
    %v3544 = vunpack.c.h.b16 %v3368
    %v3545 = vunpack.c.l.b16 %v3369
    %v3546 = vunpack.c.h.b16 %v3369
    %v3547 = vunpack.c.l.b16 %v3370
    %v3548 = vunpack.c.h.b16 %v3370
    %v3549 = vunpack.c.l.b16 %v3371
    %v3550 = vunpack.c.h.b16 %v3371
    %v3551 = vunpack.c.l.b16 %v3372
    %v3552 = vunpack.c.h.b16 %v3372
    %v3553 = vunpack.c.l.b16 %v3373
    %v3554 = vunpack.c.h.b16 %v3373
    %v3555 = vunpack.c.l.b16 %v3374
    %v3556 = vunpack.c.h.b16 %v3374
    %v3557 = vunpack.c.l.b16 %v3375
    %v3558 = vunpack.c.h.b16 %v3375
    %v3559 = vunpack.c.l.b16 %v3376
    %v3560 = vunpack.c.h.b16 %v3376
    %v3561 = vunpack.c.l.b16 %v3377
    %v3562 = vunpack.c.h.b16 %v3377
    %v3563 = vunpack.c.l.b16 %v3378
    %v3564 = vunpack.c.h.b16 %v3378
    %v3565 = vunpack.c.l.b16 %v3379
    %v3566 = vunpack.c.h.b16 %v3379
    %v3567 = vunpack.c.l.b16 %v3380
    %v3568 = vunpack.c.h.b16 %v3380
    %v3569 = vunpack.c.l.b16 %v3381
    %v3570 = vunpack.c.h.b16 %v3381
    %v3571 = vunpack.c.l.b16 %v3382
    %v3572 = vunpack.c.h.b16 %v3382
    %v3573 = vunpack.c.l.b16 %v3383
    %v3574 = vunpack.c.h.b16 %v3383
    %v3575 = vunpack.c.l.b16 %v3384
    %v3576 = vunpack.c.h.b16 %v3384
    %v3577 = vunpack.c.l.b16 %v3385
    %v3578 = vunpack.c.h.b16 %v3385
    %v3579 = vunpack.c.l.b16 %v3386
    %v3580 = vunpack.c.h.b16 %v3386
    %v3581 = vunpack.c.l.b16 %v3387
    %v3582 = vunpack.c.h.b16 %v3387
    %v3583 = vunpack.c.l.b16 %v3388
    %v3584 = vunpack.c.h.b16 %v3388
    %v3585 = vunpack.c.l.b16 %v3389
    %v3586 = vunpack.c.h.b16 %v3389
    %v3587 = vunpack.c.l.b16 %v3390
    %v3588 = vunpack.c.h.b16 %v3390
    %v3589 = vunpack.c.l.b16 %v3391
    %v3590 = vunpack.c.h.b16 %v3391
    %v3591 = vunpack.c.l.b16 %v3392
    %v3592 = vunpack.c.h.b16 %v3392
    %v3593 = vunpack.c.l.b16 %v3393
    %v3594 = vunpack.c.h.b16 %v3393
    %v3595 = vunpack.c.l.b16 %v3394
    %v3596 = vunpack.c.h.b16 %v3394
    %v3597 = vunpack.c.l.b16 %v3395
    %v3598 = vunpack.c.h.b16 %v3395
    %v3599 = vunpack.c.l.b16 %v3396
    %v3600 = vunpack.c.h.b16 %v3396
    %v3601 = vunpack.c.l.b16 %v3397
    %v3602 = vunpack.c.h.b16 %v3397
    %v3603 = vpack.c.b16 %v3477, %v3475
    %v3604 = vpack.c.b16 %v3478, %v3476
    %v3605 = vpack.c.b16 %v3481, %v3479
    %v3606 = vpack.c.b16 %v3482, %v3480
    %v3607 = vpack.c.b16 %v3485, %v3483
    %v3608 = vpack.c.b16 %v3486, %v3484
    %v3609 = vpack.c.b16 %v3489, %v3487
    %v3610 = vpack.c.b16 %v3490, %v3488
    %v3611 = vpack.c.b16 %v3493, %v3491
    %v3612 = vpack.c.b16 %v3494, %v3492
    %v3613 = vpack.c.b16 %v3497, %v3495
    %v3614 = vpack.c.b16 %v3498, %v3496
    %v3615 = vpack.c.b16 %v3501, %v3499
    %v3616 = vpack.c.b16 %v3502, %v3500
    %v3617 = vpack.c.b16 %v3505, %v3503
    %v3618 = vpack.c.b16 %v3506, %v3504
    %v3619 = vpack.c.b16 %v3509, %v3507
    %v3620 = vpack.c.b16 %v3510, %v3508
    %v3621 = vpack.c.b16 %v3513, %v3511
    %v3622 = vpack.c.b16 %v3514, %v3512
    %v3623 = vpack.c.b16 %v3517, %v3515
    %v3624 = vpack.c.b16 %v3518, %v3516
    %v3625 = vpack.c.b16 %v3521, %v3519
    %v3626 = vpack.c.b16 %v3522, %v3520
    %v3627 = vpack.c.b16 %v3525, %v3523
    %v3628 = vpack.c.b16 %v3526, %v3524
    %v3629 = vpack.c.b16 %v3529, %v3527
    %v3630 = vpack.c.b16 %v3530, %v3528
    %v3631 = vpack.c.b16 %v3533, %v3531
    %v3632 = vpack.c.b16 %v3534, %v3532
    %v3633 = vpack.c.b16 %v3537, %v3535
    %v3634 = vpack.c.b16 %v3538, %v3536
    %v3635 = vpack.c.b16 %v3541, %v3539
    %v3636 = vpack.c.b16 %v3542, %v3540
    %v3637 = vpack.c.b16 %v3545, %v3543
    %v3638 = vpack.c.b16 %v3546, %v3544
    %v3639 = vpack.c.b16 %v3549, %v3547
    %v3640 = vpack.c.b16 %v3550, %v3548
    %v3641 = vpack.c.b16 %v3553, %v3551
    %v3642 = vpack.c.b16 %v3554, %v3552
    %v3643 = vpack.c.b16 %v3557, %v3555
    %v3644 = vpack.c.b16 %v3558, %v3556
    %v3645 = vpack.c.b16 %v3561, %v3559
    %v3646 = vpack.c.b16 %v3562, %v3560
    %v3647 = vpack.c.b16 %v3565, %v3563
    %v3648 = vpack.c.b16 %v3566, %v3564
    %v3649 = vpack.c.b16 %v3569, %v3567
    %v3650 = vpack.c.b16 %v3570, %v3568
    %v3651 = vpack.c.b16 %v3573, %v3571
    %v3652 = vpack.c.b16 %v3574, %v3572
    %v3653 = vpack.c.b16 %v3577, %v3575
    %v3654 = vpack.c.b16 %v3578, %v3576
    %v3655 = vpack.c.b16 %v3581, %v3579
    %v3656 = vpack.c.b16 %v3582, %v3580
    %v3657 = vpack.c.b16 %v3585, %v3583
    %v3658 = vpack.c.b16 %v3586, %v3584
    %v3659 = vpack.c.b16 %v3589, %v3587
    %v3660 = vpack.c.b16 %v3590, %v3588
    %v3661 = vpack.c.b16 %v3593, %v3591
    %v3662 = vpack.c.b16 %v3594, %v3592
    %v3663 = vpack.c.b16 %v3597, %v3595
    %v3664 = vpack.c.b16 %v3598, %v3596
    %v3665 = vpack.c.b16 %v3601, %v3599
    %v3666 = vpack.c.b16 %v3602, %v3600
    %3731 = vmatprep.subr.bf16.mxu0 %v3618
    %3732 = vmatpush1.bf16.msra.mxu0 %v3617
    %3733 = vmatprep.subr.bf16.mxu0 %v3616
    %3734 = vmatpush1.bf16.msra.mxu0 %v3615
    %3735 = vmatprep.subr.bf16.mxu0 %v3614
    %3736 = vmatpush1.bf16.msra.mxu0 %v3613
    %3737 = vmatprep.subr.bf16.mxu0 %v3612
    %3738 = vmatpush1.bf16.msra.mxu0 %v3611
    %3739 = vmatprep.subr.bf16.mxu0 %v3610
    %3740 = vmatpush1.bf16.msra.mxu0 %v3609
    %3741 = vmatprep.subr.bf16.mxu0 %v3608
    %3742 = vmatpush1.bf16.msra.mxu0 %v3607
    %3743 = vmatprep.subr.bf16.mxu0 %v3606
    %3744 = vmatpush1.bf16.msra.mxu0 %v3605
    %3745 = vmatprep.subr.bf16.mxu0 %v3604
    %3746 = vmatpush1.bf16.msra.mxu0 %v3603
    %3747 = vmatprep.subr.bf16.mxu0 %v3634
    %3748 = vmatpush2.bf16.msra.mxu0 %v3633
    %3749 = vmatprep.subr.bf16.mxu0 %v3632
    %3750 = vmatpush2.bf16.msra.mxu0 %v3631
    %3751 = vmatprep.subr.bf16.mxu0 %v3630
    %3752 = vmatpush2.bf16.msra.mxu0 %v3629
    %3753 = vmatprep.subr.bf16.mxu0 %v3628
    %3754 = vmatpush2.bf16.msra.mxu0 %v3627
    %3755 = vmatprep.subr.bf16.mxu0 %v3626
    %3756 = vmatpush2.bf16.msra.mxu0 %v3625
    %3757 = vmatprep.subr.bf16.mxu0 %v3624
    %3758 = vmatpush2.bf16.msra.mxu0 %v3623
    %3759 = vmatprep.subr.bf16.mxu0 %v3622
    %3760 = vmatpush2.bf16.msra.mxu0 %v3621
    %3761 = vmatprep.subr.bf16.mxu0 %v3620
    %3762 = vmatpush2.bf16.msra.mxu0 %v3619
    %3763 = vmatprep.mubr.bf16.mxu0 %v2392
    %3764 = vmatmul.mubr.bf16.gmra.mxu0 %v2391
    %v3765 = vpop.f32.mrf.mxu0
    %v3766 = vadd.f32 %v3404, %v3765
    %v3767 = vpop.f32.mrf.mxu0
    %v3768 = vadd.f32 %v3408, %v3767
    %v3769 = vpop.f32.mrf.mxu0
    %v3770 = vpop.f32.mrf.mxu0
    %3771 = vdwg.mxu0
    %3772 = vmatprep.subr.bf16.mxu0 %v3650
    %3773 = vmatpush1.bf16.msra.mxu0 %v3649
    %3774 = vmatprep.subr.bf16.mxu0 %v3648
    %3775 = vmatpush1.bf16.msra.mxu0 %v3647
    %3776 = vmatprep.subr.bf16.mxu0 %v3646
    %3777 = vmatpush1.bf16.msra.mxu0 %v3645
    %3778 = vmatprep.subr.bf16.mxu0 %v3644
    %3779 = vmatpush1.bf16.msra.mxu0 %v3643
    %3780 = vmatprep.subr.bf16.mxu0 %v3642
    %3781 = vmatpush1.bf16.msra.mxu0 %v3641
    %3782 = vmatprep.subr.bf16.mxu0 %v3640
    %3783 = vmatpush1.bf16.msra.mxu0 %v3639
    %3784 = vmatprep.subr.bf16.mxu0 %v3638
    %3785 = vmatpush1.bf16.msra.mxu0 %v3637
    %3786 = vmatprep.subr.bf16.mxu0 %v3636
    %3787 = vmatpush1.bf16.msra.mxu0 %v3635
    %3788 = vmatprep.subr.bf16.mxu0 %v3666
    %3789 = vmatpush2.bf16.msra.mxu0 %v3665
    %3790 = vmatprep.subr.bf16.mxu0 %v3664
    %3791 = vmatpush2.bf16.msra.mxu0 %v3663
    %3792 = vmatprep.subr.bf16.mxu0 %v3662
    %3793 = vmatpush2.bf16.msra.mxu0 %v3661
    %3794 = vmatprep.subr.bf16.mxu0 %v3660
    %3795 = vmatpush2.bf16.msra.mxu0 %v3659
    %3796 = vmatprep.subr.bf16.mxu0 %v3658
    %3797 = vmatpush2.bf16.msra.mxu0 %v3657
    %3798 = vmatprep.subr.bf16.mxu0 %v3656
    %3799 = vmatpush2.bf16.msra.mxu0 %v3655
    %3800 = vmatprep.subr.bf16.mxu0 %v3654
    %3801 = vmatpush2.bf16.msra.mxu0 %v3653
    %3802 = vmatprep.subr.bf16.mxu0 %v3652
    %3803 = vmatpush2.bf16.msra.mxu0 %v3651
    %3804 = vmatprep.mubr.bf16.mxu0 %v2394
    %3805 = vmatmul.mubr.bf16.gmra.mxu0 %v2393
    %v3806 = vpop.f32.mrf.mxu0
    %v3807 = vadd.f32 %v3766, %v3806
    %v3808 = vpop.f32.mrf.mxu0
    %v3809 = vadd.f32 %v3768, %v3808
    %v3810 = vpop.f32.mrf.mxu0
    %v3811 = vpop.f32.mrf.mxu0
    %3812 = vdwg.mxu0
    %v3813 = vadd.f32 %v3332, %v3807
    %v3814 = vadd.f32 %v3333, %v3809
    %v3815 = vld [vmem:[#allocation2 + $0xa8] sm:$0xf]
    %v3816 = vld [vmem:[#allocation2 + $0xac] sm:$0xf]
    %v3817 = vld [vmem:[#allocation2 + $0xb0] sm:$0xf]
    %v3818 = vld [vmem:[#allocation2 + $0xb4] sm:$0xf]
    %v3819 = vld [vmem:[#allocation2 + $0xb8] sm:$0xf]
    %v3820 = vld [vmem:[#allocation2 + $0xbc] sm:$0xf]
    %v3821 = vld [vmem:[#allocation2 + $0xc0] sm:$0xf]
    %v3822 = vld [vmem:[#allocation2 + $0xc4] sm:$0xf]
    %v3823 = vld [vmem:[#allocation2 + $0xc8] sm:$0xf]
    %v3824 = vld [vmem:[#allocation2 + $0xcc] sm:$0xf]
    %v3825 = vld [vmem:[#allocation2 + $0xd0] sm:$0xf]
    %v3826 = vld [vmem:[#allocation2 + $0xd4] sm:$0xf]
    %v3827 = vld [vmem:[#allocation2 + $0xd8] sm:$0xf]
    %v3828 = vld [vmem:[#allocation2 + $0xdc] sm:$0xf]
    %v3829 = vld [vmem:[#allocation2 + $0xe0] sm:$0xf]
    %v3830 = vld [vmem:[#allocation2 + $0xe4] sm:$0xf]
    %v3831 = vld [vmem:[#allocation2 + $0xe8] sm:$0xf]
    %v3832 = vld [vmem:[#allocation2 + $0xec] sm:$0xf]
    %v3833 = vld [vmem:[#allocation2 + $0xf0] sm:$0xf]
    %v3834 = vld [vmem:[#allocation2 + $0xf4] sm:$0xf]
    %v3835 = vld [vmem:[#allocation2 + $0xf8] sm:$0xf]
    %v3836 = vld [vmem:[#allocation2 + $0xfc] sm:$0xf]
    %v3837 = vld [vmem:[#allocation2 + $0x100] sm:$0xf]
    %v3838 = vld [vmem:[#allocation2 + $0x104] sm:$0xf]
    %v3839 = vld [vmem:[#allocation2 + $0x108] sm:$0xf]
    %v3840 = vld [vmem:[#allocation2 + $0x10c] sm:$0xf]
    %v3841 = vld [vmem:[#allocation2 + $0x110] sm:$0xf]
    %v3842 = vld [vmem:[#allocation2 + $0x114] sm:$0xf]
    %v3843 = vld [vmem:[#allocation2 + $0x118] sm:$0xf]
    %v3844 = vld [vmem:[#allocation2 + $0x11c] sm:$0xf]
    %v3845 = vld [vmem:[#allocation2 + $0x120] sm:$0xf]
    %v3846 = vld [vmem:[#allocation2 + $0x124] sm:$0xf]
    %v3847 = vpack.c.bf16 %v3813, %v3813
    %v3848 = vpack.c.bf16 %v3814, %v3814
    %v3849 = vld [vmem:[#allocation8 + $0x24] ss:$0 sm:$0xff]
    %v3882 = vunpack.c.l.b16 %v3815
    %v3883 = vunpack.c.l.b16 %v3816
    %v3884 = vunpack.c.l.b16 %v3817
    %v3885 = vunpack.c.l.b16 %v3818
    %v3886 = vunpack.c.l.b16 %v3819
    %v3887 = vunpack.c.l.b16 %v3820
    %v3888 = vunpack.c.l.b16 %v3821
    %v3889 = vunpack.c.l.b16 %v3822
    %v3890 = vunpack.c.l.b16 %v3823
    %v3891 = vunpack.c.l.b16 %v3824
    %v3892 = vunpack.c.l.b16 %v3825
    %v3893 = vunpack.c.l.b16 %v3826
    %v3894 = vunpack.c.l.b16 %v3827
    %v3895 = vunpack.c.l.b16 %v3828
    %v3896 = vunpack.c.l.b16 %v3829
    %v3897 = vunpack.c.l.b16 %v3830
    %v3898 = vunpack.c.l.b16 %v3831
    %v3899 = vunpack.c.l.b16 %v3832
    %v3900 = vunpack.c.l.b16 %v3833
    %v3901 = vunpack.c.l.b16 %v3834
    %v3902 = vunpack.c.l.b16 %v3835
    %v3903 = vunpack.c.l.b16 %v3836
    %v3904 = vunpack.c.l.b16 %v3837
    %v3905 = vunpack.c.l.b16 %v3838
    %v3906 = vunpack.c.l.b16 %v3839
    %v3907 = vunpack.c.l.b16 %v3840
    %v3908 = vunpack.c.l.b16 %v3841
    %v3909 = vunpack.c.l.b16 %v3842
    %v3910 = vunpack.c.l.b16 %v3843
    %v3911 = vunpack.c.l.b16 %v3844
    %v3912 = vunpack.c.l.b16 %v3845
    %v3913 = vunpack.c.l.b16 %v3846
    %v3914 = vpack.c.b16 %v3883, %v3882
    %v3915 = vpack.c.b16 %v3885, %v3884
    %v3916 = vpack.c.b16 %v3887, %v3886
    %v3917 = vpack.c.b16 %v3889, %v3888
    %v3918 = vpack.c.b16 %v3891, %v3890
    %v3919 = vpack.c.b16 %v3893, %v3892
    %v3920 = vpack.c.b16 %v3895, %v3894
    %v3921 = vpack.c.b16 %v3897, %v3896
    %v3922 = vpack.c.b16 %v3899, %v3898
    %v3923 = vpack.c.b16 %v3901, %v3900
    %v3924 = vpack.c.b16 %v3903, %v3902
    %v3925 = vpack.c.b16 %v3905, %v3904
    %v3926 = vpack.c.b16 %v3907, %v3906
    %v3927 = vpack.c.b16 %v3909, %v3908
    %v3928 = vpack.c.b16 %v3911, %v3910
    %v3929 = vpack.c.b16 %v3913, %v3912
    %3946 = vmatprep.subr.bf16.mxu0 0
    %3947 = vmatpush1.bf16.msra.mxu0 %v3921
    %3948 = vmatprep.subr.bf16.mxu0 0
    %3949 = vmatpush1.bf16.msra.mxu0 %v3920
    %3950 = vmatprep.subr.bf16.mxu0 0
    %3951 = vmatpush1.bf16.msra.mxu0 %v3919
    %3952 = vmatprep.subr.bf16.mxu0 0
    %3953 = vmatpush1.bf16.msra.mxu0 %v3918
    %3954 = vmatprep.subr.bf16.mxu0 0
    %3955 = vmatpush1.bf16.msra.mxu0 %v3917
    %3956 = vmatprep.subr.bf16.mxu0 0
    %3957 = vmatpush1.bf16.msra.mxu0 %v3916
    %3958 = vmatprep.subr.bf16.mxu0 0
    %3959 = vmatpush1.bf16.msra.mxu0 %v3915
    %3960 = vmatprep.subr.bf16.mxu0 0
    %3961 = vmatpush1.bf16.msra.mxu0 %v3914
    %3962 = vmatprep.subr.bf16.mxu0 0
    %3963 = vmatpush2.bf16.msra.mxu0 %v3929
    %3964 = vmatprep.subr.bf16.mxu0 0
    %3965 = vmatpush2.bf16.msra.mxu0 %v3928
    %3966 = vmatprep.subr.bf16.mxu0 0
    %3967 = vmatpush2.bf16.msra.mxu0 %v3927
    %3968 = vmatprep.subr.bf16.mxu0 0
    %3969 = vmatpush2.bf16.msra.mxu0 %v3926
    %3970 = vmatprep.subr.bf16.mxu0 0
    %3971 = vmatpush2.bf16.msra.mxu0 %v3925
    %3972 = vmatprep.subr.bf16.mxu0 0
    %3973 = vmatpush2.bf16.msra.mxu0 %v3924
    %3974 = vmatprep.subr.bf16.mxu0 0
    %3975 = vmatpush2.bf16.msra.mxu0 %v3923
    %3976 = vmatprep.subr.bf16.mxu0 0
    %3977 = vmatpush2.bf16.msra.mxu0 %v3922
    %3978 = vmatprep.mubr.bf16.mxu0 %v3848
    %3979 = vmatmul.mubr.bf16.gmra.mxu0 %v3847
    %v3980 = vpop.f32.mrf.mxu0
    %v3981 = vadd.f32 %v3849, %v3980
    %v3982 = vpop.f32.mrf.mxu0
    %v3983 = vpop.f32.mrf.mxu0
    %v3984 = vpop.f32.mrf.mxu0
    %3985 = vdwg.mxu0
    %v3986 = vxor.u32 %v3981, 2147483648
    %v3987 = vmul.f32 %v3986, 1.442695
    %v3988 = vpow.pop %v3987
    %v3989 = vadd.f32 %v3988, 1.0
    %v3990 = vrcp.pop %v3989
    %v3991 = vmul.f32 1.0, %v3990
    %v3992 = vmul.f32 %v3981, %v3991
    %v3993 = vld [vmem:[#allocation2 + $0x128] sm:$0xf]
    %v3994 = vld [vmem:[#allocation2 + $0x12c] sm:$0xf]
    %v3995 = vld [vmem:[#allocation2 + $0x130] sm:$0xf]
    %v3996 = vld [vmem:[#allocation2 + $0x134] sm:$0xf]
    %v3997 = vld [vmem:[#allocation2 + $0x138] sm:$0xf]
    %v3998 = vld [vmem:[#allocation2 + $0x13c] sm:$0xf]
    %v3999 = vld [vmem:[#allocation2 + $0x140] sm:$0xf]
    %v4000 = vld [vmem:[#allocation2 + $0x144] sm:$0xf]
    %v4001 = vld [vmem:[#allocation2 + $0x148] sm:$0xf]
    %v4002 = vld [vmem:[#allocation2 + $0x14c] sm:$0xf]
    %v4003 = vld [vmem:[#allocation2 + $0x150] sm:$0xf]
    %v4004 = vld [vmem:[#allocation2 + $0x154] sm:$0xf]
    %v4005 = vld [vmem:[#allocation2 + $0x158] sm:$0xf]
    %v4006 = vld [vmem:[#allocation2 + $0x15c] sm:$0xf]
    %v4007 = vld [vmem:[#allocation2 + $0x160] sm:$0xf]
    %v4008 = vld [vmem:[#allocation2 + $0x164] sm:$0xf]
    %v4009 = vld [vmem:[#allocation2 + $0x168] sm:$0xf]
    %v4010 = vld [vmem:[#allocation2 + $0x16c] sm:$0xf]
    %v4011 = vld [vmem:[#allocation2 + $0x170] sm:$0xf]
    %v4012 = vld [vmem:[#allocation2 + $0x174] sm:$0xf]
    %v4013 = vld [vmem:[#allocation2 + $0x178] sm:$0xf]
    %v4014 = vld [vmem:[#allocation2 + $0x17c] sm:$0xf]
    %v4015 = vld [vmem:[#allocation2 + $0x180] sm:$0xf]
    %v4016 = vld [vmem:[#allocation2 + $0x184] sm:$0xf]
    %v4017 = vld [vmem:[#allocation2 + $0x188] sm:$0xf]
    %v4018 = vld [vmem:[#allocation2 + $0x18c] sm:$0xf]
    %v4019 = vld [vmem:[#allocation2 + $0x190] sm:$0xf]
    %v4020 = vld [vmem:[#allocation2 + $0x194] sm:$0xf]
    %v4021 = vld [vmem:[#allocation2 + $0x198] sm:$0xf]
    %v4022 = vld [vmem:[#allocation2 + $0x19c] sm:$0xf]
    %v4023 = vld [vmem:[#allocation2 + $0x1a0] sm:$0xf]
    %v4024 = vld [vmem:[#allocation2 + $0x1a4] sm:$0xf]
    %v4025 = vld [vmem:[#allocation8 + $0x25] ss:$0 sm:$0xff]
    %v4058 = vunpack.c.l.b16 %v3993
    %v4059 = vunpack.c.l.b16 %v3994
    %v4060 = vunpack.c.l.b16 %v3995
    %v4061 = vunpack.c.l.b16 %v3996
    %v4062 = vunpack.c.l.b16 %v3997
    %v4063 = vunpack.c.l.b16 %v3998
    %v4064 = vunpack.c.l.b16 %v3999
    %v4065 = vunpack.c.l.b16 %v4000
    %v4066 = vunpack.c.l.b16 %v4001
    %v4067 = vunpack.c.l.b16 %v4002
    %v4068 = vunpack.c.l.b16 %v4003
    %v4069 = vunpack.c.l.b16 %v4004
    %v4070 = vunpack.c.l.b16 %v4005
    %v4071 = vunpack.c.l.b16 %v4006
    %v4072 = vunpack.c.l.b16 %v4007
    %v4073 = vunpack.c.l.b16 %v4008
    %v4074 = vunpack.c.l.b16 %v4009
    %v4075 = vunpack.c.l.b16 %v4010
    %v4076 = vunpack.c.l.b16 %v4011
    %v4077 = vunpack.c.l.b16 %v4012
    %v4078 = vunpack.c.l.b16 %v4013
    %v4079 = vunpack.c.l.b16 %v4014
    %v4080 = vunpack.c.l.b16 %v4015
    %v4081 = vunpack.c.l.b16 %v4016
    %v4082 = vunpack.c.l.b16 %v4017
    %v4083 = vunpack.c.l.b16 %v4018
    %v4084 = vunpack.c.l.b16 %v4019
    %v4085 = vunpack.c.l.b16 %v4020
    %v4086 = vunpack.c.l.b16 %v4021
    %v4087 = vunpack.c.l.b16 %v4022
    %v4088 = vunpack.c.l.b16 %v4023
    %v4089 = vunpack.c.l.b16 %v4024
    %v4090 = vpack.c.b16 %v4059, %v4058
    %v4091 = vpack.c.b16 %v4061, %v4060
    %v4092 = vpack.c.b16 %v4063, %v4062
    %v4093 = vpack.c.b16 %v4065, %v4064
    %v4094 = vpack.c.b16 %v4067, %v4066
    %v4095 = vpack.c.b16 %v4069, %v4068
    %v4096 = vpack.c.b16 %v4071, %v4070
    %v4097 = vpack.c.b16 %v4073, %v4072
    %v4098 = vpack.c.b16 %v4075, %v4074
    %v4099 = vpack.c.b16 %v4077, %v4076
    %v4100 = vpack.c.b16 %v4079, %v4078
    %v4101 = vpack.c.b16 %v4081, %v4080
    %v4102 = vpack.c.b16 %v4083, %v4082
    %v4103 = vpack.c.b16 %v4085, %v4084
    %v4104 = vpack.c.b16 %v4087, %v4086
    %v4105 = vpack.c.b16 %v4089, %v4088
    %4122 = vmatprep.subr.bf16.mxu0 0
    %4123 = vmatpush1.bf16.msra.mxu0 %v4097
    %4124 = vmatprep.subr.bf16.mxu0 0
    %4125 = vmatpush1.bf16.msra.mxu0 %v4096
    %4126 = vmatprep.subr.bf16.mxu0 0
    %4127 = vmatpush1.bf16.msra.mxu0 %v4095
    %4128 = vmatprep.subr.bf16.mxu0 0
    %4129 = vmatpush1.bf16.msra.mxu0 %v4094
    %4130 = vmatprep.subr.bf16.mxu0 0
    %4131 = vmatpush1.bf16.msra.mxu0 %v4093
    %4132 = vmatprep.subr.bf16.mxu0 0
    %4133 = vmatpush1.bf16.msra.mxu0 %v4092
    %4134 = vmatprep.subr.bf16.mxu0 0
    %4135 = vmatpush1.bf16.msra.mxu0 %v4091
    %4136 = vmatprep.subr.bf16.mxu0 0
    %4137 = vmatpush1.bf16.msra.mxu0 %v4090
    %4138 = vmatprep.subr.bf16.mxu0 0
    %4139 = vmatpush2.bf16.msra.mxu0 %v4105
    %4140 = vmatprep.subr.bf16.mxu0 0
    %4141 = vmatpush2.bf16.msra.mxu0 %v4104
    %4142 = vmatprep.subr.bf16.mxu0 0
    %4143 = vmatpush2.bf16.msra.mxu0 %v4103
    %4144 = vmatprep.subr.bf16.mxu0 0
    %4145 = vmatpush2.bf16.msra.mxu0 %v4102
    %4146 = vmatprep.subr.bf16.mxu0 0
    %4147 = vmatpush2.bf16.msra.mxu0 %v4101
    %4148 = vmatprep.subr.bf16.mxu0 0
    %4149 = vmatpush2.bf16.msra.mxu0 %v4100
    %4150 = vmatprep.subr.bf16.mxu0 0
    %4151 = vmatpush2.bf16.msra.mxu0 %v4099
    %4152 = vmatprep.subr.bf16.mxu0 0
    %4153 = vmatpush2.bf16.msra.mxu0 %v4098
    %4154 = vmatprep.mubr.bf16.mxu0 %v777
    %4155 = vmatmul.mubr.bf16.gmra.mxu0 %v776
    %v4156 = vpop.f32.mrf.mxu0
    %v4157 = vadd.f32 %v4025, %v4156
    %v4158 = vpop.f32.mrf.mxu0
    %v4159 = vpop.f32.mrf.mxu0
    %v4160 = vpop.f32.mrf.mxu0
    %4161 = vdwg.mxu0
    %v4162 = vadd.f32 %v3992, %v4157
    %v4163 = vld [vmem:[#allocation2 + $0x1a8] sm:$0xf]
    %v4164 = vld [vmem:[#allocation2 + $0x1ac] sm:$0xf]
    %v4165 = vld [vmem:[#allocation2 + $0x1b0] sm:$0xf]
    %v4166 = vld [vmem:[#allocation2 + $0x1b4] sm:$0xf]
    %v4167 = vld [vmem:[#allocation2 + $0x1b8] sm:$0xf]
    %v4168 = vld [vmem:[#allocation2 + $0x1bc] sm:$0xf]
    %v4169 = vld [vmem:[#allocation2 + $0x1c0] sm:$0xf]
    %v4170 = vld [vmem:[#allocation2 + $0x1c4] sm:$0xf]
    %v4171 = vld [vmem:[#allocation2 + $0x1c8] sm:$0xf]
    %v4172 = vld [vmem:[#allocation2 + $0x1cc] sm:$0xf]
    %v4173 = vld [vmem:[#allocation2 + $0x1d0] sm:$0xf]
    %v4174 = vld [vmem:[#allocation2 + $0x1d4] sm:$0xf]
    %v4175 = vld [vmem:[#allocation2 + $0x1d8] sm:$0xf]
    %v4176 = vld [vmem:[#allocation2 + $0x1dc] sm:$0xf]
    %v4177 = vld [vmem:[#allocation2 + $0x1e0] sm:$0xf]
    %v4178 = vld [vmem:[#allocation2 + $0x1e4] sm:$0xf]
    %v4179 = vpack.c.bf16 %v4162, %v4162
    %v4180 = vld [vmem:[#allocation8 + $0x26] ss:$0 sm:$0xff]
    %v4197 = vunpack.c.l.b16 %v4163
    %v4198 = vunpack.c.l.b16 %v4164
    %v4199 = vunpack.c.l.b16 %v4165
    %v4200 = vunpack.c.l.b16 %v4166
    %v4201 = vunpack.c.l.b16 %v4167
    %v4202 = vunpack.c.l.b16 %v4168
    %v4203 = vunpack.c.l.b16 %v4169
    %v4204 = vunpack.c.l.b16 %v4170
    %v4205 = vunpack.c.l.b16 %v4171
    %v4206 = vunpack.c.l.b16 %v4172
    %v4207 = vunpack.c.l.b16 %v4173
    %v4208 = vunpack.c.l.b16 %v4174
    %v4209 = vunpack.c.l.b16 %v4175
    %v4210 = vunpack.c.l.b16 %v4176
    %v4211 = vunpack.c.l.b16 %v4177
    %v4212 = vunpack.c.l.b16 %v4178
    %v4213 = vpack.c.b16 %v4198, %v4197
    %v4214 = vpack.c.b16 %v4200, %v4199
    %v4215 = vpack.c.b16 %v4202, %v4201
    %v4216 = vpack.c.b16 %v4204, %v4203
    %v4217 = vpack.c.b16 %v4206, %v4205
    %v4218 = vpack.c.b16 %v4208, %v4207
    %v4219 = vpack.c.b16 %v4210, %v4209
    %v4220 = vpack.c.b16 %v4212, %v4211
    %4229 = vmatprep.subr.bf16.mxu0 0
    %4230 = vmatpush1.bf16.msra.mxu0 %v4220
    %4231 = vmatprep.subr.bf16.mxu0 0
    %4232 = vmatpush1.bf16.msra.mxu0 %v4219
    %4233 = vmatprep.subr.bf16.mxu0 0
    %4234 = vmatpush1.bf16.msra.mxu0 %v4218
    %4235 = vmatprep.subr.bf16.mxu0 0
    %4236 = vmatpush1.bf16.msra.mxu0 %v4217
    %4237 = vmatprep.subr.bf16.mxu0 0
    %4238 = vmatpush1.bf16.msra.mxu0 %v4216
    %4239 = vmatprep.subr.bf16.mxu0 0
    %4240 = vmatpush1.bf16.msra.mxu0 %v4215
    %4241 = vmatprep.subr.bf16.mxu0 0
    %4242 = vmatpush1.bf16.msra.mxu0 %v4214
    %4243 = vmatprep.subr.bf16.mxu0 0
    %4244 = vmatpush1.bf16.msra.mxu0 %v4213
    %4245 = vmatprep.subr.bf16.mxu0 0
    %4246 = vmatpush2.bf16.msra.mxu0 0
    %4247 = vmatprep.subr.bf16.mxu0 0
    %4248 = vmatpush2.bf16.msra.mxu0 0
    %4249 = vmatprep.subr.bf16.mxu0 0
    %4250 = vmatpush2.bf16.msra.mxu0 0
    %4251 = vmatprep.subr.bf16.mxu0 0
    %4252 = vmatpush2.bf16.msra.mxu0 0
    %4253 = vmatprep.subr.bf16.mxu0 0
    %4254 = vmatpush2.bf16.msra.mxu0 0
    %4255 = vmatprep.subr.bf16.mxu0 0
    %4256 = vmatpush2.bf16.msra.mxu0 0
    %4257 = vmatprep.subr.bf16.mxu0 0
    %4258 = vmatpush2.bf16.msra.mxu0 0
    %4259 = vmatprep.subr.bf16.mxu0 0
    %4260 = vmatpush2.bf16.msra.mxu0 0
    %4261 = vmatprep.mubr.bf16.mxu0 0
    %4262 = vmatmul.mubr.bf16.gmra.mxu0 %v4179
    %v4263 = vpop.f32.mrf.mxu0
    %v4264 = vadd.f32 %v4180, %v4263
    %v4265 = vpop.f32.mrf.mxu0
    %v4266 = vpop.f32.mrf.mxu0
    %v4267 = vpop.f32.mrf.mxu0
    %4268 = vdwg.mxu0
    %v4269 = vxor.u32 %v4264, 2147483648
    %v4270 = vmul.f32 %v4269, 1.442695
    %v4271 = vpow.pop %v4270
    %v4272 = vadd.f32 %v4271, 1.0
    %v4273 = vrcp.pop %v4272
    %v4274 = vmul.f32 1.0, %v4273
    %v4275 = vmul.f32 %v4264, %v4274
    %v4276 = vld [vmem:[#allocation2 + $0x1e8] sm:$0xf]
    %v4277 = vld [vmem:[#allocation2 + $0x1ec] sm:$0xf]
    %v4278 = vld [vmem:[#allocation2 + $0x1f0] sm:$0xf]
    %v4279 = vld [vmem:[#allocation2 + $0x1f4] sm:$0xf]
    %v4280 = vld [vmem:[#allocation2 + $0x1f8] sm:$0xf]
    %v4281 = vld [vmem:[#allocation2 + $0x1fc] sm:$0xf]
    %v4282 = vld [vmem:[#allocation2 + $0x200] sm:$0xf]
    %v4283 = vld [vmem:[#allocation2 + $0x204] sm:$0xf]
    %v4284 = vld [vmem:[#allocation2 + $0x208] sm:$0xf]
    %v4285 = vld [vmem:[#allocation2 + $0x20c] sm:$0xf]
    %v4286 = vld [vmem:[#allocation2 + $0x210] sm:$0xf]
    %v4287 = vld [vmem:[#allocation2 + $0x214] sm:$0xf]
    %v4288 = vld [vmem:[#allocation2 + $0x218] sm:$0xf]
    %v4289 = vld [vmem:[#allocation2 + $0x21c] sm:$0xf]
    %v4290 = vld [vmem:[#allocation2 + $0x220] sm:$0xf]
    %v4291 = vld [vmem:[#allocation2 + $0x224] sm:$0xf]
    %v4292 = vld [vmem:[#allocation2 + $0x228] sm:$0xf]
    %v4293 = vld [vmem:[#allocation2 + $0x22c] sm:$0xf]
    %v4294 = vld [vmem:[#allocation2 + $0x230] sm:$0xf]
    %v4295 = vld [vmem:[#allocation2 + $0x234] sm:$0xf]
    %v4296 = vld [vmem:[#allocation2 + $0x238] sm:$0xf]
    %v4297 = vld [vmem:[#allocation2 + $0x23c] sm:$0xf]
    %v4298 = vld [vmem:[#allocation2 + $0x240] sm:$0xf]
    %v4299 = vld [vmem:[#allocation2 + $0x244] sm:$0xf]
    %v4300 = vld [vmem:[#allocation2 + $0x248] sm:$0xf]
    %v4301 = vld [vmem:[#allocation2 + $0x24c] sm:$0xf]
    %v4302 = vld [vmem:[#allocation2 + $0x250] sm:$0xf]
    %v4303 = vld [vmem:[#allocation2 + $0x254] sm:$0xf]
    %v4304 = vld [vmem:[#allocation2 + $0x258] sm:$0xf]
    %v4305 = vld [vmem:[#allocation2 + $0x25c] sm:$0xf]
    %v4306 = vld [vmem:[#allocation2 + $0x260] sm:$0xf]
    %v4307 = vld [vmem:[#allocation2 + $0x264] sm:$0xf]
    %v4308 = vld [vmem:[#allocation8 + $0x27] ss:$0 sm:$0xff]
    %v4341 = vunpack.c.l.b16 %v4276
    %v4342 = vunpack.c.l.b16 %v4277
    %v4343 = vunpack.c.l.b16 %v4278
    %v4344 = vunpack.c.l.b16 %v4279
    %v4345 = vunpack.c.l.b16 %v4280
    %v4346 = vunpack.c.l.b16 %v4281
    %v4347 = vunpack.c.l.b16 %v4282
    %v4348 = vunpack.c.l.b16 %v4283
    %v4349 = vunpack.c.l.b16 %v4284
    %v4350 = vunpack.c.l.b16 %v4285
    %v4351 = vunpack.c.l.b16 %v4286
    %v4352 = vunpack.c.l.b16 %v4287
    %v4353 = vunpack.c.l.b16 %v4288
    %v4354 = vunpack.c.l.b16 %v4289
    %v4355 = vunpack.c.l.b16 %v4290
    %v4356 = vunpack.c.l.b16 %v4291
    %v4357 = vunpack.c.l.b16 %v4292
    %v4358 = vunpack.c.l.b16 %v4293
    %v4359 = vunpack.c.l.b16 %v4294
    %v4360 = vunpack.c.l.b16 %v4295
    %v4361 = vunpack.c.l.b16 %v4296
    %v4362 = vunpack.c.l.b16 %v4297
    %v4363 = vunpack.c.l.b16 %v4298
    %v4364 = vunpack.c.l.b16 %v4299
    %v4365 = vunpack.c.l.b16 %v4300
    %v4366 = vunpack.c.l.b16 %v4301
    %v4367 = vunpack.c.l.b16 %v4302
    %v4368 = vunpack.c.l.b16 %v4303
    %v4369 = vunpack.c.l.b16 %v4304
    %v4370 = vunpack.c.l.b16 %v4305
    %v4371 = vunpack.c.l.b16 %v4306
    %v4372 = vunpack.c.l.b16 %v4307
    %v4373 = vpack.c.b16 %v4342, %v4341
    %v4374 = vpack.c.b16 %v4344, %v4343
    %v4375 = vpack.c.b16 %v4346, %v4345
    %v4376 = vpack.c.b16 %v4348, %v4347
    %v4377 = vpack.c.b16 %v4350, %v4349
    %v4378 = vpack.c.b16 %v4352, %v4351
    %v4379 = vpack.c.b16 %v4354, %v4353
    %v4380 = vpack.c.b16 %v4356, %v4355
    %v4381 = vpack.c.b16 %v4358, %v4357
    %v4382 = vpack.c.b16 %v4360, %v4359
    %v4383 = vpack.c.b16 %v4362, %v4361
    %v4384 = vpack.c.b16 %v4364, %v4363
    %v4385 = vpack.c.b16 %v4366, %v4365
    %v4386 = vpack.c.b16 %v4368, %v4367
    %v4387 = vpack.c.b16 %v4370, %v4369
    %v4388 = vpack.c.b16 %v4372, %v4371
    %4405 = vmatprep.subr.bf16.mxu0 0
    %4406 = vmatpush1.bf16.msra.mxu0 %v4380
    %4407 = vmatprep.subr.bf16.mxu0 0
    %4408 = vmatpush1.bf16.msra.mxu0 %v4379
    %4409 = vmatprep.subr.bf16.mxu0 0
    %4410 = vmatpush1.bf16.msra.mxu0 %v4378
    %4411 = vmatprep.subr.bf16.mxu0 0
    %4412 = vmatpush1.bf16.msra.mxu0 %v4377
    %4413 = vmatprep.subr.bf16.mxu0 0
    %4414 = vmatpush1.bf16.msra.mxu0 %v4376
    %4415 = vmatprep.subr.bf16.mxu0 0
    %4416 = vmatpush1.bf16.msra.mxu0 %v4375
    %4417 = vmatprep.subr.bf16.mxu0 0
    %4418 = vmatpush1.bf16.msra.mxu0 %v4374
    %4419 = vmatprep.subr.bf16.mxu0 0
    %4420 = vmatpush1.bf16.msra.mxu0 %v4373
    %4421 = vmatprep.subr.bf16.mxu0 0
    %4422 = vmatpush2.bf16.msra.mxu0 %v4388
    %4423 = vmatprep.subr.bf16.mxu0 0
    %4424 = vmatpush2.bf16.msra.mxu0 %v4387
    %4425 = vmatprep.subr.bf16.mxu0 0
    %4426 = vmatpush2.bf16.msra.mxu0 %v4386
    %4427 = vmatprep.subr.bf16.mxu0 0
    %4428 = vmatpush2.bf16.msra.mxu0 %v4385
    %4429 = vmatprep.subr.bf16.mxu0 0
    %4430 = vmatpush2.bf16.msra.mxu0 %v4384
    %4431 = vmatprep.subr.bf16.mxu0 0
    %4432 = vmatpush2.bf16.msra.mxu0 %v4383
    %4433 = vmatprep.subr.bf16.mxu0 0
    %4434 = vmatpush2.bf16.msra.mxu0 %v4382
    %4435 = vmatprep.subr.bf16.mxu0 0
    %4436 = vmatpush2.bf16.msra.mxu0 %v4381
    %4437 = vmatprep.mubr.bf16.mxu0 %v3848
    %4438 = vmatmul.mubr.bf16.gmra.mxu0 %v3847
    %v4439 = vpop.f32.mrf.mxu0
    %v4440 = vadd.f32 %v4308, %v4439
    %v4441 = vpop.f32.mrf.mxu0
    %v4442 = vpop.f32.mrf.mxu0
    %v4443 = vpop.f32.mrf.mxu0
    %4444 = vdwg.mxu0
    %v4445 = vadd.f32 %v4275, %v4440
    %v4446 = vld [vmem:[#allocation2 + $0x268] sm:$0xf]
    %v4447 = vld [vmem:[#allocation2 + $0x26c] sm:$0xf]
    %v4448 = vld [vmem:[#allocation2 + $0x270] sm:$0xf]
    %v4449 = vld [vmem:[#allocation2 + $0x274] sm:$0xf]
    %v4450 = vld [vmem:[#allocation2 + $0x278] sm:$0xf]
    %v4451 = vld [vmem:[#allocation2 + $0x27c] sm:$0xf]
    %v4452 = vld [vmem:[#allocation2 + $0x280] sm:$0xf]
    %v4453 = vld [vmem:[#allocation2 + $0x284] sm:$0xf]
    %v4454 = vld [vmem:[#allocation2 + $0x288] sm:$0xf]
    %v4455 = vld [vmem:[#allocation2 + $0x28c] sm:$0xf]
    %v4456 = vld [vmem:[#allocation2 + $0x290] sm:$0xf]
    %v4457 = vld [vmem:[#allocation2 + $0x294] sm:$0xf]
    %v4458 = vld [vmem:[#allocation2 + $0x298] sm:$0xf]
    %v4459 = vld [vmem:[#allocation2 + $0x29c] sm:$0xf]
    %v4460 = vld [vmem:[#allocation2 + $0x2a0] sm:$0xf]
    %v4461 = vld [vmem:[#allocation2 + $0x2a4] sm:$0xf]
    %v4462 = vpack.c.bf16 %v4445, %v4445
    %v4463 = vld [vmem:[#allocation8 + $0x40] ss:$0 sm:$0xff]
    %v4480 = vunpack.c.l.b16 %v4446
    %v4481 = vunpack.c.l.b16 %v4447
    %v4482 = vunpack.c.l.b16 %v4448
    %v4483 = vunpack.c.l.b16 %v4449
    %v4484 = vunpack.c.l.b16 %v4450
    %v4485 = vunpack.c.l.b16 %v4451
    %v4486 = vunpack.c.l.b16 %v4452
    %v4487 = vunpack.c.l.b16 %v4453
    %v4488 = vunpack.c.l.b16 %v4454
    %v4489 = vunpack.c.l.b16 %v4455
    %v4490 = vunpack.c.l.b16 %v4456
    %v4491 = vunpack.c.l.b16 %v4457
    %v4492 = vunpack.c.l.b16 %v4458
    %v4493 = vunpack.c.l.b16 %v4459
    %v4494 = vunpack.c.l.b16 %v4460
    %v4495 = vunpack.c.l.b16 %v4461
    %v4496 = vpack.c.b16 %v4481, %v4480
    %v4497 = vpack.c.b16 %v4483, %v4482
    %v4498 = vpack.c.b16 %v4485, %v4484
    %v4499 = vpack.c.b16 %v4487, %v4486
    %v4500 = vpack.c.b16 %v4489, %v4488
    %v4501 = vpack.c.b16 %v4491, %v4490
    %v4502 = vpack.c.b16 %v4493, %v4492
    %v4503 = vpack.c.b16 %v4495, %v4494
    %4512 = vmatprep.subr.bf16.mxu0 0
    %4513 = vmatpush1.bf16.msra.mxu0 %v4503
    %4514 = vmatprep.subr.bf16.mxu0 0
    %4515 = vmatpush1.bf16.msra.mxu0 %v4502
    %4516 = vmatprep.subr.bf16.mxu0 0
    %4517 = vmatpush1.bf16.msra.mxu0 %v4501
    %4518 = vmatprep.subr.bf16.mxu0 0
    %4519 = vmatpush1.bf16.msra.mxu0 %v4500
    %4520 = vmatprep.subr.bf16.mxu0 0
    %4521 = vmatpush1.bf16.msra.mxu0 %v4499
    %4522 = vmatprep.subr.bf16.mxu0 0
    %4523 = vmatpush1.bf16.msra.mxu0 %v4498
    %4524 = vmatprep.subr.bf16.mxu0 0
    %4525 = vmatpush1.bf16.msra.mxu0 %v4497
    %4526 = vmatprep.subr.bf16.mxu0 0
    %4527 = vmatpush1.bf16.msra.mxu0 %v4496
    %4528 = vmatprep.subr.bf16.mxu0 0
    %4529 = vmatpush2.bf16.msra.mxu0 0
    %4530 = vmatprep.subr.bf16.mxu0 0
    %4531 = vmatpush2.bf16.msra.mxu0 0
    %4532 = vmatprep.subr.bf16.mxu0 0
    %4533 = vmatpush2.bf16.msra.mxu0 0
    %4534 = vmatprep.subr.bf16.mxu0 0
    %4535 = vmatpush2.bf16.msra.mxu0 0
    %4536 = vmatprep.subr.bf16.mxu0 0
    %4537 = vmatpush2.bf16.msra.mxu0 0
    %4538 = vmatprep.subr.bf16.mxu0 0
    %4539 = vmatpush2.bf16.msra.mxu0 0
    %4540 = vmatprep.subr.bf16.mxu0 0
    %4541 = vmatpush2.bf16.msra.mxu0 0
    %4542 = vmatprep.subr.bf16.mxu0 0
    %4543 = vmatpush2.bf16.msra.mxu0 0
    %4544 = vmatprep.mubr.bf16.mxu0 0
    %4545 = vmatmul.mubr.bf16.gmra.mxu0 %v4462
    %v4546 = vpop.f32.mrf.mxu0
    %v4547 = vadd.f32 %v4463, %v4546
    %v4548 = vpop.f32.mrf.mxu0
    %v4549 = vpop.f32.mrf.mxu0
    %v4550 = vpop.f32.mrf.mxu0
    %4551 = vdwg.mxu0
    %v4552 = vxor.u32 %v4547, 2147483648
    %v4553 = vmul.f32 %v4552, 1.442695
    %v4554 = vpow.pop %v4553
    %v4555 = vadd.f32 %v4554, 1.0
    %v4556 = vrcp.pop %v4555
    %v4557 = vmul.f32 1.0, %v4556
    %v4558 = vmul.f32 %v4547, %v4557
    %v4559 = vld [vmem:[#allocation2 + $0x2a8] sm:$0xf]
    %v4560 = vld [vmem:[#allocation2 + $0x2ac] sm:$0xf]
    %v4561 = vld [vmem:[#allocation2 + $0x2b0] sm:$0xf]
    %v4562 = vld [vmem:[#allocation2 + $0x2b4] sm:$0xf]
    %v4563 = vld [vmem:[#allocation2 + $0x2b8] sm:$0xf]
    %v4564 = vld [vmem:[#allocation2 + $0x2bc] sm:$0xf]
    %v4565 = vld [vmem:[#allocation2 + $0x2c0] sm:$0xf]
    %v4566 = vld [vmem:[#allocation2 + $0x2c4] sm:$0xf]
    %v4567 = vld [vmem:[#allocation2 + $0x2c8] sm:$0xf]
    %v4568 = vld [vmem:[#allocation2 + $0x2cc] sm:$0xf]
    %v4569 = vld [vmem:[#allocation2 + $0x2d0] sm:$0xf]
    %v4570 = vld [vmem:[#allocation2 + $0x2d4] sm:$0xf]
    %v4571 = vld [vmem:[#allocation2 + $0x2d8] sm:$0xf]
    %v4572 = vld [vmem:[#allocation2 + $0x2dc] sm:$0xf]
    %v4573 = vld [vmem:[#allocation2 + $0x2e0] sm:$0xf]
    %v4574 = vld [vmem:[#allocation2 + $0x2e4] sm:$0xf]
    %v4575 = vld [vmem:[#allocation2 + $0x2e8] sm:$0xf]
    %v4576 = vld [vmem:[#allocation2 + $0x2ec] sm:$0xf]
    %v4577 = vld [vmem:[#allocation2 + $0x2f0] sm:$0xf]
    %v4578 = vld [vmem:[#allocation2 + $0x2f4] sm:$0xf]
    %v4579 = vld [vmem:[#allocation2 + $0x2f8] sm:$0xf]
    %v4580 = vld [vmem:[#allocation2 + $0x2fc] sm:$0xf]
    %v4581 = vld [vmem:[#allocation2 + $0x300] sm:$0xf]
    %v4582 = vld [vmem:[#allocation2 + $0x304] sm:$0xf]
    %v4583 = vld [vmem:[#allocation2 + $0x308] sm:$0xf]
    %v4584 = vld [vmem:[#allocation2 + $0x30c] sm:$0xf]
    %v4585 = vld [vmem:[#allocation2 + $0x310] sm:$0xf]
    %v4586 = vld [vmem:[#allocation2 + $0x314] sm:$0xf]
    %v4587 = vld [vmem:[#allocation2 + $0x318] sm:$0xf]
    %v4588 = vld [vmem:[#allocation2 + $0x31c] sm:$0xf]
    %v4589 = vld [vmem:[#allocation2 + $0x320] sm:$0xf]
    %v4590 = vld [vmem:[#allocation2 + $0x324] sm:$0xf]
    %v4591 = vld [vmem:[#allocation8 + $0x41] ss:$0 sm:$0xff]
    %v4624 = vunpack.c.l.b16 %v4559
    %v4625 = vunpack.c.l.b16 %v4560
    %v4626 = vunpack.c.l.b16 %v4561
    %v4627 = vunpack.c.l.b16 %v4562
    %v4628 = vunpack.c.l.b16 %v4563
    %v4629 = vunpack.c.l.b16 %v4564
    %v4630 = vunpack.c.l.b16 %v4565
    %v4631 = vunpack.c.l.b16 %v4566
    %v4632 = vunpack.c.l.b16 %v4567
    %v4633 = vunpack.c.l.b16 %v4568
    %v4634 = vunpack.c.l.b16 %v4569
    %v4635 = vunpack.c.l.b16 %v4570
    %v4636 = vunpack.c.l.b16 %v4571
    %v4637 = vunpack.c.l.b16 %v4572
    %v4638 = vunpack.c.l.b16 %v4573
    %v4639 = vunpack.c.l.b16 %v4574
    %v4640 = vunpack.c.l.b16 %v4575
    %v4641 = vunpack.c.l.b16 %v4576
    %v4642 = vunpack.c.l.b16 %v4577
    %v4643 = vunpack.c.l.b16 %v4578
    %v4644 = vunpack.c.l.b16 %v4579
    %v4645 = vunpack.c.l.b16 %v4580
    %v4646 = vunpack.c.l.b16 %v4581
    %v4647 = vunpack.c.l.b16 %v4582
    %v4648 = vunpack.c.l.b16 %v4583
    %v4649 = vunpack.c.l.b16 %v4584
    %v4650 = vunpack.c.l.b16 %v4585
    %v4651 = vunpack.c.l.b16 %v4586
    %v4652 = vunpack.c.l.b16 %v4587
    %v4653 = vunpack.c.l.b16 %v4588
    %v4654 = vunpack.c.l.b16 %v4589
    %v4655 = vunpack.c.l.b16 %v4590
    %v4656 = vpack.c.b16 %v4625, %v4624
    %v4657 = vpack.c.b16 %v4627, %v4626
    %v4658 = vpack.c.b16 %v4629, %v4628
    %v4659 = vpack.c.b16 %v4631, %v4630
    %v4660 = vpack.c.b16 %v4633, %v4632
    %v4661 = vpack.c.b16 %v4635, %v4634
    %v4662 = vpack.c.b16 %v4637, %v4636
    %v4663 = vpack.c.b16 %v4639, %v4638
    %v4664 = vpack.c.b16 %v4641, %v4640
    %v4665 = vpack.c.b16 %v4643, %v4642
    %v4666 = vpack.c.b16 %v4645, %v4644
    %v4667 = vpack.c.b16 %v4647, %v4646
    %v4668 = vpack.c.b16 %v4649, %v4648
    %v4669 = vpack.c.b16 %v4651, %v4650
    %v4670 = vpack.c.b16 %v4653, %v4652
    %v4671 = vpack.c.b16 %v4655, %v4654
    %4688 = vmatprep.subr.bf16.mxu0 0
    %4689 = vmatpush1.bf16.msra.mxu0 %v4663
    %4690 = vmatprep.subr.bf16.mxu0 0
    %4691 = vmatpush1.bf16.msra.mxu0 %v4662
    %4692 = vmatprep.subr.bf16.mxu0 0
    %4693 = vmatpush1.bf16.msra.mxu0 %v4661
    %4694 = vmatprep.subr.bf16.mxu0 0
    %4695 = vmatpush1.bf16.msra.mxu0 %v4660
    %4696 = vmatprep.subr.bf16.mxu0 0
    %4697 = vmatpush1.bf16.msra.mxu0 %v4659
    %4698 = vmatprep.subr.bf16.mxu0 0
    %4699 = vmatpush1.bf16.msra.mxu0 %v4658
    %4700 = vmatprep.subr.bf16.mxu0 0
    %4701 = vmatpush1.bf16.msra.mxu0 %v4657
    %4702 = vmatprep.subr.bf16.mxu0 0
    %4703 = vmatpush1.bf16.msra.mxu0 %v4656
    %4704 = vmatprep.subr.bf16.mxu0 0
    %4705 = vmatpush2.bf16.msra.mxu0 %v4671
    %4706 = vmatprep.subr.bf16.mxu0 0
    %4707 = vmatpush2.bf16.msra.mxu0 %v4670
    %4708 = vmatprep.subr.bf16.mxu0 0
    %4709 = vmatpush2.bf16.msra.mxu0 %v4669
    %4710 = vmatprep.subr.bf16.mxu0 0
    %4711 = vmatpush2.bf16.msra.mxu0 %v4668
    %4712 = vmatprep.subr.bf16.mxu0 0
    %4713 = vmatpush2.bf16.msra.mxu0 %v4667
    %4714 = vmatprep.subr.bf16.mxu0 0
    %4715 = vmatpush2.bf16.msra.mxu0 %v4666
    %4716 = vmatprep.subr.bf16.mxu0 0
    %4717 = vmatpush2.bf16.msra.mxu0 %v4665
    %4718 = vmatprep.subr.bf16.mxu0 0
    %4719 = vmatpush2.bf16.msra.mxu0 %v4664
    %4720 = vmatprep.mubr.bf16.mxu0 %v777
    %4721 = vmatmul.mubr.bf16.gmra.mxu0 %v776
    %v4722 = vpop.f32.mrf.mxu0
    %v4723 = vadd.f32 %v4591, %v4722
    %v4724 = vpop.f32.mrf.mxu0
    %v4725 = vpop.f32.mrf.mxu0
    %v4726 = vpop.f32.mrf.mxu0
    %4727 = vdwg.mxu0
    %v4728 = vadd.f32 %v4558, %v4723
    %v4729 = vld [vmem:[#allocation2 + $0x328] sm:$0xf]
    %v4730 = vld [vmem:[#allocation2 + $0x32c] sm:$0xf]
    %v4731 = vld [vmem:[#allocation2 + $0x330] sm:$0xf]
    %v4732 = vld [vmem:[#allocation2 + $0x334] sm:$0xf]
    %v4733 = vld [vmem:[#allocation2 + $0x338] sm:$0xf]
    %v4734 = vld [vmem:[#allocation2 + $0x33c] sm:$0xf]
    %v4735 = vld [vmem:[#allocation2 + $0x340] sm:$0xf]
    %v4736 = vld [vmem:[#allocation2 + $0x344] sm:$0xf]
    %v4737 = vld [vmem:[#allocation2 + $0x348] sm:$0xf]
    %v4738 = vld [vmem:[#allocation2 + $0x34c] sm:$0xf]
    %v4739 = vld [vmem:[#allocation2 + $0x350] sm:$0xf]
    %v4740 = vld [vmem:[#allocation2 + $0x354] sm:$0xf]
    %v4741 = vld [vmem:[#allocation2 + $0x358] sm:$0xf]
    %v4742 = vld [vmem:[#allocation2 + $0x35c] sm:$0xf]
    %v4743 = vld [vmem:[#allocation2 + $0x360] sm:$0xf]
    %v4744 = vld [vmem:[#allocation2 + $0x364] sm:$0xf]
    %v4745 = vpack.c.bf16 %v4728, %v4728
    %v4746 = vld [vmem:[#allocation8 + $0x42] ss:$0 sm:$0xff]
    %v4763 = vunpack.c.l.b16 %v4729
    %v4764 = vunpack.c.l.b16 %v4730
    %v4765 = vunpack.c.l.b16 %v4731
    %v4766 = vunpack.c.l.b16 %v4732
    %v4767 = vunpack.c.l.b16 %v4733
    %v4768 = vunpack.c.l.b16 %v4734
    %v4769 = vunpack.c.l.b16 %v4735
    %v4770 = vunpack.c.l.b16 %v4736
    %v4771 = vunpack.c.l.b16 %v4737
    %v4772 = vunpack.c.l.b16 %v4738
    %v4773 = vunpack.c.l.b16 %v4739
    %v4774 = vunpack.c.l.b16 %v4740
    %v4775 = vunpack.c.l.b16 %v4741
    %v4776 = vunpack.c.l.b16 %v4742
    %v4777 = vunpack.c.l.b16 %v4743
    %v4778 = vunpack.c.l.b16 %v4744
    %v4779 = vpack.c.b16 %v4764, %v4763
    %v4780 = vpack.c.b16 %v4766, %v4765
    %v4781 = vpack.c.b16 %v4768, %v4767
    %v4782 = vpack.c.b16 %v4770, %v4769
    %v4783 = vpack.c.b16 %v4772, %v4771
    %v4784 = vpack.c.b16 %v4774, %v4773
    %v4785 = vpack.c.b16 %v4776, %v4775
    %v4786 = vpack.c.b16 %v4778, %v4777
    %4795 = vmatprep.subr.bf16.mxu0 0
    %4796 = vmatpush1.bf16.msra.mxu0 %v4786
    %4797 = vmatprep.subr.bf16.mxu0 0
    %4798 = vmatpush1.bf16.msra.mxu0 %v4785
    %4799 = vmatprep.subr.bf16.mxu0 0
    %4800 = vmatpush1.bf16.msra.mxu0 %v4784
    %4801 = vmatprep.subr.bf16.mxu0 0
    %4802 = vmatpush1.bf16.msra.mxu0 %v4783
    %4803 = vmatprep.subr.bf16.mxu0 0
    %4804 = vmatpush1.bf16.msra.mxu0 %v4782
    %4805 = vmatprep.subr.bf16.mxu0 0
    %4806 = vmatpush1.bf16.msra.mxu0 %v4781
    %4807 = vmatprep.subr.bf16.mxu0 0
    %4808 = vmatpush1.bf16.msra.mxu0 %v4780
    %4809 = vmatprep.subr.bf16.mxu0 0
    %4810 = vmatpush1.bf16.msra.mxu0 %v4779
    %4811 = vmatprep.subr.bf16.mxu0 0
    %4812 = vmatpush2.bf16.msra.mxu0 0
    %4813 = vmatprep.subr.bf16.mxu0 0
    %4814 = vmatpush2.bf16.msra.mxu0 0
    %4815 = vmatprep.subr.bf16.mxu0 0
    %4816 = vmatpush2.bf16.msra.mxu0 0
    %4817 = vmatprep.subr.bf16.mxu0 0
    %4818 = vmatpush2.bf16.msra.mxu0 0
    %4819 = vmatprep.subr.bf16.mxu0 0
    %4820 = vmatpush2.bf16.msra.mxu0 0
    %4821 = vmatprep.subr.bf16.mxu0 0
    %4822 = vmatpush2.bf16.msra.mxu0 0
    %4823 = vmatprep.subr.bf16.mxu0 0
    %4824 = vmatpush2.bf16.msra.mxu0 0
    %4825 = vmatprep.subr.bf16.mxu0 0
    %4826 = vmatpush2.bf16.msra.mxu0 0
    %4827 = vmatprep.mubr.bf16.mxu0 0
    %4828 = vmatmul.mubr.bf16.gmra.mxu0 %v4745
    %v4829 = vpop.f32.mrf.mxu0
    %v4830 = vadd.f32 %v4746, %v4829
    %v4831 = vpop.f32.mrf.mxu0
    %v4832 = vpop.f32.mrf.mxu0
    %v4833 = vpop.f32.mrf.mxu0
    %4834 = vdwg.mxu0
    %v4835 = vxor.u32 %v4830, 2147483648
    %v4836 = vmul.f32 %v4835, 1.442695
    %v4837 = vpow.pop %v4836
    %v4838 = vadd.f32 %v4837, 1.0
    %v4839 = vrcp.pop %v4838
    %v4840 = vmul.f32 1.0, %v4839
    %v4841 = vmul.f32 %v4830, %v4840
    %v4842 = vadd.f32 %v4841, %v4445
    %v4843 = vld [vmem:[#allocation5 + $0x600] sm:$0xff]
    %v4844 = vld [vmem:[#allocation5 + $0x608] sm:$0xff]
    %v4845 = vld [vmem:[#allocation5 + $0x610] sm:$0xff]
    %v4846 = vld [vmem:[#allocation5 + $0x618] sm:$0xff]
    %v4847 = vld [vmem:[#allocation5 + $0x620] sm:$0xff]
    %v4848 = vld [vmem:[#allocation5 + $0x628] sm:$0xff]
    %v4849 = vld [vmem:[#allocation5 + $0x630] sm:$0xff]
    %v4850 = vld [vmem:[#allocation5 + $0x638] sm:$0xff]
    %v4851 = vld [vmem:[#allocation5 + $0x640] sm:$0xff]
    %v4852 = vld [vmem:[#allocation5 + $0x648] sm:$0xff]
    %v4853 = vld [vmem:[#allocation5 + $0x650] sm:$0xff]
    %v4854 = vld [vmem:[#allocation5 + $0x658] sm:$0xff]
    %v4855 = vld [vmem:[#allocation5 + $0x660] sm:$0xff]
    %v4856 = vld [vmem:[#allocation5 + $0x668] sm:$0xff]
    %v4857 = vld [vmem:[#allocation5 + $0x670] sm:$0xff]
    %v4858 = vld [vmem:[#allocation5 + $0x678] sm:$0xff]
    %v4859 = vld [vmem:[#allocation5 + $0x680] sm:$0xff]
    %v4860 = vld [vmem:[#allocation5 + $0x688] sm:$0xff]
    %v4861 = vld [vmem:[#allocation5 + $0x690] sm:$0xff]
    %v4862 = vld [vmem:[#allocation5 + $0x698] sm:$0xff]
    %v4863 = vld [vmem:[#allocation5 + $0x6a0] sm:$0xff]
    %v4864 = vld [vmem:[#allocation5 + $0x6a8] sm:$0xff]
    %v4865 = vld [vmem:[#allocation5 + $0x6b0] sm:$0xff]
    %v4866 = vld [vmem:[#allocation5 + $0x6b8] sm:$0xff]
    %v4867 = vld [vmem:[#allocation5 + $0x6c0] sm:$0xff]
    %v4868 = vld [vmem:[#allocation5 + $0x6c8] sm:$0xff]
    %v4869 = vld [vmem:[#allocation5 + $0x6d0] sm:$0xff]
    %v4870 = vld [vmem:[#allocation5 + $0x6d8] sm:$0xff]
    %v4871 = vld [vmem:[#allocation5 + $0x6e0] sm:$0xff]
    %v4872 = vld [vmem:[#allocation5 + $0x6e8] sm:$0xff]
    %v4873 = vld [vmem:[#allocation5 + $0x6f0] sm:$0xff]
    %v4874 = vld [vmem:[#allocation5 + $0x6f8] sm:$0xff]
    %v4875 = vpack.c.bf16 %v4842, %v4842
    %v4892 = vunpack.c.l.b16 %v4859
    %v4893 = vunpack.c.h.b16 %v4859
    %v4894 = vunpack.c.l.b16 %v4860
    %v4895 = vunpack.c.h.b16 %v4860
    %v4896 = vunpack.c.l.b16 %v4861
    %v4897 = vunpack.c.h.b16 %v4861
    %v4898 = vunpack.c.l.b16 %v4862
    %v4899 = vunpack.c.h.b16 %v4862
    %v4900 = vunpack.c.l.b16 %v4863
    %v4901 = vunpack.c.h.b16 %v4863
    %v4902 = vunpack.c.l.b16 %v4864
    %v4903 = vunpack.c.h.b16 %v4864
    %v4904 = vunpack.c.l.b16 %v4865
    %v4905 = vunpack.c.h.b16 %v4865
    %v4906 = vunpack.c.l.b16 %v4866
    %v4907 = vunpack.c.h.b16 %v4866
    %v4908 = vunpack.c.l.b16 %v4867
    %v4909 = vunpack.c.h.b16 %v4867
    %v4910 = vunpack.c.l.b16 %v4868
    %v4911 = vunpack.c.h.b16 %v4868
    %v4912 = vunpack.c.l.b16 %v4869
    %v4913 = vunpack.c.h.b16 %v4869
    %v4914 = vunpack.c.l.b16 %v4870
    %v4915 = vunpack.c.h.b16 %v4870
    %v4916 = vunpack.c.l.b16 %v4871
    %v4917 = vunpack.c.h.b16 %v4871
    %v4918 = vunpack.c.l.b16 %v4872
    %v4919 = vunpack.c.h.b16 %v4872
    %v4920 = vunpack.c.l.b16 %v4873
    %v4921 = vunpack.c.h.b16 %v4873
    %v4922 = vunpack.c.l.b16 %v4874
    %v4923 = vunpack.c.h.b16 %v4874
    %v4924 = vpack.c.b16 %v4894, %v4892
    %v4925 = vpack.c.b16 %v4895, %v4893
    %v4926 = vpack.c.b16 %v4898, %v4896
    %v4927 = vpack.c.b16 %v4899, %v4897
    %v4928 = vpack.c.b16 %v4902, %v4900
    %v4929 = vpack.c.b16 %v4903, %v4901
    %v4930 = vpack.c.b16 %v4906, %v4904
    %v4931 = vpack.c.b16 %v4907, %v4905
    %v4932 = vpack.c.b16 %v4910, %v4908
    %v4933 = vpack.c.b16 %v4911, %v4909
    %v4934 = vpack.c.b16 %v4914, %v4912
    %v4935 = vpack.c.b16 %v4915, %v4913
    %v4936 = vpack.c.b16 %v4918, %v4916
    %v4937 = vpack.c.b16 %v4919, %v4917
    %v4938 = vpack.c.b16 %v4922, %v4920
    %v4939 = vpack.c.b16 %v4923, %v4921
    %4956 = vmatprep.subr.bf16.mxu0 %v4939
    %4957 = vmatpush1.bf16.msra.mxu0 %v4938
    %4958 = vmatprep.subr.bf16.mxu0 %v4937
    %4959 = vmatpush1.bf16.msra.mxu0 %v4936
    %4960 = vmatprep.subr.bf16.mxu0 %v4935
    %4961 = vmatpush1.bf16.msra.mxu0 %v4934
    %4962 = vmatprep.subr.bf16.mxu0 %v4933
    %4963 = vmatpush1.bf16.msra.mxu0 %v4932
    %4964 = vmatprep.subr.bf16.mxu0 %v4931
    %4965 = vmatpush1.bf16.msra.mxu0 %v4930
    %4966 = vmatprep.subr.bf16.mxu0 %v4929
    %4967 = vmatpush1.bf16.msra.mxu0 %v4928
    %4968 = vmatprep.subr.bf16.mxu0 %v4927
    %4969 = vmatpush1.bf16.msra.mxu0 %v4926
    %4970 = vmatprep.subr.bf16.mxu0 %v4925
    %4971 = vmatpush1.bf16.msra.mxu0 %v4924
    %4972 = vmatprep.subr.bf16.mxu0 0
    %4973 = vmatpush2.bf16.msra.mxu0 0
    %4974 = vmatprep.subr.bf16.mxu0 0
    %4975 = vmatpush2.bf16.msra.mxu0 0
    %4976 = vmatprep.subr.bf16.mxu0 0
    %4977 = vmatpush2.bf16.msra.mxu0 0
    %4978 = vmatprep.subr.bf16.mxu0 0
    %4979 = vmatpush2.bf16.msra.mxu0 0
    %4980 = vmatprep.subr.bf16.mxu0 0
    %4981 = vmatpush2.bf16.msra.mxu0 0
    %4982 = vmatprep.subr.bf16.mxu0 0
    %4983 = vmatpush2.bf16.msra.mxu0 0
    %4984 = vmatprep.subr.bf16.mxu0 0
    %4985 = vmatpush2.bf16.msra.mxu0 0
    %4986 = vmatprep.subr.bf16.mxu0 0
    %4987 = vmatpush2.bf16.msra.mxu0 0
    %4988 = vmatprep.mubr.bf16.mxu0 0
    %4989 = vmatmul.mubr.bf16.gmra.mxu0 %v4875
    %v4990 = vpop.f32.mrf.mxu0
    %v4991 = vadd.f32 0.0, %v4990
    %v4992 = vpop.f32.mrf.mxu0
    %v4993 = vadd.f32 0.0, %v4992
    %v4994 = vpop.f32.mrf.mxu0
    %v4995 = vpop.f32.mrf.mxu0
    %4996 = vdwg.mxu0
    %v5013 = vunpack.c.l.b16 %v4843
    %v5014 = vunpack.c.h.b16 %v4843
    %v5015 = vunpack.c.l.b16 %v4844
    %v5016 = vunpack.c.h.b16 %v4844
    %v5017 = vunpack.c.l.b16 %v4845
    %v5018 = vunpack.c.h.b16 %v4845
    %v5019 = vunpack.c.l.b16 %v4846
    %v5020 = vunpack.c.h.b16 %v4846
    %v5021 = vunpack.c.l.b16 %v4847
    %v5022 = vunpack.c.h.b16 %v4847
    %v5023 = vunpack.c.l.b16 %v4848
    %v5024 = vunpack.c.h.b16 %v4848
    %v5025 = vunpack.c.l.b16 %v4849
    %v5026 = vunpack.c.h.b16 %v4849
    %v5027 = vunpack.c.l.b16 %v4850
    %v5028 = vunpack.c.h.b16 %v4850
    %v5029 = vunpack.c.l.b16 %v4851
    %v5030 = vunpack.c.h.b16 %v4851
    %v5031 = vunpack.c.l.b16 %v4852
    %v5032 = vunpack.c.h.b16 %v4852
    %v5033 = vunpack.c.l.b16 %v4853
    %v5034 = vunpack.c.h.b16 %v4853
    %v5035 = vunpack.c.l.b16 %v4854
    %v5036 = vunpack.c.h.b16 %v4854
    %v5037 = vunpack.c.l.b16 %v4855
    %v5038 = vunpack.c.h.b16 %v4855
    %v5039 = vunpack.c.l.b16 %v4856
    %v5040 = vunpack.c.h.b16 %v4856
    %v5041 = vunpack.c.l.b16 %v4857
    %v5042 = vunpack.c.h.b16 %v4857
    %v5043 = vunpack.c.l.b16 %v4858
    %v5044 = vunpack.c.h.b16 %v4858
    %v5045 = vpack.c.b16 %v5015, %v5013
    %v5046 = vpack.c.b16 %v5016, %v5014
    %v5047 = vpack.c.b16 %v5019, %v5017
    %v5048 = vpack.c.b16 %v5020, %v5018
    %v5049 = vpack.c.b16 %v5023, %v5021
    %v5050 = vpack.c.b16 %v5024, %v5022
    %v5051 = vpack.c.b16 %v5027, %v5025
    %v5052 = vpack.c.b16 %v5028, %v5026
    %v5053 = vpack.c.b16 %v5031, %v5029
    %v5054 = vpack.c.b16 %v5032, %v5030
    %v5055 = vpack.c.b16 %v5035, %v5033
    %v5056 = vpack.c.b16 %v5036, %v5034
    %v5057 = vpack.c.b16 %v5039, %v5037
    %v5058 = vpack.c.b16 %v5040, %v5038
    %v5059 = vpack.c.b16 %v5043, %v5041
    %v5060 = vpack.c.b16 %v5044, %v5042
    %5077 = vmatprep.subr.bf16.mxu0 %v5060
    %5078 = vmatpush1.bf16.msra.mxu0 %v5059
    %5079 = vmatprep.subr.bf16.mxu0 %v5058
    %5080 = vmatpush1.bf16.msra.mxu0 %v5057
    %5081 = vmatprep.subr.bf16.mxu0 %v5056
    %5082 = vmatpush1.bf16.msra.mxu0 %v5055
    %5083 = vmatprep.subr.bf16.mxu0 %v5054
    %5084 = vmatpush1.bf16.msra.mxu0 %v5053
    %5085 = vmatprep.subr.bf16.mxu0 %v5052
    %5086 = vmatpush1.bf16.msra.mxu0 %v5051
    %5087 = vmatprep.subr.bf16.mxu0 %v5050
    %5088 = vmatpush1.bf16.msra.mxu0 %v5049
    %5089 = vmatprep.subr.bf16.mxu0 %v5048
    %5090 = vmatpush1.bf16.msra.mxu0 %v5047
    %5091 = vmatprep.subr.bf16.mxu0 %v5046
    %5092 = vmatpush1.bf16.msra.mxu0 %v5045
    %5093 = vmatprep.subr.bf16.mxu0 0
    %5094 = vmatpush2.bf16.msra.mxu0 0
    %5095 = vmatprep.subr.bf16.mxu0 0
    %5096 = vmatpush2.bf16.msra.mxu0 0
    %5097 = vmatprep.subr.bf16.mxu0 0
    %5098 = vmatpush2.bf16.msra.mxu0 0
    %5099 = vmatprep.subr.bf16.mxu0 0
    %5100 = vmatpush2.bf16.msra.mxu0 0
    %5101 = vmatprep.subr.bf16.mxu0 0
    %5102 = vmatpush2.bf16.msra.mxu0 0
    %5103 = vmatprep.subr.bf16.mxu0 0
    %5104 = vmatpush2.bf16.msra.mxu0 0
    %5105 = vmatprep.subr.bf16.mxu0 0
    %5106 = vmatpush2.bf16.msra.mxu0 0
    %5107 = vmatprep.subr.bf16.mxu0 0
    %5108 = vmatpush2.bf16.msra.mxu0 0
    %5109 = vmatprep.mubr.bf16.mxu0 0
    %5110 = vmatmul.mubr.bf16.gmra.mxu0 %v4462
    %v5111 = vpop.f32.mrf.mxu0
    %v5112 = vadd.f32 %v4991, %v5111
    %v5113 = vpop.f32.mrf.mxu0
    %v5114 = vadd.f32 %v4993, %v5113
    %v5115 = vpop.f32.mrf.mxu0
    %v5116 = vpop.f32.mrf.mxu0
    %5117 = vdwg.mxu0
    %s5118 = scalar_lea.vmem [#allocation8], 67
    %v5119 = vld [vmem:[%s5118] ss:$8 sm:$0x3]
    %v5121 = vlaneseq
    %v5122 = vshrl.u32 %v5121, 7
    %v5123 = vsub.s32 0, %v5122
    %v5124 = vrot.slane %v5119, %v5123
    %v5125 = vlaneseq
    %v5126 = vshrl.u32 %v5125, 7
    %v5127 = vsub.s32 1, %v5126
    %v5128 = vrot.slane %v5119, %v5127
    %v5131 = vadd.f32 %v5112, %v5124
    %v5132 = vadd.f32 %v5114, %v5128
    %v5133 = vxor.u32 %v5131, 2147483648
    %v5134 = vxor.u32 %v5132, 2147483648
    %v5135 = vmul.f32 %v5133, 1.442695
    %v5136 = vpow.pop %v5135
    %v5137 = vmul.f32 %v5134, 1.442695
    %v5138 = vpow.pop %v5137
    %v5139 = vadd.f32 %v5136, 1.0
    %v5140 = vadd.f32 %v5138, 1.0
    %v5141 = vrcp.pop %v5139
    %v5142 = vmul.f32 1.0, %v5141
    %v5143 = vrcp.pop %v5140
    %v5144 = vmul.f32 1.0, %v5143
    %v5145 = vmul.f32 %v5131, %v5142
    %v5146 = vmul.f32 %v5132, %v5144
    %v5147 = vld [vmem:[#allocation5 + $0x700] sm:$0xff]
    %v5148 = vld [vmem:[#allocation5 + $0x708] sm:$0xff]
    %v5149 = vld [vmem:[#allocation5 + $0x710] sm:$0xff]
    %v5150 = vld [vmem:[#allocation5 + $0x718] sm:$0xff]
    %v5151 = vld [vmem:[#allocation5 + $0x720] sm:$0xff]
    %v5152 = vld [vmem:[#allocation5 + $0x728] sm:$0xff]
    %v5153 = vld [vmem:[#allocation5 + $0x730] sm:$0xff]
    %v5154 = vld [vmem:[#allocation5 + $0x738] sm:$0xff]
    %v5155 = vld [vmem:[#allocation5 + $0x740] sm:$0xff]
    %v5156 = vld [vmem:[#allocation5 + $0x748] sm:$0xff]
    %v5157 = vld [vmem:[#allocation5 + $0x750] sm:$0xff]
    %v5158 = vld [vmem:[#allocation5 + $0x758] sm:$0xff]
    %v5159 = vld [vmem:[#allocation5 + $0x760] sm:$0xff]
    %v5160 = vld [vmem:[#allocation5 + $0x768] sm:$0xff]
    %v5161 = vld [vmem:[#allocation5 + $0x770] sm:$0xff]
    %v5162 = vld [vmem:[#allocation5 + $0x778] sm:$0xff]
    %v5163 = vld [vmem:[#allocation5 + $0x780] sm:$0xff]
    %v5164 = vld [vmem:[#allocation5 + $0x788] sm:$0xff]
    %v5165 = vld [vmem:[#allocation5 + $0x790] sm:$0xff]
    %v5166 = vld [vmem:[#allocation5 + $0x798] sm:$0xff]
    %v5167 = vld [vmem:[#allocation5 + $0x7a0] sm:$0xff]
    %v5168 = vld [vmem:[#allocation5 + $0x7a8] sm:$0xff]
    %v5169 = vld [vmem:[#allocation5 + $0x7b0] sm:$0xff]
    %v5170 = vld [vmem:[#allocation5 + $0x7b8] sm:$0xff]
    %v5171 = vld [vmem:[#allocation5 + $0x7c0] sm:$0xff]
    %v5172 = vld [vmem:[#allocation5 + $0x7c8] sm:$0xff]
    %v5173 = vld [vmem:[#allocation5 + $0x7d0] sm:$0xff]
    %v5174 = vld [vmem:[#allocation5 + $0x7d8] sm:$0xff]
    %v5175 = vld [vmem:[#allocation5 + $0x7e0] sm:$0xff]
    %v5176 = vld [vmem:[#allocation5 + $0x7e8] sm:$0xff]
    %v5177 = vld [vmem:[#allocation5 + $0x7f0] sm:$0xff]
    %v5178 = vld [vmem:[#allocation5 + $0x7f8] sm:$0xff]
    %s5179 = scalar_lea.vmem [#allocation8], 68
    %v5180 = vld [vmem:[%s5179] ss:$8 sm:$0x3]
    %v5182 = vlaneseq
    %v5183 = vshrl.u32 %v5182, 7
    %v5184 = vsub.s32 0, %v5183
    %v5185 = vrot.slane %v5180, %v5184
    %v5186 = vlaneseq
    %v5187 = vshrl.u32 %v5186, 7
    %v5188 = vsub.s32 1, %v5187
    %v5189 = vrot.slane %v5180, %v5188
    %v5224 = vunpack.c.l.b16 %v5147
    %v5225 = vunpack.c.h.b16 %v5147
    %v5226 = vunpack.c.l.b16 %v5148
    %v5227 = vunpack.c.h.b16 %v5148
    %v5228 = vunpack.c.l.b16 %v5149
    %v5229 = vunpack.c.h.b16 %v5149
    %v5230 = vunpack.c.l.b16 %v5150
    %v5231 = vunpack.c.h.b16 %v5150
    %v5232 = vunpack.c.l.b16 %v5151
    %v5233 = vunpack.c.h.b16 %v5151
    %v5234 = vunpack.c.l.b16 %v5152
    %v5235 = vunpack.c.h.b16 %v5152
    %v5236 = vunpack.c.l.b16 %v5153
    %v5237 = vunpack.c.h.b16 %v5153
    %v5238 = vunpack.c.l.b16 %v5154
    %v5239 = vunpack.c.h.b16 %v5154
    %v5240 = vunpack.c.l.b16 %v5155
    %v5241 = vunpack.c.h.b16 %v5155
    %v5242 = vunpack.c.l.b16 %v5156
    %v5243 = vunpack.c.h.b16 %v5156
    %v5244 = vunpack.c.l.b16 %v5157
    %v5245 = vunpack.c.h.b16 %v5157
    %v5246 = vunpack.c.l.b16 %v5158
    %v5247 = vunpack.c.h.b16 %v5158
    %v5248 = vunpack.c.l.b16 %v5159
    %v5249 = vunpack.c.h.b16 %v5159
    %v5250 = vunpack.c.l.b16 %v5160
    %v5251 = vunpack.c.h.b16 %v5160
    %v5252 = vunpack.c.l.b16 %v5161
    %v5253 = vunpack.c.h.b16 %v5161
    %v5254 = vunpack.c.l.b16 %v5162
    %v5255 = vunpack.c.h.b16 %v5162
    %v5256 = vunpack.c.l.b16 %v5163
    %v5257 = vunpack.c.h.b16 %v5163
    %v5258 = vunpack.c.l.b16 %v5164
    %v5259 = vunpack.c.h.b16 %v5164
    %v5260 = vunpack.c.l.b16 %v5165
    %v5261 = vunpack.c.h.b16 %v5165
    %v5262 = vunpack.c.l.b16 %v5166
    %v5263 = vunpack.c.h.b16 %v5166
    %v5264 = vunpack.c.l.b16 %v5167
    %v5265 = vunpack.c.h.b16 %v5167
    %v5266 = vunpack.c.l.b16 %v5168
    %v5267 = vunpack.c.h.b16 %v5168
    %v5268 = vunpack.c.l.b16 %v5169
    %v5269 = vunpack.c.h.b16 %v5169
    %v5270 = vunpack.c.l.b16 %v5170
    %v5271 = vunpack.c.h.b16 %v5170
    %v5272 = vunpack.c.l.b16 %v5171
    %v5273 = vunpack.c.h.b16 %v5171
    %v5274 = vunpack.c.l.b16 %v5172
    %v5275 = vunpack.c.h.b16 %v5172
    %v5276 = vunpack.c.l.b16 %v5173
    %v5277 = vunpack.c.h.b16 %v5173
    %v5278 = vunpack.c.l.b16 %v5174
    %v5279 = vunpack.c.h.b16 %v5174
    %v5280 = vunpack.c.l.b16 %v5175
    %v5281 = vunpack.c.h.b16 %v5175
    %v5282 = vunpack.c.l.b16 %v5176
    %v5283 = vunpack.c.h.b16 %v5176
    %v5284 = vunpack.c.l.b16 %v5177
    %v5285 = vunpack.c.h.b16 %v5177
    %v5286 = vunpack.c.l.b16 %v5178
    %v5287 = vunpack.c.h.b16 %v5178
    %v5288 = vpack.c.b16 %v5226, %v5224
    %v5289 = vpack.c.b16 %v5227, %v5225
    %v5290 = vpack.c.b16 %v5230, %v5228
    %v5291 = vpack.c.b16 %v5231, %v5229
    %v5292 = vpack.c.b16 %v5234, %v5232
    %v5293 = vpack.c.b16 %v5235, %v5233
    %v5294 = vpack.c.b16 %v5238, %v5236
    %v5295 = vpack.c.b16 %v5239, %v5237
    %v5296 = vpack.c.b16 %v5242, %v5240
    %v5297 = vpack.c.b16 %v5243, %v5241
    %v5298 = vpack.c.b16 %v5246, %v5244
    %v5299 = vpack.c.b16 %v5247, %v5245
    %v5300 = vpack.c.b16 %v5250, %v5248
    %v5301 = vpack.c.b16 %v5251, %v5249
    %v5302 = vpack.c.b16 %v5254, %v5252
    %v5303 = vpack.c.b16 %v5255, %v5253
    %v5304 = vpack.c.b16 %v5258, %v5256
    %v5305 = vpack.c.b16 %v5259, %v5257
    %v5306 = vpack.c.b16 %v5262, %v5260
    %v5307 = vpack.c.b16 %v5263, %v5261
    %v5308 = vpack.c.b16 %v5266, %v5264
    %v5309 = vpack.c.b16 %v5267, %v5265
    %v5310 = vpack.c.b16 %v5270, %v5268
    %v5311 = vpack.c.b16 %v5271, %v5269
    %v5312 = vpack.c.b16 %v5274, %v5272
    %v5313 = vpack.c.b16 %v5275, %v5273
    %v5314 = vpack.c.b16 %v5278, %v5276
    %v5315 = vpack.c.b16 %v5279, %v5277
    %v5316 = vpack.c.b16 %v5282, %v5280
    %v5317 = vpack.c.b16 %v5283, %v5281
    %v5318 = vpack.c.b16 %v5286, %v5284
    %v5319 = vpack.c.b16 %v5287, %v5285
    %5352 = vmatprep.subr.bf16.mxu0 %v5303
    %5353 = vmatpush1.bf16.msra.mxu0 %v5302
    %5354 = vmatprep.subr.bf16.mxu0 %v5301
    %5355 = vmatpush1.bf16.msra.mxu0 %v5300
    %5356 = vmatprep.subr.bf16.mxu0 %v5299
    %5357 = vmatpush1.bf16.msra.mxu0 %v5298
    %5358 = vmatprep.subr.bf16.mxu0 %v5297
    %5359 = vmatpush1.bf16.msra.mxu0 %v5296
    %5360 = vmatprep.subr.bf16.mxu0 %v5295
    %5361 = vmatpush1.bf16.msra.mxu0 %v5294
    %5362 = vmatprep.subr.bf16.mxu0 %v5293
    %5363 = vmatpush1.bf16.msra.mxu0 %v5292
    %5364 = vmatprep.subr.bf16.mxu0 %v5291
    %5365 = vmatpush1.bf16.msra.mxu0 %v5290
    %5366 = vmatprep.subr.bf16.mxu0 %v5289
    %5367 = vmatpush1.bf16.msra.mxu0 %v5288
    %5368 = vmatprep.subr.bf16.mxu0 %v5319
    %5369 = vmatpush2.bf16.msra.mxu0 %v5318
    %5370 = vmatprep.subr.bf16.mxu0 %v5317
    %5371 = vmatpush2.bf16.msra.mxu0 %v5316
    %5372 = vmatprep.subr.bf16.mxu0 %v5315
    %5373 = vmatpush2.bf16.msra.mxu0 %v5314
    %5374 = vmatprep.subr.bf16.mxu0 %v5313
    %5375 = vmatpush2.bf16.msra.mxu0 %v5312
    %5376 = vmatprep.subr.bf16.mxu0 %v5311
    %5377 = vmatpush2.bf16.msra.mxu0 %v5310
    %5378 = vmatprep.subr.bf16.mxu0 %v5309
    %5379 = vmatpush2.bf16.msra.mxu0 %v5308
    %5380 = vmatprep.subr.bf16.mxu0 %v5307
    %5381 = vmatpush2.bf16.msra.mxu0 %v5306
    %5382 = vmatprep.subr.bf16.mxu0 %v5305
    %5383 = vmatpush2.bf16.msra.mxu0 %v5304
    %5384 = vmatprep.mubr.bf16.mxu0 %v777
    %5385 = vmatmul.mubr.bf16.gmra.mxu0 %v776
    %v5386 = vpop.f32.mrf.mxu0
    %v5387 = vadd.f32 %v5185, %v5386
    %v5388 = vpop.f32.mrf.mxu0
    %v5389 = vadd.f32 %v5189, %v5388
    %v5390 = vpop.f32.mrf.mxu0
    %v5391 = vpop.f32.mrf.mxu0
    %5392 = vdwg.mxu0
    %v5393 = vadd.f32 %v5145, %v5387
    %v5394 = vadd.f32 %v5146, %v5389
    %v5395 = vld [vmem:[#allocation5 + $0x800] sm:$0xff]
    %v5396 = vld [vmem:[#allocation5 + $0x808] sm:$0xff]
    %v5397 = vld [vmem:[#allocation5 + $0x810] sm:$0xff]
    %v5398 = vld [vmem:[#allocation5 + $0x818] sm:$0xff]
    %v5399 = vld [vmem:[#allocation5 + $0x820] sm:$0xff]
    %v5400 = vld [vmem:[#allocation5 + $0x828] sm:$0xff]
    %v5401 = vld [vmem:[#allocation5 + $0x830] sm:$0xff]
    %v5402 = vld [vmem:[#allocation5 + $0x838] sm:$0xff]
    %v5403 = vld [vmem:[#allocation5 + $0x840] sm:$0xff]
    %v5404 = vld [vmem:[#allocation5 + $0x848] sm:$0xff]
    %v5405 = vld [vmem:[#allocation5 + $0x850] sm:$0xff]
    %v5406 = vld [vmem:[#allocation5 + $0x858] sm:$0xff]
    %v5407 = vld [vmem:[#allocation5 + $0x860] sm:$0xff]
    %v5408 = vld [vmem:[#allocation5 + $0x868] sm:$0xff]
    %v5409 = vld [vmem:[#allocation5 + $0x870] sm:$0xff]
    %v5410 = vld [vmem:[#allocation5 + $0x878] sm:$0xff]
    %v5411 = vld [vmem:[#allocation5 + $0x880] sm:$0xff]
    %v5412 = vld [vmem:[#allocation5 + $0x888] sm:$0xff]
    %v5413 = vld [vmem:[#allocation5 + $0x890] sm:$0xff]
    %v5414 = vld [vmem:[#allocation5 + $0x898] sm:$0xff]
    %v5415 = vld [vmem:[#allocation5 + $0x8a0] sm:$0xff]
    %v5416 = vld [vmem:[#allocation5 + $0x8a8] sm:$0xff]
    %v5417 = vld [vmem:[#allocation5 + $0x8b0] sm:$0xff]
    %v5418 = vld [vmem:[#allocation5 + $0x8b8] sm:$0xff]
    %v5419 = vld [vmem:[#allocation5 + $0x8c0] sm:$0xff]
    %v5420 = vld [vmem:[#allocation5 + $0x8c8] sm:$0xff]
    %v5421 = vld [vmem:[#allocation5 + $0x8d0] sm:$0xff]
    %v5422 = vld [vmem:[#allocation5 + $0x8d8] sm:$0xff]
    %v5423 = vld [vmem:[#allocation5 + $0x8e0] sm:$0xff]
    %v5424 = vld [vmem:[#allocation5 + $0x8e8] sm:$0xff]
    %v5425 = vld [vmem:[#allocation5 + $0x8f0] sm:$0xff]
    %v5426 = vld [vmem:[#allocation5 + $0x8f8] sm:$0xff]
    %v5427 = vpack.c.bf16 %v5393, %v5393
    %v5428 = vpack.c.bf16 %v5394, %v5394
    %s5429 = scalar_lea.vmem [#allocation8], 69
    %v5430 = vld [vmem:[%s5429] ss:$8 sm:$0x3]
    %v5432 = vlaneseq
    %v5433 = vshrl.u32 %v5432, 7
    %v5434 = vsub.s32 0, %v5433
    %v5435 = vrot.slane %v5430, %v5434
    %v5436 = vlaneseq
    %v5437 = vshrl.u32 %v5436, 7
    %v5438 = vsub.s32 1, %v5437
    %v5439 = vrot.slane %v5430, %v5438
    %v5474 = vunpack.c.l.b16 %v5395
    %v5475 = vunpack.c.h.b16 %v5395
    %v5476 = vunpack.c.l.b16 %v5396
    %v5477 = vunpack.c.h.b16 %v5396
    %v5478 = vunpack.c.l.b16 %v5397
    %v5479 = vunpack.c.h.b16 %v5397
    %v5480 = vunpack.c.l.b16 %v5398
    %v5481 = vunpack.c.h.b16 %v5398
    %v5482 = vunpack.c.l.b16 %v5399
    %v5483 = vunpack.c.h.b16 %v5399
    %v5484 = vunpack.c.l.b16 %v5400
    %v5485 = vunpack.c.h.b16 %v5400
    %v5486 = vunpack.c.l.b16 %v5401
    %v5487 = vunpack.c.h.b16 %v5401
    %v5488 = vunpack.c.l.b16 %v5402
    %v5489 = vunpack.c.h.b16 %v5402
    %v5490 = vunpack.c.l.b16 %v5403
    %v5491 = vunpack.c.h.b16 %v5403
    %v5492 = vunpack.c.l.b16 %v5404
    %v5493 = vunpack.c.h.b16 %v5404
    %v5494 = vunpack.c.l.b16 %v5405
    %v5495 = vunpack.c.h.b16 %v5405
    %v5496 = vunpack.c.l.b16 %v5406
    %v5497 = vunpack.c.h.b16 %v5406
    %v5498 = vunpack.c.l.b16 %v5407
    %v5499 = vunpack.c.h.b16 %v5407
    %v5500 = vunpack.c.l.b16 %v5408
    %v5501 = vunpack.c.h.b16 %v5408
    %v5502 = vunpack.c.l.b16 %v5409
    %v5503 = vunpack.c.h.b16 %v5409
    %v5504 = vunpack.c.l.b16 %v5410
    %v5505 = vunpack.c.h.b16 %v5410
    %v5506 = vunpack.c.l.b16 %v5411
    %v5507 = vunpack.c.h.b16 %v5411
    %v5508 = vunpack.c.l.b16 %v5412
    %v5509 = vunpack.c.h.b16 %v5412
    %v5510 = vunpack.c.l.b16 %v5413
    %v5511 = vunpack.c.h.b16 %v5413
    %v5512 = vunpack.c.l.b16 %v5414
    %v5513 = vunpack.c.h.b16 %v5414
    %v5514 = vunpack.c.l.b16 %v5415
    %v5515 = vunpack.c.h.b16 %v5415
    %v5516 = vunpack.c.l.b16 %v5416
    %v5517 = vunpack.c.h.b16 %v5416
    %v5518 = vunpack.c.l.b16 %v5417
    %v5519 = vunpack.c.h.b16 %v5417
    %v5520 = vunpack.c.l.b16 %v5418
    %v5521 = vunpack.c.h.b16 %v5418
    %v5522 = vunpack.c.l.b16 %v5419
    %v5523 = vunpack.c.h.b16 %v5419
    %v5524 = vunpack.c.l.b16 %v5420
    %v5525 = vunpack.c.h.b16 %v5420
    %v5526 = vunpack.c.l.b16 %v5421
    %v5527 = vunpack.c.h.b16 %v5421
    %v5528 = vunpack.c.l.b16 %v5422
    %v5529 = vunpack.c.h.b16 %v5422
    %v5530 = vunpack.c.l.b16 %v5423
    %v5531 = vunpack.c.h.b16 %v5423
    %v5532 = vunpack.c.l.b16 %v5424
    %v5533 = vunpack.c.h.b16 %v5424
    %v5534 = vunpack.c.l.b16 %v5425
    %v5535 = vunpack.c.h.b16 %v5425
    %v5536 = vunpack.c.l.b16 %v5426
    %v5537 = vunpack.c.h.b16 %v5426
    %v5538 = vpack.c.b16 %v5476, %v5474
    %v5539 = vpack.c.b16 %v5477, %v5475
    %v5540 = vpack.c.b16 %v5480, %v5478
    %v5541 = vpack.c.b16 %v5481, %v5479
    %v5542 = vpack.c.b16 %v5484, %v5482
    %v5543 = vpack.c.b16 %v5485, %v5483
    %v5544 = vpack.c.b16 %v5488, %v5486
    %v5545 = vpack.c.b16 %v5489, %v5487
    %v5546 = vpack.c.b16 %v5492, %v5490
    %v5547 = vpack.c.b16 %v5493, %v5491
    %v5548 = vpack.c.b16 %v5496, %v5494
    %v5549 = vpack.c.b16 %v5497, %v5495
    %v5550 = vpack.c.b16 %v5500, %v5498
    %v5551 = vpack.c.b16 %v5501, %v5499
    %v5552 = vpack.c.b16 %v5504, %v5502
    %v5553 = vpack.c.b16 %v5505, %v5503
    %v5554 = vpack.c.b16 %v5508, %v5506
    %v5555 = vpack.c.b16 %v5509, %v5507
    %v5556 = vpack.c.b16 %v5512, %v5510
    %v5557 = vpack.c.b16 %v5513, %v5511
    %v5558 = vpack.c.b16 %v5516, %v5514
    %v5559 = vpack.c.b16 %v5517, %v5515
    %v5560 = vpack.c.b16 %v5520, %v5518
    %v5561 = vpack.c.b16 %v5521, %v5519
    %v5562 = vpack.c.b16 %v5524, %v5522
    %v5563 = vpack.c.b16 %v5525, %v5523
    %v5564 = vpack.c.b16 %v5528, %v5526
    %v5565 = vpack.c.b16 %v5529, %v5527
    %v5566 = vpack.c.b16 %v5532, %v5530
    %v5567 = vpack.c.b16 %v5533, %v5531
    %v5568 = vpack.c.b16 %v5536, %v5534
    %v5569 = vpack.c.b16 %v5537, %v5535
    %5602 = vmatprep.subr.bf16.mxu0 %v5553
    %5603 = vmatpush1.bf16.msra.mxu0 %v5552
    %5604 = vmatprep.subr.bf16.mxu0 %v5551
    %5605 = vmatpush1.bf16.msra.mxu0 %v5550
    %5606 = vmatprep.subr.bf16.mxu0 %v5549
    %5607 = vmatpush1.bf16.msra.mxu0 %v5548
    %5608 = vmatprep.subr.bf16.mxu0 %v5547
    %5609 = vmatpush1.bf16.msra.mxu0 %v5546
    %5610 = vmatprep.subr.bf16.mxu0 %v5545
    %5611 = vmatpush1.bf16.msra.mxu0 %v5544
    %5612 = vmatprep.subr.bf16.mxu0 %v5543
    %5613 = vmatpush1.bf16.msra.mxu0 %v5542
    %5614 = vmatprep.subr.bf16.mxu0 %v5541
    %5615 = vmatpush1.bf16.msra.mxu0 %v5540
    %5616 = vmatprep.subr.bf16.mxu0 %v5539
    %5617 = vmatpush1.bf16.msra.mxu0 %v5538
    %5618 = vmatprep.subr.bf16.mxu0 %v5569
    %5619 = vmatpush2.bf16.msra.mxu0 %v5568
    %5620 = vmatprep.subr.bf16.mxu0 %v5567
    %5621 = vmatpush2.bf16.msra.mxu0 %v5566
    %5622 = vmatprep.subr.bf16.mxu0 %v5565
    %5623 = vmatpush2.bf16.msra.mxu0 %v5564
    %5624 = vmatprep.subr.bf16.mxu0 %v5563
    %5625 = vmatpush2.bf16.msra.mxu0 %v5562
    %5626 = vmatprep.subr.bf16.mxu0 %v5561
    %5627 = vmatpush2.bf16.msra.mxu0 %v5560
    %5628 = vmatprep.subr.bf16.mxu0 %v5559
    %5629 = vmatpush2.bf16.msra.mxu0 %v5558
    %5630 = vmatprep.subr.bf16.mxu0 %v5557
    %5631 = vmatpush2.bf16.msra.mxu0 %v5556
    %5632 = vmatprep.subr.bf16.mxu0 %v5555
    %5633 = vmatpush2.bf16.msra.mxu0 %v5554
    %5634 = vmatprep.mubr.bf16.mxu0 %v5428
    %5635 = vmatmul.mubr.bf16.gmra.mxu0 %v5427
    %v5636 = vpop.f32.mrf.mxu0
    %v5637 = vadd.f32 %v5435, %v5636
    %v5638 = vpop.f32.mrf.mxu0
    %v5639 = vadd.f32 %v5439, %v5638
    %v5640 = vpop.f32.mrf.mxu0
    %v5641 = vpop.f32.mrf.mxu0
    %5642 = vdwg.mxu0
    %v5643 = vxor.u32 %v5637, 2147483648
    %v5644 = vxor.u32 %v5639, 2147483648
    %v5645 = vmul.f32 %v5643, 1.442695
    %v5646 = vpow.pop %v5645
    %v5647 = vmul.f32 %v5644, 1.442695
    %v5648 = vpow.pop %v5647
    %v5649 = vadd.f32 %v5646, 1.0
    %v5650 = vadd.f32 %v5648, 1.0
    %v5651 = vrcp.pop %v5649
    %v5652 = vmul.f32 1.0, %v5651
    %v5653 = vrcp.pop %v5650
    %v5654 = vmul.f32 1.0, %v5653
    %v5655 = vmul.f32 %v5637, %v5652
    %v5656 = vmul.f32 %v5639, %v5654
    %v5657 = vadd.f32 %v5655, %v4445
    %v5658 = vadd.f32 %v5656, %v4842
    %v5659 = vld [vmem:[#allocation7 + $0x640] sm:$0xff]
    %v5660 = vld [vmem:[#allocation7 + $0x648] sm:$0xff]
    %v5661 = vld [vmem:[#allocation7 + $0x650] sm:$0xff]
    %v5662 = vld [vmem:[#allocation7 + $0x658] sm:$0xff]
    %v5663 = vld [vmem:[#allocation7 + $0x660] sm:$0xff]
    %v5664 = vld [vmem:[#allocation7 + $0x668] sm:$0xff]
    %v5665 = vld [vmem:[#allocation7 + $0x670] sm:$0xff]
    %v5666 = vld [vmem:[#allocation7 + $0x678] sm:$0xff]
    %v5667 = vld [vmem:[#allocation7 + $0x680] sm:$0xff]
    %v5668 = vld [vmem:[#allocation7 + $0x688] sm:$0xff]
    %v5669 = vld [vmem:[#allocation7 + $0x690] sm:$0xff]
    %v5670 = vld [vmem:[#allocation7 + $0x698] sm:$0xff]
    %v5671 = vld [vmem:[#allocation7 + $0x6a0] sm:$0xff]
    %v5672 = vld [vmem:[#allocation7 + $0x6a8] sm:$0xff]
    %v5673 = vld [vmem:[#allocation7 + $0x6b0] sm:$0xff]
    %v5674 = vld [vmem:[#allocation7 + $0x6b8] sm:$0xff]
    %v5675 = vld [vmem:[#allocation7 + $0x6c0] sm:$0xff]
    %v5676 = vld [vmem:[#allocation7 + $0x6c8] sm:$0xff]
    %v5677 = vld [vmem:[#allocation7 + $0x6d0] sm:$0xff]
    %v5678 = vld [vmem:[#allocation7 + $0x6d8] sm:$0xff]
    %v5679 = vld [vmem:[#allocation7 + $0x6e0] sm:$0xff]
    %v5680 = vld [vmem:[#allocation7 + $0x6e8] sm:$0xff]
    %v5681 = vld [vmem:[#allocation7 + $0x6f0] sm:$0xff]
    %v5682 = vld [vmem:[#allocation7 + $0x6f8] sm:$0xff]
    %v5683 = vld [vmem:[#allocation7 + $0x700] sm:$0xff]
    %v5684 = vld [vmem:[#allocation7 + $0x708] sm:$0xff]
    %v5685 = vld [vmem:[#allocation7 + $0x710] sm:$0xff]
    %v5686 = vld [vmem:[#allocation7 + $0x718] sm:$0xff]
    %v5687 = vld [vmem:[#allocation7 + $0x720] sm:$0xff]
    %v5688 = vld [vmem:[#allocation7 + $0x728] sm:$0xff]
    %v5689 = vld [vmem:[#allocation7 + $0x730] sm:$0xff]
    %v5690 = vld [vmem:[#allocation7 + $0x738] sm:$0xff]
    %v5691 = vld [vmem:[#allocation7 + $0x740] sm:$0xff]
    %v5692 = vld [vmem:[#allocation7 + $0x748] sm:$0xff]
    %v5693 = vld [vmem:[#allocation7 + $0x750] sm:$0xff]
    %v5694 = vld [vmem:[#allocation7 + $0x758] sm:$0xff]
    %v5695 = vld [vmem:[#allocation7 + $0x760] sm:$0xff]
    %v5696 = vld [vmem:[#allocation7 + $0x768] sm:$0xff]
    %v5697 = vld [vmem:[#allocation7 + $0x770] sm:$0xff]
    %v5698 = vld [vmem:[#allocation7 + $0x778] sm:$0xff]
    %v5699 = vld [vmem:[#allocation7 + $0x780] sm:$0xff]
    %v5700 = vld [vmem:[#allocation7 + $0x788] sm:$0xff]
    %v5701 = vld [vmem:[#allocation7 + $0x790] sm:$0xff]
    %v5702 = vld [vmem:[#allocation7 + $0x798] sm:$0xff]
    %v5703 = vld [vmem:[#allocation7 + $0x7a0] sm:$0xff]
    %v5704 = vld [vmem:[#allocation7 + $0x7a8] sm:$0xff]
    %v5705 = vld [vmem:[#allocation7 + $0x7b0] sm:$0xff]
    %v5706 = vld [vmem:[#allocation7 + $0x7b8] sm:$0xff]
    %v5707 = vld [vmem:[#allocation7 + $0x7c0] sm:$0xff]
    %v5708 = vld [vmem:[#allocation7 + $0x7c8] sm:$0xff]
    %v5709 = vld [vmem:[#allocation7 + $0x7d0] sm:$0xff]
    %v5710 = vld [vmem:[#allocation7 + $0x7d8] sm:$0xff]
    %v5711 = vld [vmem:[#allocation7 + $0x7e0] sm:$0xff]
    %v5712 = vld [vmem:[#allocation7 + $0x7e8] sm:$0xff]
    %v5713 = vld [vmem:[#allocation7 + $0x7f0] sm:$0xff]
    %v5714 = vld [vmem:[#allocation7 + $0x7f8] sm:$0xff]
    %v5715 = vld [vmem:[#allocation7 + $0x800] sm:$0xff]
    %v5716 = vld [vmem:[#allocation7 + $0x808] sm:$0xff]
    %v5717 = vld [vmem:[#allocation7 + $0x810] sm:$0xff]
    %v5718 = vld [vmem:[#allocation7 + $0x818] sm:$0xff]
    %v5719 = vld [vmem:[#allocation7 + $0x820] sm:$0xff]
    %v5720 = vld [vmem:[#allocation7 + $0x828] sm:$0xff]
    %v5721 = vld [vmem:[#allocation7 + $0x830] sm:$0xff]
    %v5722 = vld [vmem:[#allocation7 + $0x838] sm:$0xff]
    %v5723 = vld [vmem:[#allocation7 + $0x840] sm:$0xff]
    %v5724 = vld [vmem:[#allocation7 + $0x848] sm:$0xff]
    %v5725 = vld [vmem:[#allocation7 + $0x850] sm:$0xff]
    %v5726 = vld [vmem:[#allocation7 + $0x858] sm:$0xff]
    %v5727 = vld [vmem:[#allocation7 + $0x860] sm:$0xff]
    %v5728 = vld [vmem:[#allocation7 + $0x868] sm:$0xff]
    %v5729 = vld [vmem:[#allocation7 + $0x870] sm:$0xff]
    %v5730 = vld [vmem:[#allocation7 + $0x878] sm:$0xff]
    %v5731 = vld [vmem:[#allocation7 + $0x880] sm:$0xff]
    %v5732 = vld [vmem:[#allocation7 + $0x888] sm:$0xff]
    %v5733 = vld [vmem:[#allocation7 + $0x890] sm:$0xff]
    %v5734 = vld [vmem:[#allocation7 + $0x898] sm:$0xff]
    %v5735 = vld [vmem:[#allocation7 + $0x8a0] sm:$0xff]
    %v5736 = vld [vmem:[#allocation7 + $0x8a8] sm:$0xff]
    %v5737 = vld [vmem:[#allocation7 + $0x8b0] sm:$0xff]
    %v5738 = vld [vmem:[#allocation7 + $0x8b8] sm:$0xff]
    %v5739 = vld [vmem:[#allocation7 + $0x8c0] sm:$0xff]
    %v5740 = vld [vmem:[#allocation7 + $0x8c8] sm:$0xff]
    %v5741 = vld [vmem:[#allocation7 + $0x8d0] sm:$0xff]
    %v5742 = vld [vmem:[#allocation7 + $0x8d8] sm:$0xff]
    %v5743 = vld [vmem:[#allocation7 + $0x8e0] sm:$0xff]
    %v5744 = vld [vmem:[#allocation7 + $0x8e8] sm:$0xff]
    %v5745 = vld [vmem:[#allocation7 + $0x8f0] sm:$0xff]
    %v5746 = vld [vmem:[#allocation7 + $0x8f8] sm:$0xff]
    %v5747 = vld [vmem:[#allocation7 + $0x900] sm:$0xff]
    %v5748 = vld [vmem:[#allocation7 + $0x908] sm:$0xff]
    %v5749 = vld [vmem:[#allocation7 + $0x910] sm:$0xff]
    %v5750 = vld [vmem:[#allocation7 + $0x918] sm:$0xff]
    %v5751 = vld [vmem:[#allocation7 + $0x920] sm:$0xff]
    %v5752 = vld [vmem:[#allocation7 + $0x928] sm:$0xff]
    %v5753 = vld [vmem:[#allocation7 + $0x930] sm:$0xff]
    %v5754 = vld [vmem:[#allocation7 + $0x938] sm:$0xff]
    %v5755 = vpack.c.bf16 %v5657, %v5657
    %v5788 = vunpack.c.l.b16 %v5723
    %v5789 = vunpack.c.h.b16 %v5723
    %v5790 = vunpack.c.l.b16 %v5724
    %v5791 = vunpack.c.h.b16 %v5724
    %v5792 = vunpack.c.l.b16 %v5725
    %v5793 = vunpack.c.h.b16 %v5725
    %v5794 = vunpack.c.l.b16 %v5726
    %v5795 = vunpack.c.h.b16 %v5726
    %v5796 = vunpack.c.l.b16 %v5727
    %v5797 = vunpack.c.h.b16 %v5727
    %v5798 = vunpack.c.l.b16 %v5728
    %v5799 = vunpack.c.h.b16 %v5728
    %v5800 = vunpack.c.l.b16 %v5729
    %v5801 = vunpack.c.h.b16 %v5729
    %v5802 = vunpack.c.l.b16 %v5730
    %v5803 = vunpack.c.h.b16 %v5730
    %v5804 = vunpack.c.l.b16 %v5731
    %v5805 = vunpack.c.h.b16 %v5731
    %v5806 = vunpack.c.l.b16 %v5732
    %v5807 = vunpack.c.h.b16 %v5732
    %v5808 = vunpack.c.l.b16 %v5733
    %v5809 = vunpack.c.h.b16 %v5733
    %v5810 = vunpack.c.l.b16 %v5734
    %v5811 = vunpack.c.h.b16 %v5734
    %v5812 = vunpack.c.l.b16 %v5735
    %v5813 = vunpack.c.h.b16 %v5735
    %v5814 = vunpack.c.l.b16 %v5736
    %v5815 = vunpack.c.h.b16 %v5736
    %v5816 = vunpack.c.l.b16 %v5737
    %v5817 = vunpack.c.h.b16 %v5737
    %v5818 = vunpack.c.l.b16 %v5738
    %v5819 = vunpack.c.h.b16 %v5738
    %v5820 = vunpack.c.l.b16 %v5739
    %v5821 = vunpack.c.h.b16 %v5739
    %v5822 = vunpack.c.l.b16 %v5740
    %v5823 = vunpack.c.h.b16 %v5740
    %v5824 = vunpack.c.l.b16 %v5741
    %v5825 = vunpack.c.h.b16 %v5741
    %v5826 = vunpack.c.l.b16 %v5742
    %v5827 = vunpack.c.h.b16 %v5742
    %v5828 = vunpack.c.l.b16 %v5743
    %v5829 = vunpack.c.h.b16 %v5743
    %v5830 = vunpack.c.l.b16 %v5744
    %v5831 = vunpack.c.h.b16 %v5744
    %v5832 = vunpack.c.l.b16 %v5745
    %v5833 = vunpack.c.h.b16 %v5745
    %v5834 = vunpack.c.l.b16 %v5746
    %v5835 = vunpack.c.h.b16 %v5746
    %v5836 = vunpack.c.l.b16 %v5747
    %v5837 = vunpack.c.h.b16 %v5747
    %v5838 = vunpack.c.l.b16 %v5748
    %v5839 = vunpack.c.h.b16 %v5748
    %v5840 = vunpack.c.l.b16 %v5749
    %v5841 = vunpack.c.h.b16 %v5749
    %v5842 = vunpack.c.l.b16 %v5750
    %v5843 = vunpack.c.h.b16 %v5750
    %v5844 = vunpack.c.l.b16 %v5751
    %v5845 = vunpack.c.h.b16 %v5751
    %v5846 = vunpack.c.l.b16 %v5752
    %v5847 = vunpack.c.h.b16 %v5752
    %v5848 = vunpack.c.l.b16 %v5753
    %v5849 = vunpack.c.h.b16 %v5753
    %v5850 = vunpack.c.l.b16 %v5754
    %v5851 = vunpack.c.h.b16 %v5754
    %v5852 = vpack.c.b16 %v5792, %v5788
    %v5853 = vpack.c.b16 %v5793, %v5789
    %v5854 = vpack.c.b16 %v5794, %v5790
    %v5855 = vpack.c.b16 %v5795, %v5791
    %v5856 = vpack.c.b16 %v5800, %v5796
    %v5857 = vpack.c.b16 %v5801, %v5797
    %v5858 = vpack.c.b16 %v5802, %v5798
    %v5859 = vpack.c.b16 %v5803, %v5799
    %v5860 = vpack.c.b16 %v5808, %v5804
    %v5861 = vpack.c.b16 %v5809, %v5805
    %v5862 = vpack.c.b16 %v5810, %v5806
    %v5863 = vpack.c.b16 %v5811, %v5807
    %v5864 = vpack.c.b16 %v5816, %v5812
    %v5865 = vpack.c.b16 %v5817, %v5813
    %v5866 = vpack.c.b16 %v5818, %v5814
    %v5867 = vpack.c.b16 %v5819, %v5815
    %v5868 = vpack.c.b16 %v5824, %v5820
    %v5869 = vpack.c.b16 %v5825, %v5821
    %v5870 = vpack.c.b16 %v5826, %v5822
    %v5871 = vpack.c.b16 %v5827, %v5823
    %v5872 = vpack.c.b16 %v5832, %v5828
    %v5873 = vpack.c.b16 %v5833, %v5829
    %v5874 = vpack.c.b16 %v5834, %v5830
    %v5875 = vpack.c.b16 %v5835, %v5831
    %v5876 = vpack.c.b16 %v5840, %v5836
    %v5877 = vpack.c.b16 %v5841, %v5837
    %v5878 = vpack.c.b16 %v5842, %v5838
    %v5879 = vpack.c.b16 %v5843, %v5839
    %v5880 = vpack.c.b16 %v5848, %v5844
    %v5881 = vpack.c.b16 %v5849, %v5845
    %v5882 = vpack.c.b16 %v5850, %v5846
    %v5883 = vpack.c.b16 %v5851, %v5847
    %5916 = vmatprep.subr.bf16.mxu0 %v5881
    %5917 = vmatpush1.bf16.msra.mxu0 %v5880
    %5918 = vmatprep.subr.bf16.mxu0 %v5877
    %5919 = vmatpush1.bf16.msra.mxu0 %v5876
    %5920 = vmatprep.subr.bf16.mxu0 %v5873
    %5921 = vmatpush1.bf16.msra.mxu0 %v5872
    %5922 = vmatprep.subr.bf16.mxu0 %v5869
    %5923 = vmatpush1.bf16.msra.mxu0 %v5868
    %5924 = vmatprep.subr.bf16.mxu0 %v5865
    %5925 = vmatpush1.bf16.msra.mxu0 %v5864
    %5926 = vmatprep.subr.bf16.mxu0 %v5861
    %5927 = vmatpush1.bf16.msra.mxu0 %v5860
    %5928 = vmatprep.subr.bf16.mxu0 %v5857
    %5929 = vmatpush1.bf16.msra.mxu0 %v5856
    %5930 = vmatprep.subr.bf16.mxu0 %v5853
    %5931 = vmatpush1.bf16.msra.mxu0 %v5852
    %5932 = vmatprep.subr.bf16.mxu0 0
    %5933 = vmatpush2.bf16.msra.mxu0 0
    %5934 = vmatprep.subr.bf16.mxu0 0
    %5935 = vmatpush2.bf16.msra.mxu0 0
    %5936 = vmatprep.subr.bf16.mxu0 0
    %5937 = vmatpush2.bf16.msra.mxu0 0
    %5938 = vmatprep.subr.bf16.mxu0 0
    %5939 = vmatpush2.bf16.msra.mxu0 0
    %5940 = vmatprep.subr.bf16.mxu0 0
    %5941 = vmatpush2.bf16.msra.mxu0 0
    %5942 = vmatprep.subr.bf16.mxu0 0
    %5943 = vmatpush2.bf16.msra.mxu0 0
    %5944 = vmatprep.subr.bf16.mxu0 0
    %5945 = vmatpush2.bf16.msra.mxu0 0
    %5946 = vmatprep.subr.bf16.mxu0 0
    %5947 = vmatpush2.bf16.msra.mxu0 0
    %5948 = vmatprep.mubr.bf16.mxu0 0
    %5949 = vmatmul.mubr.bf16.gmra.mxu0 %v5755
    %v5950 = vpop.f32.mrf.mxu0
    %v5951 = vadd.f32 0.0, %v5950
    %v5952 = vpop.f32.mrf.mxu0
    %v5953 = vadd.f32 0.0, %v5952
    %v5954 = vpop.f32.mrf.mxu0
    %v5955 = vpop.f32.mrf.mxu0
    %5956 = vdwg.mxu0
    %5957 = vmatprep.subr.bf16.mxu0 %v5883
    %5958 = vmatpush1.bf16.msra.mxu0 %v5882
    %5959 = vmatprep.subr.bf16.mxu0 %v5879
    %5960 = vmatpush1.bf16.msra.mxu0 %v5878
    %5961 = vmatprep.subr.bf16.mxu0 %v5875
    %5962 = vmatpush1.bf16.msra.mxu0 %v5874
    %5963 = vmatprep.subr.bf16.mxu0 %v5871
    %5964 = vmatpush1.bf16.msra.mxu0 %v5870
    %5965 = vmatprep.subr.bf16.mxu0 %v5867
    %5966 = vmatpush1.bf16.msra.mxu0 %v5866
    %5967 = vmatprep.subr.bf16.mxu0 %v5863
    %5968 = vmatpush1.bf16.msra.mxu0 %v5862
    %5969 = vmatprep.subr.bf16.mxu0 %v5859
    %5970 = vmatpush1.bf16.msra.mxu0 %v5858
    %5971 = vmatprep.subr.bf16.mxu0 %v5855
    %5972 = vmatpush1.bf16.msra.mxu0 %v5854
    %5973 = vmatprep.subr.bf16.mxu0 0
    %5974 = vmatpush2.bf16.msra.mxu0 0
    %5975 = vmatprep.subr.bf16.mxu0 0
    %5976 = vmatpush2.bf16.msra.mxu0 0
    %5977 = vmatprep.subr.bf16.mxu0 0
    %5978 = vmatpush2.bf16.msra.mxu0 0
    %5979 = vmatprep.subr.bf16.mxu0 0
    %5980 = vmatpush2.bf16.msra.mxu0 0
    %5981 = vmatprep.subr.bf16.mxu0 0
    %5982 = vmatpush2.bf16.msra.mxu0 0
    %5983 = vmatprep.subr.bf16.mxu0 0
    %5984 = vmatpush2.bf16.msra.mxu0 0
    %5985 = vmatprep.subr.bf16.mxu0 0
    %5986 = vmatpush2.bf16.msra.mxu0 0
    %5987 = vmatprep.subr.bf16.mxu0 0
    %5988 = vmatpush2.bf16.msra.mxu0 0
    %5989 = vmatprep.mubr.bf16.mxu0 0
    %5990 = vmatmul.mubr.bf16.gmra.mxu0 %v5755
    %v5991 = vpop.f32.mrf.mxu0
    %v5992 = vadd.f32 0.0, %v5991
    %v5993 = vpop.f32.mrf.mxu0
    %v5994 = vadd.f32 0.0, %v5993
    %v5995 = vpop.f32.mrf.mxu0
    %v5996 = vpop.f32.mrf.mxu0
    %5997 = vdwg.mxu0
    %v6062 = vunpack.c.l.b16 %v5659
    %v6063 = vunpack.c.h.b16 %v5659
    %v6064 = vunpack.c.l.b16 %v5660
    %v6065 = vunpack.c.h.b16 %v5660
    %v6066 = vunpack.c.l.b16 %v5661
    %v6067 = vunpack.c.h.b16 %v5661
    %v6068 = vunpack.c.l.b16 %v5662
    %v6069 = vunpack.c.h.b16 %v5662
    %v6070 = vunpack.c.l.b16 %v5663
    %v6071 = vunpack.c.h.b16 %v5663
    %v6072 = vunpack.c.l.b16 %v5664
    %v6073 = vunpack.c.h.b16 %v5664
    %v6074 = vunpack.c.l.b16 %v5665
    %v6075 = vunpack.c.h.b16 %v5665
    %v6076 = vunpack.c.l.b16 %v5666
    %v6077 = vunpack.c.h.b16 %v5666
    %v6078 = vunpack.c.l.b16 %v5667
    %v6079 = vunpack.c.h.b16 %v5667
    %v6080 = vunpack.c.l.b16 %v5668
    %v6081 = vunpack.c.h.b16 %v5668
    %v6082 = vunpack.c.l.b16 %v5669
    %v6083 = vunpack.c.h.b16 %v5669
    %v6084 = vunpack.c.l.b16 %v5670
    %v6085 = vunpack.c.h.b16 %v5670
    %v6086 = vunpack.c.l.b16 %v5671
    %v6087 = vunpack.c.h.b16 %v5671
    %v6088 = vunpack.c.l.b16 %v5672
    %v6089 = vunpack.c.h.b16 %v5672
    %v6090 = vunpack.c.l.b16 %v5673
    %v6091 = vunpack.c.h.b16 %v5673
    %v6092 = vunpack.c.l.b16 %v5674
    %v6093 = vunpack.c.h.b16 %v5674
    %v6094 = vunpack.c.l.b16 %v5675
    %v6095 = vunpack.c.h.b16 %v5675
    %v6096 = vunpack.c.l.b16 %v5676
    %v6097 = vunpack.c.h.b16 %v5676
    %v6098 = vunpack.c.l.b16 %v5677
    %v6099 = vunpack.c.h.b16 %v5677
    %v6100 = vunpack.c.l.b16 %v5678
    %v6101 = vunpack.c.h.b16 %v5678
    %v6102 = vunpack.c.l.b16 %v5679
    %v6103 = vunpack.c.h.b16 %v5679
    %v6104 = vunpack.c.l.b16 %v5680
    %v6105 = vunpack.c.h.b16 %v5680
    %v6106 = vunpack.c.l.b16 %v5681
    %v6107 = vunpack.c.h.b16 %v5681
    %v6108 = vunpack.c.l.b16 %v5682
    %v6109 = vunpack.c.h.b16 %v5682
    %v6110 = vunpack.c.l.b16 %v5683
    %v6111 = vunpack.c.h.b16 %v5683
    %v6112 = vunpack.c.l.b16 %v5684
    %v6113 = vunpack.c.h.b16 %v5684
    %v6114 = vunpack.c.l.b16 %v5685
    %v6115 = vunpack.c.h.b16 %v5685
    %v6116 = vunpack.c.l.b16 %v5686
    %v6117 = vunpack.c.h.b16 %v5686
    %v6118 = vunpack.c.l.b16 %v5687
    %v6119 = vunpack.c.h.b16 %v5687
    %v6120 = vunpack.c.l.b16 %v5688
    %v6121 = vunpack.c.h.b16 %v5688
    %v6122 = vunpack.c.l.b16 %v5689
    %v6123 = vunpack.c.h.b16 %v5689
    %v6124 = vunpack.c.l.b16 %v5690
    %v6125 = vunpack.c.h.b16 %v5690
    %v6126 = vunpack.c.l.b16 %v5691
    %v6127 = vunpack.c.h.b16 %v5691
    %v6128 = vunpack.c.l.b16 %v5692
    %v6129 = vunpack.c.h.b16 %v5692
    %v6130 = vunpack.c.l.b16 %v5693
    %v6131 = vunpack.c.h.b16 %v5693
    %v6132 = vunpack.c.l.b16 %v5694
    %v6133 = vunpack.c.h.b16 %v5694
    %v6134 = vunpack.c.l.b16 %v5695
    %v6135 = vunpack.c.h.b16 %v5695
    %v6136 = vunpack.c.l.b16 %v5696
    %v6137 = vunpack.c.h.b16 %v5696
    %v6138 = vunpack.c.l.b16 %v5697
    %v6139 = vunpack.c.h.b16 %v5697
    %v6140 = vunpack.c.l.b16 %v5698
    %v6141 = vunpack.c.h.b16 %v5698
    %v6142 = vunpack.c.l.b16 %v5699
    %v6143 = vunpack.c.h.b16 %v5699
    %v6144 = vunpack.c.l.b16 %v5700
    %v6145 = vunpack.c.h.b16 %v5700
    %v6146 = vunpack.c.l.b16 %v5701
    %v6147 = vunpack.c.h.b16 %v5701
    %v6148 = vunpack.c.l.b16 %v5702
    %v6149 = vunpack.c.h.b16 %v5702
    %v6150 = vunpack.c.l.b16 %v5703
    %v6151 = vunpack.c.h.b16 %v5703
    %v6152 = vunpack.c.l.b16 %v5704
    %v6153 = vunpack.c.h.b16 %v5704
    %v6154 = vunpack.c.l.b16 %v5705
    %v6155 = vunpack.c.h.b16 %v5705
    %v6156 = vunpack.c.l.b16 %v5706
    %v6157 = vunpack.c.h.b16 %v5706
    %v6158 = vunpack.c.l.b16 %v5707
    %v6159 = vunpack.c.h.b16 %v5707
    %v6160 = vunpack.c.l.b16 %v5708
    %v6161 = vunpack.c.h.b16 %v5708
    %v6162 = vunpack.c.l.b16 %v5709
    %v6163 = vunpack.c.h.b16 %v5709
    %v6164 = vunpack.c.l.b16 %v5710
    %v6165 = vunpack.c.h.b16 %v5710
    %v6166 = vunpack.c.l.b16 %v5711
    %v6167 = vunpack.c.h.b16 %v5711
    %v6168 = vunpack.c.l.b16 %v5712
    %v6169 = vunpack.c.h.b16 %v5712
    %v6170 = vunpack.c.l.b16 %v5713
    %v6171 = vunpack.c.h.b16 %v5713
    %v6172 = vunpack.c.l.b16 %v5714
    %v6173 = vunpack.c.h.b16 %v5714
    %v6174 = vunpack.c.l.b16 %v5715
    %v6175 = vunpack.c.h.b16 %v5715
    %v6176 = vunpack.c.l.b16 %v5716
    %v6177 = vunpack.c.h.b16 %v5716
    %v6178 = vunpack.c.l.b16 %v5717
    %v6179 = vunpack.c.h.b16 %v5717
    %v6180 = vunpack.c.l.b16 %v5718
    %v6181 = vunpack.c.h.b16 %v5718
    %v6182 = vunpack.c.l.b16 %v5719
    %v6183 = vunpack.c.h.b16 %v5719
    %v6184 = vunpack.c.l.b16 %v5720
    %v6185 = vunpack.c.h.b16 %v5720
    %v6186 = vunpack.c.l.b16 %v5721
    %v6187 = vunpack.c.h.b16 %v5721
    %v6188 = vunpack.c.l.b16 %v5722
    %v6189 = vunpack.c.h.b16 %v5722
    %v6190 = vpack.c.b16 %v6066, %v6062
    %v6191 = vpack.c.b16 %v6067, %v6063
    %v6192 = vpack.c.b16 %v6068, %v6064
    %v6193 = vpack.c.b16 %v6069, %v6065
    %v6194 = vpack.c.b16 %v6074, %v6070
    %v6195 = vpack.c.b16 %v6075, %v6071
    %v6196 = vpack.c.b16 %v6076, %v6072
    %v6197 = vpack.c.b16 %v6077, %v6073
    %v6198 = vpack.c.b16 %v6082, %v6078
    %v6199 = vpack.c.b16 %v6083, %v6079
    %v6200 = vpack.c.b16 %v6084, %v6080
    %v6201 = vpack.c.b16 %v6085, %v6081
    %v6202 = vpack.c.b16 %v6090, %v6086
    %v6203 = vpack.c.b16 %v6091, %v6087
    %v6204 = vpack.c.b16 %v6092, %v6088
    %v6205 = vpack.c.b16 %v6093, %v6089
    %v6206 = vpack.c.b16 %v6098, %v6094
    %v6207 = vpack.c.b16 %v6099, %v6095
    %v6208 = vpack.c.b16 %v6100, %v6096
    %v6209 = vpack.c.b16 %v6101, %v6097
    %v6210 = vpack.c.b16 %v6106, %v6102
    %v6211 = vpack.c.b16 %v6107, %v6103
    %v6212 = vpack.c.b16 %v6108, %v6104
    %v6213 = vpack.c.b16 %v6109, %v6105
    %v6214 = vpack.c.b16 %v6114, %v6110
    %v6215 = vpack.c.b16 %v6115, %v6111
    %v6216 = vpack.c.b16 %v6116, %v6112
    %v6217 = vpack.c.b16 %v6117, %v6113
    %v6218 = vpack.c.b16 %v6122, %v6118
    %v6219 = vpack.c.b16 %v6123, %v6119
    %v6220 = vpack.c.b16 %v6124, %v6120
    %v6221 = vpack.c.b16 %v6125, %v6121
    %v6222 = vpack.c.b16 %v6130, %v6126
    %v6223 = vpack.c.b16 %v6131, %v6127
    %v6224 = vpack.c.b16 %v6132, %v6128
    %v6225 = vpack.c.b16 %v6133, %v6129
    %v6226 = vpack.c.b16 %v6138, %v6134
    %v6227 = vpack.c.b16 %v6139, %v6135
    %v6228 = vpack.c.b16 %v6140, %v6136
    %v6229 = vpack.c.b16 %v6141, %v6137
    %v6230 = vpack.c.b16 %v6146, %v6142
    %v6231 = vpack.c.b16 %v6147, %v6143
    %v6232 = vpack.c.b16 %v6148, %v6144
    %v6233 = vpack.c.b16 %v6149, %v6145
    %v6234 = vpack.c.b16 %v6154, %v6150
    %v6235 = vpack.c.b16 %v6155, %v6151
    %v6236 = vpack.c.b16 %v6156, %v6152
    %v6237 = vpack.c.b16 %v6157, %v6153
    %v6238 = vpack.c.b16 %v6162, %v6158
    %v6239 = vpack.c.b16 %v6163, %v6159
    %v6240 = vpack.c.b16 %v6164, %v6160
    %v6241 = vpack.c.b16 %v6165, %v6161
    %v6242 = vpack.c.b16 %v6170, %v6166
    %v6243 = vpack.c.b16 %v6171, %v6167
    %v6244 = vpack.c.b16 %v6172, %v6168
    %v6245 = vpack.c.b16 %v6173, %v6169
    %v6246 = vpack.c.b16 %v6178, %v6174
    %v6247 = vpack.c.b16 %v6179, %v6175
    %v6248 = vpack.c.b16 %v6180, %v6176
    %v6249 = vpack.c.b16 %v6181, %v6177
    %v6250 = vpack.c.b16 %v6186, %v6182
    %v6251 = vpack.c.b16 %v6187, %v6183
    %v6252 = vpack.c.b16 %v6188, %v6184
    %v6253 = vpack.c.b16 %v6189, %v6185
    %6318 = vmatprep.subr.bf16.mxu0 %v6219
    %6319 = vmatpush1.bf16.msra.mxu0 %v6218
    %6320 = vmatprep.subr.bf16.mxu0 %v6215
    %6321 = vmatpush1.bf16.msra.mxu0 %v6214
    %6322 = vmatprep.subr.bf16.mxu0 %v6211
    %6323 = vmatpush1.bf16.msra.mxu0 %v6210
    %6324 = vmatprep.subr.bf16.mxu0 %v6207
    %6325 = vmatpush1.bf16.msra.mxu0 %v6206
    %6326 = vmatprep.subr.bf16.mxu0 %v6203
    %6327 = vmatpush1.bf16.msra.mxu0 %v6202
    %6328 = vmatprep.subr.bf16.mxu0 %v6199
    %6329 = vmatpush1.bf16.msra.mxu0 %v6198
    %6330 = vmatprep.subr.bf16.mxu0 %v6195
    %6331 = vmatpush1.bf16.msra.mxu0 %v6194
    %6332 = vmatprep.subr.bf16.mxu0 %v6191
    %6333 = vmatpush1.bf16.msra.mxu0 %v6190
    %6334 = vmatprep.subr.bf16.mxu0 %v6251
    %6335 = vmatpush2.bf16.msra.mxu0 %v6250
    %6336 = vmatprep.subr.bf16.mxu0 %v6247
    %6337 = vmatpush2.bf16.msra.mxu0 %v6246
    %6338 = vmatprep.subr.bf16.mxu0 %v6243
    %6339 = vmatpush2.bf16.msra.mxu0 %v6242
    %6340 = vmatprep.subr.bf16.mxu0 %v6239
    %6341 = vmatpush2.bf16.msra.mxu0 %v6238
    %6342 = vmatprep.subr.bf16.mxu0 %v6235
    %6343 = vmatpush2.bf16.msra.mxu0 %v6234
    %6344 = vmatprep.subr.bf16.mxu0 %v6231
    %6345 = vmatpush2.bf16.msra.mxu0 %v6230
    %6346 = vmatprep.subr.bf16.mxu0 %v6227
    %6347 = vmatpush2.bf16.msra.mxu0 %v6226
    %6348 = vmatprep.subr.bf16.mxu0 %v6223
    %6349 = vmatpush2.bf16.msra.mxu0 %v6222
    %6350 = vmatprep.mubr.bf16.mxu0 %v3848
    %6351 = vmatmul.mubr.bf16.gmra.mxu0 %v3847
    %v6352 = vpop.f32.mrf.mxu0
    %v6353 = vadd.f32 %v5951, %v6352
    %v6354 = vpop.f32.mrf.mxu0
    %v6355 = vadd.f32 %v5953, %v6354
    %v6356 = vpop.f32.mrf.mxu0
    %v6357 = vpop.f32.mrf.mxu0
    %6358 = vdwg.mxu0
    %6359 = vmatprep.subr.bf16.mxu0 %v6221
    %6360 = vmatpush1.bf16.msra.mxu0 %v6220
    %6361 = vmatprep.subr.bf16.mxu0 %v6217
    %6362 = vmatpush1.bf16.msra.mxu0 %v6216
    %6363 = vmatprep.subr.bf16.mxu0 %v6213
    %6364 = vmatpush1.bf16.msra.mxu0 %v6212
    %6365 = vmatprep.subr.bf16.mxu0 %v6209
    %6366 = vmatpush1.bf16.msra.mxu0 %v6208
    %6367 = vmatprep.subr.bf16.mxu0 %v6205
    %6368 = vmatpush1.bf16.msra.mxu0 %v6204
    %6369 = vmatprep.subr.bf16.mxu0 %v6201
    %6370 = vmatpush1.bf16.msra.mxu0 %v6200
    %6371 = vmatprep.subr.bf16.mxu0 %v6197
    %6372 = vmatpush1.bf16.msra.mxu0 %v6196
    %6373 = vmatprep.subr.bf16.mxu0 %v6193
    %6374 = vmatpush1.bf16.msra.mxu0 %v6192
    %6375 = vmatprep.subr.bf16.mxu0 %v6253
    %6376 = vmatpush2.bf16.msra.mxu0 %v6252
    %6377 = vmatprep.subr.bf16.mxu0 %v6249
    %6378 = vmatpush2.bf16.msra.mxu0 %v6248
    %6379 = vmatprep.subr.bf16.mxu0 %v6245
    %6380 = vmatpush2.bf16.msra.mxu0 %v6244
    %6381 = vmatprep.subr.bf16.mxu0 %v6241
    %6382 = vmatpush2.bf16.msra.mxu0 %v6240
    %6383 = vmatprep.subr.bf16.mxu0 %v6237
    %6384 = vmatpush2.bf16.msra.mxu0 %v6236
    %6385 = vmatprep.subr.bf16.mxu0 %v6233
    %6386 = vmatpush2.bf16.msra.mxu0 %v6232
    %6387 = vmatprep.subr.bf16.mxu0 %v6229
    %6388 = vmatpush2.bf16.msra.mxu0 %v6228
    %6389 = vmatprep.subr.bf16.mxu0 %v6225
    %6390 = vmatpush2.bf16.msra.mxu0 %v6224
    %6391 = vmatprep.mubr.bf16.mxu0 %v3848
    %6392 = vmatmul.mubr.bf16.gmra.mxu0 %v3847
    %v6393 = vpop.f32.mrf.mxu0
    %v6394 = vadd.f32 %v5992, %v6393
    %v6395 = vpop.f32.mrf.mxu0
    %v6396 = vadd.f32 %v5994, %v6395
    %v6397 = vpop.f32.mrf.mxu0
    %v6398 = vpop.f32.mrf.mxu0
    %6399 = vdwg.mxu0
    %v6400 = vld [vmem:[#allocation7 + $0x940] sm:$0xff]
    %v6401 = vld [vmem:[#allocation7 + $0x948] sm:$0xff]
    %v6402 = vld [vmem:[#allocation7 + $0x950] sm:$0xff]
    %v6403 = vld [vmem:[#allocation7 + $0x958] sm:$0xff]
    %v6404 = vld [vmem:[#allocation7 + $0x960] sm:$0xff]
    %v6405 = vld [vmem:[#allocation7 + $0x968] sm:$0xff]
    %v6406 = vld [vmem:[#allocation7 + $0x970] sm:$0xff]
    %v6407 = vld [vmem:[#allocation7 + $0x978] sm:$0xff]
    %v6408 = vld [vmem:[#allocation7 + $0x980] sm:$0xff]
    %v6409 = vld [vmem:[#allocation7 + $0x988] sm:$0xff]
    %v6410 = vld [vmem:[#allocation7 + $0x990] sm:$0xff]
    %v6411 = vld [vmem:[#allocation7 + $0x998] sm:$0xff]
    %v6412 = vld [vmem:[#allocation7 + $0x9a0] sm:$0xff]
    %v6413 = vld [vmem:[#allocation7 + $0x9a8] sm:$0xff]
    %v6414 = vld [vmem:[#allocation7 + $0x9b0] sm:$0xff]
    %v6415 = vld [vmem:[#allocation7 + $0x9b8] sm:$0xff]
    %v6416 = vld [vmem:[#allocation7 + $0x9c0] sm:$0xff]
    %v6417 = vld [vmem:[#allocation7 + $0x9c8] sm:$0xff]
    %v6418 = vld [vmem:[#allocation7 + $0x9d0] sm:$0xff]
    %v6419 = vld [vmem:[#allocation7 + $0x9d8] sm:$0xff]
    %v6420 = vld [vmem:[#allocation7 + $0x9e0] sm:$0xff]
    %v6421 = vld [vmem:[#allocation7 + $0x9e8] sm:$0xff]
    %v6422 = vld [vmem:[#allocation7 + $0x9f0] sm:$0xff]
    %v6423 = vld [vmem:[#allocation7 + $0x9f8] sm:$0xff]
    %v6424 = vld [vmem:[#allocation7 + $0xa00] sm:$0xff]
    %v6425 = vld [vmem:[#allocation7 + $0xa08] sm:$0xff]
    %v6426 = vld [vmem:[#allocation7 + $0xa10] sm:$0xff]
    %v6427 = vld [vmem:[#allocation7 + $0xa18] sm:$0xff]
    %v6428 = vld [vmem:[#allocation7 + $0xa20] sm:$0xff]
    %v6429 = vld [vmem:[#allocation7 + $0xa28] sm:$0xff]
    %v6430 = vld [vmem:[#allocation7 + $0xa30] sm:$0xff]
    %v6431 = vld [vmem:[#allocation7 + $0xa38] sm:$0xff]
    %v6432 = vpack.c.bf16 %v5658, %v5658
    %v6465 = vunpack.c.l.b16 %v6400
    %v6466 = vunpack.c.h.b16 %v6400
    %v6467 = vunpack.c.l.b16 %v6401
    %v6468 = vunpack.c.h.b16 %v6401
    %v6469 = vunpack.c.l.b16 %v6402
    %v6470 = vunpack.c.h.b16 %v6402
    %v6471 = vunpack.c.l.b16 %v6403
    %v6472 = vunpack.c.h.b16 %v6403
    %v6473 = vunpack.c.l.b16 %v6404
    %v6474 = vunpack.c.h.b16 %v6404
    %v6475 = vunpack.c.l.b16 %v6405
    %v6476 = vunpack.c.h.b16 %v6405
    %v6477 = vunpack.c.l.b16 %v6406
    %v6478 = vunpack.c.h.b16 %v6406
    %v6479 = vunpack.c.l.b16 %v6407
    %v6480 = vunpack.c.h.b16 %v6407
    %v6481 = vunpack.c.l.b16 %v6408
    %v6482 = vunpack.c.h.b16 %v6408
    %v6483 = vunpack.c.l.b16 %v6409
    %v6484 = vunpack.c.h.b16 %v6409
    %v6485 = vunpack.c.l.b16 %v6410
    %v6486 = vunpack.c.h.b16 %v6410
    %v6487 = vunpack.c.l.b16 %v6411
    %v6488 = vunpack.c.h.b16 %v6411
    %v6489 = vunpack.c.l.b16 %v6412
    %v6490 = vunpack.c.h.b16 %v6412
    %v6491 = vunpack.c.l.b16 %v6413
    %v6492 = vunpack.c.h.b16 %v6413
    %v6493 = vunpack.c.l.b16 %v6414
    %v6494 = vunpack.c.h.b16 %v6414
    %v6495 = vunpack.c.l.b16 %v6415
    %v6496 = vunpack.c.h.b16 %v6415
    %v6497 = vunpack.c.l.b16 %v6416
    %v6498 = vunpack.c.h.b16 %v6416
    %v6499 = vunpack.c.l.b16 %v6417
    %v6500 = vunpack.c.h.b16 %v6417
    %v6501 = vunpack.c.l.b16 %v6418
    %v6502 = vunpack.c.h.b16 %v6418
    %v6503 = vunpack.c.l.b16 %v6419
    %v6504 = vunpack.c.h.b16 %v6419
    %v6505 = vunpack.c.l.b16 %v6420
    %v6506 = vunpack.c.h.b16 %v6420
    %v6507 = vunpack.c.l.b16 %v6421
    %v6508 = vunpack.c.h.b16 %v6421
    %v6509 = vunpack.c.l.b16 %v6422
    %v6510 = vunpack.c.h.b16 %v6422
    %v6511 = vunpack.c.l.b16 %v6423
    %v6512 = vunpack.c.h.b16 %v6423
    %v6513 = vunpack.c.l.b16 %v6424
    %v6514 = vunpack.c.h.b16 %v6424
    %v6515 = vunpack.c.l.b16 %v6425
    %v6516 = vunpack.c.h.b16 %v6425
    %v6517 = vunpack.c.l.b16 %v6426
    %v6518 = vunpack.c.h.b16 %v6426
    %v6519 = vunpack.c.l.b16 %v6427
    %v6520 = vunpack.c.h.b16 %v6427
    %v6521 = vunpack.c.l.b16 %v6428
    %v6522 = vunpack.c.h.b16 %v6428
    %v6523 = vunpack.c.l.b16 %v6429
    %v6524 = vunpack.c.h.b16 %v6429
    %v6525 = vunpack.c.l.b16 %v6430
    %v6526 = vunpack.c.h.b16 %v6430
    %v6527 = vunpack.c.l.b16 %v6431
    %v6528 = vunpack.c.h.b16 %v6431
    %v6529 = vpack.c.b16 %v6469, %v6465
    %v6530 = vpack.c.b16 %v6470, %v6466
    %v6531 = vpack.c.b16 %v6471, %v6467
    %v6532 = vpack.c.b16 %v6472, %v6468
    %v6533 = vpack.c.b16 %v6477, %v6473
    %v6534 = vpack.c.b16 %v6478, %v6474
    %v6535 = vpack.c.b16 %v6479, %v6475
    %v6536 = vpack.c.b16 %v6480, %v6476
    %v6537 = vpack.c.b16 %v6485, %v6481
    %v6538 = vpack.c.b16 %v6486, %v6482
    %v6539 = vpack.c.b16 %v6487, %v6483
    %v6540 = vpack.c.b16 %v6488, %v6484
    %v6541 = vpack.c.b16 %v6493, %v6489
    %v6542 = vpack.c.b16 %v6494, %v6490
    %v6543 = vpack.c.b16 %v6495, %v6491
    %v6544 = vpack.c.b16 %v6496, %v6492
    %v6545 = vpack.c.b16 %v6501, %v6497
    %v6546 = vpack.c.b16 %v6502, %v6498
    %v6547 = vpack.c.b16 %v6503, %v6499
    %v6548 = vpack.c.b16 %v6504, %v6500
    %v6549 = vpack.c.b16 %v6509, %v6505
    %v6550 = vpack.c.b16 %v6510, %v6506
    %v6551 = vpack.c.b16 %v6511, %v6507
    %v6552 = vpack.c.b16 %v6512, %v6508
    %v6553 = vpack.c.b16 %v6517, %v6513
    %v6554 = vpack.c.b16 %v6518, %v6514
    %v6555 = vpack.c.b16 %v6519, %v6515
    %v6556 = vpack.c.b16 %v6520, %v6516
    %v6557 = vpack.c.b16 %v6525, %v6521
    %v6558 = vpack.c.b16 %v6526, %v6522
    %v6559 = vpack.c.b16 %v6527, %v6523
    %v6560 = vpack.c.b16 %v6528, %v6524
    %6593 = vmatprep.subr.bf16.mxu0 %v6558
    %6594 = vmatpush1.bf16.msra.mxu0 %v6557
    %6595 = vmatprep.subr.bf16.mxu0 %v6554
    %6596 = vmatpush1.bf16.msra.mxu0 %v6553
    %6597 = vmatprep.subr.bf16.mxu0 %v6550
    %6598 = vmatpush1.bf16.msra.mxu0 %v6549
    %6599 = vmatprep.subr.bf16.mxu0 %v6546
    %6600 = vmatpush1.bf16.msra.mxu0 %v6545
    %6601 = vmatprep.subr.bf16.mxu0 %v6542
    %6602 = vmatpush1.bf16.msra.mxu0 %v6541
    %6603 = vmatprep.subr.bf16.mxu0 %v6538
    %6604 = vmatpush1.bf16.msra.mxu0 %v6537
    %6605 = vmatprep.subr.bf16.mxu0 %v6534
    %6606 = vmatpush1.bf16.msra.mxu0 %v6533
    %6607 = vmatprep.subr.bf16.mxu0 %v6530
    %6608 = vmatpush1.bf16.msra.mxu0 %v6529
    %6609 = vmatprep.subr.bf16.mxu0 0
    %6610 = vmatpush2.bf16.msra.mxu0 0
    %6611 = vmatprep.subr.bf16.mxu0 0
    %6612 = vmatpush2.bf16.msra.mxu0 0
    %6613 = vmatprep.subr.bf16.mxu0 0
    %6614 = vmatpush2.bf16.msra.mxu0 0
    %6615 = vmatprep.subr.bf16.mxu0 0
    %6616 = vmatpush2.bf16.msra.mxu0 0
    %6617 = vmatprep.subr.bf16.mxu0 0
    %6618 = vmatpush2.bf16.msra.mxu0 0
    %6619 = vmatprep.subr.bf16.mxu0 0
    %6620 = vmatpush2.bf16.msra.mxu0 0
    %6621 = vmatprep.subr.bf16.mxu0 0
    %6622 = vmatpush2.bf16.msra.mxu0 0
    %6623 = vmatprep.subr.bf16.mxu0 0
    %6624 = vmatpush2.bf16.msra.mxu0 0
    %6625 = vmatprep.mubr.bf16.mxu0 0
    %6626 = vmatmul.mubr.bf16.gmra.mxu0 %v6432
    %v6627 = vpop.f32.mrf.mxu0
    %v6628 = vadd.f32 0.0, %v6627
    %v6629 = vpop.f32.mrf.mxu0
    %v6630 = vadd.f32 0.0, %v6629
    %v6631 = vpop.f32.mrf.mxu0
    %v6632 = vpop.f32.mrf.mxu0
    %6633 = vdwg.mxu0
    %6634 = vmatprep.subr.bf16.mxu0 %v6560
    %6635 = vmatpush1.bf16.msra.mxu0 %v6559
    %6636 = vmatprep.subr.bf16.mxu0 %v6556
    %6637 = vmatpush1.bf16.msra.mxu0 %v6555
    %6638 = vmatprep.subr.bf16.mxu0 %v6552
    %6639 = vmatpush1.bf16.msra.mxu0 %v6551
    %6640 = vmatprep.subr.bf16.mxu0 %v6548
    %6641 = vmatpush1.bf16.msra.mxu0 %v6547
    %6642 = vmatprep.subr.bf16.mxu0 %v6544
    %6643 = vmatpush1.bf16.msra.mxu0 %v6543
    %6644 = vmatprep.subr.bf16.mxu0 %v6540
    %6645 = vmatpush1.bf16.msra.mxu0 %v6539
    %6646 = vmatprep.subr.bf16.mxu0 %v6536
    %6647 = vmatpush1.bf16.msra.mxu0 %v6535
    %6648 = vmatprep.subr.bf16.mxu0 %v6532
    %6649 = vmatpush1.bf16.msra.mxu0 %v6531
    %6650 = vmatprep.subr.bf16.mxu0 0
    %6651 = vmatpush2.bf16.msra.mxu0 0
    %6652 = vmatprep.subr.bf16.mxu0 0
    %6653 = vmatpush2.bf16.msra.mxu0 0
    %6654 = vmatprep.subr.bf16.mxu0 0
    %6655 = vmatpush2.bf16.msra.mxu0 0
    %6656 = vmatprep.subr.bf16.mxu0 0
    %6657 = vmatpush2.bf16.msra.mxu0 0
    %6658 = vmatprep.subr.bf16.mxu0 0
    %6659 = vmatpush2.bf16.msra.mxu0 0
    %6660 = vmatprep.subr.bf16.mxu0 0
    %6661 = vmatpush2.bf16.msra.mxu0 0
    %6662 = vmatprep.subr.bf16.mxu0 0
    %6663 = vmatpush2.bf16.msra.mxu0 0
    %6664 = vmatprep.subr.bf16.mxu0 0
    %6665 = vmatpush2.bf16.msra.mxu0 0
    %6666 = vmatprep.mubr.bf16.mxu0 0
    %6667 = vmatmul.mubr.bf16.gmra.mxu0 %v6432
    %v6668 = vpop.f32.mrf.mxu0
    %v6669 = vadd.f32 0.0, %v6668
    %v6670 = vpop.f32.mrf.mxu0
    %v6671 = vadd.f32 0.0, %v6670
    %v6672 = vpop.f32.mrf.mxu0
    %v6673 = vpop.f32.mrf.mxu0
    %6674 = vdwg.mxu0
    %v6675 = vadd.f32 %v6353, %v6628
    %v6676 = vadd.f32 %v6355, %v6630
    %v6677 = vadd.f32 %v6394, %v6669
    %v6678 = vadd.f32 %v6396, %v6671
    %s6679 = scalar_lea.vmem [#allocation8], 70
    %v6680 = vld [vmem:[%s6679] ss:$8 sm:$0xf]
    %v6682 = vlaneseq
    %v6683 = vshrl.u32 %v6682, 7
    %v6684 = vsub.s32 0, %v6683
    %v6685 = vrot.slane %v6680, %v6684
    %v6686 = vlaneseq
    %v6687 = vshrl.u32 %v6686, 7
    %v6688 = vsub.s32 1, %v6687
    %v6689 = vrot.slane %v6680, %v6688
    %v6690 = vlaneseq
    %v6691 = vshrl.u32 %v6690, 7
    %v6692 = vsub.s32 2, %v6691
    %v6693 = vrot.slane %v6680, %v6692
    %v6694 = vlaneseq
    %v6695 = vshrl.u32 %v6694, 7
    %v6696 = vsub.s32 3, %v6695
    %v6697 = vrot.slane %v6680, %v6696
    %v6702 = vadd.f32 %v6675, %v6685
    %v6703 = vadd.f32 %v6676, %v6689
    %v6704 = vadd.f32 %v6677, %v6693
    %v6705 = vadd.f32 %v6678, %v6697
    %v6706 = vxor.u32 %v6702, 2147483648
    %v6707 = vxor.u32 %v6703, 2147483648
    %v6708 = vxor.u32 %v6704, 2147483648
    %v6709 = vxor.u32 %v6705, 2147483648
    %v6710 = vmul.f32 %v6706, 1.442695
    %v6711 = vpow.pop %v6710
    %v6712 = vmul.f32 %v6707, 1.442695
    %v6713 = vpow.pop %v6712
    %v6714 = vmul.f32 %v6708, 1.442695
    %v6715 = vpow.pop %v6714
    %v6716 = vmul.f32 %v6709, 1.442695
    %v6717 = vpow.pop %v6716
    %v6718 = vadd.f32 %v6711, 1.0
    %v6719 = vadd.f32 %v6713, 1.0
    %v6720 = vadd.f32 %v6715, 1.0
    %v6721 = vadd.f32 %v6717, 1.0
    %v6722 = vrcp.pop %v6718
    %v6723 = vmul.f32 1.0, %v6722
    %v6724 = vrcp.pop %v6719
    %v6725 = vmul.f32 1.0, %v6724
    %v6726 = vrcp.pop %v6720
    %v6727 = vmul.f32 1.0, %v6726
    %v6728 = vrcp.pop %v6721
    %v6729 = vmul.f32 1.0, %v6728
    %v6730 = vmul.f32 %v6702, %v6723
    %v6731 = vmul.f32 %v6703, %v6725
    %v6732 = vmul.f32 %v6704, %v6727
    %v6733 = vmul.f32 %v6705, %v6729
    %v6734 = vld [vmem:[#allocation7 + $0xa40] sm:$0xff]
    %v6735 = vld [vmem:[#allocation7 + $0xa48] sm:$0xff]
    %v6736 = vld [vmem:[#allocation7 + $0xa50] sm:$0xff]
    %v6737 = vld [vmem:[#allocation7 + $0xa58] sm:$0xff]
    %v6738 = vld [vmem:[#allocation7 + $0xa60] sm:$0xff]
    %v6739 = vld [vmem:[#allocation7 + $0xa68] sm:$0xff]
    %v6740 = vld [vmem:[#allocation7 + $0xa70] sm:$0xff]
    %v6741 = vld [vmem:[#allocation7 + $0xa78] sm:$0xff]
    %v6742 = vld [vmem:[#allocation7 + $0xa80] sm:$0xff]
    %v6743 = vld [vmem:[#allocation7 + $0xa88] sm:$0xff]
    %v6744 = vld [vmem:[#allocation7 + $0xa90] sm:$0xff]
    %v6745 = vld [vmem:[#allocation7 + $0xa98] sm:$0xff]
    %v6746 = vld [vmem:[#allocation7 + $0xaa0] sm:$0xff]
    %v6747 = vld [vmem:[#allocation7 + $0xaa8] sm:$0xff]
    %v6748 = vld [vmem:[#allocation7 + $0xab0] sm:$0xff]
    %v6749 = vld [vmem:[#allocation7 + $0xab8] sm:$0xff]
    %v6750 = vld [vmem:[#allocation7 + $0xac0] sm:$0xff]
    %v6751 = vld [vmem:[#allocation7 + $0xac8] sm:$0xff]
    %v6752 = vld [vmem:[#allocation7 + $0xad0] sm:$0xff]
    %v6753 = vld [vmem:[#allocation7 + $0xad8] sm:$0xff]
    %v6754 = vld [vmem:[#allocation7 + $0xae0] sm:$0xff]
    %v6755 = vld [vmem:[#allocation7 + $0xae8] sm:$0xff]
    %v6756 = vld [vmem:[#allocation7 + $0xaf0] sm:$0xff]
    %v6757 = vld [vmem:[#allocation7 + $0xaf8] sm:$0xff]
    %v6758 = vld [vmem:[#allocation7 + $0xb00] sm:$0xff]
    %v6759 = vld [vmem:[#allocation7 + $0xb08] sm:$0xff]
    %v6760 = vld [vmem:[#allocation7 + $0xb10] sm:$0xff]
    %v6761 = vld [vmem:[#allocation7 + $0xb18] sm:$0xff]
    %v6762 = vld [vmem:[#allocation7 + $0xb20] sm:$0xff]
    %v6763 = vld [vmem:[#allocation7 + $0xb28] sm:$0xff]
    %v6764 = vld [vmem:[#allocation7 + $0xb30] sm:$0xff]
    %v6765 = vld [vmem:[#allocation7 + $0xb38] sm:$0xff]
    %v6766 = vld [vmem:[#allocation7 + $0xb40] sm:$0xff]
    %v6767 = vld [vmem:[#allocation7 + $0xb48] sm:$0xff]
    %v6768 = vld [vmem:[#allocation7 + $0xb50] sm:$0xff]
    %v6769 = vld [vmem:[#allocation7 + $0xb58] sm:$0xff]
    %v6770 = vld [vmem:[#allocation7 + $0xb60] sm:$0xff]
    %v6771 = vld [vmem:[#allocation7 + $0xb68] sm:$0xff]
    %v6772 = vld [vmem:[#allocation7 + $0xb70] sm:$0xff]
    %v6773 = vld [vmem:[#allocation7 + $0xb78] sm:$0xff]
    %v6774 = vld [vmem:[#allocation7 + $0xb80] sm:$0xff]
    %v6775 = vld [vmem:[#allocation7 + $0xb88] sm:$0xff]
    %v6776 = vld [vmem:[#allocation7 + $0xb90] sm:$0xff]
    %v6777 = vld [vmem:[#allocation7 + $0xb98] sm:$0xff]
    %v6778 = vld [vmem:[#allocation7 + $0xba0] sm:$0xff]
    %v6779 = vld [vmem:[#allocation7 + $0xba8] sm:$0xff]
    %v6780 = vld [vmem:[#allocation7 + $0xbb0] sm:$0xff]
    %v6781 = vld [vmem:[#allocation7 + $0xbb8] sm:$0xff]
    %v6782 = vld [vmem:[#allocation7 + $0xbc0] sm:$0xff]
    %v6783 = vld [vmem:[#allocation7 + $0xbc8] sm:$0xff]
    %v6784 = vld [vmem:[#allocation7 + $0xbd0] sm:$0xff]
    %v6785 = vld [vmem:[#allocation7 + $0xbd8] sm:$0xff]
    %v6786 = vld [vmem:[#allocation7 + $0xbe0] sm:$0xff]
    %v6787 = vld [vmem:[#allocation7 + $0xbe8] sm:$0xff]
    %v6788 = vld [vmem:[#allocation7 + $0xbf0] sm:$0xff]
    %v6789 = vld [vmem:[#allocation7 + $0xbf8] sm:$0xff]
    %v6790 = vld [vmem:[#allocation7 + $0xc00] sm:$0xff]
    %v6791 = vld [vmem:[#allocation7 + $0xc08] sm:$0xff]
    %v6792 = vld [vmem:[#allocation7 + $0xc10] sm:$0xff]
    %v6793 = vld [vmem:[#allocation7 + $0xc18] sm:$0xff]
    %v6794 = vld [vmem:[#allocation7 + $0xc20] sm:$0xff]
    %v6795 = vld [vmem:[#allocation7 + $0xc28] sm:$0xff]
    %v6796 = vld [vmem:[#allocation7 + $0xc30] sm:$0xff]
    %v6797 = vld [vmem:[#allocation7 + $0xc38] sm:$0xff]
    %s6798 = scalar_lea.vmem [#allocation8], 71
    %v6799 = vld [vmem:[%s6798] ss:$8 sm:$0xf]
    %v6801 = vlaneseq
    %v6802 = vshrl.u32 %v6801, 7
    %v6803 = vsub.s32 0, %v6802
    %v6804 = vrot.slane %v6799, %v6803
    %v6805 = vlaneseq
    %v6806 = vshrl.u32 %v6805, 7
    %v6807 = vsub.s32 1, %v6806
    %v6808 = vrot.slane %v6799, %v6807
    %v6809 = vlaneseq
    %v6810 = vshrl.u32 %v6809, 7
    %v6811 = vsub.s32 2, %v6810
    %v6812 = vrot.slane %v6799, %v6811
    %v6813 = vlaneseq
    %v6814 = vshrl.u32 %v6813, 7
    %v6815 = vsub.s32 3, %v6814
    %v6816 = vrot.slane %v6799, %v6815
    %v6885 = vunpack.c.l.b16 %v6734
    %v6886 = vunpack.c.h.b16 %v6734
    %v6887 = vunpack.c.l.b16 %v6735
    %v6888 = vunpack.c.h.b16 %v6735
    %v6889 = vunpack.c.l.b16 %v6736
    %v6890 = vunpack.c.h.b16 %v6736
    %v6891 = vunpack.c.l.b16 %v6737
    %v6892 = vunpack.c.h.b16 %v6737
    %v6893 = vunpack.c.l.b16 %v6738
    %v6894 = vunpack.c.h.b16 %v6738
    %v6895 = vunpack.c.l.b16 %v6739
    %v6896 = vunpack.c.h.b16 %v6739
    %v6897 = vunpack.c.l.b16 %v6740
    %v6898 = vunpack.c.h.b16 %v6740
    %v6899 = vunpack.c.l.b16 %v6741
    %v6900 = vunpack.c.h.b16 %v6741
    %v6901 = vunpack.c.l.b16 %v6742
    %v6902 = vunpack.c.h.b16 %v6742
    %v6903 = vunpack.c.l.b16 %v6743
    %v6904 = vunpack.c.h.b16 %v6743
    %v6905 = vunpack.c.l.b16 %v6744
    %v6906 = vunpack.c.h.b16 %v6744
    %v6907 = vunpack.c.l.b16 %v6745
    %v6908 = vunpack.c.h.b16 %v6745
    %v6909 = vunpack.c.l.b16 %v6746
    %v6910 = vunpack.c.h.b16 %v6746
    %v6911 = vunpack.c.l.b16 %v6747
    %v6912 = vunpack.c.h.b16 %v6747
    %v6913 = vunpack.c.l.b16 %v6748
    %v6914 = vunpack.c.h.b16 %v6748
    %v6915 = vunpack.c.l.b16 %v6749
    %v6916 = vunpack.c.h.b16 %v6749
    %v6917 = vunpack.c.l.b16 %v6750
    %v6918 = vunpack.c.h.b16 %v6750
    %v6919 = vunpack.c.l.b16 %v6751
    %v6920 = vunpack.c.h.b16 %v6751
    %v6921 = vunpack.c.l.b16 %v6752
    %v6922 = vunpack.c.h.b16 %v6752
    %v6923 = vunpack.c.l.b16 %v6753
    %v6924 = vunpack.c.h.b16 %v6753
    %v6925 = vunpack.c.l.b16 %v6754
    %v6926 = vunpack.c.h.b16 %v6754
    %v6927 = vunpack.c.l.b16 %v6755
    %v6928 = vunpack.c.h.b16 %v6755
    %v6929 = vunpack.c.l.b16 %v6756
    %v6930 = vunpack.c.h.b16 %v6756
    %v6931 = vunpack.c.l.b16 %v6757
    %v6932 = vunpack.c.h.b16 %v6757
    %v6933 = vunpack.c.l.b16 %v6758
    %v6934 = vunpack.c.h.b16 %v6758
    %v6935 = vunpack.c.l.b16 %v6759
    %v6936 = vunpack.c.h.b16 %v6759
    %v6937 = vunpack.c.l.b16 %v6760
    %v6938 = vunpack.c.h.b16 %v6760
    %v6939 = vunpack.c.l.b16 %v6761
    %v6940 = vunpack.c.h.b16 %v6761
    %v6941 = vunpack.c.l.b16 %v6762
    %v6942 = vunpack.c.h.b16 %v6762
    %v6943 = vunpack.c.l.b16 %v6763
    %v6944 = vunpack.c.h.b16 %v6763
    %v6945 = vunpack.c.l.b16 %v6764
    %v6946 = vunpack.c.h.b16 %v6764
    %v6947 = vunpack.c.l.b16 %v6765
    %v6948 = vunpack.c.h.b16 %v6765
    %v6949 = vunpack.c.l.b16 %v6766
    %v6950 = vunpack.c.h.b16 %v6766
    %v6951 = vunpack.c.l.b16 %v6767
    %v6952 = vunpack.c.h.b16 %v6767
    %v6953 = vunpack.c.l.b16 %v6768
    %v6954 = vunpack.c.h.b16 %v6768
    %v6955 = vunpack.c.l.b16 %v6769
    %v6956 = vunpack.c.h.b16 %v6769
    %v6957 = vunpack.c.l.b16 %v6770
    %v6958 = vunpack.c.h.b16 %v6770
    %v6959 = vunpack.c.l.b16 %v6771
    %v6960 = vunpack.c.h.b16 %v6771
    %v6961 = vunpack.c.l.b16 %v6772
    %v6962 = vunpack.c.h.b16 %v6772
    %v6963 = vunpack.c.l.b16 %v6773
    %v6964 = vunpack.c.h.b16 %v6773
    %v6965 = vunpack.c.l.b16 %v6774
    %v6966 = vunpack.c.h.b16 %v6774
    %v6967 = vunpack.c.l.b16 %v6775
    %v6968 = vunpack.c.h.b16 %v6775
    %v6969 = vunpack.c.l.b16 %v6776
    %v6970 = vunpack.c.h.b16 %v6776
    %v6971 = vunpack.c.l.b16 %v6777
    %v6972 = vunpack.c.h.b16 %v6777
    %v6973 = vunpack.c.l.b16 %v6778
    %v6974 = vunpack.c.h.b16 %v6778
    %v6975 = vunpack.c.l.b16 %v6779
    %v6976 = vunpack.c.h.b16 %v6779
    %v6977 = vunpack.c.l.b16 %v6780
    %v6978 = vunpack.c.h.b16 %v6780
    %v6979 = vunpack.c.l.b16 %v6781
    %v6980 = vunpack.c.h.b16 %v6781
    %v6981 = vunpack.c.l.b16 %v6782
    %v6982 = vunpack.c.h.b16 %v6782
    %v6983 = vunpack.c.l.b16 %v6783
    %v6984 = vunpack.c.h.b16 %v6783
    %v6985 = vunpack.c.l.b16 %v6784
    %v6986 = vunpack.c.h.b16 %v6784
    %v6987 = vunpack.c.l.b16 %v6785
    %v6988 = vunpack.c.h.b16 %v6785
    %v6989 = vunpack.c.l.b16 %v6786
    %v6990 = vunpack.c.h.b16 %v6786
    %v6991 = vunpack.c.l.b16 %v6787
    %v6992 = vunpack.c.h.b16 %v6787
    %v6993 = vunpack.c.l.b16 %v6788
    %v6994 = vunpack.c.h.b16 %v6788
    %v6995 = vunpack.c.l.b16 %v6789
    %v6996 = vunpack.c.h.b16 %v6789
    %v6997 = vunpack.c.l.b16 %v6790
    %v6998 = vunpack.c.h.b16 %v6790
    %v6999 = vunpack.c.l.b16 %v6791
    %v7000 = vunpack.c.h.b16 %v6791
    %v7001 = vunpack.c.l.b16 %v6792
    %v7002 = vunpack.c.h.b16 %v6792
    %v7003 = vunpack.c.l.b16 %v6793
    %v7004 = vunpack.c.h.b16 %v6793
    %v7005 = vunpack.c.l.b16 %v6794
    %v7006 = vunpack.c.h.b16 %v6794
    %v7007 = vunpack.c.l.b16 %v6795
    %v7008 = vunpack.c.h.b16 %v6795
    %v7009 = vunpack.c.l.b16 %v6796
    %v7010 = vunpack.c.h.b16 %v6796
    %v7011 = vunpack.c.l.b16 %v6797
    %v7012 = vunpack.c.h.b16 %v6797
    %v7013 = vpack.c.b16 %v6889, %v6885
    %v7014 = vpack.c.b16 %v6890, %v6886
    %v7015 = vpack.c.b16 %v6891, %v6887
    %v7016 = vpack.c.b16 %v6892, %v6888
    %v7017 = vpack.c.b16 %v6897, %v6893
    %v7018 = vpack.c.b16 %v6898, %v6894
    %v7019 = vpack.c.b16 %v6899, %v6895
    %v7020 = vpack.c.b16 %v6900, %v6896
    %v7021 = vpack.c.b16 %v6905, %v6901
    %v7022 = vpack.c.b16 %v6906, %v6902
    %v7023 = vpack.c.b16 %v6907, %v6903
    %v7024 = vpack.c.b16 %v6908, %v6904
    %v7025 = vpack.c.b16 %v6913, %v6909
    %v7026 = vpack.c.b16 %v6914, %v6910
    %v7027 = vpack.c.b16 %v6915, %v6911
    %v7028 = vpack.c.b16 %v6916, %v6912
    %v7029 = vpack.c.b16 %v6921, %v6917
    %v7030 = vpack.c.b16 %v6922, %v6918
    %v7031 = vpack.c.b16 %v6923, %v6919
    %v7032 = vpack.c.b16 %v6924, %v6920
    %v7033 = vpack.c.b16 %v6929, %v6925
    %v7034 = vpack.c.b16 %v6930, %v6926
    %v7035 = vpack.c.b16 %v6931, %v6927
    %v7036 = vpack.c.b16 %v6932, %v6928
    %v7037 = vpack.c.b16 %v6937, %v6933
    %v7038 = vpack.c.b16 %v6938, %v6934
    %v7039 = vpack.c.b16 %v6939, %v6935
    %v7040 = vpack.c.b16 %v6940, %v6936
    %v7041 = vpack.c.b16 %v6945, %v6941
    %v7042 = vpack.c.b16 %v6946, %v6942
    %v7043 = vpack.c.b16 %v6947, %v6943
    %v7044 = vpack.c.b16 %v6948, %v6944
    %v7045 = vpack.c.b16 %v6953, %v6949
    %v7046 = vpack.c.b16 %v6954, %v6950
    %v7047 = vpack.c.b16 %v6955, %v6951
    %v7048 = vpack.c.b16 %v6956, %v6952
    %v7049 = vpack.c.b16 %v6961, %v6957
    %v7050 = vpack.c.b16 %v6962, %v6958
    %v7051 = vpack.c.b16 %v6963, %v6959
    %v7052 = vpack.c.b16 %v6964, %v6960
    %v7053 = vpack.c.b16 %v6969, %v6965
    %v7054 = vpack.c.b16 %v6970, %v6966
    %v7055 = vpack.c.b16 %v6971, %v6967
    %v7056 = vpack.c.b16 %v6972, %v6968
    %v7057 = vpack.c.b16 %v6977, %v6973
    %v7058 = vpack.c.b16 %v6978, %v6974
    %v7059 = vpack.c.b16 %v6979, %v6975
    %v7060 = vpack.c.b16 %v6980, %v6976
    %v7061 = vpack.c.b16 %v6985, %v6981
    %v7062 = vpack.c.b16 %v6986, %v6982
    %v7063 = vpack.c.b16 %v6987, %v6983
    %v7064 = vpack.c.b16 %v6988, %v6984
    %v7065 = vpack.c.b16 %v6993, %v6989
    %v7066 = vpack.c.b16 %v6994, %v6990
    %v7067 = vpack.c.b16 %v6995, %v6991
    %v7068 = vpack.c.b16 %v6996, %v6992
    %v7069 = vpack.c.b16 %v7001, %v6997
    %v7070 = vpack.c.b16 %v7002, %v6998
    %v7071 = vpack.c.b16 %v7003, %v6999
    %v7072 = vpack.c.b16 %v7004, %v7000
    %v7073 = vpack.c.b16 %v7009, %v7005
    %v7074 = vpack.c.b16 %v7010, %v7006
    %v7075 = vpack.c.b16 %v7011, %v7007
    %v7076 = vpack.c.b16 %v7012, %v7008
    %7141 = vmatprep.subr.bf16.mxu0 %v7042
    %7142 = vmatpush1.bf16.msra.mxu0 %v7041
    %7143 = vmatprep.subr.bf16.mxu0 %v7038
    %7144 = vmatpush1.bf16.msra.mxu0 %v7037
    %7145 = vmatprep.subr.bf16.mxu0 %v7034
    %7146 = vmatpush1.bf16.msra.mxu0 %v7033
    %7147 = vmatprep.subr.bf16.mxu0 %v7030
    %7148 = vmatpush1.bf16.msra.mxu0 %v7029
    %7149 = vmatprep.subr.bf16.mxu0 %v7026
    %7150 = vmatpush1.bf16.msra.mxu0 %v7025
    %7151 = vmatprep.subr.bf16.mxu0 %v7022
    %7152 = vmatpush1.bf16.msra.mxu0 %v7021
    %7153 = vmatprep.subr.bf16.mxu0 %v7018
    %7154 = vmatpush1.bf16.msra.mxu0 %v7017
    %7155 = vmatprep.subr.bf16.mxu0 %v7014
    %7156 = vmatpush1.bf16.msra.mxu0 %v7013
    %7157 = vmatprep.subr.bf16.mxu0 %v7074
    %7158 = vmatpush2.bf16.msra.mxu0 %v7073
    %7159 = vmatprep.subr.bf16.mxu0 %v7070
    %7160 = vmatpush2.bf16.msra.mxu0 %v7069
    %7161 = vmatprep.subr.bf16.mxu0 %v7066
    %7162 = vmatpush2.bf16.msra.mxu0 %v7065
    %7163 = vmatprep.subr.bf16.mxu0 %v7062
    %7164 = vmatpush2.bf16.msra.mxu0 %v7061
    %7165 = vmatprep.subr.bf16.mxu0 %v7058
    %7166 = vmatpush2.bf16.msra.mxu0 %v7057
    %7167 = vmatprep.subr.bf16.mxu0 %v7054
    %7168 = vmatpush2.bf16.msra.mxu0 %v7053
    %7169 = vmatprep.subr.bf16.mxu0 %v7050
    %7170 = vmatpush2.bf16.msra.mxu0 %v7049
    %7171 = vmatprep.subr.bf16.mxu0 %v7046
    %7172 = vmatpush2.bf16.msra.mxu0 %v7045
    %7173 = vmatprep.mubr.bf16.mxu0 %v777
    %7174 = vmatmul.mubr.bf16.gmra.mxu0 %v776
    %v7175 = vpop.f32.mrf.mxu0
    %v7176 = vadd.f32 %v6804, %v7175
    %v7177 = vpop.f32.mrf.mxu0
    %v7178 = vadd.f32 %v6808, %v7177
    %v7179 = vpop.f32.mrf.mxu0
    %v7180 = vpop.f32.mrf.mxu0
    %7181 = vdwg.mxu0
    %7182 = vmatprep.subr.bf16.mxu0 %v7044
    %7183 = vmatpush1.bf16.msra.mxu0 %v7043
    %7184 = vmatprep.subr.bf16.mxu0 %v7040
    %7185 = vmatpush1.bf16.msra.mxu0 %v7039
    %7186 = vmatprep.subr.bf16.mxu0 %v7036
    %7187 = vmatpush1.bf16.msra.mxu0 %v7035
    %7188 = vmatprep.subr.bf16.mxu0 %v7032
    %7189 = vmatpush1.bf16.msra.mxu0 %v7031
    %7190 = vmatprep.subr.bf16.mxu0 %v7028
    %7191 = vmatpush1.bf16.msra.mxu0 %v7027
    %7192 = vmatprep.subr.bf16.mxu0 %v7024
    %7193 = vmatpush1.bf16.msra.mxu0 %v7023
    %7194 = vmatprep.subr.bf16.mxu0 %v7020
    %7195 = vmatpush1.bf16.msra.mxu0 %v7019
    %7196 = vmatprep.subr.bf16.mxu0 %v7016
    %7197 = vmatpush1.bf16.msra.mxu0 %v7015
    %7198 = vmatprep.subr.bf16.mxu0 %v7076
    %7199 = vmatpush2.bf16.msra.mxu0 %v7075
    %7200 = vmatprep.subr.bf16.mxu0 %v7072
    %7201 = vmatpush2.bf16.msra.mxu0 %v7071
    %7202 = vmatprep.subr.bf16.mxu0 %v7068
    %7203 = vmatpush2.bf16.msra.mxu0 %v7067
    %7204 = vmatprep.subr.bf16.mxu0 %v7064
    %7205 = vmatpush2.bf16.msra.mxu0 %v7063
    %7206 = vmatprep.subr.bf16.mxu0 %v7060
    %7207 = vmatpush2.bf16.msra.mxu0 %v7059
    %7208 = vmatprep.subr.bf16.mxu0 %v7056
    %7209 = vmatpush2.bf16.msra.mxu0 %v7055
    %7210 = vmatprep.subr.bf16.mxu0 %v7052
    %7211 = vmatpush2.bf16.msra.mxu0 %v7051
    %7212 = vmatprep.subr.bf16.mxu0 %v7048
    %7213 = vmatpush2.bf16.msra.mxu0 %v7047
    %7214 = vmatprep.mubr.bf16.mxu0 %v777
    %7215 = vmatmul.mubr.bf16.gmra.mxu0 %v776
    %v7216 = vpop.f32.mrf.mxu0
    %v7217 = vadd.f32 %v6812, %v7216
    %v7218 = vpop.f32.mrf.mxu0
    %v7219 = vadd.f32 %v6816, %v7218
    %v7220 = vpop.f32.mrf.mxu0
    %v7221 = vpop.f32.mrf.mxu0
    %7222 = vdwg.mxu0
    %v7223 = vadd.f32 %v6730, %v7176
    %v7224 = vadd.f32 %v6731, %v7178
    %v7225 = vadd.f32 %v6732, %v7217
    %v7226 = vadd.f32 %v6733, %v7219
    %v7227 = vld [vmem:[#allocation7 + $0xc40] sm:$0xff]
    %v7228 = vld [vmem:[#allocation7 + $0xc48] sm:$0xff]
    %v7229 = vld [vmem:[#allocation7 + $0xc50] sm:$0xff]
    %v7230 = vld [vmem:[#allocation7 + $0xc58] sm:$0xff]
    %v7231 = vld [vmem:[#allocation7 + $0xc60] sm:$0xff]
    %v7232 = vld [vmem:[#allocation7 + $0xc68] sm:$0xff]
    %v7233 = vld [vmem:[#allocation7 + $0xc70] sm:$0xff]
    %v7234 = vld [vmem:[#allocation7 + $0xc78] sm:$0xff]
    %v7235 = vld [vmem:[#allocation7 + $0xc80] sm:$0xff]
    %v7236 = vld [vmem:[#allocation7 + $0xc88] sm:$0xff]
    %v7237 = vld [vmem:[#allocation7 + $0xc90] sm:$0xff]
    %v7238 = vld [vmem:[#allocation7 + $0xc98] sm:$0xff]
    %v7239 = vld [vmem:[#allocation7 + $0xca0] sm:$0xff]
    %v7240 = vld [vmem:[#allocation7 + $0xca8] sm:$0xff]
    %v7241 = vld [vmem:[#allocation7 + $0xcb0] sm:$0xff]
    %v7242 = vld [vmem:[#allocation7 + $0xcb8] sm:$0xff]
    %v7243 = vld [vmem:[#allocation7 + $0xcc0] sm:$0xff]
    %v7244 = vld [vmem:[#allocation7 + $0xcc8] sm:$0xff]
    %v7245 = vld [vmem:[#allocation7 + $0xcd0] sm:$0xff]
    %v7246 = vld [vmem:[#allocation7 + $0xcd8] sm:$0xff]
    %v7247 = vld [vmem:[#allocation7 + $0xce0] sm:$0xff]
    %v7248 = vld [vmem:[#allocation7 + $0xce8] sm:$0xff]
    %v7249 = vld [vmem:[#allocation7 + $0xcf0] sm:$0xff]
    %v7250 = vld [vmem:[#allocation7 + $0xcf8] sm:$0xff]
    %v7251 = vld [vmem:[#allocation7 + $0xd00] sm:$0xff]
    %v7252 = vld [vmem:[#allocation7 + $0xd08] sm:$0xff]
    %v7253 = vld [vmem:[#allocation7 + $0xd10] sm:$0xff]
    %v7254 = vld [vmem:[#allocation7 + $0xd18] sm:$0xff]
    %v7255 = vld [vmem:[#allocation7 + $0xd20] sm:$0xff]
    %v7256 = vld [vmem:[#allocation7 + $0xd28] sm:$0xff]
    %v7257 = vld [vmem:[#allocation7 + $0xd30] sm:$0xff]
    %v7258 = vld [vmem:[#allocation7 + $0xd38] sm:$0xff]
    %v7259 = vld [vmem:[#allocation7 + $0xd40] sm:$0xff]
    %v7260 = vld [vmem:[#allocation7 + $0xd48] sm:$0xff]
    %v7261 = vld [vmem:[#allocation7 + $0xd50] sm:$0xff]
    %v7262 = vld [vmem:[#allocation7 + $0xd58] sm:$0xff]
    %v7263 = vld [vmem:[#allocation7 + $0xd60] sm:$0xff]
    %v7264 = vld [vmem:[#allocation7 + $0xd68] sm:$0xff]
    %v7265 = vld [vmem:[#allocation7 + $0xd70] sm:$0xff]
    %v7266 = vld [vmem:[#allocation7 + $0xd78] sm:$0xff]
    %v7267 = vld [vmem:[#allocation7 + $0xd80] sm:$0xff]
    %v7268 = vld [vmem:[#allocation7 + $0xd88] sm:$0xff]
    %v7269 = vld [vmem:[#allocation7 + $0xd90] sm:$0xff]
    %v7270 = vld [vmem:[#allocation7 + $0xd98] sm:$0xff]
    %v7271 = vld [vmem:[#allocation7 + $0xda0] sm:$0xff]
    %v7272 = vld [vmem:[#allocation7 + $0xda8] sm:$0xff]
    %v7273 = vld [vmem:[#allocation7 + $0xdb0] sm:$0xff]
    %v7274 = vld [vmem:[#allocation7 + $0xdb8] sm:$0xff]
    %v7275 = vld [vmem:[#allocation7 + $0xdc0] sm:$0xff]
    %v7276 = vld [vmem:[#allocation7 + $0xdc8] sm:$0xff]
    %v7277 = vld [vmem:[#allocation7 + $0xdd0] sm:$0xff]
    %v7278 = vld [vmem:[#allocation7 + $0xdd8] sm:$0xff]
    %v7279 = vld [vmem:[#allocation7 + $0xde0] sm:$0xff]
    %v7280 = vld [vmem:[#allocation7 + $0xde8] sm:$0xff]
    %v7281 = vld [vmem:[#allocation7 + $0xdf0] sm:$0xff]
    %v7282 = vld [vmem:[#allocation7 + $0xdf8] sm:$0xff]
    %v7283 = vld [vmem:[#allocation7 + $0xe00] sm:$0xff]
    %v7284 = vld [vmem:[#allocation7 + $0xe08] sm:$0xff]
    %v7285 = vld [vmem:[#allocation7 + $0xe10] sm:$0xff]
    %v7286 = vld [vmem:[#allocation7 + $0xe18] sm:$0xff]
    %v7287 = vld [vmem:[#allocation7 + $0xe20] sm:$0xff]
    %v7288 = vld [vmem:[#allocation7 + $0xe28] sm:$0xff]
    %v7289 = vld [vmem:[#allocation7 + $0xe30] sm:$0xff]
    %v7290 = vld [vmem:[#allocation7 + $0xe38] sm:$0xff]
    %v7291 = vld [vmem:[#allocation7 + $0xe40] sm:$0xff]
    %v7292 = vld [vmem:[#allocation7 + $0xe48] sm:$0xff]
    %v7293 = vld [vmem:[#allocation7 + $0xe50] sm:$0xff]
    %v7294 = vld [vmem:[#allocation7 + $0xe58] sm:$0xff]
    %v7295 = vld [vmem:[#allocation7 + $0xe60] sm:$0xff]
    %v7296 = vld [vmem:[#allocation7 + $0xe68] sm:$0xff]
    %v7297 = vld [vmem:[#allocation7 + $0xe70] sm:$0xff]
    %v7298 = vld [vmem:[#allocation7 + $0xe78] sm:$0xff]
    %v7299 = vld [vmem:[#allocation7 + $0xe80] sm:$0xff]
    %v7300 = vld [vmem:[#allocation7 + $0xe88] sm:$0xff]
    %v7301 = vld [vmem:[#allocation7 + $0xe90] sm:$0xff]
    %v7302 = vld [vmem:[#allocation7 + $0xe98] sm:$0xff]
    %v7303 = vld [vmem:[#allocation7 + $0xea0] sm:$0xff]
    %v7304 = vld [vmem:[#allocation7 + $0xea8] sm:$0xff]
    %v7305 = vld [vmem:[#allocation7 + $0xeb0] sm:$0xff]
    %v7306 = vld [vmem:[#allocation7 + $0xeb8] sm:$0xff]
    %v7307 = vld [vmem:[#allocation7 + $0xec0] sm:$0xff]
    %v7308 = vld [vmem:[#allocation7 + $0xec8] sm:$0xff]
    %v7309 = vld [vmem:[#allocation7 + $0xed0] sm:$0xff]
    %v7310 = vld [vmem:[#allocation7 + $0xed8] sm:$0xff]
    %v7311 = vld [vmem:[#allocation7 + $0xee0] sm:$0xff]
    %v7312 = vld [vmem:[#allocation7 + $0xee8] sm:$0xff]
    %v7313 = vld [vmem:[#allocation7 + $0xef0] sm:$0xff]
    %v7314 = vld [vmem:[#allocation7 + $0xef8] sm:$0xff]
    %v7315 = vld [vmem:[#allocation7 + $0xf00] sm:$0xff]
    %v7316 = vld [vmem:[#allocation7 + $0xf08] sm:$0xff]
    %v7317 = vld [vmem:[#allocation7 + $0xf10] sm:$0xff]
    %v7318 = vld [vmem:[#allocation7 + $0xf18] sm:$0xff]
    %v7319 = vld [vmem:[#allocation7 + $0xf20] sm:$0xff]
    %v7320 = vld [vmem:[#allocation7 + $0xf28] sm:$0xff]
    %v7321 = vld [vmem:[#allocation7 + $0xf30] sm:$0xff]
    %v7322 = vld [vmem:[#allocation7 + $0xf38] sm:$0xff]
    %v7323 = vld [vmem:[#allocation7 + $0xf40] sm:$0xff]
    %v7324 = vld [vmem:[#allocation7 + $0xf48] sm:$0xff]
    %v7325 = vld [vmem:[#allocation7 + $0xf50] sm:$0xff]
    %v7326 = vld [vmem:[#allocation7 + $0xf58] sm:$0xff]
    %v7327 = vld [vmem:[#allocation7 + $0xf60] sm:$0xff]
    %v7328 = vld [vmem:[#allocation7 + $0xf68] sm:$0xff]
    %v7329 = vld [vmem:[#allocation7 + $0xf70] sm:$0xff]
    %v7330 = vld [vmem:[#allocation7 + $0xf78] sm:$0xff]
    %v7331 = vld [vmem:[#allocation7 + $0xf80] sm:$0xff]
    %v7332 = vld [vmem:[#allocation7 + $0xf88] sm:$0xff]
    %v7333 = vld [vmem:[#allocation7 + $0xf90] sm:$0xff]
    %v7334 = vld [vmem:[#allocation7 + $0xf98] sm:$0xff]
    %v7335 = vld [vmem:[#allocation7 + $0xfa0] sm:$0xff]
    %v7336 = vld [vmem:[#allocation7 + $0xfa8] sm:$0xff]
    %v7337 = vld [vmem:[#allocation7 + $0xfb0] sm:$0xff]
    %v7338 = vld [vmem:[#allocation7 + $0xfb8] sm:$0xff]
    %v7339 = vld [vmem:[#allocation7 + $0xfc0] sm:$0xff]
    %v7340 = vld [vmem:[#allocation7 + $0xfc8] sm:$0xff]
    %v7341 = vld [vmem:[#allocation7 + $0xfd0] sm:$0xff]
    %v7342 = vld [vmem:[#allocation7 + $0xfd8] sm:$0xff]
    %v7343 = vld [vmem:[#allocation7 + $0xfe0] sm:$0xff]
    %v7344 = vld [vmem:[#allocation7 + $0xfe8] sm:$0xff]
    %v7345 = vld [vmem:[#allocation7 + $0xff0] sm:$0xff]
    %v7346 = vld [vmem:[#allocation7 + $0xff8] sm:$0xff]
    %v7347 = vld [vmem:[#allocation7 + $0x1000] sm:$0xff]
    %v7348 = vld [vmem:[#allocation7 + $0x1008] sm:$0xff]
    %v7349 = vld [vmem:[#allocation7 + $0x1010] sm:$0xff]
    %v7350 = vld [vmem:[#allocation7 + $0x1018] sm:$0xff]
    %v7351 = vld [vmem:[#allocation7 + $0x1020] sm:$0xff]
    %v7352 = vld [vmem:[#allocation7 + $0x1028] sm:$0xff]
    %v7353 = vld [vmem:[#allocation7 + $0x1030] sm:$0xff]
    %v7354 = vld [vmem:[#allocation7 + $0x1038] sm:$0xff]
    %v7355 = vpack.c.bf16 %v7223, %v7223
    %v7356 = vpack.c.bf16 %v7224, %v7224
    %v7357 = vpack.c.bf16 %v7225, %v7225
    %v7358 = vpack.c.bf16 %v7226, %v7226
    %s7359 = scalar_lea.vmem [#allocation8], 96
    %v7360 = vld [vmem:[%s7359] ss:$8 sm:$0xf]
    %v7362 = vlaneseq
    %v7363 = vshrl.u32 %v7362, 7
    %v7364 = vsub.s32 0, %v7363
    %v7365 = vrot.slane %v7360, %v7364
    %v7366 = vlaneseq
    %v7367 = vshrl.u32 %v7366, 7
    %v7368 = vsub.s32 1, %v7367
    %v7369 = vrot.slane %v7360, %v7368
    %v7370 = vlaneseq
    %v7371 = vshrl.u32 %v7370, 7
    %v7372 = vsub.s32 2, %v7371
    %v7373 = vrot.slane %v7360, %v7372
    %v7374 = vlaneseq
    %v7375 = vshrl.u32 %v7374, 7
    %v7376 = vsub.s32 3, %v7375
    %v7377 = vrot.slane %v7360, %v7376
    %v7510 = vunpack.c.l.b16 %v7227
    %v7511 = vunpack.c.h.b16 %v7227
    %v7512 = vunpack.c.l.b16 %v7228
    %v7513 = vunpack.c.h.b16 %v7228
    %v7514 = vunpack.c.l.b16 %v7229
    %v7515 = vunpack.c.h.b16 %v7229
    %v7516 = vunpack.c.l.b16 %v7230
    %v7517 = vunpack.c.h.b16 %v7230
    %v7518 = vunpack.c.l.b16 %v7231
    %v7519 = vunpack.c.h.b16 %v7231
    %v7520 = vunpack.c.l.b16 %v7232
    %v7521 = vunpack.c.h.b16 %v7232
    %v7522 = vunpack.c.l.b16 %v7233
    %v7523 = vunpack.c.h.b16 %v7233
    %v7524 = vunpack.c.l.b16 %v7234
    %v7525 = vunpack.c.h.b16 %v7234
    %v7526 = vunpack.c.l.b16 %v7235
    %v7527 = vunpack.c.h.b16 %v7235
    %v7528 = vunpack.c.l.b16 %v7236
    %v7529 = vunpack.c.h.b16 %v7236
    %v7530 = vunpack.c.l.b16 %v7237
    %v7531 = vunpack.c.h.b16 %v7237
    %v7532 = vunpack.c.l.b16 %v7238
    %v7533 = vunpack.c.h.b16 %v7238
    %v7534 = vunpack.c.l.b16 %v7239
    %v7535 = vunpack.c.h.b16 %v7239
    %v7536 = vunpack.c.l.b16 %v7240
    %v7537 = vunpack.c.h.b16 %v7240
    %v7538 = vunpack.c.l.b16 %v7241
    %v7539 = vunpack.c.h.b16 %v7241
    %v7540 = vunpack.c.l.b16 %v7242
    %v7541 = vunpack.c.h.b16 %v7242
    %v7542 = vunpack.c.l.b16 %v7243
    %v7543 = vunpack.c.h.b16 %v7243
    %v7544 = vunpack.c.l.b16 %v7244
    %v7545 = vunpack.c.h.b16 %v7244
    %v7546 = vunpack.c.l.b16 %v7245
    %v7547 = vunpack.c.h.b16 %v7245
    %v7548 = vunpack.c.l.b16 %v7246
    %v7549 = vunpack.c.h.b16 %v7246
    %v7550 = vunpack.c.l.b16 %v7247
    %v7551 = vunpack.c.h.b16 %v7247
    %v7552 = vunpack.c.l.b16 %v7248
    %v7553 = vunpack.c.h.b16 %v7248
    %v7554 = vunpack.c.l.b16 %v7249
    %v7555 = vunpack.c.h.b16 %v7249
    %v7556 = vunpack.c.l.b16 %v7250
    %v7557 = vunpack.c.h.b16 %v7250
    %v7558 = vunpack.c.l.b16 %v7251
    %v7559 = vunpack.c.h.b16 %v7251
    %v7560 = vunpack.c.l.b16 %v7252
    %v7561 = vunpack.c.h.b16 %v7252
    %v7562 = vunpack.c.l.b16 %v7253
    %v7563 = vunpack.c.h.b16 %v7253
    %v7564 = vunpack.c.l.b16 %v7254
    %v7565 = vunpack.c.h.b16 %v7254
    %v7566 = vunpack.c.l.b16 %v7255
    %v7567 = vunpack.c.h.b16 %v7255
    %v7568 = vunpack.c.l.b16 %v7256
    %v7569 = vunpack.c.h.b16 %v7256
    %v7570 = vunpack.c.l.b16 %v7257
    %v7571 = vunpack.c.h.b16 %v7257
    %v7572 = vunpack.c.l.b16 %v7258
    %v7573 = vunpack.c.h.b16 %v7258
    %v7574 = vunpack.c.l.b16 %v7259
    %v7575 = vunpack.c.h.b16 %v7259
    %v7576 = vunpack.c.l.b16 %v7260
    %v7577 = vunpack.c.h.b16 %v7260
    %v7578 = vunpack.c.l.b16 %v7261
    %v7579 = vunpack.c.h.b16 %v7261
    %v7580 = vunpack.c.l.b16 %v7262
    %v7581 = vunpack.c.h.b16 %v7262
    %v7582 = vunpack.c.l.b16 %v7263
    %v7583 = vunpack.c.h.b16 %v7263
    %v7584 = vunpack.c.l.b16 %v7264
    %v7585 = vunpack.c.h.b16 %v7264
    %v7586 = vunpack.c.l.b16 %v7265
    %v7587 = vunpack.c.h.b16 %v7265
    %v7588 = vunpack.c.l.b16 %v7266
    %v7589 = vunpack.c.h.b16 %v7266
    %v7590 = vunpack.c.l.b16 %v7267
    %v7591 = vunpack.c.h.b16 %v7267
    %v7592 = vunpack.c.l.b16 %v7268
    %v7593 = vunpack.c.h.b16 %v7268
    %v7594 = vunpack.c.l.b16 %v7269
    %v7595 = vunpack.c.h.b16 %v7269
    %v7596 = vunpack.c.l.b16 %v7270
    %v7597 = vunpack.c.h.b16 %v7270
    %v7598 = vunpack.c.l.b16 %v7271
    %v7599 = vunpack.c.h.b16 %v7271
    %v7600 = vunpack.c.l.b16 %v7272
    %v7601 = vunpack.c.h.b16 %v7272
    %v7602 = vunpack.c.l.b16 %v7273
    %v7603 = vunpack.c.h.b16 %v7273
    %v7604 = vunpack.c.l.b16 %v7274
    %v7605 = vunpack.c.h.b16 %v7274
    %v7606 = vunpack.c.l.b16 %v7275
    %v7607 = vunpack.c.h.b16 %v7275
    %v7608 = vunpack.c.l.b16 %v7276
    %v7609 = vunpack.c.h.b16 %v7276
    %v7610 = vunpack.c.l.b16 %v7277
    %v7611 = vunpack.c.h.b16 %v7277
    %v7612 = vunpack.c.l.b16 %v7278
    %v7613 = vunpack.c.h.b16 %v7278
    %v7614 = vunpack.c.l.b16 %v7279
    %v7615 = vunpack.c.h.b16 %v7279
    %v7616 = vunpack.c.l.b16 %v7280
    %v7617 = vunpack.c.h.b16 %v7280
    %v7618 = vunpack.c.l.b16 %v7281
    %v7619 = vunpack.c.h.b16 %v7281
    %v7620 = vunpack.c.l.b16 %v7282
    %v7621 = vunpack.c.h.b16 %v7282
    %v7622 = vunpack.c.l.b16 %v7283
    %v7623 = vunpack.c.h.b16 %v7283
    %v7624 = vunpack.c.l.b16 %v7284
    %v7625 = vunpack.c.h.b16 %v7284
    %v7626 = vunpack.c.l.b16 %v7285
    %v7627 = vunpack.c.h.b16 %v7285
    %v7628 = vunpack.c.l.b16 %v7286
    %v7629 = vunpack.c.h.b16 %v7286
    %v7630 = vunpack.c.l.b16 %v7287
    %v7631 = vunpack.c.h.b16 %v7287
    %v7632 = vunpack.c.l.b16 %v7288
    %v7633 = vunpack.c.h.b16 %v7288
    %v7634 = vunpack.c.l.b16 %v7289
    %v7635 = vunpack.c.h.b16 %v7289
    %v7636 = vunpack.c.l.b16 %v7290
    %v7637 = vunpack.c.h.b16 %v7290
    %v7638 = vunpack.c.l.b16 %v7291
    %v7639 = vunpack.c.h.b16 %v7291
    %v7640 = vunpack.c.l.b16 %v7292
    %v7641 = vunpack.c.h.b16 %v7292
    %v7642 = vunpack.c.l.b16 %v7293
    %v7643 = vunpack.c.h.b16 %v7293
    %v7644 = vunpack.c.l.b16 %v7294
    %v7645 = vunpack.c.h.b16 %v7294
    %v7646 = vunpack.c.l.b16 %v7295
    %v7647 = vunpack.c.h.b16 %v7295
    %v7648 = vunpack.c.l.b16 %v7296
    %v7649 = vunpack.c.h.b16 %v7296
    %v7650 = vunpack.c.l.b16 %v7297
    %v7651 = vunpack.c.h.b16 %v7297
    %v7652 = vunpack.c.l.b16 %v7298
    %v7653 = vunpack.c.h.b16 %v7298
    %v7654 = vunpack.c.l.b16 %v7299
    %v7655 = vunpack.c.h.b16 %v7299
    %v7656 = vunpack.c.l.b16 %v7300
    %v7657 = vunpack.c.h.b16 %v7300
    %v7658 = vunpack.c.l.b16 %v7301
    %v7659 = vunpack.c.h.b16 %v7301
    %v7660 = vunpack.c.l.b16 %v7302
    %v7661 = vunpack.c.h.b16 %v7302
    %v7662 = vunpack.c.l.b16 %v7303
    %v7663 = vunpack.c.h.b16 %v7303
    %v7664 = vunpack.c.l.b16 %v7304
    %v7665 = vunpack.c.h.b16 %v7304
    %v7666 = vunpack.c.l.b16 %v7305
    %v7667 = vunpack.c.h.b16 %v7305
    %v7668 = vunpack.c.l.b16 %v7306
    %v7669 = vunpack.c.h.b16 %v7306
    %v7670 = vunpack.c.l.b16 %v7307
    %v7671 = vunpack.c.h.b16 %v7307
    %v7672 = vunpack.c.l.b16 %v7308
    %v7673 = vunpack.c.h.b16 %v7308
    %v7674 = vunpack.c.l.b16 %v7309
    %v7675 = vunpack.c.h.b16 %v7309
    %v7676 = vunpack.c.l.b16 %v7310
    %v7677 = vunpack.c.h.b16 %v7310
    %v7678 = vunpack.c.l.b16 %v7311
    %v7679 = vunpack.c.h.b16 %v7311
    %v7680 = vunpack.c.l.b16 %v7312
    %v7681 = vunpack.c.h.b16 %v7312
    %v7682 = vunpack.c.l.b16 %v7313
    %v7683 = vunpack.c.h.b16 %v7313
    %v7684 = vunpack.c.l.b16 %v7314
    %v7685 = vunpack.c.h.b16 %v7314
    %v7686 = vunpack.c.l.b16 %v7315
    %v7687 = vunpack.c.h.b16 %v7315
    %v7688 = vunpack.c.l.b16 %v7316
    %v7689 = vunpack.c.h.b16 %v7316
    %v7690 = vunpack.c.l.b16 %v7317
    %v7691 = vunpack.c.h.b16 %v7317
    %v7692 = vunpack.c.l.b16 %v7318
    %v7693 = vunpack.c.h.b16 %v7318
    %v7694 = vunpack.c.l.b16 %v7319
    %v7695 = vunpack.c.h.b16 %v7319
    %v7696 = vunpack.c.l.b16 %v7320
    %v7697 = vunpack.c.h.b16 %v7320
    %v7698 = vunpack.c.l.b16 %v7321
    %v7699 = vunpack.c.h.b16 %v7321
    %v7700 = vunpack.c.l.b16 %v7322
    %v7701 = vunpack.c.h.b16 %v7322
    %v7702 = vunpack.c.l.b16 %v7323
    %v7703 = vunpack.c.h.b16 %v7323
    %v7704 = vunpack.c.l.b16 %v7324
    %v7705 = vunpack.c.h.b16 %v7324
    %v7706 = vunpack.c.l.b16 %v7325
    %v7707 = vunpack.c.h.b16 %v7325
    %v7708 = vunpack.c.l.b16 %v7326
    %v7709 = vunpack.c.h.b16 %v7326
    %v7710 = vunpack.c.l.b16 %v7327
    %v7711 = vunpack.c.h.b16 %v7327
    %v7712 = vunpack.c.l.b16 %v7328
    %v7713 = vunpack.c.h.b16 %v7328
    %v7714 = vunpack.c.l.b16 %v7329
    %v7715 = vunpack.c.h.b16 %v7329
    %v7716 = vunpack.c.l.b16 %v7330
    %v7717 = vunpack.c.h.b16 %v7330
    %v7718 = vunpack.c.l.b16 %v7331
    %v7719 = vunpack.c.h.b16 %v7331
    %v7720 = vunpack.c.l.b16 %v7332
    %v7721 = vunpack.c.h.b16 %v7332
    %v7722 = vunpack.c.l.b16 %v7333
    %v7723 = vunpack.c.h.b16 %v7333
    %v7724 = vunpack.c.l.b16 %v7334
    %v7725 = vunpack.c.h.b16 %v7334
    %v7726 = vunpack.c.l.b16 %v7335
    %v7727 = vunpack.c.h.b16 %v7335
    %v7728 = vunpack.c.l.b16 %v7336
    %v7729 = vunpack.c.h.b16 %v7336
    %v7730 = vunpack.c.l.b16 %v7337
    %v7731 = vunpack.c.h.b16 %v7337
    %v7732 = vunpack.c.l.b16 %v7338
    %v7733 = vunpack.c.h.b16 %v7338
    %v7734 = vunpack.c.l.b16 %v7339
    %v7735 = vunpack.c.h.b16 %v7339
    %v7736 = vunpack.c.l.b16 %v7340
    %v7737 = vunpack.c.h.b16 %v7340
    %v7738 = vunpack.c.l.b16 %v7341
    %v7739 = vunpack.c.h.b16 %v7341
    %v7740 = vunpack.c.l.b16 %v7342
    %v7741 = vunpack.c.h.b16 %v7342
    %v7742 = vunpack.c.l.b16 %v7343
    %v7743 = vunpack.c.h.b16 %v7343
    %v7744 = vunpack.c.l.b16 %v7344
    %v7745 = vunpack.c.h.b16 %v7344
    %v7746 = vunpack.c.l.b16 %v7345
    %v7747 = vunpack.c.h.b16 %v7345
    %v7748 = vunpack.c.l.b16 %v7346
    %v7749 = vunpack.c.h.b16 %v7346
    %v7750 = vunpack.c.l.b16 %v7347
    %v7751 = vunpack.c.h.b16 %v7347
    %v7752 = vunpack.c.l.b16 %v7348
    %v7753 = vunpack.c.h.b16 %v7348
    %v7754 = vunpack.c.l.b16 %v7349
    %v7755 = vunpack.c.h.b16 %v7349
    %v7756 = vunpack.c.l.b16 %v7350
    %v7757 = vunpack.c.h.b16 %v7350
    %v7758 = vunpack.c.l.b16 %v7351
    %v7759 = vunpack.c.h.b16 %v7351
    %v7760 = vunpack.c.l.b16 %v7352
    %v7761 = vunpack.c.h.b16 %v7352
    %v7762 = vunpack.c.l.b16 %v7353
    %v7763 = vunpack.c.h.b16 %v7353
    %v7764 = vunpack.c.l.b16 %v7354
    %v7765 = vunpack.c.h.b16 %v7354
    %v7766 = vpack.c.b16 %v7514, %v7510
    %v7767 = vpack.c.b16 %v7515, %v7511
    %v7768 = vpack.c.b16 %v7516, %v7512
    %v7769 = vpack.c.b16 %v7517, %v7513
    %v7770 = vpack.c.b16 %v7522, %v7518
    %v7771 = vpack.c.b16 %v7523, %v7519
    %v7772 = vpack.c.b16 %v7524, %v7520
    %v7773 = vpack.c.b16 %v7525, %v7521
    %v7774 = vpack.c.b16 %v7530, %v7526
    %v7775 = vpack.c.b16 %v7531, %v7527
    %v7776 = vpack.c.b16 %v7532, %v7528
    %v7777 = vpack.c.b16 %v7533, %v7529
    %v7778 = vpack.c.b16 %v7538, %v7534
    %v7779 = vpack.c.b16 %v7539, %v7535
    %v7780 = vpack.c.b16 %v7540, %v7536
    %v7781 = vpack.c.b16 %v7541, %v7537
    %v7782 = vpack.c.b16 %v7546, %v7542
    %v7783 = vpack.c.b16 %v7547, %v7543
    %v7784 = vpack.c.b16 %v7548, %v7544
    %v7785 = vpack.c.b16 %v7549, %v7545
    %v7786 = vpack.c.b16 %v7554, %v7550
    %v7787 = vpack.c.b16 %v7555, %v7551
    %v7788 = vpack.c.b16 %v7556, %v7552
    %v7789 = vpack.c.b16 %v7557, %v7553
    %v7790 = vpack.c.b16 %v7562, %v7558
    %v7791 = vpack.c.b16 %v7563, %v7559
    %v7792 = vpack.c.b16 %v7564, %v7560
    %v7793 = vpack.c.b16 %v7565, %v7561
    %v7794 = vpack.c.b16 %v7570, %v7566
    %v7795 = vpack.c.b16 %v7571, %v7567
    %v7796 = vpack.c.b16 %v7572, %v7568
    %v7797 = vpack.c.b16 %v7573, %v7569
    %v7798 = vpack.c.b16 %v7578, %v7574
    %v7799 = vpack.c.b16 %v7579, %v7575
    %v7800 = vpack.c.b16 %v7580, %v7576
    %v7801 = vpack.c.b16 %v7581, %v7577
    %v7802 = vpack.c.b16 %v7586, %v7582
    %v7803 = vpack.c.b16 %v7587, %v7583
    %v7804 = vpack.c.b16 %v7588, %v7584
    %v7805 = vpack.c.b16 %v7589, %v7585
    %v7806 = vpack.c.b16 %v7594, %v7590
    %v7807 = vpack.c.b16 %v7595, %v7591
    %v7808 = vpack.c.b16 %v7596, %v7592
    %v7809 = vpack.c.b16 %v7597, %v7593
    %v7810 = vpack.c.b16 %v7602, %v7598
    %v7811 = vpack.c.b16 %v7603, %v7599
    %v7812 = vpack.c.b16 %v7604, %v7600
    %v7813 = vpack.c.b16 %v7605, %v7601
    %v7814 = vpack.c.b16 %v7610, %v7606
    %v7815 = vpack.c.b16 %v7611, %v7607
    %v7816 = vpack.c.b16 %v7612, %v7608
    %v7817 = vpack.c.b16 %v7613, %v7609
    %v7818 = vpack.c.b16 %v7618, %v7614
    %v7819 = vpack.c.b16 %v7619, %v7615
    %v7820 = vpack.c.b16 %v7620, %v7616
    %v7821 = vpack.c.b16 %v7621, %v7617
    %v7822 = vpack.c.b16 %v7626, %v7622
    %v7823 = vpack.c.b16 %v7627, %v7623
    %v7824 = vpack.c.b16 %v7628, %v7624
    %v7825 = vpack.c.b16 %v7629, %v7625
    %v7826 = vpack.c.b16 %v7634, %v7630
    %v7827 = vpack.c.b16 %v7635, %v7631
    %v7828 = vpack.c.b16 %v7636, %v7632
    %v7829 = vpack.c.b16 %v7637, %v7633
    %v7830 = vpack.c.b16 %v7642, %v7638
    %v7831 = vpack.c.b16 %v7643, %v7639
    %v7832 = vpack.c.b16 %v7644, %v7640
    %v7833 = vpack.c.b16 %v7645, %v7641
    %v7834 = vpack.c.b16 %v7650, %v7646
    %v7835 = vpack.c.b16 %v7651, %v7647
    %v7836 = vpack.c.b16 %v7652, %v7648
    %v7837 = vpack.c.b16 %v7653, %v7649
    %v7838 = vpack.c.b16 %v7658, %v7654
    %v7839 = vpack.c.b16 %v7659, %v7655
    %v7840 = vpack.c.b16 %v7660, %v7656
    %v7841 = vpack.c.b16 %v7661, %v7657
    %v7842 = vpack.c.b16 %v7666, %v7662
    %v7843 = vpack.c.b16 %v7667, %v7663
    %v7844 = vpack.c.b16 %v7668, %v7664
    %v7845 = vpack.c.b16 %v7669, %v7665
    %v7846 = vpack.c.b16 %v7674, %v7670
    %v7847 = vpack.c.b16 %v7675, %v7671
    %v7848 = vpack.c.b16 %v7676, %v7672
    %v7849 = vpack.c.b16 %v7677, %v7673
    %v7850 = vpack.c.b16 %v7682, %v7678
    %v7851 = vpack.c.b16 %v7683, %v7679
    %v7852 = vpack.c.b16 %v7684, %v7680
    %v7853 = vpack.c.b16 %v7685, %v7681
    %v7854 = vpack.c.b16 %v7690, %v7686
    %v7855 = vpack.c.b16 %v7691, %v7687
    %v7856 = vpack.c.b16 %v7692, %v7688
    %v7857 = vpack.c.b16 %v7693, %v7689
    %v7858 = vpack.c.b16 %v7698, %v7694
    %v7859 = vpack.c.b16 %v7699, %v7695
    %v7860 = vpack.c.b16 %v7700, %v7696
    %v7861 = vpack.c.b16 %v7701, %v7697
    %v7862 = vpack.c.b16 %v7706, %v7702
    %v7863 = vpack.c.b16 %v7707, %v7703
    %v7864 = vpack.c.b16 %v7708, %v7704
    %v7865 = vpack.c.b16 %v7709, %v7705
    %v7866 = vpack.c.b16 %v7714, %v7710
    %v7867 = vpack.c.b16 %v7715, %v7711
    %v7868 = vpack.c.b16 %v7716, %v7712
    %v7869 = vpack.c.b16 %v7717, %v7713
    %v7870 = vpack.c.b16 %v7722, %v7718
    %v7871 = vpack.c.b16 %v7723, %v7719
    %v7872 = vpack.c.b16 %v7724, %v7720
    %v7873 = vpack.c.b16 %v7725, %v7721
    %v7874 = vpack.c.b16 %v7730, %v7726
    %v7875 = vpack.c.b16 %v7731, %v7727
    %v7876 = vpack.c.b16 %v7732, %v7728
    %v7877 = vpack.c.b16 %v7733, %v7729
    %v7878 = vpack.c.b16 %v7738, %v7734
    %v7879 = vpack.c.b16 %v7739, %v7735
    %v7880 = vpack.c.b16 %v7740, %v7736
    %v7881 = vpack.c.b16 %v7741, %v7737
    %v7882 = vpack.c.b16 %v7746, %v7742
    %v7883 = vpack.c.b16 %v7747, %v7743
    %v7884 = vpack.c.b16 %v7748, %v7744
    %v7885 = vpack.c.b16 %v7749, %v7745
    %v7886 = vpack.c.b16 %v7754, %v7750
    %v7887 = vpack.c.b16 %v7755, %v7751
    %v7888 = vpack.c.b16 %v7756, %v7752
    %v7889 = vpack.c.b16 %v7757, %v7753
    %v7890 = vpack.c.b16 %v7762, %v7758
    %v7891 = vpack.c.b16 %v7763, %v7759
    %v7892 = vpack.c.b16 %v7764, %v7760
    %v7893 = vpack.c.b16 %v7765, %v7761
    %8022 = vmatprep.subr.bf16.mxu0 %v7795
    %8023 = vmatpush1.bf16.msra.mxu0 %v7794
    %8024 = vmatprep.subr.bf16.mxu0 %v7791
    %8025 = vmatpush1.bf16.msra.mxu0 %v7790
    %8026 = vmatprep.subr.bf16.mxu0 %v7787
    %8027 = vmatpush1.bf16.msra.mxu0 %v7786
    %8028 = vmatprep.subr.bf16.mxu0 %v7783
    %8029 = vmatpush1.bf16.msra.mxu0 %v7782
    %8030 = vmatprep.subr.bf16.mxu0 %v7779
    %8031 = vmatpush1.bf16.msra.mxu0 %v7778
    %8032 = vmatprep.subr.bf16.mxu0 %v7775
    %8033 = vmatpush1.bf16.msra.mxu0 %v7774
    %8034 = vmatprep.subr.bf16.mxu0 %v7771
    %8035 = vmatpush1.bf16.msra.mxu0 %v7770
    %8036 = vmatprep.subr.bf16.mxu0 %v7767
    %8037 = vmatpush1.bf16.msra.mxu0 %v7766
    %8038 = vmatprep.subr.bf16.mxu0 %v7827
    %8039 = vmatpush2.bf16.msra.mxu0 %v7826
    %8040 = vmatprep.subr.bf16.mxu0 %v7823
    %8041 = vmatpush2.bf16.msra.mxu0 %v7822
    %8042 = vmatprep.subr.bf16.mxu0 %v7819
    %8043 = vmatpush2.bf16.msra.mxu0 %v7818
    %8044 = vmatprep.subr.bf16.mxu0 %v7815
    %8045 = vmatpush2.bf16.msra.mxu0 %v7814
    %8046 = vmatprep.subr.bf16.mxu0 %v7811
    %8047 = vmatpush2.bf16.msra.mxu0 %v7810
    %8048 = vmatprep.subr.bf16.mxu0 %v7807
    %8049 = vmatpush2.bf16.msra.mxu0 %v7806
    %8050 = vmatprep.subr.bf16.mxu0 %v7803
    %8051 = vmatpush2.bf16.msra.mxu0 %v7802
    %8052 = vmatprep.subr.bf16.mxu0 %v7799
    %8053 = vmatpush2.bf16.msra.mxu0 %v7798
    %8054 = vmatprep.mubr.bf16.mxu0 %v7356
    %8055 = vmatmul.mubr.bf16.gmra.mxu0 %v7355
    %v8056 = vpop.f32.mrf.mxu0
    %v8057 = vadd.f32 %v7365, %v8056
    %v8058 = vpop.f32.mrf.mxu0
    %v8059 = vadd.f32 %v7369, %v8058
    %v8060 = vpop.f32.mrf.mxu0
    %v8061 = vpop.f32.mrf.mxu0
    %8062 = vdwg.mxu0
    %8063 = vmatprep.subr.bf16.mxu0 %v7859
    %8064 = vmatpush1.bf16.msra.mxu0 %v7858
    %8065 = vmatprep.subr.bf16.mxu0 %v7855
    %8066 = vmatpush1.bf16.msra.mxu0 %v7854
    %8067 = vmatprep.subr.bf16.mxu0 %v7851
    %8068 = vmatpush1.bf16.msra.mxu0 %v7850
    %8069 = vmatprep.subr.bf16.mxu0 %v7847
    %8070 = vmatpush1.bf16.msra.mxu0 %v7846
    %8071 = vmatprep.subr.bf16.mxu0 %v7843
    %8072 = vmatpush1.bf16.msra.mxu0 %v7842
    %8073 = vmatprep.subr.bf16.mxu0 %v7839
    %8074 = vmatpush1.bf16.msra.mxu0 %v7838
    %8075 = vmatprep.subr.bf16.mxu0 %v7835
    %8076 = vmatpush1.bf16.msra.mxu0 %v7834
    %8077 = vmatprep.subr.bf16.mxu0 %v7831
    %8078 = vmatpush1.bf16.msra.mxu0 %v7830
    %8079 = vmatprep.subr.bf16.mxu0 %v7891
    %8080 = vmatpush2.bf16.msra.mxu0 %v7890
    %8081 = vmatprep.subr.bf16.mxu0 %v7887
    %8082 = vmatpush2.bf16.msra.mxu0 %v7886
    %8083 = vmatprep.subr.bf16.mxu0 %v7883
    %8084 = vmatpush2.bf16.msra.mxu0 %v7882
    %8085 = vmatprep.subr.bf16.mxu0 %v7879
    %8086 = vmatpush2.bf16.msra.mxu0 %v7878
    %8087 = vmatprep.subr.bf16.mxu0 %v7875
    %8088 = vmatpush2.bf16.msra.mxu0 %v7874
    %8089 = vmatprep.subr.bf16.mxu0 %v7871
    %8090 = vmatpush2.bf16.msra.mxu0 %v7870
    %8091 = vmatprep.subr.bf16.mxu0 %v7867
    %8092 = vmatpush2.bf16.msra.mxu0 %v7866
    %8093 = vmatprep.subr.bf16.mxu0 %v7863
    %8094 = vmatpush2.bf16.msra.mxu0 %v7862
    %8095 = vmatprep.mubr.bf16.mxu0 %v7358
    %8096 = vmatmul.mubr.bf16.gmra.mxu0 %v7357
    %v8097 = vpop.f32.mrf.mxu0
    %v8098 = vadd.f32 %v8057, %v8097
    %v8099 = vpop.f32.mrf.mxu0
    %v8100 = vadd.f32 %v8059, %v8099
    %v8101 = vpop.f32.mrf.mxu0
    %v8102 = vpop.f32.mrf.mxu0
    %8103 = vdwg.mxu0
    %8104 = vmatprep.subr.bf16.mxu0 %v7797
    %8105 = vmatpush1.bf16.msra.mxu0 %v7796
    %8106 = vmatprep.subr.bf16.mxu0 %v7793
    %8107 = vmatpush1.bf16.msra.mxu0 %v7792
    %8108 = vmatprep.subr.bf16.mxu0 %v7789
    %8109 = vmatpush1.bf16.msra.mxu0 %v7788
    %8110 = vmatprep.subr.bf16.mxu0 %v7785
    %8111 = vmatpush1.bf16.msra.mxu0 %v7784
    %8112 = vmatprep.subr.bf16.mxu0 %v7781
    %8113 = vmatpush1.bf16.msra.mxu0 %v7780
    %8114 = vmatprep.subr.bf16.mxu0 %v7777
    %8115 = vmatpush1.bf16.msra.mxu0 %v7776
    %8116 = vmatprep.subr.bf16.mxu0 %v7773
    %8117 = vmatpush1.bf16.msra.mxu0 %v7772
    %8118 = vmatprep.subr.bf16.mxu0 %v7769
    %8119 = vmatpush1.bf16.msra.mxu0 %v7768
    %8120 = vmatprep.subr.bf16.mxu0 %v7829
    %8121 = vmatpush2.bf16.msra.mxu0 %v7828
    %8122 = vmatprep.subr.bf16.mxu0 %v7825
    %8123 = vmatpush2.bf16.msra.mxu0 %v7824
    %8124 = vmatprep.subr.bf16.mxu0 %v7821
    %8125 = vmatpush2.bf16.msra.mxu0 %v7820
    %8126 = vmatprep.subr.bf16.mxu0 %v7817
    %8127 = vmatpush2.bf16.msra.mxu0 %v7816
    %8128 = vmatprep.subr.bf16.mxu0 %v7813
    %8129 = vmatpush2.bf16.msra.mxu0 %v7812
    %8130 = vmatprep.subr.bf16.mxu0 %v7809
    %8131 = vmatpush2.bf16.msra.mxu0 %v7808
    %8132 = vmatprep.subr.bf16.mxu0 %v7805
    %8133 = vmatpush2.bf16.msra.mxu0 %v7804
    %8134 = vmatprep.subr.bf16.mxu0 %v7801
    %8135 = vmatpush2.bf16.msra.mxu0 %v7800
    %8136 = vmatprep.mubr.bf16.mxu0 %v7356
    %8137 = vmatmul.mubr.bf16.gmra.mxu0 %v7355
    %v8138 = vpop.f32.mrf.mxu0
    %v8139 = vadd.f32 %v7373, %v8138
    %v8140 = vpop.f32.mrf.mxu0
    %v8141 = vadd.f32 %v7377, %v8140
    %v8142 = vpop.f32.mrf.mxu0
    %v8143 = vpop.f32.mrf.mxu0
    %8144 = vdwg.mxu0
    %8145 = vmatprep.subr.bf16.mxu0 %v7861
    %8146 = vmatpush1.bf16.msra.mxu0 %v7860
    %8147 = vmatprep.subr.bf16.mxu0 %v7857
    %8148 = vmatpush1.bf16.msra.mxu0 %v7856
    %8149 = vmatprep.subr.bf16.mxu0 %v7853
    %8150 = vmatpush1.bf16.msra.mxu0 %v7852
    %8151 = vmatprep.subr.bf16.mxu0 %v7849
    %8152 = vmatpush1.bf16.msra.mxu0 %v7848
    %8153 = vmatprep.subr.bf16.mxu0 %v7845
    %8154 = vmatpush1.bf16.msra.mxu0 %v7844
    %8155 = vmatprep.subr.bf16.mxu0 %v7841
    %8156 = vmatpush1.bf16.msra.mxu0 %v7840
    %8157 = vmatprep.subr.bf16.mxu0 %v7837
    %8158 = vmatpush1.bf16.msra.mxu0 %v7836
    %8159 = vmatprep.subr.bf16.mxu0 %v7833
    %8160 = vmatpush1.bf16.msra.mxu0 %v7832
    %8161 = vmatprep.subr.bf16.mxu0 %v7893
    %8162 = vmatpush2.bf16.msra.mxu0 %v7892
    %8163 = vmatprep.subr.bf16.mxu0 %v7889
    %8164 = vmatpush2.bf16.msra.mxu0 %v7888
    %8165 = vmatprep.subr.bf16.mxu0 %v7885
    %8166 = vmatpush2.bf16.msra.mxu0 %v7884
    %8167 = vmatprep.subr.bf16.mxu0 %v7881
    %8168 = vmatpush2.bf16.msra.mxu0 %v7880
    %8169 = vmatprep.subr.bf16.mxu0 %v7877
    %8170 = vmatpush2.bf16.msra.mxu0 %v7876
    %8171 = vmatprep.subr.bf16.mxu0 %v7873
    %8172 = vmatpush2.bf16.msra.mxu0 %v7872
    %8173 = vmatprep.subr.bf16.mxu0 %v7869
    %8174 = vmatpush2.bf16.msra.mxu0 %v7868
    %8175 = vmatprep.subr.bf16.mxu0 %v7865
    %8176 = vmatpush2.bf16.msra.mxu0 %v7864
    %8177 = vmatprep.mubr.bf16.mxu0 %v7358
    %8178 = vmatmul.mubr.bf16.gmra.mxu0 %v7357
    %v8179 = vpop.f32.mrf.mxu0
    %v8180 = vadd.f32 %v8139, %v8179
    %v8181 = vpop.f32.mrf.mxu0
    %v8182 = vadd.f32 %v8141, %v8181
    %v8183 = vpop.f32.mrf.mxu0
    %v8184 = vpop.f32.mrf.mxu0
    %8185 = vdwg.mxu0
    %v8186 = vxor.u32 %v8098, 2147483648
    %v8187 = vxor.u32 %v8100, 2147483648
    %v8188 = vxor.u32 %v8180, 2147483648
    %v8189 = vxor.u32 %v8182, 2147483648
    %v8190 = vmul.f32 %v8186, 1.442695
    %v8191 = vpow.pop %v8190
    %v8192 = vmul.f32 %v8187, 1.442695
    %v8193 = vpow.pop %v8192
    %v8194 = vmul.f32 %v8188, 1.442695
    %v8195 = vpow.pop %v8194
    %v8196 = vmul.f32 %v8189, 1.442695
    %v8197 = vpow.pop %v8196
    %v8198 = vadd.f32 %v8191, 1.0
    %v8199 = vadd.f32 %v8193, 1.0
    %v8200 = vadd.f32 %v8195, 1.0
    %v8201 = vadd.f32 %v8197, 1.0
    %v8202 = vrcp.pop %v8198
    %v8203 = vmul.f32 1.0, %v8202
    %v8204 = vrcp.pop %v8199
    %v8205 = vmul.f32 1.0, %v8204
    %v8206 = vrcp.pop %v8200
    %v8207 = vmul.f32 1.0, %v8206
    %v8208 = vrcp.pop %v8201
    %v8209 = vmul.f32 1.0, %v8208
    %v8210 = vmul.f32 %v8098, %v8203
    %v8211 = vmul.f32 %v8100, %v8205
    %v8212 = vmul.f32 %v8180, %v8207
    %v8213 = vmul.f32 %v8182, %v8209
    %v8214 = vadd.f32 %v8210, %v3813
    %v8215 = vadd.f32 %v8211, %v3814
    %v8216 = vadd.f32 %v8212, %v5657
    %v8217 = vadd.f32 %v8213, %v5658
    %v8218 = vld [vmem:[#allocation2 + $0x368] sm:$0xf]
    %v8219 = vld [vmem:[#allocation2 + $0x36c] sm:$0xf]
    %v8220 = vld [vmem:[#allocation2 + $0x370] sm:$0xf]
    %v8221 = vld [vmem:[#allocation2 + $0x374] sm:$0xf]
    %v8222 = vld [vmem:[#allocation2 + $0x378] sm:$0xf]
    %v8223 = vld [vmem:[#allocation2 + $0x37c] sm:$0xf]
    %v8224 = vld [vmem:[#allocation2 + $0x380] sm:$0xf]
    %v8225 = vld [vmem:[#allocation2 + $0x384] sm:$0xf]
    %v8226 = vld [vmem:[#allocation2 + $0x388] sm:$0xf]
    %v8227 = vld [vmem:[#allocation2 + $0x38c] sm:$0xf]
    %v8228 = vld [vmem:[#allocation2 + $0x390] sm:$0xf]
    %v8229 = vld [vmem:[#allocation2 + $0x394] sm:$0xf]
    %v8230 = vld [vmem:[#allocation2 + $0x398] sm:$0xf]
    %v8231 = vld [vmem:[#allocation2 + $0x39c] sm:$0xf]
    %v8232 = vld [vmem:[#allocation2 + $0x3a0] sm:$0xf]
    %v8233 = vld [vmem:[#allocation2 + $0x3a4] sm:$0xf]
    %v8234 = vld [vmem:[#allocation2 + $0x3a8] sm:$0xf]
    %v8235 = vld [vmem:[#allocation2 + $0x3ac] sm:$0xf]
    %v8236 = vld [vmem:[#allocation2 + $0x3b0] sm:$0xf]
    %v8237 = vld [vmem:[#allocation2 + $0x3b4] sm:$0xf]
    %v8238 = vld [vmem:[#allocation2 + $0x3b8] sm:$0xf]
    %v8239 = vld [vmem:[#allocation2 + $0x3bc] sm:$0xf]
    %v8240 = vld [vmem:[#allocation2 + $0x3c0] sm:$0xf]
    %v8241 = vld [vmem:[#allocation2 + $0x3c4] sm:$0xf]
    %v8242 = vld [vmem:[#allocation2 + $0x3c8] sm:$0xf]
    %v8243 = vld [vmem:[#allocation2 + $0x3cc] sm:$0xf]
    %v8244 = vld [vmem:[#allocation2 + $0x3d0] sm:$0xf]
    %v8245 = vld [vmem:[#allocation2 + $0x3d4] sm:$0xf]
    %v8246 = vld [vmem:[#allocation2 + $0x3d8] sm:$0xf]
    %v8247 = vld [vmem:[#allocation2 + $0x3dc] sm:$0xf]
    %v8248 = vld [vmem:[#allocation2 + $0x3e0] sm:$0xf]
    %v8249 = vld [vmem:[#allocation2 + $0x3e4] sm:$0xf]
    %v8250 = vld [vmem:[#allocation2 + $0x3e8] sm:$0xf]
    %v8251 = vld [vmem:[#allocation2 + $0x3ec] sm:$0xf]
    %v8252 = vld [vmem:[#allocation2 + $0x3f0] sm:$0xf]
    %v8253 = vld [vmem:[#allocation2 + $0x3f4] sm:$0xf]
    %v8254 = vld [vmem:[#allocation2 + $0x3f8] sm:$0xf]
    %v8255 = vld [vmem:[#allocation2 + $0x3fc] sm:$0xf]
    %v8256 = vld [vmem:[#allocation2 + $0x400] sm:$0xf]
    %v8257 = vld [vmem:[#allocation2 + $0x404] sm:$0xf]
    %v8258 = vld [vmem:[#allocation2 + $0x408] sm:$0xf]
    %v8259 = vld [vmem:[#allocation2 + $0x40c] sm:$0xf]
    %v8260 = vld [vmem:[#allocation2 + $0x410] sm:$0xf]
    %v8261 = vld [vmem:[#allocation2 + $0x414] sm:$0xf]
    %v8262 = vld [vmem:[#allocation2 + $0x418] sm:$0xf]
    %v8263 = vld [vmem:[#allocation2 + $0x41c] sm:$0xf]
    %v8264 = vld [vmem:[#allocation2 + $0x420] sm:$0xf]
    %v8265 = vld [vmem:[#allocation2 + $0x424] sm:$0xf]
    %v8266 = vld [vmem:[#allocation2 + $0x428] sm:$0xf]
    %v8267 = vld [vmem:[#allocation2 + $0x42c] sm:$0xf]
    %v8268 = vld [vmem:[#allocation2 + $0x430] sm:$0xf]
    %v8269 = vld [vmem:[#allocation2 + $0x434] sm:$0xf]
    %v8270 = vld [vmem:[#allocation2 + $0x438] sm:$0xf]
    %v8271 = vld [vmem:[#allocation2 + $0x43c] sm:$0xf]
    %v8272 = vld [vmem:[#allocation2 + $0x440] sm:$0xf]
    %v8273 = vld [vmem:[#allocation2 + $0x444] sm:$0xf]
    %v8274 = vld [vmem:[#allocation2 + $0x448] sm:$0xf]
    %v8275 = vld [vmem:[#allocation2 + $0x44c] sm:$0xf]
    %v8276 = vld [vmem:[#allocation2 + $0x450] sm:$0xf]
    %v8277 = vld [vmem:[#allocation2 + $0x454] sm:$0xf]
    %v8278 = vld [vmem:[#allocation2 + $0x458] sm:$0xf]
    %v8279 = vld [vmem:[#allocation2 + $0x45c] sm:$0xf]
    %v8280 = vld [vmem:[#allocation2 + $0x460] sm:$0xf]
    %v8281 = vld [vmem:[#allocation2 + $0x464] sm:$0xf]
    %v8282 = vld [vmem:[#allocation2 + $0x468] sm:$0xf]
    %v8283 = vld [vmem:[#allocation2 + $0x46c] sm:$0xf]
    %v8284 = vld [vmem:[#allocation2 + $0x470] sm:$0xf]
    %v8285 = vld [vmem:[#allocation2 + $0x474] sm:$0xf]
    %v8286 = vld [vmem:[#allocation2 + $0x478] sm:$0xf]
    %v8287 = vld [vmem:[#allocation2 + $0x47c] sm:$0xf]
    %v8288 = vld [vmem:[#allocation2 + $0x480] sm:$0xf]
    %v8289 = vld [vmem:[#allocation2 + $0x484] sm:$0xf]
    %v8290 = vld [vmem:[#allocation2 + $0x488] sm:$0xf]
    %v8291 = vld [vmem:[#allocation2 + $0x48c] sm:$0xf]
    %v8292 = vld [vmem:[#allocation2 + $0x490] sm:$0xf]
    %v8293 = vld [vmem:[#allocation2 + $0x494] sm:$0xf]
    %v8294 = vld [vmem:[#allocation2 + $0x498] sm:$0xf]
    %v8295 = vld [vmem:[#allocation2 + $0x49c] sm:$0xf]
    %v8296 = vld [vmem:[#allocation2 + $0x4a0] sm:$0xf]
    %v8297 = vld [vmem:[#allocation2 + $0x4a4] sm:$0xf]
    %v8298 = vld [vmem:[#allocation2 + $0x4a8] sm:$0xf]
    %v8299 = vld [vmem:[#allocation2 + $0x4ac] sm:$0xf]
    %v8300 = vld [vmem:[#allocation2 + $0x4b0] sm:$0xf]
    %v8301 = vld [vmem:[#allocation2 + $0x4b4] sm:$0xf]
    %v8302 = vld [vmem:[#allocation2 + $0x4b8] sm:$0xf]
    %v8303 = vld [vmem:[#allocation2 + $0x4bc] sm:$0xf]
    %v8304 = vld [vmem:[#allocation2 + $0x4c0] sm:$0xf]
    %v8305 = vld [vmem:[#allocation2 + $0x4c4] sm:$0xf]
    %v8306 = vld [vmem:[#allocation2 + $0x4c8] sm:$0xf]
    %v8307 = vld [vmem:[#allocation2 + $0x4cc] sm:$0xf]
    %v8308 = vld [vmem:[#allocation2 + $0x4d0] sm:$0xf]
    %v8309 = vld [vmem:[#allocation2 + $0x4d4] sm:$0xf]
    %v8310 = vld [vmem:[#allocation2 + $0x4d8] sm:$0xf]
    %v8311 = vld [vmem:[#allocation2 + $0x4dc] sm:$0xf]
    %v8312 = vld [vmem:[#allocation2 + $0x4e0] sm:$0xf]
    %v8313 = vld [vmem:[#allocation2 + $0x4e4] sm:$0xf]
    %v8314 = vpack.c.bf16 %v8214, %v8214
    %v8315 = vpack.c.bf16 %v8215, %v8215
    %v8348 = vunpack.c.l.b16 %v8282
    %v8349 = vunpack.c.l.b16 %v8283
    %v8350 = vunpack.c.l.b16 %v8284
    %v8351 = vunpack.c.l.b16 %v8285
    %v8352 = vunpack.c.l.b16 %v8286
    %v8353 = vunpack.c.l.b16 %v8287
    %v8354 = vunpack.c.l.b16 %v8288
    %v8355 = vunpack.c.l.b16 %v8289
    %v8356 = vunpack.c.l.b16 %v8290
    %v8357 = vunpack.c.l.b16 %v8291
    %v8358 = vunpack.c.l.b16 %v8292
    %v8359 = vunpack.c.l.b16 %v8293
    %v8360 = vunpack.c.l.b16 %v8294
    %v8361 = vunpack.c.l.b16 %v8295
    %v8362 = vunpack.c.l.b16 %v8296
    %v8363 = vunpack.c.l.b16 %v8297
    %v8364 = vunpack.c.l.b16 %v8298
    %v8365 = vunpack.c.l.b16 %v8299
    %v8366 = vunpack.c.l.b16 %v8300
    %v8367 = vunpack.c.l.b16 %v8301
    %v8368 = vunpack.c.l.b16 %v8302
    %v8369 = vunpack.c.l.b16 %v8303
    %v8370 = vunpack.c.l.b16 %v8304
    %v8371 = vunpack.c.l.b16 %v8305
    %v8372 = vunpack.c.l.b16 %v8306
    %v8373 = vunpack.c.l.b16 %v8307
    %v8374 = vunpack.c.l.b16 %v8308
    %v8375 = vunpack.c.l.b16 %v8309
    %v8376 = vunpack.c.l.b16 %v8310
    %v8377 = vunpack.c.l.b16 %v8311
    %v8378 = vunpack.c.l.b16 %v8312
    %v8379 = vunpack.c.l.b16 %v8313
    %v8380 = vpack.c.b16 %v8349, %v8348
    %v8381 = vpack.c.b16 %v8351, %v8350
    %v8382 = vpack.c.b16 %v8353, %v8352
    %v8383 = vpack.c.b16 %v8355, %v8354
    %v8384 = vpack.c.b16 %v8357, %v8356
    %v8385 = vpack.c.b16 %v8359, %v8358
    %v8386 = vpack.c.b16 %v8361, %v8360
    %v8387 = vpack.c.b16 %v8363, %v8362
    %v8388 = vpack.c.b16 %v8365, %v8364
    %v8389 = vpack.c.b16 %v8367, %v8366
    %v8390 = vpack.c.b16 %v8369, %v8368
    %v8391 = vpack.c.b16 %v8371, %v8370
    %v8392 = vpack.c.b16 %v8373, %v8372
    %v8393 = vpack.c.b16 %v8375, %v8374
    %v8394 = vpack.c.b16 %v8377, %v8376
    %v8395 = vpack.c.b16 %v8379, %v8378
    %8412 = vmatprep.subr.bf16.mxu0 0
    %8413 = vmatpush1.bf16.msra.mxu0 %v8387
    %8414 = vmatprep.subr.bf16.mxu0 0
    %8415 = vmatpush1.bf16.msra.mxu0 %v8386
    %8416 = vmatprep.subr.bf16.mxu0 0
    %8417 = vmatpush1.bf16.msra.mxu0 %v8385
    %8418 = vmatprep.subr.bf16.mxu0 0
    %8419 = vmatpush1.bf16.msra.mxu0 %v8384
    %8420 = vmatprep.subr.bf16.mxu0 0
    %8421 = vmatpush1.bf16.msra.mxu0 %v8383
    %8422 = vmatprep.subr.bf16.mxu0 0
    %8423 = vmatpush1.bf16.msra.mxu0 %v8382
    %8424 = vmatprep.subr.bf16.mxu0 0
    %8425 = vmatpush1.bf16.msra.mxu0 %v8381
    %8426 = vmatprep.subr.bf16.mxu0 0
    %8427 = vmatpush1.bf16.msra.mxu0 %v8380
    %8428 = vmatprep.subr.bf16.mxu0 0
    %8429 = vmatpush2.bf16.msra.mxu0 %v8395
    %8430 = vmatprep.subr.bf16.mxu0 0
    %8431 = vmatpush2.bf16.msra.mxu0 %v8394
    %8432 = vmatprep.subr.bf16.mxu0 0
    %8433 = vmatpush2.bf16.msra.mxu0 %v8393
    %8434 = vmatprep.subr.bf16.mxu0 0
    %8435 = vmatpush2.bf16.msra.mxu0 %v8392
    %8436 = vmatprep.subr.bf16.mxu0 0
    %8437 = vmatpush2.bf16.msra.mxu0 %v8391
    %8438 = vmatprep.subr.bf16.mxu0 0
    %8439 = vmatpush2.bf16.msra.mxu0 %v8390
    %8440 = vmatprep.subr.bf16.mxu0 0
    %8441 = vmatpush2.bf16.msra.mxu0 %v8389
    %8442 = vmatprep.subr.bf16.mxu0 0
    %8443 = vmatpush2.bf16.msra.mxu0 %v8388
    %8444 = vmatprep.mubr.bf16.mxu0 %v8315
    %8445 = vmatmul.mubr.bf16.gmra.mxu0 %v8314
    %v8446 = vpop.f32.mrf.mxu0
    %v8447 = vadd.f32 0.0, %v8446
    %v8448 = vpop.f32.mrf.mxu0
    %v8449 = vpop.f32.mrf.mxu0
    %v8450 = vpop.f32.mrf.mxu0
    %8451 = vdwg.mxu0
    %v8516 = vunpack.c.l.b16 %v8218
    %v8517 = vunpack.c.l.b16 %v8219
    %v8518 = vunpack.c.l.b16 %v8220
    %v8519 = vunpack.c.l.b16 %v8221
    %v8520 = vunpack.c.l.b16 %v8222
    %v8521 = vunpack.c.l.b16 %v8223
    %v8522 = vunpack.c.l.b16 %v8224
    %v8523 = vunpack.c.l.b16 %v8225
    %v8524 = vunpack.c.l.b16 %v8226
    %v8525 = vunpack.c.l.b16 %v8227
    %v8526 = vunpack.c.l.b16 %v8228
    %v8527 = vunpack.c.l.b16 %v8229
    %v8528 = vunpack.c.l.b16 %v8230
    %v8529 = vunpack.c.l.b16 %v8231
    %v8530 = vunpack.c.l.b16 %v8232
    %v8531 = vunpack.c.l.b16 %v8233
    %v8532 = vunpack.c.l.b16 %v8234
    %v8533 = vunpack.c.l.b16 %v8235
    %v8534 = vunpack.c.l.b16 %v8236
    %v8535 = vunpack.c.l.b16 %v8237
    %v8536 = vunpack.c.l.b16 %v8238
    %v8537 = vunpack.c.l.b16 %v8239
    %v8538 = vunpack.c.l.b16 %v8240
    %v8539 = vunpack.c.l.b16 %v8241
    %v8540 = vunpack.c.l.b16 %v8242
    %v8541 = vunpack.c.l.b16 %v8243
    %v8542 = vunpack.c.l.b16 %v8244
    %v8543 = vunpack.c.l.b16 %v8245
    %v8544 = vunpack.c.l.b16 %v8246
    %v8545 = vunpack.c.l.b16 %v8247
    %v8546 = vunpack.c.l.b16 %v8248
    %v8547 = vunpack.c.l.b16 %v8249
    %v8548 = vunpack.c.l.b16 %v8250
    %v8549 = vunpack.c.l.b16 %v8251
    %v8550 = vunpack.c.l.b16 %v8252
    %v8551 = vunpack.c.l.b16 %v8253
    %v8552 = vunpack.c.l.b16 %v8254
    %v8553 = vunpack.c.l.b16 %v8255
    %v8554 = vunpack.c.l.b16 %v8256
    %v8555 = vunpack.c.l.b16 %v8257
    %v8556 = vunpack.c.l.b16 %v8258
    %v8557 = vunpack.c.l.b16 %v8259
    %v8558 = vunpack.c.l.b16 %v8260
    %v8559 = vunpack.c.l.b16 %v8261
    %v8560 = vunpack.c.l.b16 %v8262
    %v8561 = vunpack.c.l.b16 %v8263
    %v8562 = vunpack.c.l.b16 %v8264
    %v8563 = vunpack.c.l.b16 %v8265
    %v8564 = vunpack.c.l.b16 %v8266
    %v8565 = vunpack.c.l.b16 %v8267
    %v8566 = vunpack.c.l.b16 %v8268
    %v8567 = vunpack.c.l.b16 %v8269
    %v8568 = vunpack.c.l.b16 %v8270
    %v8569 = vunpack.c.l.b16 %v8271
    %v8570 = vunpack.c.l.b16 %v8272
    %v8571 = vunpack.c.l.b16 %v8273
    %v8572 = vunpack.c.l.b16 %v8274
    %v8573 = vunpack.c.l.b16 %v8275
    %v8574 = vunpack.c.l.b16 %v8276
    %v8575 = vunpack.c.l.b16 %v8277
    %v8576 = vunpack.c.l.b16 %v8278
    %v8577 = vunpack.c.l.b16 %v8279
    %v8578 = vunpack.c.l.b16 %v8280
    %v8579 = vunpack.c.l.b16 %v8281
    %v8580 = vpack.c.b16 %v8517, %v8516
    %v8581 = vpack.c.b16 %v8519, %v8518
    %v8582 = vpack.c.b16 %v8521, %v8520
    %v8583 = vpack.c.b16 %v8523, %v8522
    %v8584 = vpack.c.b16 %v8525, %v8524
    %v8585 = vpack.c.b16 %v8527, %v8526
    %v8586 = vpack.c.b16 %v8529, %v8528
    %v8587 = vpack.c.b16 %v8531, %v8530
    %v8588 = vpack.c.b16 %v8533, %v8532
    %v8589 = vpack.c.b16 %v8535, %v8534
    %v8590 = vpack.c.b16 %v8537, %v8536
    %v8591 = vpack.c.b16 %v8539, %v8538
    %v8592 = vpack.c.b16 %v8541, %v8540
    %v8593 = vpack.c.b16 %v8543, %v8542
    %v8594 = vpack.c.b16 %v8545, %v8544
    %v8595 = vpack.c.b16 %v8547, %v8546
    %v8596 = vpack.c.b16 %v8549, %v8548
    %v8597 = vpack.c.b16 %v8551, %v8550
    %v8598 = vpack.c.b16 %v8553, %v8552
    %v8599 = vpack.c.b16 %v8555, %v8554
    %v8600 = vpack.c.b16 %v8557, %v8556
    %v8601 = vpack.c.b16 %v8559, %v8558
    %v8602 = vpack.c.b16 %v8561, %v8560
    %v8603 = vpack.c.b16 %v8563, %v8562
    %v8604 = vpack.c.b16 %v8565, %v8564
    %v8605 = vpack.c.b16 %v8567, %v8566
    %v8606 = vpack.c.b16 %v8569, %v8568
    %v8607 = vpack.c.b16 %v8571, %v8570
    %v8608 = vpack.c.b16 %v8573, %v8572
    %v8609 = vpack.c.b16 %v8575, %v8574
    %v8610 = vpack.c.b16 %v8577, %v8576
    %v8611 = vpack.c.b16 %v8579, %v8578
    %8644 = vmatprep.subr.bf16.mxu0 0
    %8645 = vmatpush1.bf16.msra.mxu0 %v8587
    %8646 = vmatprep.subr.bf16.mxu0 0
    %8647 = vmatpush1.bf16.msra.mxu0 %v8586
    %8648 = vmatprep.subr.bf16.mxu0 0
    %8649 = vmatpush1.bf16.msra.mxu0 %v8585
    %8650 = vmatprep.subr.bf16.mxu0 0
    %8651 = vmatpush1.bf16.msra.mxu0 %v8584
    %8652 = vmatprep.subr.bf16.mxu0 0
    %8653 = vmatpush1.bf16.msra.mxu0 %v8583
    %8654 = vmatprep.subr.bf16.mxu0 0
    %8655 = vmatpush1.bf16.msra.mxu0 %v8582
    %8656 = vmatprep.subr.bf16.mxu0 0
    %8657 = vmatpush1.bf16.msra.mxu0 %v8581
    %8658 = vmatprep.subr.bf16.mxu0 0
    %8659 = vmatpush1.bf16.msra.mxu0 %v8580
    %8660 = vmatprep.subr.bf16.mxu0 0
    %8661 = vmatpush2.bf16.msra.mxu0 %v8595
    %8662 = vmatprep.subr.bf16.mxu0 0
    %8663 = vmatpush2.bf16.msra.mxu0 %v8594
    %8664 = vmatprep.subr.bf16.mxu0 0
    %8665 = vmatpush2.bf16.msra.mxu0 %v8593
    %8666 = vmatprep.subr.bf16.mxu0 0
    %8667 = vmatpush2.bf16.msra.mxu0 %v8592
    %8668 = vmatprep.subr.bf16.mxu0 0
    %8669 = vmatpush2.bf16.msra.mxu0 %v8591
    %8670 = vmatprep.subr.bf16.mxu0 0
    %8671 = vmatpush2.bf16.msra.mxu0 %v8590
    %8672 = vmatprep.subr.bf16.mxu0 0
    %8673 = vmatpush2.bf16.msra.mxu0 %v8589
    %8674 = vmatprep.subr.bf16.mxu0 0
    %8675 = vmatpush2.bf16.msra.mxu0 %v8588
    %8676 = vmatprep.mubr.bf16.mxu0 %v2392
    %8677 = vmatmul.mubr.bf16.gmra.mxu0 %v2391
    %v8678 = vpop.f32.mrf.mxu0
    %v8679 = vadd.f32 %v8447, %v8678
    %v8680 = vpop.f32.mrf.mxu0
    %v8681 = vpop.f32.mrf.mxu0
    %v8682 = vpop.f32.mrf.mxu0
    %8683 = vdwg.mxu0
    %8684 = vmatprep.subr.bf16.mxu0 0
    %8685 = vmatpush1.bf16.msra.mxu0 %v8603
    %8686 = vmatprep.subr.bf16.mxu0 0
    %8687 = vmatpush1.bf16.msra.mxu0 %v8602
    %8688 = vmatprep.subr.bf16.mxu0 0
    %8689 = vmatpush1.bf16.msra.mxu0 %v8601
    %8690 = vmatprep.subr.bf16.mxu0 0
    %8691 = vmatpush1.bf16.msra.mxu0 %v8600
    %8692 = vmatprep.subr.bf16.mxu0 0
    %8693 = vmatpush1.bf16.msra.mxu0 %v8599
    %8694 = vmatprep.subr.bf16.mxu0 0
    %8695 = vmatpush1.bf16.msra.mxu0 %v8598
    %8696 = vmatprep.subr.bf16.mxu0 0
    %8697 = vmatpush1.bf16.msra.mxu0 %v8597
    %8698 = vmatprep.subr.bf16.mxu0 0
    %8699 = vmatpush1.bf16.msra.mxu0 %v8596
    %8700 = vmatprep.subr.bf16.mxu0 0
    %8701 = vmatpush2.bf16.msra.mxu0 %v8611
    %8702 = vmatprep.subr.bf16.mxu0 0
    %8703 = vmatpush2.bf16.msra.mxu0 %v8610
    %8704 = vmatprep.subr.bf16.mxu0 0
    %8705 = vmatpush2.bf16.msra.mxu0 %v8609
    %8706 = vmatprep.subr.bf16.mxu0 0
    %8707 = vmatpush2.bf16.msra.mxu0 %v8608
    %8708 = vmatprep.subr.bf16.mxu0 0
    %8709 = vmatpush2.bf16.msra.mxu0 %v8607
    %8710 = vmatprep.subr.bf16.mxu0 0
    %8711 = vmatpush2.bf16.msra.mxu0 %v8606
    %8712 = vmatprep.subr.bf16.mxu0 0
    %8713 = vmatpush2.bf16.msra.mxu0 %v8605
    %8714 = vmatprep.subr.bf16.mxu0 0
    %8715 = vmatpush2.bf16.msra.mxu0 %v8604
    %8716 = vmatprep.mubr.bf16.mxu0 %v2394
    %8717 = vmatmul.mubr.bf16.gmra.mxu0 %v2393
    %v8718 = vpop.f32.mrf.mxu0
    %v8719 = vadd.f32 %v8679, %v8718
    %v8720 = vpop.f32.mrf.mxu0
    %v8721 = vpop.f32.mrf.mxu0
    %v8722 = vpop.f32.mrf.mxu0
    %8723 = vdwg.mxu0
    %v8724 = vld [vmem:[#allocation2 + $0x4e8] sm:$0xf]
    %v8725 = vld [vmem:[#allocation2 + $0x4ec] sm:$0xf]
    %v8726 = vld [vmem:[#allocation2 + $0x4f0] sm:$0xf]
    %v8727 = vld [vmem:[#allocation2 + $0x4f4] sm:$0xf]
    %v8728 = vld [vmem:[#allocation2 + $0x4f8] sm:$0xf]
    %v8729 = vld [vmem:[#allocation2 + $0x4fc] sm:$0xf]
    %v8730 = vld [vmem:[#allocation2 + $0x500] sm:$0xf]
    %v8731 = vld [vmem:[#allocation2 + $0x504] sm:$0xf]
    %v8732 = vld [vmem:[#allocation2 + $0x508] sm:$0xf]
    %v8733 = vld [vmem:[#allocation2 + $0x50c] sm:$0xf]
    %v8734 = vld [vmem:[#allocation2 + $0x510] sm:$0xf]
    %v8735 = vld [vmem:[#allocation2 + $0x514] sm:$0xf]
    %v8736 = vld [vmem:[#allocation2 + $0x518] sm:$0xf]
    %v8737 = vld [vmem:[#allocation2 + $0x51c] sm:$0xf]
    %v8738 = vld [vmem:[#allocation2 + $0x520] sm:$0xf]
    %v8739 = vld [vmem:[#allocation2 + $0x524] sm:$0xf]
    %v8740 = vpack.c.bf16 %v8216, %v8216
    %v8757 = vunpack.c.l.b16 %v8724
    %v8758 = vunpack.c.l.b16 %v8725
    %v8759 = vunpack.c.l.b16 %v8726
    %v8760 = vunpack.c.l.b16 %v8727
    %v8761 = vunpack.c.l.b16 %v8728
    %v8762 = vunpack.c.l.b16 %v8729
    %v8763 = vunpack.c.l.b16 %v8730
    %v8764 = vunpack.c.l.b16 %v8731
    %v8765 = vunpack.c.l.b16 %v8732
    %v8766 = vunpack.c.l.b16 %v8733
    %v8767 = vunpack.c.l.b16 %v8734
    %v8768 = vunpack.c.l.b16 %v8735
    %v8769 = vunpack.c.l.b16 %v8736
    %v8770 = vunpack.c.l.b16 %v8737
    %v8771 = vunpack.c.l.b16 %v8738
    %v8772 = vunpack.c.l.b16 %v8739
    %v8773 = vpack.c.b16 %v8758, %v8757
    %v8774 = vpack.c.b16 %v8760, %v8759
    %v8775 = vpack.c.b16 %v8762, %v8761
    %v8776 = vpack.c.b16 %v8764, %v8763
    %v8777 = vpack.c.b16 %v8766, %v8765
    %v8778 = vpack.c.b16 %v8768, %v8767
    %v8779 = vpack.c.b16 %v8770, %v8769
    %v8780 = vpack.c.b16 %v8772, %v8771
    %8789 = vmatprep.subr.bf16.mxu0 0
    %8790 = vmatpush1.bf16.msra.mxu0 %v8780
    %8791 = vmatprep.subr.bf16.mxu0 0
    %8792 = vmatpush1.bf16.msra.mxu0 %v8779
    %8793 = vmatprep.subr.bf16.mxu0 0
    %8794 = vmatpush1.bf16.msra.mxu0 %v8778
    %8795 = vmatprep.subr.bf16.mxu0 0
    %8796 = vmatpush1.bf16.msra.mxu0 %v8777
    %8797 = vmatprep.subr.bf16.mxu0 0
    %8798 = vmatpush1.bf16.msra.mxu0 %v8776
    %8799 = vmatprep.subr.bf16.mxu0 0
    %8800 = vmatpush1.bf16.msra.mxu0 %v8775
    %8801 = vmatprep.subr.bf16.mxu0 0
    %8802 = vmatpush1.bf16.msra.mxu0 %v8774
    %8803 = vmatprep.subr.bf16.mxu0 0
    %8804 = vmatpush1.bf16.msra.mxu0 %v8773
    %8805 = vmatprep.subr.bf16.mxu0 0
    %8806 = vmatpush2.bf16.msra.mxu0 0
    %8807 = vmatprep.subr.bf16.mxu0 0
    %8808 = vmatpush2.bf16.msra.mxu0 0
    %8809 = vmatprep.subr.bf16.mxu0 0
    %8810 = vmatpush2.bf16.msra.mxu0 0
    %8811 = vmatprep.subr.bf16.mxu0 0
    %8812 = vmatpush2.bf16.msra.mxu0 0
    %8813 = vmatprep.subr.bf16.mxu0 0
    %8814 = vmatpush2.bf16.msra.mxu0 0
    %8815 = vmatprep.subr.bf16.mxu0 0
    %8816 = vmatpush2.bf16.msra.mxu0 0
    %8817 = vmatprep.subr.bf16.mxu0 0
    %8818 = vmatpush2.bf16.msra.mxu0 0
    %8819 = vmatprep.subr.bf16.mxu0 0
    %8820 = vmatpush2.bf16.msra.mxu0 0
    %8821 = vmatprep.mubr.bf16.mxu0 0
    %8822 = vmatmul.mubr.bf16.gmra.mxu0 %v8740
    %v8823 = vpop.f32.mrf.mxu0
    %v8824 = vadd.f32 0.0, %v8823
    %v8825 = vpop.f32.mrf.mxu0
    %v8826 = vpop.f32.mrf.mxu0
    %v8827 = vpop.f32.mrf.mxu0
    %8828 = vdwg.mxu0
    %v8829 = vadd.f32 %v8719, %v8824
    %v8830 = vld [vmem:[#allocation2 + $0x528] sm:$0xf]
    %v8831 = vld [vmem:[#allocation2 + $0x52c] sm:$0xf]
    %v8832 = vld [vmem:[#allocation2 + $0x530] sm:$0xf]
    %v8833 = vld [vmem:[#allocation2 + $0x534] sm:$0xf]
    %v8834 = vld [vmem:[#allocation2 + $0x538] sm:$0xf]
    %v8835 = vld [vmem:[#allocation2 + $0x53c] sm:$0xf]
    %v8836 = vld [vmem:[#allocation2 + $0x540] sm:$0xf]
    %v8837 = vld [vmem:[#allocation2 + $0x544] sm:$0xf]
    %v8838 = vld [vmem:[#allocation2 + $0x548] sm:$0xf]
    %v8839 = vld [vmem:[#allocation2 + $0x54c] sm:$0xf]
    %v8840 = vld [vmem:[#allocation2 + $0x550] sm:$0xf]
    %v8841 = vld [vmem:[#allocation2 + $0x554] sm:$0xf]
    %v8842 = vld [vmem:[#allocation2 + $0x558] sm:$0xf]
    %v8843 = vld [vmem:[#allocation2 + $0x55c] sm:$0xf]
    %v8844 = vld [vmem:[#allocation2 + $0x560] sm:$0xf]
    %v8845 = vld [vmem:[#allocation2 + $0x564] sm:$0xf]
    %v8846 = vpack.c.bf16 %v8217, %v8217
    %v8863 = vunpack.c.l.b16 %v8830
    %v8864 = vunpack.c.l.b16 %v8831
    %v8865 = vunpack.c.l.b16 %v8832
    %v8866 = vunpack.c.l.b16 %v8833
    %v8867 = vunpack.c.l.b16 %v8834
    %v8868 = vunpack.c.l.b16 %v8835
    %v8869 = vunpack.c.l.b16 %v8836
    %v8870 = vunpack.c.l.b16 %v8837
    %v8871 = vunpack.c.l.b16 %v8838
    %v8872 = vunpack.c.l.b16 %v8839
    %v8873 = vunpack.c.l.b16 %v8840
    %v8874 = vunpack.c.l.b16 %v8841
    %v8875 = vunpack.c.l.b16 %v8842
    %v8876 = vunpack.c.l.b16 %v8843
    %v8877 = vunpack.c.l.b16 %v8844
    %v8878 = vunpack.c.l.b16 %v8845
    %v8879 = vpack.c.b16 %v8864, %v8863
    %v8880 = vpack.c.b16 %v8866, %v8865
    %v8881 = vpack.c.b16 %v8868, %v8867
    %v8882 = vpack.c.b16 %v8870, %v8869
    %v8883 = vpack.c.b16 %v8872, %v8871
    %v8884 = vpack.c.b16 %v8874, %v8873
    %v8885 = vpack.c.b16 %v8876, %v8875
    %v8886 = vpack.c.b16 %v8878, %v8877
    %8895 = vmatprep.subr.bf16.mxu0 0
    %8896 = vmatpush1.bf16.msra.mxu0 %v8886
    %8897 = vmatprep.subr.bf16.mxu0 0
    %8898 = vmatpush1.bf16.msra.mxu0 %v8885
    %8899 = vmatprep.subr.bf16.mxu0 0
    %8900 = vmatpush1.bf16.msra.mxu0 %v8884
    %8901 = vmatprep.subr.bf16.mxu0 0
    %8902 = vmatpush1.bf16.msra.mxu0 %v8883
    %8903 = vmatprep.subr.bf16.mxu0 0
    %8904 = vmatpush1.bf16.msra.mxu0 %v8882
    %8905 = vmatprep.subr.bf16.mxu0 0
    %8906 = vmatpush1.bf16.msra.mxu0 %v8881
    %8907 = vmatprep.subr.bf16.mxu0 0
    %8908 = vmatpush1.bf16.msra.mxu0 %v8880
    %8909 = vmatprep.subr.bf16.mxu0 0
    %8910 = vmatpush1.bf16.msra.mxu0 %v8879
    %8911 = vmatprep.subr.bf16.mxu0 0
    %8912 = vmatpush2.bf16.msra.mxu0 0
    %8913 = vmatprep.subr.bf16.mxu0 0
    %8914 = vmatpush2.bf16.msra.mxu0 0
    %8915 = vmatprep.subr.bf16.mxu0 0
    %8916 = vmatpush2.bf16.msra.mxu0 0
    %8917 = vmatprep.subr.bf16.mxu0 0
    %8918 = vmatpush2.bf16.msra.mxu0 0
    %8919 = vmatprep.subr.bf16.mxu0 0
    %8920 = vmatpush2.bf16.msra.mxu0 0
    %8921 = vmatprep.subr.bf16.mxu0 0
    %8922 = vmatpush2.bf16.msra.mxu0 0
    %8923 = vmatprep.subr.bf16.mxu0 0
    %8924 = vmatpush2.bf16.msra.mxu0 0
    %8925 = vmatprep.subr.bf16.mxu0 0
    %8926 = vmatpush2.bf16.msra.mxu0 0
    %8927 = vmatprep.mubr.bf16.mxu0 0
    %8928 = vmatmul.mubr.bf16.gmra.mxu0 %v8846
    %v8929 = vpop.f32.mrf.mxu0
    %v8930 = vadd.f32 0.0, %v8929
    %v8931 = vpop.f32.mrf.mxu0
    %v8932 = vpop.f32.mrf.mxu0
    %v8933 = vpop.f32.mrf.mxu0
    %8934 = vdwg.mxu0
    %v8935 = vadd.f32 %v8829, %v8930
    %v8936 = vld [vmem:[#allocation8 + $0x61] ss:$0 sm:$0xff]
    %v8937 = vadd.f32 %v8935, %v8936
    %8939 = vset.pattern.permute.xlu0 0
    %8940 = vperm.xlu0 %8939, %v89
    %v8941 = vpop.permute.xlu0 %8940
    %v8943 = vmul.f32 %v8937, %v8941
    %8944 = vst [vmem:[#allocation10] sm:$0xff] %v8943
    // Predicated region
    $region50: #{forward.1} parent=1 // pred_check
      _
    $region51: #{forward.1} parent=1 // pred_check_branch
      %8946 = sbr.rel (0) target = $region53
    $region52: #{forward.1} parent=1 // pred_region
      %s8948 = ssub.s32 128, 128
      %8949 = vsyncadd [#allocation4], %s8948
      %s8951 = sshll.u32 [#allocation10], 4
      %s8952 = int_to_ptr.vmem [resolvable:$true] %s8951
      %8954 = dma.vmem_to_hbm [thread:$0]  %s8952, 128, %s8, [#allocation4]
    $region53: #{forward.1} parent=1 // pred_fallthru
      _
    // Predicated region
    $region54: #{forward.1} parent=1 // pred_check
      _
    $region55: #{forward.1} parent=1 // pred_check_branch
      %8956 = sbr.rel (0) target = $region57
    $region56: #{forward.1} parent=1 // pred_region
      %8957 = dma.done [#allocation4], 128
    $region57: #{forward.1} parent=1 // pred_fallthru
      _
    %8958 = vsyncpa [#allocation3], 1
    %8959 = vsyncpa [#allocation6], 1
    %8960 = vsyncpa [#allocation9], 1
    %8961 = vsyncpa [#allocation4], 1

</llo_original>
